<compile_context>
chip_gen: v7x
topology: tpu7x:2x2x1
jax: 0.10.0
libtpu: 0.0.40
codegen_flags: <defaults>
</compile_context>

<pallas_src>
import math
from functools import partial

import jax
import jax.numpy as jnp
from jax.experimental import pallas as pl
from jax.experimental.pallas import tpu as pltpu

EMBED_DIM = 32
NUM_HEADS = 4
HEAD_DIM = EMBED_DIM // NUM_HEADS
DIM_FF = 64          # FFN params exist in the module but never affect the output
LN_EPS = 1e-5

# Row indices inside the per-layer packed (NUM_BVEC, E) bias / LayerNorm slab.
(B_SA_BV, B_SA_BO, B_CA_BQ, B_CA_BO,
 B_G1, B_BE1, B_G2, B_BE2, B_G3, B_BE3) = range(10)
NUM_BVEC = 10
# Slot indices inside the per-layer stacked square-weight slab (4 per layer).
W_SA_V, W_SA_O, W_CA_Q, W_CA_O = range(4)
NUM_WSQ = 4


# ---------------------------------------------------------------------------
# In-kernel helpers (traced inside the Pallas kernel body)
# ---------------------------------------------------------------------------
def _layer_norm(x, gamma, beta):
    mu = jnp.mean(x, axis=-1, keepdims=True)
    var = jnp.mean((x - mu) ** 2, axis=-1, keepdims=True)
    return (x - mu) * jax.lax.rsqrt(var + LN_EPS) * gamma + beta


def _split_heads(x, n_batch, seq, lane_off=0):
    """(n_batch*seq, >= lane_off+E) row slab -> (H*n_batch, seq, D), head-major batch.

    4 full-sublane lane slices + layout-free leading-dim reshapes + one
    leading-axis concat (no per-(batch,head) sub-tile slicing).
    """
    parts = [
        x[:, lane_off + i * HEAD_DIM: lane_off + (i + 1) * HEAD_DIM]
        .reshape(n_batch, seq, HEAD_DIM)
        for i in range(NUM_HEADS)
    ]
    return jnp.concatenate(parts, axis=0)


def _merge_heads(x, n_batch, seq):
    """(H*n_batch, seq, D) -> (n_batch*seq, E): lane-concat the heads back."""
    parts = [
        x[i * n_batch:(i + 1) * n_batch].reshape(n_batch * seq, HEAD_DIM)
        for i in range(NUM_HEADS)
    ]
    return jnp.concatenate(parts, axis=1)


def _attention(qb, kb, vb):
    """Batched per-(head,batch) attention; qb already scaled by 1/sqrt(D)."""
    s = jnp.einsum("bqd,bkd->bqk", qb, kb, preferred_element_type=jnp.float32)
    s = s - jnp.max(s, axis=-1, keepdims=True)
    p = jnp.exp(s)
    inv = pl.reciprocal(jnp.sum(p, axis=-1, keepdims=True), approx=True)  # EUP slot
    return jnp.einsum("bqk,bkd->bqd", p * inv, vb,
                      preferred_element_type=jnp.float32)


# ---------------------------------------------------------------------------
# Pallas kernel: the WHOLE decoder stack, whole batch, single invocation
# ---------------------------------------------------------------------------
def _decoder_kernel(num_layers, n_batch, lq, lk,
                    tgt_ref, mem_ref, qpos_ref, pos_ref,
                    w_saqk_ref, w_sq_ref, w_cakv_ref, w_reid_ref,
                    b_saqk_ref, bvec_ref, b_cakv_ref, b_reid_ref,
                    out_ref):
    e = EMBED_DIM
    scale = 1.0 / math.sqrt(HEAD_DIM)

    tgt = tgt_ref[...]          # (N*Lq, E) batch-major rows
    mem = mem_ref[...]          # (N*Lk, E)
    qpos = qpos_ref[...]        # (N*Lq, E)
    pos = pos_ref[...]          # (N*Lk, E)

    # --- reid projection (layer 0 only in the reference forward) -----------
    tgt = (jnp.dot(tgt, w_reid_ref[...], preferred_element_type=jnp.float32)
           + b_reid_ref[...])

    # --- layer-invariant cross-attention K / V for ALL layers, one matmul --
    k_all = (jnp.dot(mem + pos, w_cakv_ref[0], preferred_element_type=jnp.float32)
             + b_cakv_ref[0:1, :])                               # (N*Lk, L*E)
    v_all = (jnp.dot(mem, w_cakv_ref[1], preferred_element_type=jnp.float32)
             + b_cakv_ref[1:2, :])                               # (N*Lk, L*E)

    # Static unroll over layers: activation stays in vregs/VMEM throughout.
    for layer in range(num_layers):
        def bvec(i, base=NUM_BVEC * layer):
            r = base + i
            return bvec_ref[r:r + 1, :]                          # (1, E)

        def wsq(slot, base=NUM_WSQ * layer):
            return w_sq_ref[base + slot]                         # (E, E)

        # ------------------------- self attention -------------------------
        qk_in = tgt + qpos
        qk = (jnp.dot(qk_in, w_saqk_ref[layer],                  # (N*Lq, 2E) = [Q|K]
                      preferred_element_type=jnp.float32)
              + b_saqk_ref[layer:layer + 1, :])
        v = (jnp.dot(tgt, wsq(W_SA_V), preferred_element_type=jnp.float32)
             + bvec(B_SA_BV))
        qb = _split_heads(qk, n_batch, lq, lane_off=0) * scale
        kb = _split_heads(qk, n_batch, lq, lane_off=e)
        vb = _split_heads(v, n_batch, lq)
        attn = _merge_heads(_attention(qb, kb, vb), n_batch, lq)
        sa_out = (jnp.dot(attn, wsq(W_SA_O), preferred_element_type=jnp.float32)
                  + bvec(B_SA_BO))
        tgt = _layer_norm(tgt + sa_out, bvec(B_G1), bvec(B_BE1))

        # ------------------------- cross attention ------------------------
        q_c = (jnp.dot(tgt + qpos, wsq(W_CA_Q), preferred_element_type=jnp.float32)
               + bvec(B_CA_BQ))
        qb_c = _split_heads(q_c, n_batch, lq) * scale
        kb_c = _split_heads(k_all, n_batch, lk, lane_off=layer * e)
        vb_c = _split_heads(v_all, n_batch, lk, lane_off=layer * e)
        attn_c = _merge_heads(_attention(qb_c, kb_c, vb_c), n_batch, lq)
        ca_out = (jnp.dot(attn_c, wsq(W_CA_O), preferred_element_type=jnp.float32)
                  + bvec(B_CA_BO))
        tgt = _layer_norm(tgt + ca_out, bvec(B_G2), bvec(B_BE2))

        # --------------------------- "FFN" block ---------------------------
        # Reference forward discards the FFN output (`tgt = tgt + dropout3(tgt)`),
        # so only the residual doubling survives; kept for LayerNorm-eps fidelity.
        tgt = _layer_norm(tgt + tgt, bvec(B_G3), bvec(B_BE3))

    out_ref[...] = tgt.astype(out_ref.dtype)


# ---------------------------------------------------------------------------
# Parameter packing: stack per-layer params along a leading layer axis
# ---------------------------------------------------------------------------
def _pack_params(layer_params):
    w_saqk = jnp.stack(                                          # (L, E, 2E)
        [jnp.concatenate([p["sa_wq"], p["sa_wk"]], axis=1) for p in layer_params])
    w_sq = jnp.concatenate(                                      # (4L, E, E)
        [jnp.stack([p["sa_wv"], p["sa_wo"], p["ca_wq"], p["ca_wo"]])
         for p in layer_params], axis=0)
    w_cakv = jnp.stack([                                         # (2, E, L*E)
        jnp.concatenate([p["ca_wk"] for p in layer_params], axis=1),
        jnp.concatenate([p["ca_wv"] for p in layer_params], axis=1),
    ])
    b_saqk = jnp.stack(                                          # (L, 2E)
        [jnp.concatenate([p["sa_bq"], p["sa_bk"]], axis=1)[0] for p in layer_params])
    bvec = jnp.concatenate(                                      # (10L, E)
        [jnp.stack([p["sa_bv"][0], p["sa_bo"][0], p["ca_bq"][0], p["ca_bo"][0],
                    p["g1"][0], p["be1"][0], p["g2"][0], p["be2"][0],
                    p["g3"][0], p["be3"][0]])
         for p in layer_params], axis=0)
    b_cakv = jnp.stack([                                         # (2, L*E)
        jnp.concatenate([p["ca_bk"][0] for p in layer_params]),
        jnp.concatenate([p["ca_bv"][0] for p in layer_params]),
    ])
    w_reid = layer_params[0]["w_reid"]                           # (E, E)  layer 0 only
    b_reid = layer_params[0]["b_reid"]                           # (1, E)
    return (w_saqk, w_sq, w_cakv, w_reid, b_saqk, bvec, b_cakv, b_reid)


# ---------------------------------------------------------------------------
# Wrapper: one pallas_call for the whole decoder stack
# ---------------------------------------------------------------------------
def transformer_decoder(layer_params, tgt, memory, query_pos, pos):
    """TransformerDecoder.forward with norm=None, return_intermediate=False.

    tgt/query_pos: (Lq, N, E);  memory/pos: (Lk, N, E).
    """
    lq, n, e = tgt.shape
    lk = memory.shape[0]
    num_layers = len(layer_params)

    def rows2d(x):      # (L, N, E) -> batch-major (N*L, E); done ONCE per call
        return jnp.transpose(x, (1, 0, 2)).reshape(-1, e)

    data = (rows2d(tgt), rows2d(memory), rows2d(query_pos), rows2d(pos))
    packed = _pack_params(layer_params)

    # NOTE: gridless on purpose — the whole problem is a few KB and fits one
    # TensorCore's VMEM on v5e/v6e/v7x.  For large batch on v7x, add a batch
    # grid axis with dimension_semantics=("parallel",) to use both TCs.
    out2d = pl.pallas_call(
        partial(_decoder_kernel, num_layers, n, lq, lk),
        out_shape=jax.ShapeDtypeStruct((n * lq, e), jnp.float32),
        in_specs=[pl.BlockSpec(memory_space=pltpu.MemorySpace.VMEM)]
        * (len(data) + len(packed)),
        out_specs=pl.BlockSpec(memory_space=pltpu.MemorySpace.VMEM),
    )(*data, *packed)

    return jnp.transpose(out2d.reshape(n, lq, e), (1, 0, 2))


# ---------------------------------------------------------------------------
# Deterministic synthetic parameters (torch Linear weights pre-transposed so
# both kernel and reference compute x @ W)
# ---------------------------------------------------------------------------
def init_params(key):
    keys = iter(jax.random.split(key, 32))

    def nrm(shape, scale=0.02):
        return scale * jax.random.normal(next(keys), shape, dtype=jnp.float32)

    p = {}
    p["w_reid"] = nrm((EMBED_DIM, EMBED_DIM))
    p["b_reid"] = nrm((1, EMBED_DIM))
    for pfx in ("sa", "ca"):
        for nm in ("wq", "wk", "wv", "wo"):
            p[f"{pfx}_{nm}"] = nrm((EMBED_DIM, EMBED_DIM))
        for nm in ("bq", "bk", "bv", "bo"):
            p[f"{pfx}_{nm}"] = nrm((1, EMBED_DIM))
    # FFN params mirror the torch module, but the reference forward discards the
    # FFN output, so they are dead weights and never shipped to the kernel.
    p["w1"] = nrm((EMBED_DIM, DIM_FF))
    p["b1"] = nrm((1, DIM_FF))
    p["w2"] = nrm((DIM_FF, EMBED_DIM))
    p["b2"] = nrm((1, EMBED_DIM))
    for i in (1, 2, 3):
        p[f"g{i}"] = jnp.ones((1, EMBED_DIM), jnp.float32)
        p[f"be{i}"] = jnp.zeros((1, EMBED_DIM), jnp.float32)
    return p


# ---------------------------------------------------------------------------
# Pure-JAX reference (mirrors the PyTorch forward, incl. discarded FFN)
# ---------------------------------------------------------------------------
def reference_layer(idx, tgt_in, memory, params, query_pos, pos):
    def linear(x, w, b):
        return jnp.einsum("lne,ef->lnf", x, w) + b[0]

    def mha(q_in, k_in, v_in, pfx):
        q = linear(q_in, params[f"{pfx}_wq"], params[f"{pfx}_bq"])
        k = linear(k_in, params[f"{pfx}_wk"], params[f"{pfx}_bk"])
        v = linear(v_in, params[f"{pfx}_wv"], params[f"{pfx}_bv"])
        lq, n, e = q.shape
        lk = k.shape[0]
        qh = q.reshape(lq, n, NUM_HEADS, HEAD_DIM)
        kh = k.reshape(lk, n, NUM_HEADS, HEAD_DIM)
        vh = v.reshape(lk, n, NUM_HEADS, HEAD_DIM)
        s = jnp.einsum("qnhd,knhd->nhqk", qh / math.sqrt(HEAD_DIM), kh)
        p = jax.nn.softmax(s, axis=-1)
        o = jnp.einsum("nhqk,knhd->qnhd", p, vh).reshape(lq, n, e)
        return linear(o, params[f"{pfx}_wo"], params[f"{pfx}_bo"])

    def ln(x, g, b):
        mu = jnp.mean(x, -1, keepdims=True)
        var = jnp.mean((x - mu) ** 2, -1, keepdims=True)
        return (x - mu) / jnp.sqrt(var + LN_EPS) * g[0] + b[0]

    tgt = (linear(tgt_in, params["w_reid"], params["b_reid"])
           if idx == 0 else tgt_in)
    qk = tgt + query_pos
    tgt = ln(tgt + mha(qk, qk, tgt, "sa"), params["g1"], params["be1"])
    tgt = ln(tgt + mha(tgt + query_pos, memory + pos, memory, "ca"),
             params["g2"], params["be2"])
    tgt = tgt + tgt   # FFN output discarded by the reference module
    return ln(tgt, params["g3"], params["be3"])


def reference_decoder(layer_params, tgt, memory, query_pos, pos):
    output = tgt
    for i, params in enumerate(layer_params):
        output = reference_layer(i, output, memory, params, query_pos, pos)
    return output


if __name__ == "__main__":
    key = jax.random.PRNGKey(0)
    kp, k1, k2, k3, k4 = jax.random.split(key, 5)
    N, Lq, Lk = 2, 8, 16
    NUM_LAYERS = 2   # exercises the layer-0 (reid) path and a subsequent layer

    layer_params = [init_params(k) for k in jax.random.split(kp, NUM_LAYERS)]
    tgt = jax.random.normal(k1, (Lq, N, EMBED_DIM), jnp.float32)
    memory = jax.random.normal(k2, (Lk, N, EMBED_DIM), jnp.float32)
    query_pos = jax.random.normal(k3, (Lq, N, EMBED_DIM), jnp.float32)
    pos = jax.random.normal(k4, (Lk, N, EMBED_DIM), jnp.float32)

    out = transformer_decoder(layer_params, tgt, memory, query_pos, pos)
    out = jax.block_until_ready(out)

    ref = reference_decoder(layer_params, tgt, memory, query_pos, pos)
    assert out.shape == (Lq, N, EMBED_DIM)
    max_err = float(jnp.max(jnp.abs(out - ref)))
    assert jnp.allclose(out, ref, atol=1e-3, rtol=1e-3), max_err
    print("KERNEL_OK")
</pallas_src>

<mosaic_0001>
module attributes {stable_mosaic.version = 11 : i64} {
  func.func @_decoder_kernel(%arg0: memref<16x32xf32, #tpu.memory_space<vmem>>, %arg1: memref<32x32xf32, #tpu.memory_space<vmem>>, %arg2: memref<16x32xf32, #tpu.memory_space<vmem>>, %arg3: memref<32x32xf32, #tpu.memory_space<vmem>>, %arg4: memref<2x32x64xf32, #tpu.memory_space<vmem>>, %arg5: memref<8x32x32xf32, #tpu.memory_space<vmem>>, %arg6: memref<2x32x64xf32, #tpu.memory_space<vmem>>, %arg7: memref<32x32xf32, #tpu.memory_space<vmem>>, %arg8: memref<2x64xf32, #tpu.memory_space<vmem>>, %arg9: memref<20x32xf32, #tpu.memory_space<vmem>>, %arg10: memref<2x64xf32, #tpu.memory_space<vmem>>, %arg11: memref<1x32xf32, #tpu.memory_space<vmem>>, %arg12: memref<16x32xf32, #tpu.memory_space<vmem>>) attributes {dimension_semantics = [], scalar_prefetch = 0 : i64, scratch_operands = 0 : i64, tpu.core_type = #tpu.core_type<tc>} {
    %c0 = arith.constant 0 : index
    %c0_0 = arith.constant 0 : index
    %0 = vector.load %arg0[%c0, %c0_0] : memref<16x32xf32, #tpu.memory_space<vmem>>, vector<16x32xf32>
    %c0_1 = arith.constant 0 : index
    %c0_2 = arith.constant 0 : index
    %1 = vector.load %arg1[%c0_1, %c0_2] : memref<32x32xf32, #tpu.memory_space<vmem>>, vector<32x32xf32>
    %c0_3 = arith.constant 0 : index
    %c0_4 = arith.constant 0 : index
    %2 = vector.load %arg2[%c0_3, %c0_4] : memref<16x32xf32, #tpu.memory_space<vmem>>, vector<16x32xf32>
    %c0_5 = arith.constant 0 : index
    %c0_6 = arith.constant 0 : index
    %3 = vector.load %arg3[%c0_5, %c0_6] : memref<32x32xf32, #tpu.memory_space<vmem>>, vector<32x32xf32>
    %c0_7 = arith.constant 0 : index
    %c0_8 = arith.constant 0 : index
    %4 = vector.load %arg7[%c0_7, %c0_8] : memref<32x32xf32, #tpu.memory_space<vmem>>, vector<32x32xf32>
    %cst = arith.constant dense<0.000000e+00> : vector<16x32xf32>
    %5 = tpu.matmul %0, %4, %cst {dimension_numbers = #tpu.dot_dimension_numbers<[1], [0], [0], [1], [0, 0, 1, 1], [], []>} : vector<16x32xf32>, vector<32x32xf32>, vector<16x32xf32> -> vector<16x32xf32>
    %c0_9 = arith.constant 0 : index
    %c0_10 = arith.constant 0 : index
    %6 = vector.load %arg11[%c0_9, %c0_10] : memref<1x32xf32, #tpu.memory_space<vmem>>, vector<1x32xf32>
    %7 = vector.broadcast %6 : vector<1x32xf32> to vector<16x32xf32>
    %8 = arith.addf %5, %7 : vector<16x32xf32>
    %9 = arith.addf %1, %3 : vector<32x32xf32>
    %c0_11 = arith.constant 0 : index
    %c0_12 = arith.constant 0 : index
    %c0_13 = arith.constant 0 : index
    %10 = vector.load %arg6[%c0_11, %c0_12, %c0_13] : memref<2x32x64xf32, #tpu.memory_space<vmem>>, vector<1x32x64xf32>
    %11 = vector.shape_cast %10 : vector<1x32x64xf32> to vector<32x64xf32>
    %cst_14 = arith.constant dense<0.000000e+00> : vector<32x64xf32>
    %12 = tpu.matmul %9, %11, %cst_14 {dimension_numbers = #tpu.dot_dimension_numbers<[1], [0], [0], [1], [0, 0, 1, 1], [], []>} : vector<32x32xf32>, vector<32x64xf32>, vector<32x64xf32> -> vector<32x64xf32>
    %c0_15 = arith.constant 0 : index
    %c0_16 = arith.constant 0 : index
    %13 = vector.load %arg10[%c0_15, %c0_16] : memref<2x64xf32, #tpu.memory_space<vmem>>, vector<1x64xf32>
    %14 = vector.broadcast %13 : vector<1x64xf32> to vector<32x64xf32>
    %15 = arith.addf %12, %14 : vector<32x64xf32>
    %c1 = arith.constant 1 : index
    %c0_17 = arith.constant 0 : index
    %c0_18 = arith.constant 0 : index
    %16 = vector.load %arg6[%c1, %c0_17, %c0_18] : memref<2x32x64xf32, #tpu.memory_space<vmem>>, vector<1x32x64xf32>
    %17 = vector.shape_cast %16 : vector<1x32x64xf32> to vector<32x64xf32>
    %cst_19 = arith.constant dense<0.000000e+00> : vector<32x64xf32>
    %18 = tpu.matmul %1, %17, %cst_19 {dimension_numbers = #tpu.dot_dimension_numbers<[1], [0], [0], [1], [0, 0, 1, 1], [], []>} : vector<32x32xf32>, vector<32x64xf32>, vector<32x64xf32> -> vector<32x64xf32>
    %c1_20 = arith.constant 1 : index
    %c0_21 = arith.constant 0 : index
    %19 = vector.load %arg10[%c1_20, %c0_21] : memref<2x64xf32, #tpu.memory_space<vmem>>, vector<1x64xf32>
    %20 = vector.broadcast %19 : vector<1x64xf32> to vector<32x64xf32>
    %21 = arith.addf %18, %20 : vector<32x64xf32>
    %22 = arith.addf %8, %2 : vector<16x32xf32>
    %c0_22 = arith.constant 0 : index
    %c0_23 = arith.constant 0 : index
    %c0_24 = arith.constant 0 : index
    %23 = vector.load %arg4[%c0_22, %c0_23, %c0_24] : memref<2x32x64xf32, #tpu.memory_space<vmem>>, vector<1x32x64xf32>
    %24 = vector.shape_cast %23 : vector<1x32x64xf32> to vector<32x64xf32>
    %cst_25 = arith.constant dense<0.000000e+00> : vector<16x64xf32>
    %25 = tpu.matmul %22, %24, %cst_25 {dimension_numbers = #tpu.dot_dimension_numbers<[1], [0], [0], [1], [0, 0, 1, 1], [], []>} : vector<16x32xf32>, vector<32x64xf32>, vector<16x64xf32> -> vector<16x64xf32>
    %c0_26 = arith.constant 0 : index
    %c0_27 = arith.constant 0 : index
    %26 = vector.load %arg8[%c0_26, %c0_27] : memref<2x64xf32, #tpu.memory_space<vmem>>, vector<1x64xf32>
    %27 = vector.broadcast %26 : vector<1x64xf32> to vector<16x64xf32>
    %28 = arith.addf %25, %27 : vector<16x64xf32>
    %c0_28 = arith.constant 0 : index
    %c0_29 = arith.constant 0 : index
    %c0_30 = arith.constant 0 : index
    %29 = vector.load %arg5[%c0_28, %c0_29, %c0_30] : memref<8x32x32xf32, #tpu.memory_space<vmem>>, vector<1x32x32xf32>
    %30 = vector.shape_cast %29 : vector<1x32x32xf32> to vector<32x32xf32>
    %cst_31 = arith.constant dense<0.000000e+00> : vector<16x32xf32>
    %31 = tpu.matmul %8, %30, %cst_31 {dimension_numbers = #tpu.dot_dimension_numbers<[1], [0], [0], [1], [0, 0, 1, 1], [], []>} : vector<16x32xf32>, vector<32x32xf32>, vector<16x32xf32> -> vector<16x32xf32>
    %c0_32 = arith.constant 0 : index
    %c0_33 = arith.constant 0 : index
    %32 = vector.load %arg9[%c0_32, %c0_33] : memref<20x32xf32, #tpu.memory_space<vmem>>, vector<1x32xf32>
    %33 = vector.broadcast %32 : vector<1x32xf32> to vector<16x32xf32>
    %34 = arith.addf %31, %33 : vector<16x32xf32>
    %35 = vector.extract_strided_slice %28 {offsets = [0, 0], sizes = [16, 8], strides = [1, 1]} : vector<16x64xf32> to vector<16x8xf32>
    %36 = vector.shape_cast %35 : vector<16x8xf32> to vector<2x8x8xf32>
    %37 = vector.extract_strided_slice %28 {offsets = [0, 8], sizes = [16, 8], strides = [1, 1]} : vector<16x64xf32> to vector<16x8xf32>
    %38 = vector.shape_cast %37 : vector<16x8xf32> to vector<2x8x8xf32>
    %39 = vector.extract_strided_slice %28 {offsets = [0, 16], sizes = [16, 8], strides = [1, 1]} : vector<16x64xf32> to vector<16x8xf32>
    %40 = vector.shape_cast %39 : vector<16x8xf32> to vector<2x8x8xf32>
    %41 = vector.extract_strided_slice %28 {offsets = [0, 24], sizes = [16, 8], strides = [1, 1]} : vector<16x64xf32> to vector<16x8xf32>
    %42 = vector.shape_cast %41 : vector<16x8xf32> to vector<2x8x8xf32>
    %43 = tpu.concatenate %36, %38, %40, %42 in 0 : vector<2x8x8xf32>, vector<2x8x8xf32>, vector<2x8x8xf32>, vector<2x8x8xf32> -> vector<8x8x8xf32>
    %cst_34 = arith.constant 0.353553385 : f32
    %44 = vector.broadcast %cst_34 : f32 to vector<8x8x8xf32>
    %45 = arith.mulf %43, %44 : vector<8x8x8xf32>
    %46 = vector.extract_strided_slice %28 {offsets = [0, 32], sizes = [16, 8], strides = [1, 1]} : vector<16x64xf32> to vector<16x8xf32>
    %47 = vector.shape_cast %46 : vector<16x8xf32> to vector<2x8x8xf32>
    %48 = vector.extract_strided_slice %28 {offsets = [0, 40], sizes = [16, 8], strides = [1, 1]} : vector<16x64xf32> to vector<16x8xf32>
    %49 = vector.shape_cast %48 : vector<16x8xf32> to vector<2x8x8xf32>
    %50 = vector.extract_strided_slice %28 {offsets = [0, 48], sizes = [16, 8], strides = [1, 1]} : vector<16x64xf32> to vector<16x8xf32>
    %51 = vector.shape_cast %50 : vector<16x8xf32> to vector<2x8x8xf32>
    %52 = vector.extract_strided_slice %28 {offsets = [0, 56], sizes = [16, 8], strides = [1, 1]} : vector<16x64xf32> to vector<16x8xf32>
    %53 = vector.shape_cast %52 : vector<16x8xf32> to vector<2x8x8xf32>
    %54 = tpu.concatenate %47, %49, %51, %53 in 0 : vector<2x8x8xf32>, vector<2x8x8xf32>, vector<2x8x8xf32>, vector<2x8x8xf32> -> vector<8x8x8xf32>
    %55 = vector.extract_strided_slice %34 {offsets = [0, 0], sizes = [16, 8], strides = [1, 1]} : vector<16x32xf32> to vector<16x8xf32>
    %56 = vector.shape_cast %55 : vector<16x8xf32> to vector<2x8x8xf32>
    %57 = vector.extract_strided_slice %34 {offsets = [0, 8], sizes = [16, 8], strides = [1, 1]} : vector<16x32xf32> to vector<16x8xf32>
    %58 = vector.shape_cast %57 : vector<16x8xf32> to vector<2x8x8xf32>
    %59 = vector.extract_strided_slice %34 {offsets = [0, 16], sizes = [16, 8], strides = [1, 1]} : vector<16x32xf32> to vector<16x8xf32>
    %60 = vector.shape_cast %59 : vector<16x8xf32> to vector<2x8x8xf32>
    %61 = vector.extract_strided_slice %34 {offsets = [0, 24], sizes = [16, 8], strides = [1, 1]} : vector<16x32xf32> to vector<16x8xf32>
    %62 = vector.shape_cast %61 : vector<16x8xf32> to vector<2x8x8xf32>
    %63 = tpu.concatenate %56, %58, %60, %62 in 0 : vector<2x8x8xf32>, vector<2x8x8xf32>, vector<2x8x8xf32>, vector<2x8x8xf32> -> vector<8x8x8xf32>
    "tpu.trace_start"() <{level = 10 : i32, message = "bqd,bkd->bqk"}> : () -> ()
    %cst_35 = arith.constant dense<0.000000e+00> : vector<8x8x8xf32>
    %64 = tpu.matmul %45, %54, %cst_35 {dimension_numbers = #tpu.dot_dimension_numbers<[2], [2], [1], [1], [0, 0, 0, 1, 1, 1], [0], [0]>} : vector<8x8x8xf32>, vector<8x8x8xf32>, vector<8x8x8xf32> -> vector<8x8x8xf32>
    "tpu.trace_stop"() : () -> ()
    %cst_36 = arith.constant dense<0xFF800000> : vector<8x8xf32>
    %65 = vector.multi_reduction <maximumf>, %64, %cst_36 [2] : vector<8x8x8xf32> to vector<8x8xf32>
    %66 = vector.shape_cast %65 : vector<8x8xf32> to vector<8x8x1xf32>
    %67 = vector.broadcast %66 : vector<8x8x1xf32> to vector<8x8x8xf32>
    %68 = arith.subf %64, %67 : vector<8x8x8xf32>
    %69 = math.exp %68 : vector<8x8x8xf32>
    %cst_37 = arith.constant dense<0.000000e+00> : vector<8x8xf32>
    %70 = vector.multi_reduction <add>, %69, %cst_37 [2] : vector<8x8x8xf32> to vector<8x8xf32>
    %71 = vector.shape_cast %70 : vector<8x8xf32> to vector<8x8x1xf32>
    %72 = tpu.reciprocal %71 {approx = true} : vector<8x8x1xf32> -> vector<8x8x1xf32>
    %73 = vector.broadcast %72 : vector<8x8x1xf32> to vector<8x8x8xf32>
    %74 = arith.mulf %69, %73 : vector<8x8x8xf32>
    "tpu.trace_start"() <{level = 10 : i32, message = "bqk,bkd->bqd"}> : () -> ()
    %cst_38 = arith.constant dense<0.000000e+00> : vector<8x8x8xf32>
    %75 = tpu.matmul %74, %63, %cst_38 {dimension_numbers = #tpu.dot_dimension_numbers<[2], [1], [1], [2], [0, 0, 0, 1, 1, 2], [0], [0]>} : vector<8x8x8xf32>, vector<8x8x8xf32>, vector<8x8x8xf32> -> vector<8x8x8xf32>
    "tpu.trace_stop"() : () -> ()
    %76 = vector.extract_strided_slice %75 {offsets = [0, 0, 0], sizes = [2, 8, 8], strides = [1, 1, 1]} : vector<8x8x8xf32> to vector<2x8x8xf32>
    %77 = vector.shape_cast %76 : vector<2x8x8xf32> to vector<16x8xf32>
    %78 = vector.extract_strided_slice %75 {offsets = [2, 0, 0], sizes = [2, 8, 8], strides = [1, 1, 1]} : vector<8x8x8xf32> to vector<2x8x8xf32>
    %79 = vector.shape_cast %78 : vector<2x8x8xf32> to vector<16x8xf32>
    %80 = vector.extract_strided_slice %75 {offsets = [4, 0, 0], sizes = [2, 8, 8], strides = [1, 1, 1]} : vector<8x8x8xf32> to vector<2x8x8xf32>
    %81 = vector.shape_cast %80 : vector<2x8x8xf32> to vector<16x8xf32>
    %82 = vector.extract_strided_slice %75 {offsets = [6, 0, 0], sizes = [2, 8, 8], strides = [1, 1, 1]} : vector<8x8x8xf32> to vector<2x8x8xf32>
    %83 = vector.shape_cast %82 : vector<2x8x8xf32> to vector<16x8xf32>
    %84 = tpu.concatenate %77, %79, %81, %83 in 1 : vector<16x8xf32>, vector<16x8xf32>, vector<16x8xf32>, vector<16x8xf32> -> vector<16x32xf32>
    %c1_39 = arith.constant 1 : index
    %c0_40 = arith.constant 0 : index
    %c0_41 = arith.constant 0 : index
    %85 = vector.load %arg5[%c1_39, %c0_40, %c0_41] : memref<8x32x32xf32, #tpu.memory_space<vmem>>, vector<1x32x32xf32>
    %86 = vector.shape_cast %85 : vector<1x32x32xf32> to vector<32x32xf32>
    %cst_42 = arith.constant dense<0.000000e+00> : vector<16x32xf32>
    %87 = tpu.matmul %84, %86, %cst_42 {dimension_numbers = #tpu.dot_dimension_numbers<[1], [0], [0], [1], [0, 0, 1, 1], [], []>} : vector<16x32xf32>, vector<32x32xf32>, vector<16x32xf32> -> vector<16x32xf32>
    %c1_43 = arith.constant 1 : index
    %c0_44 = arith.constant 0 : index
    %88 = vector.load %arg9[%c1_43, %c0_44] : memref<20x32xf32, #tpu.memory_space<vmem>>, vector<1x32xf32>
    %89 = vector.broadcast %88 : vector<1x32xf32> to vector<16x32xf32>
    %90 = arith.addf %87, %89 : vector<16x32xf32>
    %91 = arith.addf %8, %90 : vector<16x32xf32>
    %c4 = arith.constant 4 : index
    %c0_45 = arith.constant 0 : index
    %92 = vector.load %arg9[%c4, %c0_45] : memref<20x32xf32, #tpu.memory_space<vmem>>, vector<1x32xf32>
    %c5 = arith.constant 5 : index
    %c0_46 = arith.constant 0 : index
    %93 = vector.load %arg9[%c5, %c0_46] : memref<20x32xf32, #tpu.memory_space<vmem>>, vector<1x32xf32>
    %cst_47 = arith.constant dense<0.000000e+00> : vector<16xf32>
    %94 = vector.multi_reduction <add>, %91, %cst_47 [1] : vector<16x32xf32> to vector<16xf32>
    %95 = vector.shape_cast %94 : vector<16xf32> to vector<16x1xf32>
    %cst_48 = arith.constant 3.200000e+01 : f32
    %96 = vector.broadcast %cst_48 : f32 to vector<16x1xf32>
    %97 = arith.divf %95, %96 : vector<16x1xf32>
    %98 = vector.broadcast %97 : vector<16x1xf32> to vector<16x32xf32>
    %99 = arith.subf %91, %98 : vector<16x32xf32>
    %100 = arith.mulf %99, %99 : vector<16x32xf32>
    %cst_49 = arith.constant dense<0.000000e+00> : vector<16xf32>
    %101 = vector.multi_reduction <add>, %100, %cst_49 [1] : vector<16x32xf32> to vector<16xf32>
    %102 = vector.shape_cast %101 : vector<16xf32> to vector<16x1xf32>
    %cst_50 = arith.constant 3.200000e+01 : f32
    %103 = vector.broadcast %cst_50 : f32 to vector<16x1xf32>
    %104 = arith.divf %102, %103 : vector<16x1xf32>
    %105 = vector.broadcast %97 : vector<16x1xf32> to vector<16x32xf32>
    %106 = arith.subf %91, %105 : vector<16x32xf32>
    %cst_51 = arith.constant 9.99999974E-6 : f32
    %107 = vector.broadcast %cst_51 : f32 to vector<16x1xf32>
    %108 = arith.addf %104, %107 : vector<16x1xf32>
    %109 = math.rsqrt %108 : vector<16x1xf32>
    %110 = vector.broadcast %109 : vector<16x1xf32> to vector<16x32xf32>
    %111 = arith.mulf %106, %110 : vector<16x32xf32>
    %112 = vector.broadcast %92 : vector<1x32xf32> to vector<16x32xf32>
    %113 = arith.mulf %111, %112 : vector<16x32xf32>
    %114 = vector.broadcast %93 : vector<1x32xf32> to vector<16x32xf32>
    %115 = arith.addf %113, %114 : vector<16x32xf32>
    %116 = arith.addf %115, %2 : vector<16x32xf32>
    %c2 = arith.constant 2 : index
    %c0_52 = arith.constant 0 : index
    %c0_53 = arith.constant 0 : index
    %117 = vector.load %arg5[%c2, %c0_52, %c0_53] : memref<8x32x32xf32, #tpu.memory_space<vmem>>, vector<1x32x32xf32>
    %118 = vector.shape_cast %117 : vector<1x32x32xf32> to vector<32x32xf32>
    %cst_54 = arith.constant dense<0.000000e+00> : vector<16x32xf32>
    %119 = tpu.matmul %116, %118, %cst_54 {dimension_numbers = #tpu.dot_dimension_numbers<[1], [0], [0], [1], [0, 0, 1, 1], [], []>} : vector<16x32xf32>, vector<32x32xf32>, vector<16x32xf32> -> vector<16x32xf32>
    %c2_55 = arith.constant 2 : index
    %c0_56 = arith.constant 0 : index
    %120 = vector.load %arg9[%c2_55, %c0_56] : memref<20x32xf32, #tpu.memory_space<vmem>>, vector<1x32xf32>
    %121 = vector.broadcast %120 : vector<1x32xf32> to vector<16x32xf32>
    %122 = arith.addf %119, %121 : vector<16x32xf32>
    %123 = vector.extract_strided_slice %122 {offsets = [0, 0], sizes = [16, 8], strides = [1, 1]} : vector<16x32xf32> to vector<16x8xf32>
    %124 = vector.shape_cast %123 : vector<16x8xf32> to vector<2x8x8xf32>
    %125 = vector.extract_strided_slice %122 {offsets = [0, 8], sizes = [16, 8], strides = [1, 1]} : vector<16x32xf32> to vector<16x8xf32>
    %126 = vector.shape_cast %125 : vector<16x8xf32> to vector<2x8x8xf32>
    %127 = vector.extract_strided_slice %122 {offsets = [0, 16], sizes = [16, 8], strides = [1, 1]} : vector<16x32xf32> to vector<16x8xf32>
    %128 = vector.shape_cast %127 : vector<16x8xf32> to vector<2x8x8xf32>
    %129 = vector.extract_strided_slice %122 {offsets = [0, 24], sizes = [16, 8], strides = [1, 1]} : vector<16x32xf32> to vector<16x8xf32>
    %130 = vector.shape_cast %129 : vector<16x8xf32> to vector<2x8x8xf32>
    %131 = tpu.concatenate %124, %126, %128, %130 in 0 : vector<2x8x8xf32>, vector<2x8x8xf32>, vector<2x8x8xf32>, vector<2x8x8xf32> -> vector<8x8x8xf32>
    %cst_57 = arith.constant 0.353553385 : f32
    %132 = vector.broadcast %cst_57 : f32 to vector<8x8x8xf32>
    %133 = arith.mulf %131, %132 : vector<8x8x8xf32>
    %134 = vector.extract_strided_slice %15 {offsets = [0, 0], sizes = [32, 8], strides = [1, 1]} : vector<32x64xf32> to vector<32x8xf32>
    %135 = vector.shape_cast %134 : vector<32x8xf32> to vector<2x16x8xf32>
    %136 = vector.extract_strided_slice %15 {offsets = [0, 8], sizes = [32, 8], strides = [1, 1]} : vector<32x64xf32> to vector<32x8xf32>
    %137 = vector.shape_cast %136 : vector<32x8xf32> to vector<2x16x8xf32>
    %138 = vector.extract_strided_slice %15 {offsets = [0, 16], sizes = [32, 8], strides = [1, 1]} : vector<32x64xf32> to vector<32x8xf32>
    %139 = vector.shape_cast %138 : vector<32x8xf32> to vector<2x16x8xf32>
    %140 = vector.extract_strided_slice %15 {offsets = [0, 24], sizes = [32, 8], strides = [1, 1]} : vector<32x64xf32> to vector<32x8xf32>
    %141 = vector.shape_cast %140 : vector<32x8xf32> to vector<2x16x8xf32>
    %142 = tpu.concatenate %135, %137, %139, %141 in 0 : vector<2x16x8xf32>, vector<2x16x8xf32>, vector<2x16x8xf32>, vector<2x16x8xf32> -> vector<8x16x8xf32>
    %143 = vector.extract_strided_slice %21 {offsets = [0, 0], sizes = [32, 8], strides = [1, 1]} : vector<32x64xf32> to vector<32x8xf32>
    %144 = vector.shape_cast %143 : vector<32x8xf32> to vector<2x16x8xf32>
    %145 = vector.extract_strided_slice %21 {offsets = [0, 8], sizes = [32, 8], strides = [1, 1]} : vector<32x64xf32> to vector<32x8xf32>
    %146 = vector.shape_cast %145 : vector<32x8xf32> to vector<2x16x8xf32>
    %147 = vector.extract_strided_slice %21 {offsets = [0, 16], sizes = [32, 8], strides = [1, 1]} : vector<32x64xf32> to vector<32x8xf32>
    %148 = vector.shape_cast %147 : vector<32x8xf32> to vector<2x16x8xf32>
    %149 = vector.extract_strided_slice %21 {offsets = [0, 24], sizes = [32, 8], strides = [1, 1]} : vector<32x64xf32> to vector<32x8xf32>
    %150 = vector.shape_cast %149 : vector<32x8xf32> to vector<2x16x8xf32>
    %151 = tpu.concatenate %144, %146, %148, %150 in 0 : vector<2x16x8xf32>, vector<2x16x8xf32>, vector<2x16x8xf32>, vector<2x16x8xf32> -> vector<8x16x8xf32>
    "tpu.trace_start"() <{level = 10 : i32, message = "bqd,bkd->bqk"}> : () -> ()
    %cst_58 = arith.constant dense<0.000000e+00> : vector<8x8x16xf32>
    %152 = tpu.matmul %133, %142, %cst_58 {dimension_numbers = #tpu.dot_dimension_numbers<[2], [2], [1], [1], [0, 0, 0, 1, 1, 1], [0], [0]>} : vector<8x8x8xf32>, vector<8x16x8xf32>, vector<8x8x16xf32> -> vector<8x8x16xf32>
    "tpu.trace_stop"() : () -> ()
    %cst_59 = arith.constant dense<0xFF800000> : vector<8x8xf32>
    %153 = vector.multi_reduction <maximumf>, %152, %cst_59 [2] : vector<8x8x16xf32> to vector<8x8xf32>
    %154 = vector.shape_cast %153 : vector<8x8xf32> to vector<8x8x1xf32>
    %155 = vector.broadcast %154 : vector<8x8x1xf32> to vector<8x8x16xf32>
    %156 = arith.subf %152, %155 : vector<8x8x16xf32>
    %157 = math.exp %156 : vector<8x8x16xf32>
    %cst_60 = arith.constant dense<0.000000e+00> : vector<8x8xf32>
    %158 = vector.multi_reduction <add>, %157, %cst_60 [2] : vector<8x8x16xf32> to vector<8x8xf32>
    %159 = vector.shape_cast %158 : vector<8x8xf32> to vector<8x8x1xf32>
    %160 = tpu.reciprocal %159 {approx = true} : vector<8x8x1xf32> -> vector<8x8x1xf32>
    %161 = vector.broadcast %160 : vector<8x8x1xf32> to vector<8x8x16xf32>
    %162 = arith.mulf %157, %161 : vector<8x8x16xf32>
    "tpu.trace_start"() <{level = 10 : i32, message = "bqk,bkd->bqd"}> : () -> ()
    %cst_61 = arith.constant dense<0.000000e+00> : vector<8x8x8xf32>
    %163 = tpu.matmul %162, %151, %cst_61 {dimension_numbers = #tpu.dot_dimension_numbers<[2], [1], [1], [2], [0, 0, 0, 1, 1, 2], [0], [0]>} : vector<8x8x16xf32>, vector<8x16x8xf32>, vector<8x8x8xf32> -> vector<8x8x8xf32>
    "tpu.trace_stop"() : () -> ()
    %164 = vector.extract_strided_slice %163 {offsets = [0, 0, 0], sizes = [2, 8, 8], strides = [1, 1, 1]} : vector<8x8x8xf32> to vector<2x8x8xf32>
    %165 = vector.shape_cast %164 : vector<2x8x8xf32> to vector<16x8xf32>
    %166 = vector.extract_strided_slice %163 {offsets = [2, 0, 0], sizes = [2, 8, 8], strides = [1, 1, 1]} : vector<8x8x8xf32> to vector<2x8x8xf32>
    %167 = vector.shape_cast %166 : vector<2x8x8xf32> to vector<16x8xf32>
    %168 = vector.extract_strided_slice %163 {offsets = [4, 0, 0], sizes = [2, 8, 8], strides = [1, 1, 1]} : vector<8x8x8xf32> to vector<2x8x8xf32>
    %169 = vector.shape_cast %168 : vector<2x8x8xf32> to vector<16x8xf32>
    %170 = vector.extract_strided_slice %163 {offsets = [6, 0, 0], sizes = [2, 8, 8], strides = [1, 1, 1]} : vector<8x8x8xf32> to vector<2x8x8xf32>
    %171 = vector.shape_cast %170 : vector<2x8x8xf32> to vector<16x8xf32>
    %172 = tpu.concatenate %165, %167, %169, %171 in 1 : vector<16x8xf32>, vector<16x8xf32>, vector<16x8xf32>, vector<16x8xf32> -> vector<16x32xf32>
    %c3 = arith.constant 3 : index
    %c0_62 = arith.constant 0 : index
    %c0_63 = arith.constant 0 : index
    %173 = vector.load %arg5[%c3, %c0_62, %c0_63] : memref<8x32x32xf32, #tpu.memory_space<vmem>>, vector<1x32x32xf32>
    %174 = vector.shape_cast %173 : vector<1x32x32xf32> to vector<32x32xf32>
    %cst_64 = arith.constant dense<0.000000e+00> : vector<16x32xf32>
    %175 = tpu.matmul %172, %174, %cst_64 {dimension_numbers = #tpu.dot_dimension_numbers<[1], [0], [0], [1], [0, 0, 1, 1], [], []>} : vector<16x32xf32>, vector<32x32xf32>, vector<16x32xf32> -> vector<16x32xf32>
    %c3_65 = arith.constant 3 : index
    %c0_66 = arith.constant 0 : index
    %176 = vector.load %arg9[%c3_65, %c0_66] : memref<20x32xf32, #tpu.memory_space<vmem>>, vector<1x32xf32>
    %177 = vector.broadcast %176 : vector<1x32xf32> to vector<16x32xf32>
    %178 = arith.addf %175, %177 : vector<16x32xf32>
    %179 = arith.addf %115, %178 : vector<16x32xf32>
    %c6 = arith.constant 6 : index
    %c0_67 = arith.constant 0 : index
    %180 = vector.load %arg9[%c6, %c0_67] : memref<20x32xf32, #tpu.memory_space<vmem>>, vector<1x32xf32>
    %c7 = arith.constant 7 : index
    %c0_68 = arith.constant 0 : index
    %181 = vector.load %arg9[%c7, %c0_68] : memref<20x32xf32, #tpu.memory_space<vmem>>, vector<1x32xf32>
    %cst_69 = arith.constant dense<0.000000e+00> : vector<16xf32>
    %182 = vector.multi_reduction <add>, %179, %cst_69 [1] : vector<16x32xf32> to vector<16xf32>
    %183 = vector.shape_cast %182 : vector<16xf32> to vector<16x1xf32>
    %cst_70 = arith.constant 3.200000e+01 : f32
    %184 = vector.broadcast %cst_70 : f32 to vector<16x1xf32>
    %185 = arith.divf %183, %184 : vector<16x1xf32>
    %186 = vector.broadcast %185 : vector<16x1xf32> to vector<16x32xf32>
    %187 = arith.subf %179, %186 : vector<16x32xf32>
    %188 = arith.mulf %187, %187 : vector<16x32xf32>
    %cst_71 = arith.constant dense<0.000000e+00> : vector<16xf32>
    %189 = vector.multi_reduction <add>, %188, %cst_71 [1] : vector<16x32xf32> to vector<16xf32>
    %190 = vector.shape_cast %189 : vector<16xf32> to vector<16x1xf32>
    %cst_72 = arith.constant 3.200000e+01 : f32
    %191 = vector.broadcast %cst_72 : f32 to vector<16x1xf32>
    %192 = arith.divf %190, %191 : vector<16x1xf32>
    %193 = vector.broadcast %185 : vector<16x1xf32> to vector<16x32xf32>
    %194 = arith.subf %179, %193 : vector<16x32xf32>
    %cst_73 = arith.constant 9.99999974E-6 : f32
    %195 = vector.broadcast %cst_73 : f32 to vector<16x1xf32>
    %196 = arith.addf %192, %195 : vector<16x1xf32>
    %197 = math.rsqrt %196 : vector<16x1xf32>
    %198 = vector.broadcast %197 : vector<16x1xf32> to vector<16x32xf32>
    %199 = arith.mulf %194, %198 : vector<16x32xf32>
    %200 = vector.broadcast %180 : vector<1x32xf32> to vector<16x32xf32>
    %201 = arith.mulf %199, %200 : vector<16x32xf32>
    %202 = vector.broadcast %181 : vector<1x32xf32> to vector<16x32xf32>
    %203 = arith.addf %201, %202 : vector<16x32xf32>
    %204 = arith.addf %203, %203 : vector<16x32xf32>
    %c8 = arith.constant 8 : index
    %c0_74 = arith.constant 0 : index
    %205 = vector.load %arg9[%c8, %c0_74] : memref<20x32xf32, #tpu.memory_space<vmem>>, vector<1x32xf32>
    %c9 = arith.constant 9 : index
    %c0_75 = arith.constant 0 : index
    %206 = vector.load %arg9[%c9, %c0_75] : memref<20x32xf32, #tpu.memory_space<vmem>>, vector<1x32xf32>
    %cst_76 = arith.constant dense<0.000000e+00> : vector<16xf32>
    %207 = vector.multi_reduction <add>, %204, %cst_76 [1] : vector<16x32xf32> to vector<16xf32>
    %208 = vector.shape_cast %207 : vector<16xf32> to vector<16x1xf32>
    %cst_77 = arith.constant 3.200000e+01 : f32
    %209 = vector.broadcast %cst_77 : f32 to vector<16x1xf32>
    %210 = arith.divf %208, %209 : vector<16x1xf32>
    %211 = vector.broadcast %210 : vector<16x1xf32> to vector<16x32xf32>
    %212 = arith.subf %204, %211 : vector<16x32xf32>
    %213 = arith.mulf %212, %212 : vector<16x32xf32>
    %cst_78 = arith.constant dense<0.000000e+00> : vector<16xf32>
    %214 = vector.multi_reduction <add>, %213, %cst_78 [1] : vector<16x32xf32> to vector<16xf32>
    %215 = vector.shape_cast %214 : vector<16xf32> to vector<16x1xf32>
    %cst_79 = arith.constant 3.200000e+01 : f32
    %216 = vector.broadcast %cst_79 : f32 to vector<16x1xf32>
    %217 = arith.divf %215, %216 : vector<16x1xf32>
    %218 = vector.broadcast %210 : vector<16x1xf32> to vector<16x32xf32>
    %219 = arith.subf %204, %218 : vector<16x32xf32>
    %cst_80 = arith.constant 9.99999974E-6 : f32
    %220 = vector.broadcast %cst_80 : f32 to vector<16x1xf32>
    %221 = arith.addf %217, %220 : vector<16x1xf32>
    %222 = math.rsqrt %221 : vector<16x1xf32>
    %223 = vector.broadcast %222 : vector<16x1xf32> to vector<16x32xf32>
    %224 = arith.mulf %219, %223 : vector<16x32xf32>
    %225 = vector.broadcast %205 : vector<1x32xf32> to vector<16x32xf32>
    %226 = arith.mulf %224, %225 : vector<16x32xf32>
    %227 = vector.broadcast %206 : vector<1x32xf32> to vector<16x32xf32>
    %228 = arith.addf %226, %227 : vector<16x32xf32>
    %229 = arith.addf %228, %2 : vector<16x32xf32>
    %c1_81 = arith.constant 1 : index
    %c0_82 = arith.constant 0 : index
    %c0_83 = arith.constant 0 : index
    %230 = vector.load %arg4[%c1_81, %c0_82, %c0_83] : memref<2x32x64xf32, #tpu.memory_space<vmem>>, vector<1x32x64xf32>
    %231 = vector.shape_cast %230 : vector<1x32x64xf32> to vector<32x64xf32>
    %cst_84 = arith.constant dense<0.000000e+00> : vector<16x64xf32>
    %232 = tpu.matmul %229, %231, %cst_84 {dimension_numbers = #tpu.dot_dimension_numbers<[1], [0], [0], [1], [0, 0, 1, 1], [], []>} : vector<16x32xf32>, vector<32x64xf32>, vector<16x64xf32> -> vector<16x64xf32>
    %c1_85 = arith.constant 1 : index
    %c0_86 = arith.constant 0 : index
    %233 = vector.load %arg8[%c1_85, %c0_86] : memref<2x64xf32, #tpu.memory_space<vmem>>, vector<1x64xf32>
    %234 = vector.broadcast %233 : vector<1x64xf32> to vector<16x64xf32>
    %235 = arith.addf %232, %234 : vector<16x64xf32>
    %c4_87 = arith.constant 4 : index
    %c0_88 = arith.constant 0 : index
    %c0_89 = arith.constant 0 : index
    %236 = vector.load %arg5[%c4_87, %c0_88, %c0_89] : memref<8x32x32xf32, #tpu.memory_space<vmem>>, vector<1x32x32xf32>
    %237 = vector.shape_cast %236 : vector<1x32x32xf32> to vector<32x32xf32>
    %cst_90 = arith.constant dense<0.000000e+00> : vector<16x32xf32>
    %238 = tpu.matmul %228, %237, %cst_90 {dimension_numbers = #tpu.dot_dimension_numbers<[1], [0], [0], [1], [0, 0, 1, 1], [], []>} : vector<16x32xf32>, vector<32x32xf32>, vector<16x32xf32> -> vector<16x32xf32>
    %c10 = arith.constant 10 : index
    %c0_91 = arith.constant 0 : index
    %239 = vector.load %arg9[%c10, %c0_91] : memref<20x32xf32, #tpu.memory_space<vmem>>, vector<1x32xf32>
    %240 = vector.broadcast %239 : vector<1x32xf32> to vector<16x32xf32>
    %241 = arith.addf %238, %240 : vector<16x32xf32>
    %242 = vector.extract_strided_slice %235 {offsets = [0, 0], sizes = [16, 8], strides = [1, 1]} : vector<16x64xf32> to vector<16x8xf32>
    %243 = vector.shape_cast %242 : vector<16x8xf32> to vector<2x8x8xf32>
    %244 = vector.extract_strided_slice %235 {offsets = [0, 8], sizes = [16, 8], strides = [1, 1]} : vector<16x64xf32> to vector<16x8xf32>
    %245 = vector.shape_cast %244 : vector<16x8xf32> to vector<2x8x8xf32>
    %246 = vector.extract_strided_slice %235 {offsets = [0, 16], sizes = [16, 8], strides = [1, 1]} : vector<16x64xf32> to vector<16x8xf32>
    %247 = vector.shape_cast %246 : vector<16x8xf32> to vector<2x8x8xf32>
    %248 = vector.extract_strided_slice %235 {offsets = [0, 24], sizes = [16, 8], strides = [1, 1]} : vector<16x64xf32> to vector<16x8xf32>
    %249 = vector.shape_cast %248 : vector<16x8xf32> to vector<2x8x8xf32>
    %250 = tpu.concatenate %243, %245, %247, %249 in 0 : vector<2x8x8xf32>, vector<2x8x8xf32>, vector<2x8x8xf32>, vector<2x8x8xf32> -> vector<8x8x8xf32>
    %cst_92 = arith.constant 0.353553385 : f32
    %251 = vector.broadcast %cst_92 : f32 to vector<8x8x8xf32>
    %252 = arith.mulf %250, %251 : vector<8x8x8xf32>
    %253 = vector.extract_strided_slice %235 {offsets = [0, 32], sizes = [16, 8], strides = [1, 1]} : vector<16x64xf32> to vector<16x8xf32>
    %254 = vector.shape_cast %253 : vector<16x8xf32> to vector<2x8x8xf32>
    %255 = vector.extract_strided_slice %235 {offsets = [0, 40], sizes = [16, 8], strides = [1, 1]} : vector<16x64xf32> to vector<16x8xf32>
    %256 = vector.shape_cast %255 : vector<16x8xf32> to vector<2x8x8xf32>
    %257 = vector.extract_strided_slice %235 {offsets = [0, 48], sizes = [16, 8], strides = [1, 1]} : vector<16x64xf32> to vector<16x8xf32>
    %258 = vector.shape_cast %257 : vector<16x8xf32> to vector<2x8x8xf32>
    %259 = vector.extract_strided_slice %235 {offsets = [0, 56], sizes = [16, 8], strides = [1, 1]} : vector<16x64xf32> to vector<16x8xf32>
    %260 = vector.shape_cast %259 : vector<16x8xf32> to vector<2x8x8xf32>
    %261 = tpu.concatenate %254, %256, %258, %260 in 0 : vector<2x8x8xf32>, vector<2x8x8xf32>, vector<2x8x8xf32>, vector<2x8x8xf32> -> vector<8x8x8xf32>
    %262 = vector.extract_strided_slice %241 {offsets = [0, 0], sizes = [16, 8], strides = [1, 1]} : vector<16x32xf32> to vector<16x8xf32>
    %263 = vector.shape_cast %262 : vector<16x8xf32> to vector<2x8x8xf32>
    %264 = vector.extract_strided_slice %241 {offsets = [0, 8], sizes = [16, 8], strides = [1, 1]} : vector<16x32xf32> to vector<16x8xf32>
    %265 = vector.shape_cast %264 : vector<16x8xf32> to vector<2x8x8xf32>
    %266 = vector.extract_strided_slice %241 {offsets = [0, 16], sizes = [16, 8], strides = [1, 1]} : vector<16x32xf32> to vector<16x8xf32>
    %267 = vector.shape_cast %266 : vector<16x8xf32> to vector<2x8x8xf32>
    %268 = vector.extract_strided_slice %241 {offsets = [0, 24], sizes = [16, 8], strides = [1, 1]} : vector<16x32xf32> to vector<16x8xf32>
    %269 = vector.shape_cast %268 : vector<16x8xf32> to vector<2x8x8xf32>
    %270 = tpu.concatenate %263, %265, %267, %269 in 0 : vector<2x8x8xf32>, vector<2x8x8xf32>, vector<2x8x8xf32>, vector<2x8x8xf32> -> vector<8x8x8xf32>
    "tpu.trace_start"() <{level = 10 : i32, message = "bqd,bkd->bqk"}> : () -> ()
    %cst_93 = arith.constant dense<0.000000e+00> : vector<8x8x8xf32>
    %271 = tpu.matmul %252, %261, %cst_93 {dimension_numbers = #tpu.dot_dimension_numbers<[2], [2], [1], [1], [0, 0, 0, 1, 1, 1], [0], [0]>} : vector<8x8x8xf32>, vector<8x8x8xf32>, vector<8x8x8xf32> -> vector<8x8x8xf32>
    "tpu.trace_stop"() : () -> ()
    %cst_94 = arith.constant dense<0xFF800000> : vector<8x8xf32>
    %272 = vector.multi_reduction <maximumf>, %271, %cst_94 [2] : vector<8x8x8xf32> to vector<8x8xf32>
    %273 = vector.shape_cast %272 : vector<8x8xf32> to vector<8x8x1xf32>
    %274 = vector.broadcast %273 : vector<8x8x1xf32> to vector<8x8x8xf32>
    %275 = arith.subf %271, %274 : vector<8x8x8xf32>
    %276 = math.exp %275 : vector<8x8x8xf32>
    %cst_95 = arith.constant dense<0.000000e+00> : vector<8x8xf32>
    %277 = vector.multi_reduction <add>, %276, %cst_95 [2] : vector<8x8x8xf32> to vector<8x8xf32>
    %278 = vector.shape_cast %277 : vector<8x8xf32> to vector<8x8x1xf32>
    %279 = tpu.reciprocal %278 {approx = true} : vector<8x8x1xf32> -> vector<8x8x1xf32>
    %280 = vector.broadcast %279 : vector<8x8x1xf32> to vector<8x8x8xf32>
    %281 = arith.mulf %276, %280 : vector<8x8x8xf32>
    "tpu.trace_start"() <{level = 10 : i32, message = "bqk,bkd->bqd"}> : () -> ()
    %cst_96 = arith.constant dense<0.000000e+00> : vector<8x8x8xf32>
    %282 = tpu.matmul %281, %270, %cst_96 {dimension_numbers = #tpu.dot_dimension_numbers<[2], [1], [1], [2], [0, 0, 0, 1, 1, 2], [0], [0]>} : vector<8x8x8xf32>, vector<8x8x8xf32>, vector<8x8x8xf32> -> vector<8x8x8xf32>
    "tpu.trace_stop"() : () -> ()
    %283 = vector.extract_strided_slice %282 {offsets = [0, 0, 0], sizes = [2, 8, 8], strides = [1, 1, 1]} : vector<8x8x8xf32> to vector<2x8x8xf32>
    %284 = vector.shape_cast %283 : vector<2x8x8xf32> to vector<16x8xf32>
    %285 = vector.extract_strided_slice %282 {offsets = [2, 0, 0], sizes = [2, 8, 8], strides = [1, 1, 1]} : vector<8x8x8xf32> to vector<2x8x8xf32>
    %286 = vector.shape_cast %285 : vector<2x8x8xf32> to vector<16x8xf32>
    %287 = vector.extract_strided_slice %282 {offsets = [4, 0, 0], sizes = [2, 8, 8], strides = [1, 1, 1]} : vector<8x8x8xf32> to vector<2x8x8xf32>
    %288 = vector.shape_cast %287 : vector<2x8x8xf32> to vector<16x8xf32>
    %289 = vector.extract_strided_slice %282 {offsets = [6, 0, 0], sizes = [2, 8, 8], strides = [1, 1, 1]} : vector<8x8x8xf32> to vector<2x8x8xf32>
    %290 = vector.shape_cast %289 : vector<2x8x8xf32> to vector<16x8xf32>
    %291 = tpu.concatenate %284, %286, %288, %290 in 1 : vector<16x8xf32>, vector<16x8xf32>, vector<16x8xf32>, vector<16x8xf32> -> vector<16x32xf32>
    %c5_97 = arith.constant 5 : index
    %c0_98 = arith.constant 0 : index
    %c0_99 = arith.constant 0 : index
    %292 = vector.load %arg5[%c5_97, %c0_98, %c0_99] : memref<8x32x32xf32, #tpu.memory_space<vmem>>, vector<1x32x32xf32>
    %293 = vector.shape_cast %292 : vector<1x32x32xf32> to vector<32x32xf32>
    %cst_100 = arith.constant dense<0.000000e+00> : vector<16x32xf32>
    %294 = tpu.matmul %291, %293, %cst_100 {dimension_numbers = #tpu.dot_dimension_numbers<[1], [0], [0], [1], [0, 0, 1, 1], [], []>} : vector<16x32xf32>, vector<32x32xf32>, vector<16x32xf32> -> vector<16x32xf32>
    %c11 = arith.constant 11 : index
    %c0_101 = arith.constant 0 : index
    %295 = vector.load %arg9[%c11, %c0_101] : memref<20x32xf32, #tpu.memory_space<vmem>>, vector<1x32xf32>
    %296 = vector.broadcast %295 : vector<1x32xf32> to vector<16x32xf32>
    %297 = arith.addf %294, %296 : vector<16x32xf32>
    %298 = arith.addf %228, %297 : vector<16x32xf32>
    %c14 = arith.constant 14 : index
    %c0_102 = arith.constant 0 : index
    %299 = vector.load %arg9[%c14, %c0_102] : memref<20x32xf32, #tpu.memory_space<vmem>>, vector<1x32xf32>
    %c15 = arith.constant 15 : index
    %c0_103 = arith.constant 0 : index
    %300 = vector.load %arg9[%c15, %c0_103] : memref<20x32xf32, #tpu.memory_space<vmem>>, vector<1x32xf32>
    %cst_104 = arith.constant dense<0.000000e+00> : vector<16xf32>
    %301 = vector.multi_reduction <add>, %298, %cst_104 [1] : vector<16x32xf32> to vector<16xf32>
    %302 = vector.shape_cast %301 : vector<16xf32> to vector<16x1xf32>
    %cst_105 = arith.constant 3.200000e+01 : f32
    %303 = vector.broadcast %cst_105 : f32 to vector<16x1xf32>
    %304 = arith.divf %302, %303 : vector<16x1xf32>
    %305 = vector.broadcast %304 : vector<16x1xf32> to vector<16x32xf32>
    %306 = arith.subf %298, %305 : vector<16x32xf32>
    %307 = arith.mulf %306, %306 : vector<16x32xf32>
    %cst_106 = arith.constant dense<0.000000e+00> : vector<16xf32>
    %308 = vector.multi_reduction <add>, %307, %cst_106 [1] : vector<16x32xf32> to vector<16xf32>
    %309 = vector.shape_cast %308 : vector<16xf32> to vector<16x1xf32>
    %cst_107 = arith.constant 3.200000e+01 : f32
    %310 = vector.broadcast %cst_107 : f32 to vector<16x1xf32>
    %311 = arith.divf %309, %310 : vector<16x1xf32>
    %312 = vector.broadcast %304 : vector<16x1xf32> to vector<16x32xf32>
    %313 = arith.subf %298, %312 : vector<16x32xf32>
    %cst_108 = arith.constant 9.99999974E-6 : f32
    %314 = vector.broadcast %cst_108 : f32 to vector<16x1xf32>
    %315 = arith.addf %311, %314 : vector<16x1xf32>
    %316 = math.rsqrt %315 : vector<16x1xf32>
    %317 = vector.broadcast %316 : vector<16x1xf32> to vector<16x32xf32>
    %318 = arith.mulf %313, %317 : vector<16x32xf32>
    %319 = vector.broadcast %299 : vector<1x32xf32> to vector<16x32xf32>
    %320 = arith.mulf %318, %319 : vector<16x32xf32>
    %321 = vector.broadcast %300 : vector<1x32xf32> to vector<16x32xf32>
    %322 = arith.addf %320, %321 : vector<16x32xf32>
    %323 = arith.addf %322, %2 : vector<16x32xf32>
    %c6_109 = arith.constant 6 : index
    %c0_110 = arith.constant 0 : index
    %c0_111 = arith.constant 0 : index
    %324 = vector.load %arg5[%c6_109, %c0_110, %c0_111] : memref<8x32x32xf32, #tpu.memory_space<vmem>>, vector<1x32x32xf32>
    %325 = vector.shape_cast %324 : vector<1x32x32xf32> to vector<32x32xf32>
    %cst_112 = arith.constant dense<0.000000e+00> : vector<16x32xf32>
    %326 = tpu.matmul %323, %325, %cst_112 {dimension_numbers = #tpu.dot_dimension_numbers<[1], [0], [0], [1], [0, 0, 1, 1], [], []>} : vector<16x32xf32>, vector<32x32xf32>, vector<16x32xf32> -> vector<16x32xf32>
    %c12 = arith.constant 12 : index
    %c0_113 = arith.constant 0 : index
    %327 = vector.load %arg9[%c12, %c0_113] : memref<20x32xf32, #tpu.memory_space<vmem>>, vector<1x32xf32>
    %328 = vector.broadcast %327 : vector<1x32xf32> to vector<16x32xf32>
    %329 = arith.addf %326, %328 : vector<16x32xf32>
    %330 = vector.extract_strided_slice %329 {offsets = [0, 0], sizes = [16, 8], strides = [1, 1]} : vector<16x32xf32> to vector<16x8xf32>
    %331 = vector.shape_cast %330 : vector<16x8xf32> to vector<2x8x8xf32>
    %332 = vector.extract_strided_slice %329 {offsets = [0, 8], sizes = [16, 8], strides = [1, 1]} : vector<16x32xf32> to vector<16x8xf32>
    %333 = vector.shape_cast %332 : vector<16x8xf32> to vector<2x8x8xf32>
    %334 = vector.extract_strided_slice %329 {offsets = [0, 16], sizes = [16, 8], strides = [1, 1]} : vector<16x32xf32> to vector<16x8xf32>
    %335 = vector.shape_cast %334 : vector<16x8xf32> to vector<2x8x8xf32>
    %336 = vector.extract_strided_slice %329 {offsets = [0, 24], sizes = [16, 8], strides = [1, 1]} : vector<16x32xf32> to vector<16x8xf32>
    %337 = vector.shape_cast %336 : vector<16x8xf32> to vector<2x8x8xf32>
    %338 = tpu.concatenate %331, %333, %335, %337 in 0 : vector<2x8x8xf32>, vector<2x8x8xf32>, vector<2x8x8xf32>, vector<2x8x8xf32> -> vector<8x8x8xf32>
    %cst_114 = arith.constant 0.353553385 : f32
    %339 = vector.broadcast %cst_114 : f32 to vector<8x8x8xf32>
    %340 = arith.mulf %338, %339 : vector<8x8x8xf32>
    %341 = vector.extract_strided_slice %15 {offsets = [0, 32], sizes = [32, 8], strides = [1, 1]} : vector<32x64xf32> to vector<32x8xf32>
    %342 = vector.shape_cast %341 : vector<32x8xf32> to vector<2x16x8xf32>
    %343 = vector.extract_strided_slice %15 {offsets = [0, 40], sizes = [32, 8], strides = [1, 1]} : vector<32x64xf32> to vector<32x8xf32>
    %344 = vector.shape_cast %343 : vector<32x8xf32> to vector<2x16x8xf32>
    %345 = vector.extract_strided_slice %15 {offsets = [0, 48], sizes = [32, 8], strides = [1, 1]} : vector<32x64xf32> to vector<32x8xf32>
    %346 = vector.shape_cast %345 : vector<32x8xf32> to vector<2x16x8xf32>
    %347 = vector.extract_strided_slice %15 {offsets = [0, 56], sizes = [32, 8], strides = [1, 1]} : vector<32x64xf32> to vector<32x8xf32>
    %348 = vector.shape_cast %347 : vector<32x8xf32> to vector<2x16x8xf32>
    %349 = tpu.concatenate %342, %344, %346, %348 in 0 : vector<2x16x8xf32>, vector<2x16x8xf32>, vector<2x16x8xf32>, vector<2x16x8xf32> -> vector<8x16x8xf32>
    %350 = vector.extract_strided_slice %21 {offsets = [0, 32], sizes = [32, 8], strides = [1, 1]} : vector<32x64xf32> to vector<32x8xf32>
    %351 = vector.shape_cast %350 : vector<32x8xf32> to vector<2x16x8xf32>
    %352 = vector.extract_strided_slice %21 {offsets = [0, 40], sizes = [32, 8], strides = [1, 1]} : vector<32x64xf32> to vector<32x8xf32>
    %353 = vector.shape_cast %352 : vector<32x8xf32> to vector<2x16x8xf32>
    %354 = vector.extract_strided_slice %21 {offsets = [0, 48], sizes = [32, 8], strides = [1, 1]} : vector<32x64xf32> to vector<32x8xf32>
    %355 = vector.shape_cast %354 : vector<32x8xf32> to vector<2x16x8xf32>
    %356 = vector.extract_strided_slice %21 {offsets = [0, 56], sizes = [32, 8], strides = [1, 1]} : vector<32x64xf32> to vector<32x8xf32>
    %357 = vector.shape_cast %356 : vector<32x8xf32> to vector<2x16x8xf32>
    %358 = tpu.concatenate %351, %353, %355, %357 in 0 : vector<2x16x8xf32>, vector<2x16x8xf32>, vector<2x16x8xf32>, vector<2x16x8xf32> -> vector<8x16x8xf32>
    "tpu.trace_start"() <{level = 10 : i32, message = "bqd,bkd->bqk"}> : () -> ()
    %cst_115 = arith.constant dense<0.000000e+00> : vector<8x8x16xf32>
    %359 = tpu.matmul %340, %349, %cst_115 {dimension_numbers = #tpu.dot_dimension_numbers<[2], [2], [1], [1], [0, 0, 0, 1, 1, 1], [0], [0]>} : vector<8x8x8xf32>, vector<8x16x8xf32>, vector<8x8x16xf32> -> vector<8x8x16xf32>
    "tpu.trace_stop"() : () -> ()
    %cst_116 = arith.constant dense<0xFF800000> : vector<8x8xf32>
    %360 = vector.multi_reduction <maximumf>, %359, %cst_116 [2] : vector<8x8x16xf32> to vector<8x8xf32>
    %361 = vector.shape_cast %360 : vector<8x8xf32> to vector<8x8x1xf32>
    %362 = vector.broadcast %361 : vector<8x8x1xf32> to vector<8x8x16xf32>
    %363 = arith.subf %359, %362 : vector<8x8x16xf32>
    %364 = math.exp %363 : vector<8x8x16xf32>
    %cst_117 = arith.constant dense<0.000000e+00> : vector<8x8xf32>
    %365 = vector.multi_reduction <add>, %364, %cst_117 [2] : vector<8x8x16xf32> to vector<8x8xf32>
    %366 = vector.shape_cast %365 : vector<8x8xf32> to vector<8x8x1xf32>
    %367 = tpu.reciprocal %366 {approx = true} : vector<8x8x1xf32> -> vector<8x8x1xf32>
    %368 = vector.broadcast %367 : vector<8x8x1xf32> to vector<8x8x16xf32>
    %369 = arith.mulf %364, %368 : vector<8x8x16xf32>
    "tpu.trace_start"() <{level = 10 : i32, message = "bqk,bkd->bqd"}> : () -> ()
    %cst_118 = arith.constant dense<0.000000e+00> : vector<8x8x8xf32>
    %370 = tpu.matmul %369, %358, %cst_118 {dimension_numbers = #tpu.dot_dimension_numbers<[2], [1], [1], [2], [0, 0, 0, 1, 1, 2], [0], [0]>} : vector<8x8x16xf32>, vector<8x16x8xf32>, vector<8x8x8xf32> -> vector<8x8x8xf32>
    "tpu.trace_stop"() : () -> ()
    %371 = vector.extract_strided_slice %370 {offsets = [0, 0, 0], sizes = [2, 8, 8], strides = [1, 1, 1]} : vector<8x8x8xf32> to vector<2x8x8xf32>
    %372 = vector.shape_cast %371 : vector<2x8x8xf32> to vector<16x8xf32>
    %373 = vector.extract_strided_slice %370 {offsets = [2, 0, 0], sizes = [2, 8, 8], strides = [1, 1, 1]} : vector<8x8x8xf32> to vector<2x8x8xf32>
    %374 = vector.shape_cast %373 : vector<2x8x8xf32> to vector<16x8xf32>
    %375 = vector.extract_strided_slice %370 {offsets = [4, 0, 0], sizes = [2, 8, 8], strides = [1, 1, 1]} : vector<8x8x8xf32> to vector<2x8x8xf32>
    %376 = vector.shape_cast %375 : vector<2x8x8xf32> to vector<16x8xf32>
    %377 = vector.extract_strided_slice %370 {offsets = [6, 0, 0], sizes = [2, 8, 8], strides = [1, 1, 1]} : vector<8x8x8xf32> to vector<2x8x8xf32>
    %378 = vector.shape_cast %377 : vector<2x8x8xf32> to vector<16x8xf32>
    %379 = tpu.concatenate %372, %374, %376, %378 in 1 : vector<16x8xf32>, vector<16x8xf32>, vector<16x8xf32>, vector<16x8xf32> -> vector<16x32xf32>
    %c7_119 = arith.constant 7 : index
    %c0_120 = arith.constant 0 : index
    %c0_121 = arith.constant 0 : index
    %380 = vector.load %arg5[%c7_119, %c0_120, %c0_121] : memref<8x32x32xf32, #tpu.memory_space<vmem>>, vector<1x32x32xf32>
    %381 = vector.shape_cast %380 : vector<1x32x32xf32> to vector<32x32xf32>
    %cst_122 = arith.constant dense<0.000000e+00> : vector<16x32xf32>
    %382 = tpu.matmul %379, %381, %cst_122 {dimension_numbers = #tpu.dot_dimension_numbers<[1], [0], [0], [1], [0, 0, 1, 1], [], []>} : vector<16x32xf32>, vector<32x32xf32>, vector<16x32xf32> -> vector<16x32xf32>
    %c13 = arith.constant 13 : index
    %c0_123 = arith.constant 0 : index
    %383 = vector.load %arg9[%c13, %c0_123] : memref<20x32xf32, #tpu.memory_space<vmem>>, vector<1x32xf32>
    %384 = vector.broadcast %383 : vector<1x32xf32> to vector<16x32xf32>
    %385 = arith.addf %382, %384 : vector<16x32xf32>
    %386 = arith.addf %322, %385 : vector<16x32xf32>
    %c16 = arith.constant 16 : index
    %c0_124 = arith.constant 0 : index
    %387 = vector.load %arg9[%c16, %c0_124] : memref<20x32xf32, #tpu.memory_space<vmem>>, vector<1x32xf32>
    %c17 = arith.constant 17 : index
    %c0_125 = arith.constant 0 : index
    %388 = vector.load %arg9[%c17, %c0_125] : memref<20x32xf32, #tpu.memory_space<vmem>>, vector<1x32xf32>
    %cst_126 = arith.constant dense<0.000000e+00> : vector<16xf32>
    %389 = vector.multi_reduction <add>, %386, %cst_126 [1] : vector<16x32xf32> to vector<16xf32>
    %390 = vector.shape_cast %389 : vector<16xf32> to vector<16x1xf32>
    %cst_127 = arith.constant 3.200000e+01 : f32
    %391 = vector.broadcast %cst_127 : f32 to vector<16x1xf32>
    %392 = arith.divf %390, %391 : vector<16x1xf32>
    %393 = vector.broadcast %392 : vector<16x1xf32> to vector<16x32xf32>
    %394 = arith.subf %386, %393 : vector<16x32xf32>
    %395 = arith.mulf %394, %394 : vector<16x32xf32>
    %cst_128 = arith.constant dense<0.000000e+00> : vector<16xf32>
    %396 = vector.multi_reduction <add>, %395, %cst_128 [1] : vector<16x32xf32> to vector<16xf32>
    %397 = vector.shape_cast %396 : vector<16xf32> to vector<16x1xf32>
    %cst_129 = arith.constant 3.200000e+01 : f32
    %398 = vector.broadcast %cst_129 : f32 to vector<16x1xf32>
    %399 = arith.divf %397, %398 : vector<16x1xf32>
    %400 = vector.broadcast %392 : vector<16x1xf32> to vector<16x32xf32>
    %401 = arith.subf %386, %400 : vector<16x32xf32>
    %cst_130 = arith.constant 9.99999974E-6 : f32
    %402 = vector.broadcast %cst_130 : f32 to vector<16x1xf32>
    %403 = arith.addf %399, %402 : vector<16x1xf32>
    %404 = math.rsqrt %403 : vector<16x1xf32>
    %405 = vector.broadcast %404 : vector<16x1xf32> to vector<16x32xf32>
    %406 = arith.mulf %401, %405 : vector<16x32xf32>
    %407 = vector.broadcast %387 : vector<1x32xf32> to vector<16x32xf32>
    %408 = arith.mulf %406, %407 : vector<16x32xf32>
    %409 = vector.broadcast %388 : vector<1x32xf32> to vector<16x32xf32>
    %410 = arith.addf %408, %409 : vector<16x32xf32>
    %411 = arith.addf %410, %410 : vector<16x32xf32>
    %c18 = arith.constant 18 : index
    %c0_131 = arith.constant 0 : index
    %412 = vector.load %arg9[%c18, %c0_131] : memref<20x32xf32, #tpu.memory_space<vmem>>, vector<1x32xf32>
    %c19 = arith.constant 19 : index
    %c0_132 = arith.constant 0 : index
    %413 = vector.load %arg9[%c19, %c0_132] : memref<20x32xf32, #tpu.memory_space<vmem>>, vector<1x32xf32>
    %cst_133 = arith.constant dense<0.000000e+00> : vector<16xf32>
    %414 = vector.multi_reduction <add>, %411, %cst_133 [1] : vector<16x32xf32> to vector<16xf32>
    %415 = vector.shape_cast %414 : vector<16xf32> to vector<16x1xf32>
    %cst_134 = arith.constant 3.200000e+01 : f32
    %416 = vector.broadcast %cst_134 : f32 to vector<16x1xf32>
    %417 = arith.divf %415, %416 : vector<16x1xf32>
    %418 = vector.broadcast %417 : vector<16x1xf32> to vector<16x32xf32>
    %419 = arith.subf %411, %418 : vector<16x32xf32>
    %420 = arith.mulf %419, %419 : vector<16x32xf32>
    %cst_135 = arith.constant dense<0.000000e+00> : vector<16xf32>
    %421 = vector.multi_reduction <add>, %420, %cst_135 [1] : vector<16x32xf32> to vector<16xf32>
    %422 = vector.shape_cast %421 : vector<16xf32> to vector<16x1xf32>
    %cst_136 = arith.constant 3.200000e+01 : f32
    %423 = vector.broadcast %cst_136 : f32 to vector<16x1xf32>
    %424 = arith.divf %422, %423 : vector<16x1xf32>
    %425 = vector.broadcast %417 : vector<16x1xf32> to vector<16x32xf32>
    %426 = arith.subf %411, %425 : vector<16x32xf32>
    %cst_137 = arith.constant 9.99999974E-6 : f32
    %427 = vector.broadcast %cst_137 : f32 to vector<16x1xf32>
    %428 = arith.addf %424, %427 : vector<16x1xf32>
    %429 = math.rsqrt %428 : vector<16x1xf32>
    %430 = vector.broadcast %429 : vector<16x1xf32> to vector<16x32xf32>
    %431 = arith.mulf %426, %430 : vector<16x32xf32>
    %432 = vector.broadcast %412 : vector<1x32xf32> to vector<16x32xf32>
    %433 = arith.mulf %431, %432 : vector<16x32xf32>
    %434 = vector.broadcast %413 : vector<1x32xf32> to vector<16x32xf32>
    %435 = arith.addf %433, %434 : vector<16x32xf32>
    %c0_138 = arith.constant 0 : index
    %c0_139 = arith.constant 0 : index
    %436 = vector.load %arg12[%c0_138, %c0_139] : memref<16x32xf32, #tpu.memory_space<vmem>>, vector<16x32xf32>
    tpu.vector_store %arg12[%c0_138, %c0_139], %435 {strides = array<i32>} : memref<16x32xf32, #tpu.memory_space<vmem>>, vector<16x32xf32>,
    return
  }
}

</mosaic_0001>

<llo_original>
// kernel: tpu_custom_call.1
$region0: #{tpu_custom_call.1}
  #allocation0 [shape = 'u32[]', space=smem, size = 0x4, offset = 0x4, fixed_abs, tag = 'smem constant byte address 0x4 - core index']
  #allocation1 [shape = 'u32[144,128]{1,0:T(1,128)}', space=vmem, size = 0x12000, scoped, tag = 'internal scratch']
  %s0 = inlined_call_operand.hbm [shape: f32[16,32], index: 0, kind: input, shape index: {}]
  %s1 = inlined_call_operand.hbm [shape: f32[32,32], index: 1, kind: input, shape index: {}]
  %s2 = inlined_call_operand.hbm [shape: f32[16,32], index: 2, kind: input, shape index: {}]
  %s3 = inlined_call_operand.hbm [shape: f32[32,32], index: 3, kind: input, shape index: {}]
  %s4 = inlined_call_operand.hbm [shape: f32[2,32,64], index: 4, kind: input, shape index: {}]
  %s5 = inlined_call_operand.hbm [shape: f32[8,32,32], index: 5, kind: input, shape index: {}]
  %s6 = inlined_call_operand.hbm [shape: f32[2,32,64], index: 6, kind: input, shape index: {}]
  %s7 = inlined_call_operand.hbm [shape: f32[32,32], index: 7, kind: input, shape index: {}]
  %s8 = inlined_call_operand.vmem [shape: f32[2,64], index: 8, kind: input, shape index: {}]
  %s9 = inlined_call_operand.vmem [shape: f32[20,32], index: 9, kind: input, shape index: {}]
  %s10 = inlined_call_operand.vmem [shape: f32[2,64], index: 10, kind: input, shape index: {}]
  %s11 = inlined_call_operand.vmem [shape: f32[1,32], index: 11, kind: input, shape index: {}]
  %s12 = inlined_call_operand.hbm [shape: f32[16,32], index: 12, kind: output, shape index: {}]
  %s13 = sld [smem:[#allocation0]]
  $region90: #{tpu_custom_call.1} parent=0
    _
  %s15 = ssub.s32 1, %s13
  %s16 = scalar_select 0, %s15, %s13
  $region1: #{tpu_custom_call.1} parent=0
    #allocation2 [shape = 'u8[8192]{0}', space=vmem, size = 0x2000, scoped, tag = 'input window, operand 0, single buffered']
    #allocation3 [shape = 's32[1]{0}', space=sflag, size = 0x4, scoped, tag = 'scoped memory for tpu_custom_call.1']
    #allocation4 [shape = 's32[1]{0}', space=sflag, size = 0x4, scoped, tag = 'scoped memory for tpu_custom_call.1']
    #allocation5 [shape = 'u8[16384]{0}', space=vmem, size = 0x4000, scoped, tag = 'input window, operand 1, single buffered']
    #allocation6 [shape = 's32[1]{0}', space=sflag, size = 0x4, scoped, tag = 'scoped memory for tpu_custom_call.1']
    #allocation7 [shape = 'u8[8192]{0}', space=vmem, size = 0x2000, scoped, tag = 'input window, operand 2, single buffered']
    #allocation8 [shape = 'u8[16384]{0}', space=vmem, size = 0x4000, scoped, tag = 'input window, operand 3, single buffered']
    #allocation9 [shape = 's32[1]{0}', space=sflag, size = 0x4, scoped, tag = 'scoped memory for tpu_custom_call.1']
    #allocation10 [shape = 'u8[32768]{0}', space=vmem, size = 0x8000, scoped, tag = 'input window, operand 4, single buffered']
    #allocation11 [shape = 'u8[131072]{0}', space=vmem, size = 0x20000, scoped, tag = 'input window, operand 5, single buffered']
    #allocation12 [shape = 's32[1]{0}', space=sflag, size = 0x4, scoped, tag = 'scoped memory for tpu_custom_call.1']
    #allocation13 [shape = 'u8[32768]{0}', space=vmem, size = 0x8000, scoped, tag = 'input window, operand 6, single buffered']
    #allocation14 [shape = 'u8[16384]{0}', space=vmem, size = 0x4000, scoped, tag = 'input window, operand 7, single buffered']
    #allocation15 [shape = 's32[1]{0}', space=sflag, size = 0x4, scoped, tag = 'scoped memory for tpu_custom_call.1']
    #allocation16 [shape = 'u8[8192]{0}', space=vmem, size = 0x2000, scoped, tag = 'output window, operand 0, single buffered']
    %17 = vsyncpa [#allocation3], 0
    %18 = vsyncpa [#allocation6], 0
    %19 = vsyncpa [#allocation9], 0
    %20 = vsyncpa [#allocation12], 0
    %21 = vsyncpa [#allocation15], 0
    %22 = vsyncpa [#allocation4], 0
    // Predicated region
    $region2: #{tpu_custom_call.1} parent=1 // pred_check
      _
    $region3: #{tpu_custom_call.1} parent=1 // pred_check_branch
      %24 = sbr.rel (0) target = $region5
    $region4: #{tpu_custom_call.1} parent=1 // pred_region
      %s26 = ssub.s32 256, 256
      %27 = vsyncadd [#allocation3], %s26
      %s28 = sshll.u32 [#allocation2], 4
      %s29 = int_to_ptr.vmem [resolvable:$true] %s28
      %34 = dma.hbm_to_vmem [thread:$0]  %s0, 256, %s29, [#allocation3], 128, 128, 8
    $region5: #{tpu_custom_call.1} parent=1 // pred_fallthru
      _
    // Predicated region
    $region6: #{tpu_custom_call.1} parent=1 // pred_check
      _
    $region7: #{tpu_custom_call.1} parent=1 // pred_check_branch
      %36 = sbr.rel (0) target = $region9
    $region8: #{tpu_custom_call.1} parent=1 // pred_region
      %s38 = ssub.s32 512, 512
      %39 = vsyncadd [#allocation6], %s38
      %s40 = sshll.u32 [#allocation5], 4
      %s41 = int_to_ptr.vmem [resolvable:$true] %s40
      %46 = dma.hbm_to_vmem [thread:$0]  %s1, 512, %s41, [#allocation6], 128, 128, 8
    $region9: #{tpu_custom_call.1} parent=1 // pred_fallthru
      _
    // Predicated region
    $region10: #{tpu_custom_call.1} parent=1 // pred_check
      _
    $region11: #{tpu_custom_call.1} parent=1 // pred_check_branch
      %48 = sbr.rel (0) target = $region13
    $region12: #{tpu_custom_call.1} parent=1 // pred_region
      %s50 = ssub.s32 256, 256
      %51 = vsyncadd [#allocation6], %s50
      %s52 = sshll.u32 [#allocation7], 4
      %s53 = int_to_ptr.vmem [resolvable:$true] %s52
      %58 = dma.hbm_to_vmem [thread:$0]  %s2, 256, %s53, [#allocation6], 128, 128, 8
    $region13: #{tpu_custom_call.1} parent=1 // pred_fallthru
      _
    // Predicated region
    $region14: #{tpu_custom_call.1} parent=1 // pred_check
      _
    $region15: #{tpu_custom_call.1} parent=1 // pred_check_branch
      %60 = sbr.rel (0) target = $region17
    $region16: #{tpu_custom_call.1} parent=1 // pred_region
      %s62 = ssub.s32 512, 512
      %63 = vsyncadd [#allocation9], %s62
      %s64 = sshll.u32 [#allocation8], 4
      %s65 = int_to_ptr.vmem [resolvable:$true] %s64
      %70 = dma.hbm_to_vmem [thread:$0]  %s3, 512, %s65, [#allocation9], 128, 128, 8
    $region17: #{tpu_custom_call.1} parent=1 // pred_fallthru
      _
    // Predicated region
    $region18: #{tpu_custom_call.1} parent=1 // pred_check
      _
    $region19: #{tpu_custom_call.1} parent=1 // pred_check_branch
      %72 = sbr.rel (0) target = $region21
    $region20: #{tpu_custom_call.1} parent=1 // pred_region
      %s74 = ssub.s32 1024, 1024
      %75 = vsyncadd [#allocation9], %s74
      %s76 = sshll.u32 [#allocation10], 4
      %s77 = int_to_ptr.vmem [resolvable:$true] %s76
      %82 = dma.hbm_to_vmem [thread:$0]  %s4, 1024, %s77, [#allocation9], 128, 128, 8
    $region21: #{tpu_custom_call.1} parent=1 // pred_fallthru
      _
    // Predicated region
    $region22: #{tpu_custom_call.1} parent=1 // pred_check
      _
    $region23: #{tpu_custom_call.1} parent=1 // pred_check_branch
      %84 = sbr.rel (0) target = $region25
    $region24: #{tpu_custom_call.1} parent=1 // pred_region
      %s86 = ssub.s32 4096, 4096
      %87 = vsyncadd [#allocation12], %s86
      %s88 = sshll.u32 [#allocation11], 4
      %s89 = int_to_ptr.vmem [resolvable:$true] %s88
      %94 = dma.hbm_to_vmem [thread:$0]  %s5, 4096, %s89, [#allocation12], 128, 128, 8
    $region25: #{tpu_custom_call.1} parent=1 // pred_fallthru
      _
    // Predicated region
    $region26: #{tpu_custom_call.1} parent=1 // pred_check
      _
    $region27: #{tpu_custom_call.1} parent=1 // pred_check_branch
      %96 = sbr.rel (0) target = $region29
    $region28: #{tpu_custom_call.1} parent=1 // pred_region
      %s98 = ssub.s32 1024, 1024
      %99 = vsyncadd [#allocation12], %s98
      %s100 = sshll.u32 [#allocation13], 4
      %s101 = int_to_ptr.vmem [resolvable:$true] %s100
      %106 = dma.hbm_to_vmem [thread:$0]  %s6, 1024, %s101, [#allocation12], 128, 128, 8
    $region29: #{tpu_custom_call.1} parent=1 // pred_fallthru
      _
    // Predicated region
    $region30: #{tpu_custom_call.1} parent=1 // pred_check
      _
    $region31: #{tpu_custom_call.1} parent=1 // pred_check_branch
      %108 = sbr.rel (0) target = $region33
    $region32: #{tpu_custom_call.1} parent=1 // pred_region
      %s110 = ssub.s32 512, 512
      %111 = vsyncadd [#allocation15], %s110
      %s112 = sshll.u32 [#allocation14], 4
      %s113 = int_to_ptr.vmem [resolvable:$true] %s112
      %118 = dma.hbm_to_vmem [thread:$0]  %s7, 512, %s113, [#allocation15], 128, 128, 8
    $region33: #{tpu_custom_call.1} parent=1 // pred_fallthru
      _
    // Predicated region
    $region34: #{tpu_custom_call.1} parent=1 // pred_check
      _
    $region35: #{tpu_custom_call.1} parent=1 // pred_check_branch
      %120 = sbr.rel (0) target = $region37
    $region36: #{tpu_custom_call.1} parent=1 // pred_region
      _
    $region37: #{tpu_custom_call.1} parent=1 // pred_fallthru
      _
    // Predicated region
    $region38: #{tpu_custom_call.1} parent=1 // pred_check
      _
    $region39: #{tpu_custom_call.1} parent=1 // pred_check_branch
      %122 = sbr.rel (0) target = $region41
    $region40: #{tpu_custom_call.1} parent=1 // pred_region
      _
    $region41: #{tpu_custom_call.1} parent=1 // pred_fallthru
      _
    // Predicated region
    $region42: #{tpu_custom_call.1} parent=1 // pred_check
      _
    $region43: #{tpu_custom_call.1} parent=1 // pred_check_branch
      %124 = sbr.rel (0) target = $region45
    $region44: #{tpu_custom_call.1} parent=1 // pred_region
      _
    $region45: #{tpu_custom_call.1} parent=1 // pred_fallthru
      _
    // Predicated region
    $region46: #{tpu_custom_call.1} parent=1 // pred_check
      _
    $region47: #{tpu_custom_call.1} parent=1 // pred_check_branch
      %126 = sbr.rel (0) target = $region49
    $region48: #{tpu_custom_call.1} parent=1 // pred_region
      _
    $region49: #{tpu_custom_call.1} parent=1 // pred_fallthru
      _
    // Predicated region
    $region50: #{tpu_custom_call.1} parent=1 // pred_check
      _
    $region51: #{tpu_custom_call.1} parent=1 // pred_check_branch
      %128 = sbr.rel (0) target = $region53
    $region52: #{tpu_custom_call.1} parent=1 // pred_region
      %129 = dma.done [#allocation3], 256
    $region53: #{tpu_custom_call.1} parent=1 // pred_fallthru
      _
    // Predicated region
    $region54: #{tpu_custom_call.1} parent=1 // pred_check
      _
    $region55: #{tpu_custom_call.1} parent=1 // pred_check_branch
      %131 = sbr.rel (0) target = $region57
    $region56: #{tpu_custom_call.1} parent=1 // pred_region
      %132 = dma.done [#allocation6], 512
    $region57: #{tpu_custom_call.1} parent=1 // pred_fallthru
      _
    // Predicated region
    $region58: #{tpu_custom_call.1} parent=1 // pred_check
      _
    $region59: #{tpu_custom_call.1} parent=1 // pred_check_branch
      %134 = sbr.rel (0) target = $region61
    $region60: #{tpu_custom_call.1} parent=1 // pred_region
      %135 = dma.done [#allocation6], 256
    $region61: #{tpu_custom_call.1} parent=1 // pred_fallthru
      _
    // Predicated region
    $region62: #{tpu_custom_call.1} parent=1 // pred_check
      _
    $region63: #{tpu_custom_call.1} parent=1 // pred_check_branch
      %137 = sbr.rel (0) target = $region65
    $region64: #{tpu_custom_call.1} parent=1 // pred_region
      %138 = dma.done [#allocation9], 512
    $region65: #{tpu_custom_call.1} parent=1 // pred_fallthru
      _
    // Predicated region
    $region66: #{tpu_custom_call.1} parent=1 // pred_check
      _
    $region67: #{tpu_custom_call.1} parent=1 // pred_check_branch
      %140 = sbr.rel (0) target = $region69
    $region68: #{tpu_custom_call.1} parent=1 // pred_region
      %141 = dma.done [#allocation9], 1024
    $region69: #{tpu_custom_call.1} parent=1 // pred_fallthru
      _
    // Predicated region
    $region70: #{tpu_custom_call.1} parent=1 // pred_check
      _
    $region71: #{tpu_custom_call.1} parent=1 // pred_check_branch
      %143 = sbr.rel (0) target = $region73
    $region72: #{tpu_custom_call.1} parent=1 // pred_region
      %144 = dma.done [#allocation12], 4096
    $region73: #{tpu_custom_call.1} parent=1 // pred_fallthru
      _
    // Predicated region
    $region74: #{tpu_custom_call.1} parent=1 // pred_check
      _
    $region75: #{tpu_custom_call.1} parent=1 // pred_check_branch
      %146 = sbr.rel (0) target = $region77
    $region76: #{tpu_custom_call.1} parent=1 // pred_region
      %147 = dma.done [#allocation12], 1024
    $region77: #{tpu_custom_call.1} parent=1 // pred_fallthru
      _
    // Predicated region
    $region78: #{tpu_custom_call.1} parent=1 // pred_check
      _
    $region79: #{tpu_custom_call.1} parent=1 // pred_check_branch
      %149 = sbr.rel (0) target = $region81
    $region80: #{tpu_custom_call.1} parent=1 // pred_region
      %150 = dma.done [#allocation15], 512
    $region81: #{tpu_custom_call.1} parent=1 // pred_fallthru
      _
    %v151 = vld [vmem:[#allocation2] sm:$0xff]
    %v152 = vld [vmem:[#allocation2 + $0x8] sm:$0xff]
    %v153 = vld [vmem:[#allocation5] sm:$0xff]
    %v154 = vld [vmem:[#allocation5 + $0x8] sm:$0xff]
    %v155 = vld [vmem:[#allocation5 + $0x10] sm:$0xff]
    %v156 = vld [vmem:[#allocation5 + $0x18] sm:$0xff]
    %v157 = vld [vmem:[#allocation7] sm:$0xff]
    %v158 = vld [vmem:[#allocation7 + $0x8] sm:$0xff]
    %v159 = vld [vmem:[#allocation8] sm:$0xff]
    %v160 = vld [vmem:[#allocation8 + $0x8] sm:$0xff]
    %v161 = vld [vmem:[#allocation8 + $0x10] sm:$0xff]
    %v162 = vld [vmem:[#allocation8 + $0x18] sm:$0xff]
    %v163 = vld [vmem:[#allocation14] sm:$0xff]
    %v164 = vld [vmem:[#allocation14 + $0x8] sm:$0xff]
    %v165 = vld [vmem:[#allocation14 + $0x10] sm:$0xff]
    %v166 = vld [vmem:[#allocation14 + $0x18] sm:$0xff]
    %v167 = vld [vmem:[%s11] sm:$0x1]
    %v169 = vlaneseq
    %v170 = vshrl.u32 %v169, 7
    %v171 = vsub.s32 0, %v170
    %v172 = vrot.slane %v167, %v171
    %vm174 = vcmask 261120
    %v176 = vsel %vm174, %v151, 0
    %v179 = vsel %vm174, %v152, 0
    %181 = vmatprep.subr.mxu0 0.0
    %182 = vmatpush1.msra.mxu0 %v163
    %183 = vmatprep.subr.mxu0 0.0
    %184 = vmatpush1.msra.mxu0 %v164
    %185 = vmatprep.subr.mxu0 0.0
    %186 = vmatpush1.msra.mxu0 %v165
    %187 = vmatprep.subr.mxu0 0.0
    %188 = vmatpush1.msra.mxu0 %v166
    %189 = vmatprep.subr.mxu0 0.0
    %190 = vmatpush1.msra.mxu0 0.0
    %191 = vmatprep.subr.mxu0 0.0
    %192 = vmatpush1.msra.mxu0 0.0
    %193 = vmatprep.subr.mxu0 0.0
    %194 = vmatpush1.msra.mxu0 0.0
    %195 = vmatprep.subr.mxu0 0.0
    %196 = vmatpush1.msra.mxu0 0.0
    %197 = vmatprep.subr.mxu0 0.0
    %198 = vmatpush1.msra.mxu0 0.0
    %199 = vmatprep.subr.mxu0 0.0
    %200 = vmatpush1.msra.mxu0 0.0
    %201 = vmatprep.subr.mxu0 0.0
    %202 = vmatpush1.msra.mxu0 0.0
    %203 = vmatprep.subr.mxu0 0.0
    %204 = vmatpush1.msra.mxu0 0.0
    %205 = vmatprep.subr.mxu0 0.0
    %206 = vmatpush1.msra.mxu0 0.0
    %207 = vmatprep.subr.mxu0 0.0
    %208 = vmatpush1.msra.mxu0 0.0
    %209 = vmatprep.subr.mxu0 0.0
    %210 = vmatpush1.msra.mxu0 0.0
    %211 = vmatprep.subr.mxu0 0.0
    %212 = vmatpush1.msra.mxu0 0.0
    %213 = vmatprep.subr.mxu0 0.0
    %214 = vmatpush1.msra.mxu0 0.0
    %215 = vmatprep.subr.mxu0 0.0
    %216 = vmatpush1.msra.mxu0 0.0
    %217 = vmatprep.subr.mxu0 0.0
    %218 = vmatpush1.msra.mxu0 0.0
    %219 = vmatprep.subr.mxu0 0.0
    %220 = vmatpush1.msra.mxu0 0.0
    %221 = vmatprep.subr.mxu0 0.0
    %222 = vmatpush1.msra.mxu0 0.0
    %223 = vmatprep.subr.mxu0 0.0
    %224 = vmatpush1.msra.mxu0 0.0
    %225 = vmatprep.subr.mxu0 0.0
    %226 = vmatpush1.msra.mxu0 0.0
    %227 = vmatprep.subr.mxu0 0.0
    %228 = vmatpush1.msra.mxu0 0.0
    %229 = vmatprep.subr.mxu0 0.0
    %230 = vmatpush1.msra.mxu0 0.0
    %231 = vmatprep.subr.mxu0 0.0
    %232 = vmatpush1.msra.mxu0 0.0
    %233 = vmatprep.subr.mxu0 0.0
    %234 = vmatpush1.msra.mxu0 0.0
    %235 = vmatprep.subr.mxu0 0.0
    %236 = vmatpush1.msra.mxu0 0.0
    %237 = vmatprep.subr.mxu0 0.0
    %238 = vmatpush1.msra.mxu0 0.0
    %239 = vmatprep.subr.mxu0 0.0
    %240 = vmatpush1.msra.mxu0 0.0
    %241 = vmatprep.subr.mxu0 0.0
    %242 = vmatpush1.msra.mxu0 0.0
    %243 = vmatprep.subr.mxu0 0.0
    %244 = vmatpush1.msra.mxu0 0.0
    %245 = vmatprep.mubr.f32.mxu0 0.0
    %246 = vmatmul.mubr.f32.gmra.mrb[0].mxu0 %v176
    %v247 = vpop.f32.mrb[0].mxu0
    %v248 = vadd.f32 %v172, %v247
    %v249 = vpop.f32.mrb[0].mxu0
    %250 = vmatprep.mubr.f32.mxu0 0.0
    %251 = vmatmul.mubr.f32.gmra.mrb[0].mxu0 %v179
    %v252 = vpop.f32.mrb[0].mxu0
    %v253 = vadd.f32 %v172, %v252
    %v254 = vpop.f32.mrb[0].mxu0
    %255 = vdwg.mxu0
    %v256 = vadd.f32 %v153, %v159
    %v257 = vadd.f32 %v154, %v160
    %v258 = vadd.f32 %v155, %v161
    %v259 = vadd.f32 %v156, %v162
    %v260 = vld [vmem:[#allocation13] sm:$0xff]
    %v261 = vld [vmem:[#allocation13 + $0x8] sm:$0xff]
    %v262 = vld [vmem:[#allocation13 + $0x10] sm:$0xff]
    %v263 = vld [vmem:[#allocation13 + $0x18] sm:$0xff]
    %v264 = vld [vmem:[%s10] sm:$0x1]
    %v265 = vlaneseq
    %v266 = vshrl.u32 %v265, 7
    %v267 = vsub.s32 0, %v266
    %v268 = vrot.slane %v264, %v267
    %v270 = vsel %vm174, %v256, 0
    %v273 = vsel %vm174, %v257, 0
    %v276 = vsel %vm174, %v258, 0
    %v279 = vsel %vm174, %v259, 0
    %281 = vmatprep.subr.mxu0 0.0
    %282 = vmatpush1.msra.mxu0 %v260
    %283 = vmatprep.subr.mxu0 0.0
    %284 = vmatpush1.msra.mxu0 %v261
    %285 = vmatprep.subr.mxu0 0.0
    %286 = vmatpush1.msra.mxu0 %v262
    %287 = vmatprep.subr.mxu0 0.0
    %288 = vmatpush1.msra.mxu0 %v263
    %289 = vmatprep.subr.mxu0 0.0
    %290 = vmatpush1.msra.mxu0 0.0
    %291 = vmatprep.subr.mxu0 0.0
    %292 = vmatpush1.msra.mxu0 0.0
    %293 = vmatprep.subr.mxu0 0.0
    %294 = vmatpush1.msra.mxu0 0.0
    %295 = vmatprep.subr.mxu0 0.0
    %296 = vmatpush1.msra.mxu0 0.0
    %297 = vmatprep.subr.mxu0 0.0
    %298 = vmatpush1.msra.mxu0 0.0
    %299 = vmatprep.subr.mxu0 0.0
    %300 = vmatpush1.msra.mxu0 0.0
    %301 = vmatprep.subr.mxu0 0.0
    %302 = vmatpush1.msra.mxu0 0.0
    %303 = vmatprep.subr.mxu0 0.0
    %304 = vmatpush1.msra.mxu0 0.0
    %305 = vmatprep.subr.mxu0 0.0
    %306 = vmatpush1.msra.mxu0 0.0
    %307 = vmatprep.subr.mxu0 0.0
    %308 = vmatpush1.msra.mxu0 0.0
    %309 = vmatprep.subr.mxu0 0.0
    %310 = vmatpush1.msra.mxu0 0.0
    %311 = vmatprep.subr.mxu0 0.0
    %312 = vmatpush1.msra.mxu0 0.0
    %313 = vmatprep.subr.mxu0 0.0
    %314 = vmatpush1.msra.mxu0 0.0
    %315 = vmatprep.subr.mxu0 0.0
    %316 = vmatpush1.msra.mxu0 0.0
    %317 = vmatprep.subr.mxu0 0.0
    %318 = vmatpush1.msra.mxu0 0.0
    %319 = vmatprep.subr.mxu0 0.0
    %320 = vmatpush1.msra.mxu0 0.0
    %321 = vmatprep.subr.mxu0 0.0
    %322 = vmatpush1.msra.mxu0 0.0
    %323 = vmatprep.subr.mxu0 0.0
    %324 = vmatpush1.msra.mxu0 0.0
    %325 = vmatprep.subr.mxu0 0.0
    %326 = vmatpush1.msra.mxu0 0.0
    %327 = vmatprep.subr.mxu0 0.0
    %328 = vmatpush1.msra.mxu0 0.0
    %329 = vmatprep.subr.mxu0 0.0
    %330 = vmatpush1.msra.mxu0 0.0
    %331 = vmatprep.subr.mxu0 0.0
    %332 = vmatpush1.msra.mxu0 0.0
    %333 = vmatprep.subr.mxu0 0.0
    %334 = vmatpush1.msra.mxu0 0.0
    %335 = vmatprep.subr.mxu0 0.0
    %336 = vmatpush1.msra.mxu0 0.0
    %337 = vmatprep.subr.mxu0 0.0
    %338 = vmatpush1.msra.mxu0 0.0
    %339 = vmatprep.subr.mxu0 0.0
    %340 = vmatpush1.msra.mxu0 0.0
    %341 = vmatprep.subr.mxu0 0.0
    %342 = vmatpush1.msra.mxu0 0.0
    %343 = vmatprep.subr.mxu0 0.0
    %344 = vmatpush1.msra.mxu0 0.0
    %345 = vmatprep.mubr.f32.mxu0 0.0
    %346 = vmatmul.mubr.f32.gmra.mrb[0].mxu0 %v270
    %v347 = vpop.f32.mrb[0].mxu0
    %v348 = vadd.f32 %v268, %v347
    %v349 = vpop.f32.mrb[0].mxu0
    %350 = vmatprep.mubr.f32.mxu0 0.0
    %351 = vmatmul.mubr.f32.gmra.mrb[0].mxu0 %v273
    %v352 = vpop.f32.mrb[0].mxu0
    %v353 = vadd.f32 %v268, %v352
    %v354 = vpop.f32.mrb[0].mxu0
    %355 = vmatprep.mubr.f32.mxu0 0.0
    %356 = vmatmul.mubr.f32.gmra.mrb[0].mxu0 %v276
    %v357 = vpop.f32.mrb[0].mxu0
    %v358 = vadd.f32 %v268, %v357
    %v359 = vpop.f32.mrb[0].mxu0
    %360 = vmatprep.mubr.f32.mxu0 0.0
    %361 = vmatmul.mubr.f32.gmra.mrb[0].mxu0 %v279
    %v362 = vpop.f32.mrb[0].mxu0
    %v363 = vadd.f32 %v268, %v362
    %v364 = vpop.f32.mrb[0].mxu0
    %365 = vdwg.mxu0
    %s366 = scalar_lea.vmem [#allocation13], 32
    %v367 = vld [vmem:[%s366] sm:$0xff]
    %v368 = vld [vmem:[%s366 + $0x8] sm:$0xff]
    %v369 = vld [vmem:[%s366 + $0x10] sm:$0xff]
    %v370 = vld [vmem:[%s366 + $0x18] sm:$0xff]
    %v371 = vld [vmem:[%s10 + $0x1] sm:$0x1]
    %v372 = vlaneseq
    %v373 = vshrl.u32 %v372, 7
    %v374 = vsub.s32 0, %v373
    %v375 = vrot.slane %v371, %v374
    %v377 = vsel %vm174, %v153, 0
    %v380 = vsel %vm174, %v154, 0
    %v383 = vsel %vm174, %v155, 0
    %v386 = vsel %vm174, %v156, 0
    %388 = vmatprep.subr.mxu0 0.0
    %389 = vmatpush1.msra.mxu0 %v367
    %390 = vmatprep.subr.mxu0 0.0
    %391 = vmatpush1.msra.mxu0 %v368
    %392 = vmatprep.subr.mxu0 0.0
    %393 = vmatpush1.msra.mxu0 %v369
    %394 = vmatprep.subr.mxu0 0.0
    %395 = vmatpush1.msra.mxu0 %v370
    %396 = vmatprep.subr.mxu0 0.0
    %397 = vmatpush1.msra.mxu0 0.0
    %398 = vmatprep.subr.mxu0 0.0
    %399 = vmatpush1.msra.mxu0 0.0
    %400 = vmatprep.subr.mxu0 0.0
    %401 = vmatpush1.msra.mxu0 0.0
    %402 = vmatprep.subr.mxu0 0.0
    %403 = vmatpush1.msra.mxu0 0.0
    %404 = vmatprep.subr.mxu0 0.0
    %405 = vmatpush1.msra.mxu0 0.0
    %406 = vmatprep.subr.mxu0 0.0
    %407 = vmatpush1.msra.mxu0 0.0
    %408 = vmatprep.subr.mxu0 0.0
    %409 = vmatpush1.msra.mxu0 0.0
    %410 = vmatprep.subr.mxu0 0.0
    %411 = vmatpush1.msra.mxu0 0.0
    %412 = vmatprep.subr.mxu0 0.0
    %413 = vmatpush1.msra.mxu0 0.0
    %414 = vmatprep.subr.mxu0 0.0
    %415 = vmatpush1.msra.mxu0 0.0
    %416 = vmatprep.subr.mxu0 0.0
    %417 = vmatpush1.msra.mxu0 0.0
    %418 = vmatprep.subr.mxu0 0.0
    %419 = vmatpush1.msra.mxu0 0.0
    %420 = vmatprep.subr.mxu0 0.0
    %421 = vmatpush1.msra.mxu0 0.0
    %422 = vmatprep.subr.mxu0 0.0
    %423 = vmatpush1.msra.mxu0 0.0
    %424 = vmatprep.subr.mxu0 0.0
    %425 = vmatpush1.msra.mxu0 0.0
    %426 = vmatprep.subr.mxu0 0.0
    %427 = vmatpush1.msra.mxu0 0.0
    %428 = vmatprep.subr.mxu0 0.0
    %429 = vmatpush1.msra.mxu0 0.0
    %430 = vmatprep.subr.mxu0 0.0
    %431 = vmatpush1.msra.mxu0 0.0
    %432 = vmatprep.subr.mxu0 0.0
    %433 = vmatpush1.msra.mxu0 0.0
    %434 = vmatprep.subr.mxu0 0.0
    %435 = vmatpush1.msra.mxu0 0.0
    %436 = vmatprep.subr.mxu0 0.0
    %437 = vmatpush1.msra.mxu0 0.0
    %438 = vmatprep.subr.mxu0 0.0
    %439 = vmatpush1.msra.mxu0 0.0
    %440 = vmatprep.subr.mxu0 0.0
    %441 = vmatpush1.msra.mxu0 0.0
    %442 = vmatprep.subr.mxu0 0.0
    %443 = vmatpush1.msra.mxu0 0.0
    %444 = vmatprep.subr.mxu0 0.0
    %445 = vmatpush1.msra.mxu0 0.0
    %446 = vmatprep.subr.mxu0 0.0
    %447 = vmatpush1.msra.mxu0 0.0
    %448 = vmatprep.subr.mxu0 0.0
    %449 = vmatpush1.msra.mxu0 0.0
    %450 = vmatprep.subr.mxu0 0.0
    %451 = vmatpush1.msra.mxu0 0.0
    %452 = vmatprep.mubr.f32.mxu0 0.0
    %453 = vmatmul.mubr.f32.gmra.mrb[0].mxu0 %v377
    %v454 = vpop.f32.mrb[0].mxu0
    %v455 = vadd.f32 %v375, %v454
    %v456 = vpop.f32.mrb[0].mxu0
    %457 = vmatprep.mubr.f32.mxu0 0.0
    %458 = vmatmul.mubr.f32.gmra.mrb[0].mxu0 %v380
    %v459 = vpop.f32.mrb[0].mxu0
    %v460 = vadd.f32 %v375, %v459
    %v461 = vpop.f32.mrb[0].mxu0
    %462 = vmatprep.mubr.f32.mxu0 0.0
    %463 = vmatmul.mubr.f32.gmra.mrb[0].mxu0 %v383
    %v464 = vpop.f32.mrb[0].mxu0
    %v465 = vadd.f32 %v375, %v464
    %v466 = vpop.f32.mrb[0].mxu0
    %467 = vmatprep.mubr.f32.mxu0 0.0
    %468 = vmatmul.mubr.f32.gmra.mrb[0].mxu0 %v386
    %v469 = vpop.f32.mrb[0].mxu0
    %v470 = vadd.f32 %v375, %v469
    %v471 = vpop.f32.mrb[0].mxu0
    %472 = vdwg.mxu0
    %v473 = vadd.f32 %v248, %v157
    %v474 = vadd.f32 %v253, %v158
    %v475 = vld [vmem:[#allocation10] sm:$0xff]
    %v476 = vld [vmem:[#allocation10 + $0x8] sm:$0xff]
    %v477 = vld [vmem:[#allocation10 + $0x10] sm:$0xff]
    %v478 = vld [vmem:[#allocation10 + $0x18] sm:$0xff]
    %v479 = vld [vmem:[%s8] sm:$0x1]
    %v480 = vlaneseq
    %v481 = vshrl.u32 %v480, 7
    %v482 = vsub.s32 0, %v481
    %v483 = vrot.slane %v479, %v482
    %v485 = vsel %vm174, %v473, 0
    %v488 = vsel %vm174, %v474, 0
    %490 = vmatprep.subr.mxu0 0.0
    %491 = vmatpush1.msra.mxu0 %v475
    %492 = vmatprep.subr.mxu0 0.0
    %493 = vmatpush1.msra.mxu0 %v476
    %494 = vmatprep.subr.mxu0 0.0
    %495 = vmatpush1.msra.mxu0 %v477
    %496 = vmatprep.subr.mxu0 0.0
    %497 = vmatpush1.msra.mxu0 %v478
    %498 = vmatprep.subr.mxu0 0.0
    %499 = vmatpush1.msra.mxu0 0.0
    %500 = vmatprep.subr.mxu0 0.0
    %501 = vmatpush1.msra.mxu0 0.0
    %502 = vmatprep.subr.mxu0 0.0
    %503 = vmatpush1.msra.mxu0 0.0
    %504 = vmatprep.subr.mxu0 0.0
    %505 = vmatpush1.msra.mxu0 0.0
    %506 = vmatprep.subr.mxu0 0.0
    %507 = vmatpush1.msra.mxu0 0.0
    %508 = vmatprep.subr.mxu0 0.0
    %509 = vmatpush1.msra.mxu0 0.0
    %510 = vmatprep.subr.mxu0 0.0
    %511 = vmatpush1.msra.mxu0 0.0
    %512 = vmatprep.subr.mxu0 0.0
    %513 = vmatpush1.msra.mxu0 0.0
    %514 = vmatprep.subr.mxu0 0.0
    %515 = vmatpush1.msra.mxu0 0.0
    %516 = vmatprep.subr.mxu0 0.0
    %517 = vmatpush1.msra.mxu0 0.0
    %518 = vmatprep.subr.mxu0 0.0
    %519 = vmatpush1.msra.mxu0 0.0
    %520 = vmatprep.subr.mxu0 0.0
    %521 = vmatpush1.msra.mxu0 0.0
    %522 = vmatprep.subr.mxu0 0.0
    %523 = vmatpush1.msra.mxu0 0.0
    %524 = vmatprep.subr.mxu0 0.0
    %525 = vmatpush1.msra.mxu0 0.0
    %526 = vmatprep.subr.mxu0 0.0
    %527 = vmatpush1.msra.mxu0 0.0
    %528 = vmatprep.subr.mxu0 0.0
    %529 = vmatpush1.msra.mxu0 0.0
    %530 = vmatprep.subr.mxu0 0.0
    %531 = vmatpush1.msra.mxu0 0.0
    %532 = vmatprep.subr.mxu0 0.0
    %533 = vmatpush1.msra.mxu0 0.0
    %534 = vmatprep.subr.mxu0 0.0
    %535 = vmatpush1.msra.mxu0 0.0
    %536 = vmatprep.subr.mxu0 0.0
    %537 = vmatpush1.msra.mxu0 0.0
    %538 = vmatprep.subr.mxu0 0.0
    %539 = vmatpush1.msra.mxu0 0.0
    %540 = vmatprep.subr.mxu0 0.0
    %541 = vmatpush1.msra.mxu0 0.0
    %542 = vmatprep.subr.mxu0 0.0
    %543 = vmatpush1.msra.mxu0 0.0
    %544 = vmatprep.subr.mxu0 0.0
    %545 = vmatpush1.msra.mxu0 0.0
    %546 = vmatprep.subr.mxu0 0.0
    %547 = vmatpush1.msra.mxu0 0.0
    %548 = vmatprep.subr.mxu0 0.0
    %549 = vmatpush1.msra.mxu0 0.0
    %550 = vmatprep.subr.mxu0 0.0
    %551 = vmatpush1.msra.mxu0 0.0
    %552 = vmatprep.subr.mxu0 0.0
    %553 = vmatpush1.msra.mxu0 0.0
    %554 = vmatprep.mubr.f32.mxu0 0.0
    %555 = vmatmul.mubr.f32.gmra.mrb[0].mxu0 %v485
    %v556 = vpop.f32.mrb[0].mxu0
    %v557 = vadd.f32 %v483, %v556
    %v558 = vpop.f32.mrb[0].mxu0
    %559 = vmatprep.mubr.f32.mxu0 0.0
    %560 = vmatmul.mubr.f32.gmra.mrb[0].mxu0 %v488
    %v561 = vpop.f32.mrb[0].mxu0
    %v562 = vadd.f32 %v483, %v561
    %v563 = vpop.f32.mrb[0].mxu0
    %564 = vdwg.mxu0
    %v565 = vld [vmem:[#allocation11] sm:$0xff]
    %v566 = vld [vmem:[#allocation11 + $0x8] sm:$0xff]
    %v567 = vld [vmem:[#allocation11 + $0x10] sm:$0xff]
    %v568 = vld [vmem:[#allocation11 + $0x18] sm:$0xff]
    %v569 = vld [vmem:[%s9] sm:$0x1]
    %v570 = vlaneseq
    %v571 = vshrl.u32 %v570, 7
    %v572 = vsub.s32 0, %v571
    %v573 = vrot.slane %v569, %v572
    %v575 = vsel %vm174, %v248, 0
    %v578 = vsel %vm174, %v253, 0
    %580 = vmatprep.subr.mxu0 0.0
    %581 = vmatpush1.msra.mxu0 %v565
    %582 = vmatprep.subr.mxu0 0.0
    %583 = vmatpush1.msra.mxu0 %v566
    %584 = vmatprep.subr.mxu0 0.0
    %585 = vmatpush1.msra.mxu0 %v567
    %586 = vmatprep.subr.mxu0 0.0
    %587 = vmatpush1.msra.mxu0 %v568
    %588 = vmatprep.subr.mxu0 0.0
    %589 = vmatpush1.msra.mxu0 0.0
    %590 = vmatprep.subr.mxu0 0.0
    %591 = vmatpush1.msra.mxu0 0.0
    %592 = vmatprep.subr.mxu0 0.0
    %593 = vmatpush1.msra.mxu0 0.0
    %594 = vmatprep.subr.mxu0 0.0
    %595 = vmatpush1.msra.mxu0 0.0
    %596 = vmatprep.subr.mxu0 0.0
    %597 = vmatpush1.msra.mxu0 0.0
    %598 = vmatprep.subr.mxu0 0.0
    %599 = vmatpush1.msra.mxu0 0.0
    %600 = vmatprep.subr.mxu0 0.0
    %601 = vmatpush1.msra.mxu0 0.0
    %602 = vmatprep.subr.mxu0 0.0
    %603 = vmatpush1.msra.mxu0 0.0
    %604 = vmatprep.subr.mxu0 0.0
    %605 = vmatpush1.msra.mxu0 0.0
    %606 = vmatprep.subr.mxu0 0.0
    %607 = vmatpush1.msra.mxu0 0.0
    %608 = vmatprep.subr.mxu0 0.0
    %609 = vmatpush1.msra.mxu0 0.0
    %610 = vmatprep.subr.mxu0 0.0
    %611 = vmatpush1.msra.mxu0 0.0
    %612 = vmatprep.subr.mxu0 0.0
    %613 = vmatpush1.msra.mxu0 0.0
    %614 = vmatprep.subr.mxu0 0.0
    %615 = vmatpush1.msra.mxu0 0.0
    %616 = vmatprep.subr.mxu0 0.0
    %617 = vmatpush1.msra.mxu0 0.0
    %618 = vmatprep.subr.mxu0 0.0
    %619 = vmatpush1.msra.mxu0 0.0
    %620 = vmatprep.subr.mxu0 0.0
    %621 = vmatpush1.msra.mxu0 0.0
    %622 = vmatprep.subr.mxu0 0.0
    %623 = vmatpush1.msra.mxu0 0.0
    %624 = vmatprep.subr.mxu0 0.0
    %625 = vmatpush1.msra.mxu0 0.0
    %626 = vmatprep.subr.mxu0 0.0
    %627 = vmatpush1.msra.mxu0 0.0
    %628 = vmatprep.subr.mxu0 0.0
    %629 = vmatpush1.msra.mxu0 0.0
    %630 = vmatprep.subr.mxu0 0.0
    %631 = vmatpush1.msra.mxu0 0.0
    %632 = vmatprep.subr.mxu0 0.0
    %633 = vmatpush1.msra.mxu0 0.0
    %634 = vmatprep.subr.mxu0 0.0
    %635 = vmatpush1.msra.mxu0 0.0
    %636 = vmatprep.subr.mxu0 0.0
    %637 = vmatpush1.msra.mxu0 0.0
    %638 = vmatprep.subr.mxu0 0.0
    %639 = vmatpush1.msra.mxu0 0.0
    %640 = vmatprep.subr.mxu0 0.0
    %641 = vmatpush1.msra.mxu0 0.0
    %642 = vmatprep.subr.mxu0 0.0
    %643 = vmatpush1.msra.mxu0 0.0
    %644 = vmatprep.mubr.f32.mxu0 0.0
    %645 = vmatmul.mubr.f32.gmra.mrb[0].mxu0 %v575
    %v646 = vpop.f32.mrb[0].mxu0
    %v647 = vadd.f32 %v573, %v646
    %v648 = vpop.f32.mrb[0].mxu0
    %649 = vmatprep.mubr.f32.mxu0 0.0
    %650 = vmatmul.mubr.f32.gmra.mrb[0].mxu0 %v578
    %v651 = vpop.f32.mrb[0].mxu0
    %v652 = vadd.f32 %v573, %v651
    %v653 = vpop.f32.mrb[0].mxu0
    %654 = vdwg.mxu0
    %657 = vrot.lane.b32.xlu0 %v557, 120
    %v658 = vpop.permute.xlu0 %657
    %659 = vrot.lane.b32.xlu0 %v562, 120
    %v660 = vpop.permute.xlu0 %659
    %663 = vrot.lane.b32.xlu0 %v557, 112
    %v664 = vpop.permute.xlu0 %663
    %665 = vrot.lane.b32.xlu0 %v562, 112
    %v666 = vpop.permute.xlu0 %665
    %669 = vrot.lane.b32.xlu0 %v557, 104
    %v670 = vpop.permute.xlu0 %669
    %671 = vrot.lane.b32.xlu0 %v562, 104
    %v672 = vpop.permute.xlu0 %671
    %v675 = vmul.f32 %v557, 0.35355338
    %v676 = vmul.f32 %v562, 0.35355338
    %v677 = vmul.f32 %v658, 0.35355338
    %v678 = vmul.f32 %v660, 0.35355338
    %v679 = vmul.f32 %v664, 0.35355338
    %v680 = vmul.f32 %v666, 0.35355338
    %v681 = vmul.f32 %v670, 0.35355338
    %v682 = vmul.f32 %v672, 0.35355338
    %685 = vrot.lane.b32.xlu0 %v647, 120
    %v686 = vpop.permute.xlu0 %685
    %687 = vrot.lane.b32.xlu0 %v652, 120
    %v688 = vpop.permute.xlu0 %687
    %691 = vrot.lane.b32.xlu0 %v647, 112
    %v692 = vpop.permute.xlu0 %691
    %693 = vrot.lane.b32.xlu0 %v652, 112
    %v694 = vpop.permute.xlu0 %693
    %697 = vrot.lane.b32.xlu0 %v647, 104
    %v698 = vpop.permute.xlu0 %697
    %699 = vrot.lane.b32.xlu0 %v652, 104
    %v700 = vpop.permute.xlu0 %699
    %703 = vrot.lane.b32.xlu0 %v557, 96
    %v704 = vpop.permute.xlu0 %703
    %vm705 = vcmask 64512
    %v707 = vsel %vm705, %v675, 0
    %v709 = vsel %vm705, %v704, 0
    %711 = vmatprep.subr.mxu0 0.0
    %712 = vmatpush1.xpose.msra.mxu0 %v709
    %713 = vmatprep.subr.mxu0 0.0
    %714 = vmatpush1.xpose.msra.mxu0 0.0
    %715 = vmatprep.subr.mxu0 0.0
    %716 = vmatpush1.xpose.msra.mxu0 0.0
    %717 = vmatprep.subr.mxu0 0.0
    %718 = vmatpush1.xpose.msra.mxu0 0.0
    %719 = vmatprep.subr.mxu0 0.0
    %720 = vmatpush1.xpose.msra.mxu0 0.0
    %721 = vmatprep.subr.mxu0 0.0
    %722 = vmatpush1.xpose.msra.mxu0 0.0
    %723 = vmatprep.subr.mxu0 0.0
    %724 = vmatpush1.xpose.msra.mxu0 0.0
    %725 = vmatprep.subr.mxu0 0.0
    %726 = vmatpush1.xpose.msra.mxu0 0.0
    %727 = vmatprep.subr.mxu0 0.0
    %728 = vmatpush1.xpose.msra.mxu0 0.0
    %729 = vmatprep.subr.mxu0 0.0
    %730 = vmatpush1.xpose.msra.mxu0 0.0
    %731 = vmatprep.subr.mxu0 0.0
    %732 = vmatpush1.xpose.msra.mxu0 0.0
    %733 = vmatprep.subr.mxu0 0.0
    %734 = vmatpush1.xpose.msra.mxu0 0.0
    %735 = vmatprep.subr.mxu0 0.0
    %736 = vmatpush1.xpose.msra.mxu0 0.0
    %737 = vmatprep.subr.mxu0 0.0
    %738 = vmatpush1.xpose.msra.mxu0 0.0
    %739 = vmatprep.subr.mxu0 0.0
    %740 = vmatpush1.xpose.msra.mxu0 0.0
    %741 = vmatprep.subr.mxu0 0.0
    %742 = vmatpush1.xpose.msra.mxu0 0.0
    %743 = vmatprep.subr.mxu0 0.0
    %744 = vmatpush1.xpose.msra.mxu0 0.0
    %745 = vmatprep.subr.mxu0 0.0
    %746 = vmatpush1.xpose.msra.mxu0 0.0
    %747 = vmatprep.subr.mxu0 0.0
    %748 = vmatpush1.xpose.msra.mxu0 0.0
    %749 = vmatprep.subr.mxu0 0.0
    %750 = vmatpush1.xpose.msra.mxu0 0.0
    %751 = vmatprep.subr.mxu0 0.0
    %752 = vmatpush1.xpose.msra.mxu0 0.0
    %753 = vmatprep.subr.mxu0 0.0
    %754 = vmatpush1.xpose.msra.mxu0 0.0
    %755 = vmatprep.subr.mxu0 0.0
    %756 = vmatpush1.xpose.msra.mxu0 0.0
    %757 = vmatprep.subr.mxu0 0.0
    %758 = vmatpush1.xpose.msra.mxu0 0.0
    %759 = vmatprep.subr.mxu0 0.0
    %760 = vmatpush1.xpose.msra.mxu0 0.0
    %761 = vmatprep.subr.mxu0 0.0
    %762 = vmatpush1.xpose.msra.mxu0 0.0
    %763 = vmatprep.subr.mxu0 0.0
    %764 = vmatpush1.xpose.msra.mxu0 0.0
    %765 = vmatprep.subr.mxu0 0.0
    %766 = vmatpush1.xpose.msra.mxu0 0.0
    %767 = vmatprep.subr.mxu0 0.0
    %768 = vmatpush1.xpose.msra.mxu0 0.0
    %769 = vmatprep.subr.mxu0 0.0
    %770 = vmatpush1.xpose.msra.mxu0 0.0
    %771 = vmatprep.subr.mxu0 0.0
    %772 = vmatpush1.xpose.msra.mxu0 0.0
    %773 = vmatprep.subr.mxu0 0.0
    %774 = vmatpush1.xpose.msra.mxu0 0.0
    %775 = vmatprep.mubr.f32.mxu0 0.0
    %776 = vmatmul.mubr.f32.gmra.mrb[0].mxu0 %v707
    %v777 = vpop.f32.mrb[0].mxu0
    %v778 = vadd.f32 0.0, %v777
    %v779 = vpop.f32.mrb[0].mxu0
    %780 = vdwg.mxu0
    %781 = vrot.lane.b32.xlu0 %v562, 96
    %v782 = vpop.permute.xlu0 %781
    %v784 = vsel %vm705, %v676, 0
    %v786 = vsel %vm705, %v782, 0
    %788 = vmatprep.subr.mxu0 0.0
    %789 = vmatpush1.xpose.msra.mxu0 %v786
    %790 = vmatprep.subr.mxu0 0.0
    %791 = vmatpush1.xpose.msra.mxu0 0.0
    %792 = vmatprep.subr.mxu0 0.0
    %793 = vmatpush1.xpose.msra.mxu0 0.0
    %794 = vmatprep.subr.mxu0 0.0
    %795 = vmatpush1.xpose.msra.mxu0 0.0
    %796 = vmatprep.subr.mxu0 0.0
    %797 = vmatpush1.xpose.msra.mxu0 0.0
    %798 = vmatprep.subr.mxu0 0.0
    %799 = vmatpush1.xpose.msra.mxu0 0.0
    %800 = vmatprep.subr.mxu0 0.0
    %801 = vmatpush1.xpose.msra.mxu0 0.0
    %802 = vmatprep.subr.mxu0 0.0
    %803 = vmatpush1.xpose.msra.mxu0 0.0
    %804 = vmatprep.subr.mxu0 0.0
    %805 = vmatpush1.xpose.msra.mxu0 0.0
    %806 = vmatprep.subr.mxu0 0.0
    %807 = vmatpush1.xpose.msra.mxu0 0.0
    %808 = vmatprep.subr.mxu0 0.0
    %809 = vmatpush1.xpose.msra.mxu0 0.0
    %810 = vmatprep.subr.mxu0 0.0
    %811 = vmatpush1.xpose.msra.mxu0 0.0
    %812 = vmatprep.subr.mxu0 0.0
    %813 = vmatpush1.xpose.msra.mxu0 0.0
    %814 = vmatprep.subr.mxu0 0.0
    %815 = vmatpush1.xpose.msra.mxu0 0.0
    %816 = vmatprep.subr.mxu0 0.0
    %817 = vmatpush1.xpose.msra.mxu0 0.0
    %818 = vmatprep.subr.mxu0 0.0
    %819 = vmatpush1.xpose.msra.mxu0 0.0
    %820 = vmatprep.subr.mxu0 0.0
    %821 = vmatpush1.xpose.msra.mxu0 0.0
    %822 = vmatprep.subr.mxu0 0.0
    %823 = vmatpush1.xpose.msra.mxu0 0.0
    %824 = vmatprep.subr.mxu0 0.0
    %825 = vmatpush1.xpose.msra.mxu0 0.0
    %826 = vmatprep.subr.mxu0 0.0
    %827 = vmatpush1.xpose.msra.mxu0 0.0
    %828 = vmatprep.subr.mxu0 0.0
    %829 = vmatpush1.xpose.msra.mxu0 0.0
    %830 = vmatprep.subr.mxu0 0.0
    %831 = vmatpush1.xpose.msra.mxu0 0.0
    %832 = vmatprep.subr.mxu0 0.0
    %833 = vmatpush1.xpose.msra.mxu0 0.0
    %834 = vmatprep.subr.mxu0 0.0
    %835 = vmatpush1.xpose.msra.mxu0 0.0
    %836 = vmatprep.subr.mxu0 0.0
    %837 = vmatpush1.xpose.msra.mxu0 0.0
    %838 = vmatprep.subr.mxu0 0.0
    %839 = vmatpush1.xpose.msra.mxu0 0.0
    %840 = vmatprep.subr.mxu0 0.0
    %841 = vmatpush1.xpose.msra.mxu0 0.0
    %842 = vmatprep.subr.mxu0 0.0
    %843 = vmatpush1.xpose.msra.mxu0 0.0
    %844 = vmatprep.subr.mxu0 0.0
    %845 = vmatpush1.xpose.msra.mxu0 0.0
    %846 = vmatprep.subr.mxu0 0.0
    %847 = vmatpush1.xpose.msra.mxu0 0.0
    %848 = vmatprep.subr.mxu0 0.0
    %849 = vmatpush1.xpose.msra.mxu0 0.0
    %850 = vmatprep.subr.mxu0 0.0
    %851 = vmatpush1.xpose.msra.mxu0 0.0
    %852 = vmatprep.mubr.f32.mxu0 0.0
    %853 = vmatmul.mubr.f32.gmra.mrb[0].mxu0 %v784
    %v854 = vpop.f32.mrb[0].mxu0
    %v855 = vadd.f32 0.0, %v854
    %v856 = vpop.f32.mrb[0].mxu0
    %857 = vdwg.mxu0
    %858 = vrot.lane.b32.xlu0 %v658, 96
    %v859 = vpop.permute.xlu0 %858
    %v861 = vsel %vm705, %v677, 0
    %v863 = vsel %vm705, %v859, 0
    %865 = vmatprep.subr.mxu0 0.0
    %866 = vmatpush1.xpose.msra.mxu0 %v863
    %867 = vmatprep.subr.mxu0 0.0
    %868 = vmatpush1.xpose.msra.mxu0 0.0
    %869 = vmatprep.subr.mxu0 0.0
    %870 = vmatpush1.xpose.msra.mxu0 0.0
    %871 = vmatprep.subr.mxu0 0.0
    %872 = vmatpush1.xpose.msra.mxu0 0.0
    %873 = vmatprep.subr.mxu0 0.0
    %874 = vmatpush1.xpose.msra.mxu0 0.0
    %875 = vmatprep.subr.mxu0 0.0
    %876 = vmatpush1.xpose.msra.mxu0 0.0
    %877 = vmatprep.subr.mxu0 0.0
    %878 = vmatpush1.xpose.msra.mxu0 0.0
    %879 = vmatprep.subr.mxu0 0.0
    %880 = vmatpush1.xpose.msra.mxu0 0.0
    %881 = vmatprep.subr.mxu0 0.0
    %882 = vmatpush1.xpose.msra.mxu0 0.0
    %883 = vmatprep.subr.mxu0 0.0
    %884 = vmatpush1.xpose.msra.mxu0 0.0
    %885 = vmatprep.subr.mxu0 0.0
    %886 = vmatpush1.xpose.msra.mxu0 0.0
    %887 = vmatprep.subr.mxu0 0.0
    %888 = vmatpush1.xpose.msra.mxu0 0.0
    %889 = vmatprep.subr.mxu0 0.0
    %890 = vmatpush1.xpose.msra.mxu0 0.0
    %891 = vmatprep.subr.mxu0 0.0
    %892 = vmatpush1.xpose.msra.mxu0 0.0
    %893 = vmatprep.subr.mxu0 0.0
    %894 = vmatpush1.xpose.msra.mxu0 0.0
    %895 = vmatprep.subr.mxu0 0.0
    %896 = vmatpush1.xpose.msra.mxu0 0.0
    %897 = vmatprep.subr.mxu0 0.0
    %898 = vmatpush1.xpose.msra.mxu0 0.0
    %899 = vmatprep.subr.mxu0 0.0
    %900 = vmatpush1.xpose.msra.mxu0 0.0
    %901 = vmatprep.subr.mxu0 0.0
    %902 = vmatpush1.xpose.msra.mxu0 0.0
    %903 = vmatprep.subr.mxu0 0.0
    %904 = vmatpush1.xpose.msra.mxu0 0.0
    %905 = vmatprep.subr.mxu0 0.0
    %906 = vmatpush1.xpose.msra.mxu0 0.0
    %907 = vmatprep.subr.mxu0 0.0
    %908 = vmatpush1.xpose.msra.mxu0 0.0
    %909 = vmatprep.subr.mxu0 0.0
    %910 = vmatpush1.xpose.msra.mxu0 0.0
    %911 = vmatprep.subr.mxu0 0.0
    %912 = vmatpush1.xpose.msra.mxu0 0.0
    %913 = vmatprep.subr.mxu0 0.0
    %914 = vmatpush1.xpose.msra.mxu0 0.0
    %915 = vmatprep.subr.mxu0 0.0
    %916 = vmatpush1.xpose.msra.mxu0 0.0
    %917 = vmatprep.subr.mxu0 0.0
    %918 = vmatpush1.xpose.msra.mxu0 0.0
    %919 = vmatprep.subr.mxu0 0.0
    %920 = vmatpush1.xpose.msra.mxu0 0.0
    %921 = vmatprep.subr.mxu0 0.0
    %922 = vmatpush1.xpose.msra.mxu0 0.0
    %923 = vmatprep.subr.mxu0 0.0
    %924 = vmatpush1.xpose.msra.mxu0 0.0
    %925 = vmatprep.subr.mxu0 0.0
    %926 = vmatpush1.xpose.msra.mxu0 0.0
    %927 = vmatprep.subr.mxu0 0.0
    %928 = vmatpush1.xpose.msra.mxu0 0.0
    %929 = vmatprep.mubr.f32.mxu0 0.0
    %930 = vmatmul.mubr.f32.gmra.mrb[0].mxu0 %v861
    %v931 = vpop.f32.mrb[0].mxu0
    %v932 = vadd.f32 0.0, %v931
    %v933 = vpop.f32.mrb[0].mxu0
    %934 = vdwg.mxu0
    %935 = vrot.lane.b32.xlu0 %v660, 96
    %v936 = vpop.permute.xlu0 %935
    %v938 = vsel %vm705, %v678, 0
    %v940 = vsel %vm705, %v936, 0
    %942 = vmatprep.subr.mxu0 0.0
    %943 = vmatpush1.xpose.msra.mxu0 %v940
    %944 = vmatprep.subr.mxu0 0.0
    %945 = vmatpush1.xpose.msra.mxu0 0.0
    %946 = vmatprep.subr.mxu0 0.0
    %947 = vmatpush1.xpose.msra.mxu0 0.0
    %948 = vmatprep.subr.mxu0 0.0
    %949 = vmatpush1.xpose.msra.mxu0 0.0
    %950 = vmatprep.subr.mxu0 0.0
    %951 = vmatpush1.xpose.msra.mxu0 0.0
    %952 = vmatprep.subr.mxu0 0.0
    %953 = vmatpush1.xpose.msra.mxu0 0.0
    %954 = vmatprep.subr.mxu0 0.0
    %955 = vmatpush1.xpose.msra.mxu0 0.0
    %956 = vmatprep.subr.mxu0 0.0
    %957 = vmatpush1.xpose.msra.mxu0 0.0
    %958 = vmatprep.subr.mxu0 0.0
    %959 = vmatpush1.xpose.msra.mxu0 0.0
    %960 = vmatprep.subr.mxu0 0.0
    %961 = vmatpush1.xpose.msra.mxu0 0.0
    %962 = vmatprep.subr.mxu0 0.0
    %963 = vmatpush1.xpose.msra.mxu0 0.0
    %964 = vmatprep.subr.mxu0 0.0
    %965 = vmatpush1.xpose.msra.mxu0 0.0
    %966 = vmatprep.subr.mxu0 0.0
    %967 = vmatpush1.xpose.msra.mxu0 0.0
    %968 = vmatprep.subr.mxu0 0.0
    %969 = vmatpush1.xpose.msra.mxu0 0.0
    %970 = vmatprep.subr.mxu0 0.0
    %971 = vmatpush1.xpose.msra.mxu0 0.0
    %972 = vmatprep.subr.mxu0 0.0
    %973 = vmatpush1.xpose.msra.mxu0 0.0
    %974 = vmatprep.subr.mxu0 0.0
    %975 = vmatpush1.xpose.msra.mxu0 0.0
    %976 = vmatprep.subr.mxu0 0.0
    %977 = vmatpush1.xpose.msra.mxu0 0.0
    %978 = vmatprep.subr.mxu0 0.0
    %979 = vmatpush1.xpose.msra.mxu0 0.0
    %980 = vmatprep.subr.mxu0 0.0
    %981 = vmatpush1.xpose.msra.mxu0 0.0
    %982 = vmatprep.subr.mxu0 0.0
    %983 = vmatpush1.xpose.msra.mxu0 0.0
    %984 = vmatprep.subr.mxu0 0.0
    %985 = vmatpush1.xpose.msra.mxu0 0.0
    %986 = vmatprep.subr.mxu0 0.0
    %987 = vmatpush1.xpose.msra.mxu0 0.0
    %988 = vmatprep.subr.mxu0 0.0
    %989 = vmatpush1.xpose.msra.mxu0 0.0
    %990 = vmatprep.subr.mxu0 0.0
    %991 = vmatpush1.xpose.msra.mxu0 0.0
    %992 = vmatprep.subr.mxu0 0.0
    %993 = vmatpush1.xpose.msra.mxu0 0.0
    %994 = vmatprep.subr.mxu0 0.0
    %995 = vmatpush1.xpose.msra.mxu0 0.0
    %996 = vmatprep.subr.mxu0 0.0
    %997 = vmatpush1.xpose.msra.mxu0 0.0
    %998 = vmatprep.subr.mxu0 0.0
    %999 = vmatpush1.xpose.msra.mxu0 0.0
    %1000 = vmatprep.subr.mxu0 0.0
    %1001 = vmatpush1.xpose.msra.mxu0 0.0
    %1002 = vmatprep.subr.mxu0 0.0
    %1003 = vmatpush1.xpose.msra.mxu0 0.0
    %1004 = vmatprep.subr.mxu0 0.0
    %1005 = vmatpush1.xpose.msra.mxu0 0.0
    %1006 = vmatprep.mubr.f32.mxu0 0.0
    %1007 = vmatmul.mubr.f32.gmra.mrb[0].mxu0 %v938
    %v1008 = vpop.f32.mrb[0].mxu0
    %v1009 = vadd.f32 0.0, %v1008
    %v1010 = vpop.f32.mrb[0].mxu0
    %1011 = vdwg.mxu0
    %1012 = vrot.lane.b32.xlu0 %v664, 96
    %v1013 = vpop.permute.xlu0 %1012
    %v1015 = vsel %vm705, %v679, 0
    %v1017 = vsel %vm705, %v1013, 0
    %1019 = vmatprep.subr.mxu0 0.0
    %1020 = vmatpush1.xpose.msra.mxu0 %v1017
    %1021 = vmatprep.subr.mxu0 0.0
    %1022 = vmatpush1.xpose.msra.mxu0 0.0
    %1023 = vmatprep.subr.mxu0 0.0
    %1024 = vmatpush1.xpose.msra.mxu0 0.0
    %1025 = vmatprep.subr.mxu0 0.0
    %1026 = vmatpush1.xpose.msra.mxu0 0.0
    %1027 = vmatprep.subr.mxu0 0.0
    %1028 = vmatpush1.xpose.msra.mxu0 0.0
    %1029 = vmatprep.subr.mxu0 0.0
    %1030 = vmatpush1.xpose.msra.mxu0 0.0
    %1031 = vmatprep.subr.mxu0 0.0
    %1032 = vmatpush1.xpose.msra.mxu0 0.0
    %1033 = vmatprep.subr.mxu0 0.0
    %1034 = vmatpush1.xpose.msra.mxu0 0.0
    %1035 = vmatprep.subr.mxu0 0.0
    %1036 = vmatpush1.xpose.msra.mxu0 0.0
    %1037 = vmatprep.subr.mxu0 0.0
    %1038 = vmatpush1.xpose.msra.mxu0 0.0
    %1039 = vmatprep.subr.mxu0 0.0
    %1040 = vmatpush1.xpose.msra.mxu0 0.0
    %1041 = vmatprep.subr.mxu0 0.0
    %1042 = vmatpush1.xpose.msra.mxu0 0.0
    %1043 = vmatprep.subr.mxu0 0.0
    %1044 = vmatpush1.xpose.msra.mxu0 0.0
    %1045 = vmatprep.subr.mxu0 0.0
    %1046 = vmatpush1.xpose.msra.mxu0 0.0
    %1047 = vmatprep.subr.mxu0 0.0
    %1048 = vmatpush1.xpose.msra.mxu0 0.0
    %1049 = vmatprep.subr.mxu0 0.0
    %1050 = vmatpush1.xpose.msra.mxu0 0.0
    %1051 = vmatprep.subr.mxu0 0.0
    %1052 = vmatpush1.xpose.msra.mxu0 0.0
    %1053 = vmatprep.subr.mxu0 0.0
    %1054 = vmatpush1.xpose.msra.mxu0 0.0
    %1055 = vmatprep.subr.mxu0 0.0
    %1056 = vmatpush1.xpose.msra.mxu0 0.0
    %1057 = vmatprep.subr.mxu0 0.0
    %1058 = vmatpush1.xpose.msra.mxu0 0.0
    %1059 = vmatprep.subr.mxu0 0.0
    %1060 = vmatpush1.xpose.msra.mxu0 0.0
    %1061 = vmatprep.subr.mxu0 0.0
    %1062 = vmatpush1.xpose.msra.mxu0 0.0
    %1063 = vmatprep.subr.mxu0 0.0
    %1064 = vmatpush1.xpose.msra.mxu0 0.0
    %1065 = vmatprep.subr.mxu0 0.0
    %1066 = vmatpush1.xpose.msra.mxu0 0.0
    %1067 = vmatprep.subr.mxu0 0.0
    %1068 = vmatpush1.xpose.msra.mxu0 0.0
    %1069 = vmatprep.subr.mxu0 0.0
    %1070 = vmatpush1.xpose.msra.mxu0 0.0
    %1071 = vmatprep.subr.mxu0 0.0
    %1072 = vmatpush1.xpose.msra.mxu0 0.0
    %1073 = vmatprep.subr.mxu0 0.0
    %1074 = vmatpush1.xpose.msra.mxu0 0.0
    %1075 = vmatprep.subr.mxu0 0.0
    %1076 = vmatpush1.xpose.msra.mxu0 0.0
    %1077 = vmatprep.subr.mxu0 0.0
    %1078 = vmatpush1.xpose.msra.mxu0 0.0
    %1079 = vmatprep.subr.mxu0 0.0
    %1080 = vmatpush1.xpose.msra.mxu0 0.0
    %1081 = vmatprep.subr.mxu0 0.0
    %1082 = vmatpush1.xpose.msra.mxu0 0.0
    %1083 = vmatprep.mubr.f32.mxu0 0.0
    %1084 = vmatmul.mubr.f32.gmra.mrb[0].mxu0 %v1015
    %v1085 = vpop.f32.mrb[0].mxu0
    %v1086 = vadd.f32 0.0, %v1085
    %v1087 = vpop.f32.mrb[0].mxu0
    %1088 = vdwg.mxu0
    %1089 = vrot.lane.b32.xlu0 %v666, 96
    %v1090 = vpop.permute.xlu0 %1089
    %v1092 = vsel %vm705, %v680, 0
    %v1094 = vsel %vm705, %v1090, 0
    %1096 = vmatprep.subr.mxu0 0.0
    %1097 = vmatpush1.xpose.msra.mxu0 %v1094
    %1098 = vmatprep.subr.mxu0 0.0
    %1099 = vmatpush1.xpose.msra.mxu0 0.0
    %1100 = vmatprep.subr.mxu0 0.0
    %1101 = vmatpush1.xpose.msra.mxu0 0.0
    %1102 = vmatprep.subr.mxu0 0.0
    %1103 = vmatpush1.xpose.msra.mxu0 0.0
    %1104 = vmatprep.subr.mxu0 0.0
    %1105 = vmatpush1.xpose.msra.mxu0 0.0
    %1106 = vmatprep.subr.mxu0 0.0
    %1107 = vmatpush1.xpose.msra.mxu0 0.0
    %1108 = vmatprep.subr.mxu0 0.0
    %1109 = vmatpush1.xpose.msra.mxu0 0.0
    %1110 = vmatprep.subr.mxu0 0.0
    %1111 = vmatpush1.xpose.msra.mxu0 0.0
    %1112 = vmatprep.subr.mxu0 0.0
    %1113 = vmatpush1.xpose.msra.mxu0 0.0
    %1114 = vmatprep.subr.mxu0 0.0
    %1115 = vmatpush1.xpose.msra.mxu0 0.0
    %1116 = vmatprep.subr.mxu0 0.0
    %1117 = vmatpush1.xpose.msra.mxu0 0.0
    %1118 = vmatprep.subr.mxu0 0.0
    %1119 = vmatpush1.xpose.msra.mxu0 0.0
    %1120 = vmatprep.subr.mxu0 0.0
    %1121 = vmatpush1.xpose.msra.mxu0 0.0
    %1122 = vmatprep.subr.mxu0 0.0
    %1123 = vmatpush1.xpose.msra.mxu0 0.0
    %1124 = vmatprep.subr.mxu0 0.0
    %1125 = vmatpush1.xpose.msra.mxu0 0.0
    %1126 = vmatprep.subr.mxu0 0.0
    %1127 = vmatpush1.xpose.msra.mxu0 0.0
    %1128 = vmatprep.subr.mxu0 0.0
    %1129 = vmatpush1.xpose.msra.mxu0 0.0
    %1130 = vmatprep.subr.mxu0 0.0
    %1131 = vmatpush1.xpose.msra.mxu0 0.0
    %1132 = vmatprep.subr.mxu0 0.0
    %1133 = vmatpush1.xpose.msra.mxu0 0.0
    %1134 = vmatprep.subr.mxu0 0.0
    %1135 = vmatpush1.xpose.msra.mxu0 0.0
    %1136 = vmatprep.subr.mxu0 0.0
    %1137 = vmatpush1.xpose.msra.mxu0 0.0
    %1138 = vmatprep.subr.mxu0 0.0
    %1139 = vmatpush1.xpose.msra.mxu0 0.0
    %1140 = vmatprep.subr.mxu0 0.0
    %1141 = vmatpush1.xpose.msra.mxu0 0.0
    %1142 = vmatprep.subr.mxu0 0.0
    %1143 = vmatpush1.xpose.msra.mxu0 0.0
    %1144 = vmatprep.subr.mxu0 0.0
    %1145 = vmatpush1.xpose.msra.mxu0 0.0
    %1146 = vmatprep.subr.mxu0 0.0
    %1147 = vmatpush1.xpose.msra.mxu0 0.0
    %1148 = vmatprep.subr.mxu0 0.0
    %1149 = vmatpush1.xpose.msra.mxu0 0.0
    %1150 = vmatprep.subr.mxu0 0.0
    %1151 = vmatpush1.xpose.msra.mxu0 0.0
    %1152 = vmatprep.subr.mxu0 0.0
    %1153 = vmatpush1.xpose.msra.mxu0 0.0
    %1154 = vmatprep.subr.mxu0 0.0
    %1155 = vmatpush1.xpose.msra.mxu0 0.0
    %1156 = vmatprep.subr.mxu0 0.0
    %1157 = vmatpush1.xpose.msra.mxu0 0.0
    %1158 = vmatprep.subr.mxu0 0.0
    %1159 = vmatpush1.xpose.msra.mxu0 0.0
    %1160 = vmatprep.mubr.f32.mxu0 0.0
    %1161 = vmatmul.mubr.f32.gmra.mrb[0].mxu0 %v1092
    %v1162 = vpop.f32.mrb[0].mxu0
    %v1163 = vadd.f32 0.0, %v1162
    %v1164 = vpop.f32.mrb[0].mxu0
    %1165 = vdwg.mxu0
    %1166 = vrot.lane.b32.xlu0 %v670, 96
    %v1167 = vpop.permute.xlu0 %1166
    %v1169 = vsel %vm705, %v681, 0
    %v1171 = vsel %vm705, %v1167, 0
    %1173 = vmatprep.subr.mxu0 0.0
    %1174 = vmatpush1.xpose.msra.mxu0 %v1171
    %1175 = vmatprep.subr.mxu0 0.0
    %1176 = vmatpush1.xpose.msra.mxu0 0.0
    %1177 = vmatprep.subr.mxu0 0.0
    %1178 = vmatpush1.xpose.msra.mxu0 0.0
    %1179 = vmatprep.subr.mxu0 0.0
    %1180 = vmatpush1.xpose.msra.mxu0 0.0
    %1181 = vmatprep.subr.mxu0 0.0
    %1182 = vmatpush1.xpose.msra.mxu0 0.0
    %1183 = vmatprep.subr.mxu0 0.0
    %1184 = vmatpush1.xpose.msra.mxu0 0.0
    %1185 = vmatprep.subr.mxu0 0.0
    %1186 = vmatpush1.xpose.msra.mxu0 0.0
    %1187 = vmatprep.subr.mxu0 0.0
    %1188 = vmatpush1.xpose.msra.mxu0 0.0
    %1189 = vmatprep.subr.mxu0 0.0
    %1190 = vmatpush1.xpose.msra.mxu0 0.0
    %1191 = vmatprep.subr.mxu0 0.0
    %1192 = vmatpush1.xpose.msra.mxu0 0.0
    %1193 = vmatprep.subr.mxu0 0.0
    %1194 = vmatpush1.xpose.msra.mxu0 0.0
    %1195 = vmatprep.subr.mxu0 0.0
    %1196 = vmatpush1.xpose.msra.mxu0 0.0
    %1197 = vmatprep.subr.mxu0 0.0
    %1198 = vmatpush1.xpose.msra.mxu0 0.0
    %1199 = vmatprep.subr.mxu0 0.0
    %1200 = vmatpush1.xpose.msra.mxu0 0.0
    %1201 = vmatprep.subr.mxu0 0.0
    %1202 = vmatpush1.xpose.msra.mxu0 0.0
    %1203 = vmatprep.subr.mxu0 0.0
    %1204 = vmatpush1.xpose.msra.mxu0 0.0
    %1205 = vmatprep.subr.mxu0 0.0
    %1206 = vmatpush1.xpose.msra.mxu0 0.0
    %1207 = vmatprep.subr.mxu0 0.0
    %1208 = vmatpush1.xpose.msra.mxu0 0.0
    %1209 = vmatprep.subr.mxu0 0.0
    %1210 = vmatpush1.xpose.msra.mxu0 0.0
    %1211 = vmatprep.subr.mxu0 0.0
    %1212 = vmatpush1.xpose.msra.mxu0 0.0
    %1213 = vmatprep.subr.mxu0 0.0
    %1214 = vmatpush1.xpose.msra.mxu0 0.0
    %1215 = vmatprep.subr.mxu0 0.0
    %1216 = vmatpush1.xpose.msra.mxu0 0.0
    %1217 = vmatprep.subr.mxu0 0.0
    %1218 = vmatpush1.xpose.msra.mxu0 0.0
    %1219 = vmatprep.subr.mxu0 0.0
    %1220 = vmatpush1.xpose.msra.mxu0 0.0
    %1221 = vmatprep.subr.mxu0 0.0
    %1222 = vmatpush1.xpose.msra.mxu0 0.0
    %1223 = vmatprep.subr.mxu0 0.0
    %1224 = vmatpush1.xpose.msra.mxu0 0.0
    %1225 = vmatprep.subr.mxu0 0.0
    %1226 = vmatpush1.xpose.msra.mxu0 0.0
    %1227 = vmatprep.subr.mxu0 0.0
    %1228 = vmatpush1.xpose.msra.mxu0 0.0
    %1229 = vmatprep.subr.mxu0 0.0
    %1230 = vmatpush1.xpose.msra.mxu0 0.0
    %1231 = vmatprep.subr.mxu0 0.0
    %1232 = vmatpush1.xpose.msra.mxu0 0.0
    %1233 = vmatprep.subr.mxu0 0.0
    %1234 = vmatpush1.xpose.msra.mxu0 0.0
    %1235 = vmatprep.subr.mxu0 0.0
    %1236 = vmatpush1.xpose.msra.mxu0 0.0
    %1237 = vmatprep.mubr.f32.mxu0 0.0
    %1238 = vmatmul.mubr.f32.gmra.mrb[0].mxu0 %v1169
    %v1239 = vpop.f32.mrb[0].mxu0
    %v1240 = vadd.f32 0.0, %v1239
    %v1241 = vpop.f32.mrb[0].mxu0
    %1242 = vdwg.mxu0
    %1243 = vrot.lane.b32.xlu0 %v672, 96
    %v1244 = vpop.permute.xlu0 %1243
    %v1246 = vsel %vm705, %v682, 0
    %v1248 = vsel %vm705, %v1244, 0
    %1250 = vmatprep.subr.mxu0 0.0
    %1251 = vmatpush1.xpose.msra.mxu0 %v1248
    %1252 = vmatprep.subr.mxu0 0.0
    %1253 = vmatpush1.xpose.msra.mxu0 0.0
    %1254 = vmatprep.subr.mxu0 0.0
    %1255 = vmatpush1.xpose.msra.mxu0 0.0
    %1256 = vmatprep.subr.mxu0 0.0
    %1257 = vmatpush1.xpose.msra.mxu0 0.0
    %1258 = vmatprep.subr.mxu0 0.0
    %1259 = vmatpush1.xpose.msra.mxu0 0.0
    %1260 = vmatprep.subr.mxu0 0.0
    %1261 = vmatpush1.xpose.msra.mxu0 0.0
    %1262 = vmatprep.subr.mxu0 0.0
    %1263 = vmatpush1.xpose.msra.mxu0 0.0
    %1264 = vmatprep.subr.mxu0 0.0
    %1265 = vmatpush1.xpose.msra.mxu0 0.0
    %1266 = vmatprep.subr.mxu0 0.0
    %1267 = vmatpush1.xpose.msra.mxu0 0.0
    %1268 = vmatprep.subr.mxu0 0.0
    %1269 = vmatpush1.xpose.msra.mxu0 0.0
    %1270 = vmatprep.subr.mxu0 0.0
    %1271 = vmatpush1.xpose.msra.mxu0 0.0
    %1272 = vmatprep.subr.mxu0 0.0
    %1273 = vmatpush1.xpose.msra.mxu0 0.0
    %1274 = vmatprep.subr.mxu0 0.0
    %1275 = vmatpush1.xpose.msra.mxu0 0.0
    %1276 = vmatprep.subr.mxu0 0.0
    %1277 = vmatpush1.xpose.msra.mxu0 0.0
    %1278 = vmatprep.subr.mxu0 0.0
    %1279 = vmatpush1.xpose.msra.mxu0 0.0
    %1280 = vmatprep.subr.mxu0 0.0
    %1281 = vmatpush1.xpose.msra.mxu0 0.0
    %1282 = vmatprep.subr.mxu0 0.0
    %1283 = vmatpush1.xpose.msra.mxu0 0.0
    %1284 = vmatprep.subr.mxu0 0.0
    %1285 = vmatpush1.xpose.msra.mxu0 0.0
    %1286 = vmatprep.subr.mxu0 0.0
    %1287 = vmatpush1.xpose.msra.mxu0 0.0
    %1288 = vmatprep.subr.mxu0 0.0
    %1289 = vmatpush1.xpose.msra.mxu0 0.0
    %1290 = vmatprep.subr.mxu0 0.0
    %1291 = vmatpush1.xpose.msra.mxu0 0.0
    %1292 = vmatprep.subr.mxu0 0.0
    %1293 = vmatpush1.xpose.msra.mxu0 0.0
    %1294 = vmatprep.subr.mxu0 0.0
    %1295 = vmatpush1.xpose.msra.mxu0 0.0
    %1296 = vmatprep.subr.mxu0 0.0
    %1297 = vmatpush1.xpose.msra.mxu0 0.0
    %1298 = vmatprep.subr.mxu0 0.0
    %1299 = vmatpush1.xpose.msra.mxu0 0.0
    %1300 = vmatprep.subr.mxu0 0.0
    %1301 = vmatpush1.xpose.msra.mxu0 0.0
    %1302 = vmatprep.subr.mxu0 0.0
    %1303 = vmatpush1.xpose.msra.mxu0 0.0
    %1304 = vmatprep.subr.mxu0 0.0
    %1305 = vmatpush1.xpose.msra.mxu0 0.0
    %1306 = vmatprep.subr.mxu0 0.0
    %1307 = vmatpush1.xpose.msra.mxu0 0.0
    %1308 = vmatprep.subr.mxu0 0.0
    %1309 = vmatpush1.xpose.msra.mxu0 0.0
    %1310 = vmatprep.subr.mxu0 0.0
    %1311 = vmatpush1.xpose.msra.mxu0 0.0
    %1312 = vmatprep.subr.mxu0 0.0
    %1313 = vmatpush1.xpose.msra.mxu0 0.0
    %1314 = vmatprep.mubr.f32.mxu0 0.0
    %1315 = vmatmul.mubr.f32.gmra.mrb[0].mxu0 %v1246
    %v1316 = vpop.f32.mrb[0].mxu0
    %v1317 = vadd.f32 0.0, %v1316
    %v1318 = vpop.f32.mrb[0].mxu0
    %1319 = vdwg.mxu0
    %v1320 = vsel %vm705, %v778, -inf
    %1321 = vmax.xlane.f32.xlu0 %v1320
    %v1322 = vpop.xlane.xlu0 %1321
    %v1323 = vsel %vm705, %v855, -inf
    %1324 = vmax.xlane.f32.xlu0 %v1323
    %v1325 = vpop.xlane.xlu0 %1324
    %v1326 = vsel %vm705, %v932, -inf
    %1327 = vmax.xlane.f32.xlu0 %v1326
    %v1328 = vpop.xlane.xlu0 %1327
    %v1329 = vsel %vm705, %v1009, -inf
    %1330 = vmax.xlane.f32.xlu0 %v1329
    %v1331 = vpop.xlane.xlu0 %1330
    %v1332 = vsel %vm705, %v1086, -inf
    %1333 = vmax.xlane.f32.xlu0 %v1332
    %v1334 = vpop.xlane.xlu0 %1333
    %v1335 = vsel %vm705, %v1163, -inf
    %1336 = vmax.xlane.f32.xlu0 %v1335
    %v1337 = vpop.xlane.xlu0 %1336
    %v1338 = vsel %vm705, %v1240, -inf
    %1339 = vmax.xlane.f32.xlu0 %v1338
    %v1340 = vpop.xlane.xlu0 %1339
    %v1341 = vsel %vm705, %v1317, -inf
    %1342 = vmax.xlane.f32.xlu0 %v1341
    %v1343 = vpop.xlane.xlu0 %1342
    %v1344 = vsub.f32 %v778, %v1322
    %v1345 = vsub.f32 %v855, %v1325
    %v1346 = vsub.f32 %v932, %v1328
    %v1347 = vsub.f32 %v1009, %v1331
    %v1348 = vsub.f32 %v1086, %v1334
    %v1349 = vsub.f32 %v1163, %v1337
    %v1350 = vsub.f32 %v1240, %v1340
    %v1351 = vsub.f32 %v1317, %v1343
    %v1352 = vmul.f32 %v1344, 1.442695
    %v1353 = vpow.pop %v1352
    %v1354 = vmul.f32 %v1345, 1.442695
    %v1355 = vpow.pop %v1354
    %v1356 = vmul.f32 %v1346, 1.442695
    %v1357 = vpow.pop %v1356
    %v1358 = vmul.f32 %v1347, 1.442695
    %v1359 = vpow.pop %v1358
    %v1360 = vmul.f32 %v1348, 1.442695
    %v1361 = vpow.pop %v1360
    %v1362 = vmul.f32 %v1349, 1.442695
    %v1363 = vpow.pop %v1362
    %v1364 = vmul.f32 %v1350, 1.442695
    %v1365 = vpow.pop %v1364
    %v1366 = vmul.f32 %v1351, 1.442695
    %v1367 = vpow.pop %v1366
    %v1368 = vsel %vm705, %v1353, 0.0
    %1369 = vadd.xlane.f32.xlu0 %v1368
    %v1370 = vpop.xlane.xlu0 %1369
    %v1371 = vsel %vm705, %v1355, 0.0
    %1372 = vadd.xlane.f32.xlu0 %v1371
    %v1373 = vpop.xlane.xlu0 %1372
    %v1374 = vsel %vm705, %v1357, 0.0
    %1375 = vadd.xlane.f32.xlu0 %v1374
    %v1376 = vpop.xlane.xlu0 %1375
    %v1377 = vsel %vm705, %v1359, 0.0
    %1378 = vadd.xlane.f32.xlu0 %v1377
    %v1379 = vpop.xlane.xlu0 %1378
    %v1380 = vsel %vm705, %v1361, 0.0
    %1381 = vadd.xlane.f32.xlu0 %v1380
    %v1382 = vpop.xlane.xlu0 %1381
    %v1383 = vsel %vm705, %v1363, 0.0
    %1384 = vadd.xlane.f32.xlu0 %v1383
    %v1385 = vpop.xlane.xlu0 %1384
    %v1386 = vsel %vm705, %v1365, 0.0
    %1387 = vadd.xlane.f32.xlu0 %v1386
    %v1388 = vpop.xlane.xlu0 %1387
    %v1389 = vsel %vm705, %v1367, 0.0
    %1390 = vadd.xlane.f32.xlu0 %v1389
    %v1391 = vpop.xlane.xlu0 %1390
    %v1392 = vrcp.pop %v1370
    %v1393 = vrcp.pop %v1373
    %v1394 = vrcp.pop %v1376
    %v1395 = vrcp.pop %v1379
    %v1396 = vrcp.pop %v1382
    %v1397 = vrcp.pop %v1385
    %v1398 = vrcp.pop %v1388
    %v1399 = vrcp.pop %v1391
    %v1400 = vmul.f32 %v1353, %v1392
    %v1401 = vmul.f32 %v1355, %v1393
    %v1402 = vmul.f32 %v1357, %v1394
    %v1403 = vmul.f32 %v1359, %v1395
    %v1404 = vmul.f32 %v1361, %v1396
    %v1405 = vmul.f32 %v1363, %v1397
    %v1406 = vmul.f32 %v1365, %v1398
    %v1407 = vmul.f32 %v1367, %v1399
    %v1409 = vsel %vm705, %v1400, 0
    %1411 = vmatprep.subr.mxu0 0.0
    %1412 = vmatpush1.msra.mxu0 %v647
    %1413 = vmatprep.subr.mxu0 0.0
    %1414 = vmatpush1.msra.mxu0 0.0
    %1415 = vmatprep.subr.mxu0 0.0
    %1416 = vmatpush1.msra.mxu0 0.0
    %1417 = vmatprep.subr.mxu0 0.0
    %1418 = vmatpush1.msra.mxu0 0.0
    %1419 = vmatprep.subr.mxu0 0.0
    %1420 = vmatpush1.msra.mxu0 0.0
    %1421 = vmatprep.subr.mxu0 0.0
    %1422 = vmatpush1.msra.mxu0 0.0
    %1423 = vmatprep.subr.mxu0 0.0
    %1424 = vmatpush1.msra.mxu0 0.0
    %1425 = vmatprep.subr.mxu0 0.0
    %1426 = vmatpush1.msra.mxu0 0.0
    %1427 = vmatprep.subr.mxu0 0.0
    %1428 = vmatpush1.msra.mxu0 0.0
    %1429 = vmatprep.subr.mxu0 0.0
    %1430 = vmatpush1.msra.mxu0 0.0
    %1431 = vmatprep.subr.mxu0 0.0
    %1432 = vmatpush1.msra.mxu0 0.0
    %1433 = vmatprep.subr.mxu0 0.0
    %1434 = vmatpush1.msra.mxu0 0.0
    %1435 = vmatprep.subr.mxu0 0.0
    %1436 = vmatpush1.msra.mxu0 0.0
    %1437 = vmatprep.subr.mxu0 0.0
    %1438 = vmatpush1.msra.mxu0 0.0
    %1439 = vmatprep.subr.mxu0 0.0
    %1440 = vmatpush1.msra.mxu0 0.0
    %1441 = vmatprep.subr.mxu0 0.0
    %1442 = vmatpush1.msra.mxu0 0.0
    %1443 = vmatprep.subr.mxu0 0.0
    %1444 = vmatpush1.msra.mxu0 0.0
    %1445 = vmatprep.subr.mxu0 0.0
    %1446 = vmatpush1.msra.mxu0 0.0
    %1447 = vmatprep.subr.mxu0 0.0
    %1448 = vmatpush1.msra.mxu0 0.0
    %1449 = vmatprep.subr.mxu0 0.0
    %1450 = vmatpush1.msra.mxu0 0.0
    %1451 = vmatprep.subr.mxu0 0.0
    %1452 = vmatpush1.msra.mxu0 0.0
    %1453 = vmatprep.subr.mxu0 0.0
    %1454 = vmatpush1.msra.mxu0 0.0
    %1455 = vmatprep.subr.mxu0 0.0
    %1456 = vmatpush1.msra.mxu0 0.0
    %1457 = vmatprep.subr.mxu0 0.0
    %1458 = vmatpush1.msra.mxu0 0.0
    %1459 = vmatprep.subr.mxu0 0.0
    %1460 = vmatpush1.msra.mxu0 0.0
    %1461 = vmatprep.subr.mxu0 0.0
    %1462 = vmatpush1.msra.mxu0 0.0
    %1463 = vmatprep.subr.mxu0 0.0
    %1464 = vmatpush1.msra.mxu0 0.0
    %1465 = vmatprep.subr.mxu0 0.0
    %1466 = vmatpush1.msra.mxu0 0.0
    %1467 = vmatprep.subr.mxu0 0.0
    %1468 = vmatpush1.msra.mxu0 0.0
    %1469 = vmatprep.subr.mxu0 0.0
    %1470 = vmatpush1.msra.mxu0 0.0
    %1471 = vmatprep.subr.mxu0 0.0
    %1472 = vmatpush1.msra.mxu0 0.0
    %1473 = vmatprep.subr.mxu0 0.0
    %1474 = vmatpush1.msra.mxu0 0.0
    %1475 = vmatprep.mubr.f32.mxu0 0.0
    %1476 = vmatmul.mubr.f32.gmra.mrb[0].mxu0 %v1409
    %v1477 = vpop.f32.mrb[0].mxu0
    %v1478 = vadd.f32 0.0, %v1477
    %v1479 = vpop.f32.mrb[0].mxu0
    %1480 = vdwg.mxu0
    %v1482 = vsel %vm705, %v1401, 0
    %1484 = vmatprep.subr.mxu0 0.0
    %1485 = vmatpush1.msra.mxu0 %v652
    %1486 = vmatprep.subr.mxu0 0.0
    %1487 = vmatpush1.msra.mxu0 0.0
    %1488 = vmatprep.subr.mxu0 0.0
    %1489 = vmatpush1.msra.mxu0 0.0
    %1490 = vmatprep.subr.mxu0 0.0
    %1491 = vmatpush1.msra.mxu0 0.0
    %1492 = vmatprep.subr.mxu0 0.0
    %1493 = vmatpush1.msra.mxu0 0.0
    %1494 = vmatprep.subr.mxu0 0.0
    %1495 = vmatpush1.msra.mxu0 0.0
    %1496 = vmatprep.subr.mxu0 0.0
    %1497 = vmatpush1.msra.mxu0 0.0
    %1498 = vmatprep.subr.mxu0 0.0
    %1499 = vmatpush1.msra.mxu0 0.0
    %1500 = vmatprep.subr.mxu0 0.0
    %1501 = vmatpush1.msra.mxu0 0.0
    %1502 = vmatprep.subr.mxu0 0.0
    %1503 = vmatpush1.msra.mxu0 0.0
    %1504 = vmatprep.subr.mxu0 0.0
    %1505 = vmatpush1.msra.mxu0 0.0
    %1506 = vmatprep.subr.mxu0 0.0
    %1507 = vmatpush1.msra.mxu0 0.0
    %1508 = vmatprep.subr.mxu0 0.0
    %1509 = vmatpush1.msra.mxu0 0.0
    %1510 = vmatprep.subr.mxu0 0.0
    %1511 = vmatpush1.msra.mxu0 0.0
    %1512 = vmatprep.subr.mxu0 0.0
    %1513 = vmatpush1.msra.mxu0 0.0
    %1514 = vmatprep.subr.mxu0 0.0
    %1515 = vmatpush1.msra.mxu0 0.0
    %1516 = vmatprep.subr.mxu0 0.0
    %1517 = vmatpush1.msra.mxu0 0.0
    %1518 = vmatprep.subr.mxu0 0.0
    %1519 = vmatpush1.msra.mxu0 0.0
    %1520 = vmatprep.subr.mxu0 0.0
    %1521 = vmatpush1.msra.mxu0 0.0
    %1522 = vmatprep.subr.mxu0 0.0
    %1523 = vmatpush1.msra.mxu0 0.0
    %1524 = vmatprep.subr.mxu0 0.0
    %1525 = vmatpush1.msra.mxu0 0.0
    %1526 = vmatprep.subr.mxu0 0.0
    %1527 = vmatpush1.msra.mxu0 0.0
    %1528 = vmatprep.subr.mxu0 0.0
    %1529 = vmatpush1.msra.mxu0 0.0
    %1530 = vmatprep.subr.mxu0 0.0
    %1531 = vmatpush1.msra.mxu0 0.0
    %1532 = vmatprep.subr.mxu0 0.0
    %1533 = vmatpush1.msra.mxu0 0.0
    %1534 = vmatprep.subr.mxu0 0.0
    %1535 = vmatpush1.msra.mxu0 0.0
    %1536 = vmatprep.subr.mxu0 0.0
    %1537 = vmatpush1.msra.mxu0 0.0
    %1538 = vmatprep.subr.mxu0 0.0
    %1539 = vmatpush1.msra.mxu0 0.0
    %1540 = vmatprep.subr.mxu0 0.0
    %1541 = vmatpush1.msra.mxu0 0.0
    %1542 = vmatprep.subr.mxu0 0.0
    %1543 = vmatpush1.msra.mxu0 0.0
    %1544 = vmatprep.subr.mxu0 0.0
    %1545 = vmatpush1.msra.mxu0 0.0
    %1546 = vmatprep.subr.mxu0 0.0
    %1547 = vmatpush1.msra.mxu0 0.0
    %1548 = vmatprep.mubr.f32.mxu0 0.0
    %1549 = vmatmul.mubr.f32.gmra.mrb[0].mxu0 %v1482
    %v1550 = vpop.f32.mrb[0].mxu0
    %v1551 = vadd.f32 0.0, %v1550
    %v1552 = vpop.f32.mrb[0].mxu0
    %1553 = vdwg.mxu0
    %v1555 = vsel %vm705, %v1402, 0
    %1557 = vmatprep.subr.mxu0 0.0
    %1558 = vmatpush1.msra.mxu0 %v686
    %1559 = vmatprep.subr.mxu0 0.0
    %1560 = vmatpush1.msra.mxu0 0.0
    %1561 = vmatprep.subr.mxu0 0.0
    %1562 = vmatpush1.msra.mxu0 0.0
    %1563 = vmatprep.subr.mxu0 0.0
    %1564 = vmatpush1.msra.mxu0 0.0
    %1565 = vmatprep.subr.mxu0 0.0
    %1566 = vmatpush1.msra.mxu0 0.0
    %1567 = vmatprep.subr.mxu0 0.0
    %1568 = vmatpush1.msra.mxu0 0.0
    %1569 = vmatprep.subr.mxu0 0.0
    %1570 = vmatpush1.msra.mxu0 0.0
    %1571 = vmatprep.subr.mxu0 0.0
    %1572 = vmatpush1.msra.mxu0 0.0
    %1573 = vmatprep.subr.mxu0 0.0
    %1574 = vmatpush1.msra.mxu0 0.0
    %1575 = vmatprep.subr.mxu0 0.0
    %1576 = vmatpush1.msra.mxu0 0.0
    %1577 = vmatprep.subr.mxu0 0.0
    %1578 = vmatpush1.msra.mxu0 0.0
    %1579 = vmatprep.subr.mxu0 0.0
    %1580 = vmatpush1.msra.mxu0 0.0
    %1581 = vmatprep.subr.mxu0 0.0
    %1582 = vmatpush1.msra.mxu0 0.0
    %1583 = vmatprep.subr.mxu0 0.0
    %1584 = vmatpush1.msra.mxu0 0.0
    %1585 = vmatprep.subr.mxu0 0.0
    %1586 = vmatpush1.msra.mxu0 0.0
    %1587 = vmatprep.subr.mxu0 0.0
    %1588 = vmatpush1.msra.mxu0 0.0
    %1589 = vmatprep.subr.mxu0 0.0
    %1590 = vmatpush1.msra.mxu0 0.0
    %1591 = vmatprep.subr.mxu0 0.0
    %1592 = vmatpush1.msra.mxu0 0.0
    %1593 = vmatprep.subr.mxu0 0.0
    %1594 = vmatpush1.msra.mxu0 0.0
    %1595 = vmatprep.subr.mxu0 0.0
    %1596 = vmatpush1.msra.mxu0 0.0
    %1597 = vmatprep.subr.mxu0 0.0
    %1598 = vmatpush1.msra.mxu0 0.0
    %1599 = vmatprep.subr.mxu0 0.0
    %1600 = vmatpush1.msra.mxu0 0.0
    %1601 = vmatprep.subr.mxu0 0.0
    %1602 = vmatpush1.msra.mxu0 0.0
    %1603 = vmatprep.subr.mxu0 0.0
    %1604 = vmatpush1.msra.mxu0 0.0
    %1605 = vmatprep.subr.mxu0 0.0
    %1606 = vmatpush1.msra.mxu0 0.0
    %1607 = vmatprep.subr.mxu0 0.0
    %1608 = vmatpush1.msra.mxu0 0.0
    %1609 = vmatprep.subr.mxu0 0.0
    %1610 = vmatpush1.msra.mxu0 0.0
    %1611 = vmatprep.subr.mxu0 0.0
    %1612 = vmatpush1.msra.mxu0 0.0
    %1613 = vmatprep.subr.mxu0 0.0
    %1614 = vmatpush1.msra.mxu0 0.0
    %1615 = vmatprep.subr.mxu0 0.0
    %1616 = vmatpush1.msra.mxu0 0.0
    %1617 = vmatprep.subr.mxu0 0.0
    %1618 = vmatpush1.msra.mxu0 0.0
    %1619 = vmatprep.subr.mxu0 0.0
    %1620 = vmatpush1.msra.mxu0 0.0
    %1621 = vmatprep.mubr.f32.mxu0 0.0
    %1622 = vmatmul.mubr.f32.gmra.mrb[0].mxu0 %v1555
    %v1623 = vpop.f32.mrb[0].mxu0
    %v1624 = vadd.f32 0.0, %v1623
    %v1625 = vpop.f32.mrb[0].mxu0
    %1626 = vdwg.mxu0
    %v1628 = vsel %vm705, %v1403, 0
    %1630 = vmatprep.subr.mxu0 0.0
    %1631 = vmatpush1.msra.mxu0 %v688
    %1632 = vmatprep.subr.mxu0 0.0
    %1633 = vmatpush1.msra.mxu0 0.0
    %1634 = vmatprep.subr.mxu0 0.0
    %1635 = vmatpush1.msra.mxu0 0.0
    %1636 = vmatprep.subr.mxu0 0.0
    %1637 = vmatpush1.msra.mxu0 0.0
    %1638 = vmatprep.subr.mxu0 0.0
    %1639 = vmatpush1.msra.mxu0 0.0
    %1640 = vmatprep.subr.mxu0 0.0
    %1641 = vmatpush1.msra.mxu0 0.0
    %1642 = vmatprep.subr.mxu0 0.0
    %1643 = vmatpush1.msra.mxu0 0.0
    %1644 = vmatprep.subr.mxu0 0.0
    %1645 = vmatpush1.msra.mxu0 0.0
    %1646 = vmatprep.subr.mxu0 0.0
    %1647 = vmatpush1.msra.mxu0 0.0
    %1648 = vmatprep.subr.mxu0 0.0
    %1649 = vmatpush1.msra.mxu0 0.0
    %1650 = vmatprep.subr.mxu0 0.0
    %1651 = vmatpush1.msra.mxu0 0.0
    %1652 = vmatprep.subr.mxu0 0.0
    %1653 = vmatpush1.msra.mxu0 0.0
    %1654 = vmatprep.subr.mxu0 0.0
    %1655 = vmatpush1.msra.mxu0 0.0
    %1656 = vmatprep.subr.mxu0 0.0
    %1657 = vmatpush1.msra.mxu0 0.0
    %1658 = vmatprep.subr.mxu0 0.0
    %1659 = vmatpush1.msra.mxu0 0.0
    %1660 = vmatprep.subr.mxu0 0.0
    %1661 = vmatpush1.msra.mxu0 0.0
    %1662 = vmatprep.subr.mxu0 0.0
    %1663 = vmatpush1.msra.mxu0 0.0
    %1664 = vmatprep.subr.mxu0 0.0
    %1665 = vmatpush1.msra.mxu0 0.0
    %1666 = vmatprep.subr.mxu0 0.0
    %1667 = vmatpush1.msra.mxu0 0.0
    %1668 = vmatprep.subr.mxu0 0.0
    %1669 = vmatpush1.msra.mxu0 0.0
    %1670 = vmatprep.subr.mxu0 0.0
    %1671 = vmatpush1.msra.mxu0 0.0
    %1672 = vmatprep.subr.mxu0 0.0
    %1673 = vmatpush1.msra.mxu0 0.0
    %1674 = vmatprep.subr.mxu0 0.0
    %1675 = vmatpush1.msra.mxu0 0.0
    %1676 = vmatprep.subr.mxu0 0.0
    %1677 = vmatpush1.msra.mxu0 0.0
    %1678 = vmatprep.subr.mxu0 0.0
    %1679 = vmatpush1.msra.mxu0 0.0
    %1680 = vmatprep.subr.mxu0 0.0
    %1681 = vmatpush1.msra.mxu0 0.0
    %1682 = vmatprep.subr.mxu0 0.0
    %1683 = vmatpush1.msra.mxu0 0.0
    %1684 = vmatprep.subr.mxu0 0.0
    %1685 = vmatpush1.msra.mxu0 0.0
    %1686 = vmatprep.subr.mxu0 0.0
    %1687 = vmatpush1.msra.mxu0 0.0
    %1688 = vmatprep.subr.mxu0 0.0
    %1689 = vmatpush1.msra.mxu0 0.0
    %1690 = vmatprep.subr.mxu0 0.0
    %1691 = vmatpush1.msra.mxu0 0.0
    %1692 = vmatprep.subr.mxu0 0.0
    %1693 = vmatpush1.msra.mxu0 0.0
    %1694 = vmatprep.mubr.f32.mxu0 0.0
    %1695 = vmatmul.mubr.f32.gmra.mrb[0].mxu0 %v1628
    %v1696 = vpop.f32.mrb[0].mxu0
    %v1697 = vadd.f32 0.0, %v1696
    %v1698 = vpop.f32.mrb[0].mxu0
    %1699 = vdwg.mxu0
    %v1701 = vsel %vm705, %v1404, 0
    %1703 = vmatprep.subr.mxu0 0.0
    %1704 = vmatpush1.msra.mxu0 %v692
    %1705 = vmatprep.subr.mxu0 0.0
    %1706 = vmatpush1.msra.mxu0 0.0
    %1707 = vmatprep.subr.mxu0 0.0
    %1708 = vmatpush1.msra.mxu0 0.0
    %1709 = vmatprep.subr.mxu0 0.0
    %1710 = vmatpush1.msra.mxu0 0.0
    %1711 = vmatprep.subr.mxu0 0.0
    %1712 = vmatpush1.msra.mxu0 0.0
    %1713 = vmatprep.subr.mxu0 0.0
    %1714 = vmatpush1.msra.mxu0 0.0
    %1715 = vmatprep.subr.mxu0 0.0
    %1716 = vmatpush1.msra.mxu0 0.0
    %1717 = vmatprep.subr.mxu0 0.0
    %1718 = vmatpush1.msra.mxu0 0.0
    %1719 = vmatprep.subr.mxu0 0.0
    %1720 = vmatpush1.msra.mxu0 0.0
    %1721 = vmatprep.subr.mxu0 0.0
    %1722 = vmatpush1.msra.mxu0 0.0
    %1723 = vmatprep.subr.mxu0 0.0
    %1724 = vmatpush1.msra.mxu0 0.0
    %1725 = vmatprep.subr.mxu0 0.0
    %1726 = vmatpush1.msra.mxu0 0.0
    %1727 = vmatprep.subr.mxu0 0.0
    %1728 = vmatpush1.msra.mxu0 0.0
    %1729 = vmatprep.subr.mxu0 0.0
    %1730 = vmatpush1.msra.mxu0 0.0
    %1731 = vmatprep.subr.mxu0 0.0
    %1732 = vmatpush1.msra.mxu0 0.0
    %1733 = vmatprep.subr.mxu0 0.0
    %1734 = vmatpush1.msra.mxu0 0.0
    %1735 = vmatprep.subr.mxu0 0.0
    %1736 = vmatpush1.msra.mxu0 0.0
    %1737 = vmatprep.subr.mxu0 0.0
    %1738 = vmatpush1.msra.mxu0 0.0
    %1739 = vmatprep.subr.mxu0 0.0
    %1740 = vmatpush1.msra.mxu0 0.0
    %1741 = vmatprep.subr.mxu0 0.0
    %1742 = vmatpush1.msra.mxu0 0.0
    %1743 = vmatprep.subr.mxu0 0.0
    %1744 = vmatpush1.msra.mxu0 0.0
    %1745 = vmatprep.subr.mxu0 0.0
    %1746 = vmatpush1.msra.mxu0 0.0
    %1747 = vmatprep.subr.mxu0 0.0
    %1748 = vmatpush1.msra.mxu0 0.0
    %1749 = vmatprep.subr.mxu0 0.0
    %1750 = vmatpush1.msra.mxu0 0.0
    %1751 = vmatprep.subr.mxu0 0.0
    %1752 = vmatpush1.msra.mxu0 0.0
    %1753 = vmatprep.subr.mxu0 0.0
    %1754 = vmatpush1.msra.mxu0 0.0
    %1755 = vmatprep.subr.mxu0 0.0
    %1756 = vmatpush1.msra.mxu0 0.0
    %1757 = vmatprep.subr.mxu0 0.0
    %1758 = vmatpush1.msra.mxu0 0.0
    %1759 = vmatprep.subr.mxu0 0.0
    %1760 = vmatpush1.msra.mxu0 0.0
    %1761 = vmatprep.subr.mxu0 0.0
    %1762 = vmatpush1.msra.mxu0 0.0
    %1763 = vmatprep.subr.mxu0 0.0
    %1764 = vmatpush1.msra.mxu0 0.0
    %1765 = vmatprep.subr.mxu0 0.0
    %1766 = vmatpush1.msra.mxu0 0.0
    %1767 = vmatprep.mubr.f32.mxu0 0.0
    %1768 = vmatmul.mubr.f32.gmra.mrb[0].mxu0 %v1701
    %v1769 = vpop.f32.mrb[0].mxu0
    %v1770 = vadd.f32 0.0, %v1769
    %v1771 = vpop.f32.mrb[0].mxu0
    %1772 = vdwg.mxu0
    %v1774 = vsel %vm705, %v1405, 0
    %1776 = vmatprep.subr.mxu0 0.0
    %1777 = vmatpush1.msra.mxu0 %v694
    %1778 = vmatprep.subr.mxu0 0.0
    %1779 = vmatpush1.msra.mxu0 0.0
    %1780 = vmatprep.subr.mxu0 0.0
    %1781 = vmatpush1.msra.mxu0 0.0
    %1782 = vmatprep.subr.mxu0 0.0
    %1783 = vmatpush1.msra.mxu0 0.0
    %1784 = vmatprep.subr.mxu0 0.0
    %1785 = vmatpush1.msra.mxu0 0.0
    %1786 = vmatprep.subr.mxu0 0.0
    %1787 = vmatpush1.msra.mxu0 0.0
    %1788 = vmatprep.subr.mxu0 0.0
    %1789 = vmatpush1.msra.mxu0 0.0
    %1790 = vmatprep.subr.mxu0 0.0
    %1791 = vmatpush1.msra.mxu0 0.0
    %1792 = vmatprep.subr.mxu0 0.0
    %1793 = vmatpush1.msra.mxu0 0.0
    %1794 = vmatprep.subr.mxu0 0.0
    %1795 = vmatpush1.msra.mxu0 0.0
    %1796 = vmatprep.subr.mxu0 0.0
    %1797 = vmatpush1.msra.mxu0 0.0
    %1798 = vmatprep.subr.mxu0 0.0
    %1799 = vmatpush1.msra.mxu0 0.0
    %1800 = vmatprep.subr.mxu0 0.0
    %1801 = vmatpush1.msra.mxu0 0.0
    %1802 = vmatprep.subr.mxu0 0.0
    %1803 = vmatpush1.msra.mxu0 0.0
    %1804 = vmatprep.subr.mxu0 0.0
    %1805 = vmatpush1.msra.mxu0 0.0
    %1806 = vmatprep.subr.mxu0 0.0
    %1807 = vmatpush1.msra.mxu0 0.0
    %1808 = vmatprep.subr.mxu0 0.0
    %1809 = vmatpush1.msra.mxu0 0.0
    %1810 = vmatprep.subr.mxu0 0.0
    %1811 = vmatpush1.msra.mxu0 0.0
    %1812 = vmatprep.subr.mxu0 0.0
    %1813 = vmatpush1.msra.mxu0 0.0
    %1814 = vmatprep.subr.mxu0 0.0
    %1815 = vmatpush1.msra.mxu0 0.0
    %1816 = vmatprep.subr.mxu0 0.0
    %1817 = vmatpush1.msra.mxu0 0.0
    %1818 = vmatprep.subr.mxu0 0.0
    %1819 = vmatpush1.msra.mxu0 0.0
    %1820 = vmatprep.subr.mxu0 0.0
    %1821 = vmatpush1.msra.mxu0 0.0
    %1822 = vmatprep.subr.mxu0 0.0
    %1823 = vmatpush1.msra.mxu0 0.0
    %1824 = vmatprep.subr.mxu0 0.0
    %1825 = vmatpush1.msra.mxu0 0.0
    %1826 = vmatprep.subr.mxu0 0.0
    %1827 = vmatpush1.msra.mxu0 0.0
    %1828 = vmatprep.subr.mxu0 0.0
    %1829 = vmatpush1.msra.mxu0 0.0
    %1830 = vmatprep.subr.mxu0 0.0
    %1831 = vmatpush1.msra.mxu0 0.0
    %1832 = vmatprep.subr.mxu0 0.0
    %1833 = vmatpush1.msra.mxu0 0.0
    %1834 = vmatprep.subr.mxu0 0.0
    %1835 = vmatpush1.msra.mxu0 0.0
    %1836 = vmatprep.subr.mxu0 0.0
    %1837 = vmatpush1.msra.mxu0 0.0
    %1838 = vmatprep.subr.mxu0 0.0
    %1839 = vmatpush1.msra.mxu0 0.0
    %1840 = vmatprep.mubr.f32.mxu0 0.0
    %1841 = vmatmul.mubr.f32.gmra.mrb[0].mxu0 %v1774
    %v1842 = vpop.f32.mrb[0].mxu0
    %v1843 = vadd.f32 0.0, %v1842
    %v1844 = vpop.f32.mrb[0].mxu0
    %1845 = vdwg.mxu0
    %v1847 = vsel %vm705, %v1406, 0
    %1849 = vmatprep.subr.mxu0 0.0
    %1850 = vmatpush1.msra.mxu0 %v698
    %1851 = vmatprep.subr.mxu0 0.0
    %1852 = vmatpush1.msra.mxu0 0.0
    %1853 = vmatprep.subr.mxu0 0.0
    %1854 = vmatpush1.msra.mxu0 0.0
    %1855 = vmatprep.subr.mxu0 0.0
    %1856 = vmatpush1.msra.mxu0 0.0
    %1857 = vmatprep.subr.mxu0 0.0
    %1858 = vmatpush1.msra.mxu0 0.0
    %1859 = vmatprep.subr.mxu0 0.0
    %1860 = vmatpush1.msra.mxu0 0.0
    %1861 = vmatprep.subr.mxu0 0.0
    %1862 = vmatpush1.msra.mxu0 0.0
    %1863 = vmatprep.subr.mxu0 0.0
    %1864 = vmatpush1.msra.mxu0 0.0
    %1865 = vmatprep.subr.mxu0 0.0
    %1866 = vmatpush1.msra.mxu0 0.0
    %1867 = vmatprep.subr.mxu0 0.0
    %1868 = vmatpush1.msra.mxu0 0.0
    %1869 = vmatprep.subr.mxu0 0.0
    %1870 = vmatpush1.msra.mxu0 0.0
    %1871 = vmatprep.subr.mxu0 0.0
    %1872 = vmatpush1.msra.mxu0 0.0
    %1873 = vmatprep.subr.mxu0 0.0
    %1874 = vmatpush1.msra.mxu0 0.0
    %1875 = vmatprep.subr.mxu0 0.0
    %1876 = vmatpush1.msra.mxu0 0.0
    %1877 = vmatprep.subr.mxu0 0.0
    %1878 = vmatpush1.msra.mxu0 0.0
    %1879 = vmatprep.subr.mxu0 0.0
    %1880 = vmatpush1.msra.mxu0 0.0
    %1881 = vmatprep.subr.mxu0 0.0
    %1882 = vmatpush1.msra.mxu0 0.0
    %1883 = vmatprep.subr.mxu0 0.0
    %1884 = vmatpush1.msra.mxu0 0.0
    %1885 = vmatprep.subr.mxu0 0.0
    %1886 = vmatpush1.msra.mxu0 0.0
    %1887 = vmatprep.subr.mxu0 0.0
    %1888 = vmatpush1.msra.mxu0 0.0
    %1889 = vmatprep.subr.mxu0 0.0
    %1890 = vmatpush1.msra.mxu0 0.0
    %1891 = vmatprep.subr.mxu0 0.0
    %1892 = vmatpush1.msra.mxu0 0.0
    %1893 = vmatprep.subr.mxu0 0.0
    %1894 = vmatpush1.msra.mxu0 0.0
    %1895 = vmatprep.subr.mxu0 0.0
    %1896 = vmatpush1.msra.mxu0 0.0
    %1897 = vmatprep.subr.mxu0 0.0
    %1898 = vmatpush1.msra.mxu0 0.0
    %1899 = vmatprep.subr.mxu0 0.0
    %1900 = vmatpush1.msra.mxu0 0.0
    %1901 = vmatprep.subr.mxu0 0.0
    %1902 = vmatpush1.msra.mxu0 0.0
    %1903 = vmatprep.subr.mxu0 0.0
    %1904 = vmatpush1.msra.mxu0 0.0
    %1905 = vmatprep.subr.mxu0 0.0
    %1906 = vmatpush1.msra.mxu0 0.0
    %1907 = vmatprep.subr.mxu0 0.0
    %1908 = vmatpush1.msra.mxu0 0.0
    %1909 = vmatprep.subr.mxu0 0.0
    %1910 = vmatpush1.msra.mxu0 0.0
    %1911 = vmatprep.subr.mxu0 0.0
    %1912 = vmatpush1.msra.mxu0 0.0
    %1913 = vmatprep.mubr.f32.mxu0 0.0
    %1914 = vmatmul.mubr.f32.gmra.mrb[0].mxu0 %v1847
    %v1915 = vpop.f32.mrb[0].mxu0
    %v1916 = vadd.f32 0.0, %v1915
    %v1917 = vpop.f32.mrb[0].mxu0
    %1918 = vdwg.mxu0
    %v1920 = vsel %vm705, %v1407, 0
    %1922 = vmatprep.subr.mxu0 0.0
    %1923 = vmatpush1.msra.mxu0 %v700
    %1924 = vmatprep.subr.mxu0 0.0
    %1925 = vmatpush1.msra.mxu0 0.0
    %1926 = vmatprep.subr.mxu0 0.0
    %1927 = vmatpush1.msra.mxu0 0.0
    %1928 = vmatprep.subr.mxu0 0.0
    %1929 = vmatpush1.msra.mxu0 0.0
    %1930 = vmatprep.subr.mxu0 0.0
    %1931 = vmatpush1.msra.mxu0 0.0
    %1932 = vmatprep.subr.mxu0 0.0
    %1933 = vmatpush1.msra.mxu0 0.0
    %1934 = vmatprep.subr.mxu0 0.0
    %1935 = vmatpush1.msra.mxu0 0.0
    %1936 = vmatprep.subr.mxu0 0.0
    %1937 = vmatpush1.msra.mxu0 0.0
    %1938 = vmatprep.subr.mxu0 0.0
    %1939 = vmatpush1.msra.mxu0 0.0
    %1940 = vmatprep.subr.mxu0 0.0
    %1941 = vmatpush1.msra.mxu0 0.0
    %1942 = vmatprep.subr.mxu0 0.0
    %1943 = vmatpush1.msra.mxu0 0.0
    %1944 = vmatprep.subr.mxu0 0.0
    %1945 = vmatpush1.msra.mxu0 0.0
    %1946 = vmatprep.subr.mxu0 0.0
    %1947 = vmatpush1.msra.mxu0 0.0
    %1948 = vmatprep.subr.mxu0 0.0
    %1949 = vmatpush1.msra.mxu0 0.0
    %1950 = vmatprep.subr.mxu0 0.0
    %1951 = vmatpush1.msra.mxu0 0.0
    %1952 = vmatprep.subr.mxu0 0.0
    %1953 = vmatpush1.msra.mxu0 0.0
    %1954 = vmatprep.subr.mxu0 0.0
    %1955 = vmatpush1.msra.mxu0 0.0
    %1956 = vmatprep.subr.mxu0 0.0
    %1957 = vmatpush1.msra.mxu0 0.0
    %1958 = vmatprep.subr.mxu0 0.0
    %1959 = vmatpush1.msra.mxu0 0.0
    %1960 = vmatprep.subr.mxu0 0.0
    %1961 = vmatpush1.msra.mxu0 0.0
    %1962 = vmatprep.subr.mxu0 0.0
    %1963 = vmatpush1.msra.mxu0 0.0
    %1964 = vmatprep.subr.mxu0 0.0
    %1965 = vmatpush1.msra.mxu0 0.0
    %1966 = vmatprep.subr.mxu0 0.0
    %1967 = vmatpush1.msra.mxu0 0.0
    %1968 = vmatprep.subr.mxu0 0.0
    %1969 = vmatpush1.msra.mxu0 0.0
    %1970 = vmatprep.subr.mxu0 0.0
    %1971 = vmatpush1.msra.mxu0 0.0
    %1972 = vmatprep.subr.mxu0 0.0
    %1973 = vmatpush1.msra.mxu0 0.0
    %1974 = vmatprep.subr.mxu0 0.0
    %1975 = vmatpush1.msra.mxu0 0.0
    %1976 = vmatprep.subr.mxu0 0.0
    %1977 = vmatpush1.msra.mxu0 0.0
    %1978 = vmatprep.subr.mxu0 0.0
    %1979 = vmatpush1.msra.mxu0 0.0
    %1980 = vmatprep.subr.mxu0 0.0
    %1981 = vmatpush1.msra.mxu0 0.0
    %1982 = vmatprep.subr.mxu0 0.0
    %1983 = vmatpush1.msra.mxu0 0.0
    %1984 = vmatprep.subr.mxu0 0.0
    %1985 = vmatpush1.msra.mxu0 0.0
    %1986 = vmatprep.mubr.f32.mxu0 0.0
    %1987 = vmatmul.mubr.f32.gmra.mrb[0].mxu0 %v1920
    %v1988 = vpop.f32.mrb[0].mxu0
    %v1989 = vadd.f32 0.0, %v1988
    %v1990 = vpop.f32.mrb[0].mxu0
    %1991 = vdwg.mxu0
    %1994 = vrot.lane.b32.xlu0 %v1624, 8
    %v1995 = vpop.permute.xlu0 %1994
    %1996 = vrot.lane.b32.xlu0 %v1697, 8
    %v1997 = vpop.permute.xlu0 %1996
    %2002 = vrot.lane.b32.xlu0 %v1770, 16
    %v2003 = vpop.permute.xlu0 %2002
    %2004 = vrot.lane.b32.xlu0 %v1843, 16
    %v2005 = vpop.permute.xlu0 %2004
    %2010 = vrot.lane.b32.xlu0 %v1916, 24
    %v2011 = vpop.permute.xlu0 %2010
    %2012 = vrot.lane.b32.xlu0 %v1989, 24
    %v2013 = vpop.permute.xlu0 %2012
    %v2016 = vsel %vm705, %v1478, %v1995
    %v2017 = vsel %vm705, %v1551, %v1997
    %vm2018 = vcmask 130048
    %v2019 = vsel %vm2018, %v2016, %v2003
    %v2020 = vsel %vm2018, %v2017, %v2005
    %vm2021 = vcmask 195584
    %v2022 = vsel %vm2021, %v2019, %v2011
    %v2023 = vsel %vm2021, %v2020, %v2013
    %s2024 = scalar_lea.vmem [#allocation11], 32
    %v2025 = vld [vmem:[%s2024] sm:$0xff]
    %v2026 = vld [vmem:[%s2024 + $0x8] sm:$0xff]
    %v2027 = vld [vmem:[%s2024 + $0x10] sm:$0xff]
    %v2028 = vld [vmem:[%s2024 + $0x18] sm:$0xff]
    %v2029 = vld [vmem:[%s9 + $0x1] sm:$0x1]
    %v2030 = vlaneseq
    %v2031 = vshrl.u32 %v2030, 7
    %v2032 = vsub.s32 0, %v2031
    %v2033 = vrot.slane %v2029, %v2032
    %v2035 = vsel %vm174, %v2022, 0
    %v2038 = vsel %vm174, %v2023, 0
    %2040 = vmatprep.subr.mxu0 0.0
    %2041 = vmatpush1.msra.mxu0 %v2025
    %2042 = vmatprep.subr.mxu0 0.0
    %2043 = vmatpush1.msra.mxu0 %v2026
    %2044 = vmatprep.subr.mxu0 0.0
    %2045 = vmatpush1.msra.mxu0 %v2027
    %2046 = vmatprep.subr.mxu0 0.0
    %2047 = vmatpush1.msra.mxu0 %v2028
    %2048 = vmatprep.subr.mxu0 0.0
    %2049 = vmatpush1.msra.mxu0 0.0
    %2050 = vmatprep.subr.mxu0 0.0
    %2051 = vmatpush1.msra.mxu0 0.0
    %2052 = vmatprep.subr.mxu0 0.0
    %2053 = vmatpush1.msra.mxu0 0.0
    %2054 = vmatprep.subr.mxu0 0.0
    %2055 = vmatpush1.msra.mxu0 0.0
    %2056 = vmatprep.subr.mxu0 0.0
    %2057 = vmatpush1.msra.mxu0 0.0
    %2058 = vmatprep.subr.mxu0 0.0
    %2059 = vmatpush1.msra.mxu0 0.0
    %2060 = vmatprep.subr.mxu0 0.0
    %2061 = vmatpush1.msra.mxu0 0.0
    %2062 = vmatprep.subr.mxu0 0.0
    %2063 = vmatpush1.msra.mxu0 0.0
    %2064 = vmatprep.subr.mxu0 0.0
    %2065 = vmatpush1.msra.mxu0 0.0
    %2066 = vmatprep.subr.mxu0 0.0
    %2067 = vmatpush1.msra.mxu0 0.0
    %2068 = vmatprep.subr.mxu0 0.0
    %2069 = vmatpush1.msra.mxu0 0.0
    %2070 = vmatprep.subr.mxu0 0.0
    %2071 = vmatpush1.msra.mxu0 0.0
    %2072 = vmatprep.subr.mxu0 0.0
    %2073 = vmatpush1.msra.mxu0 0.0
    %2074 = vmatprep.subr.mxu0 0.0
    %2075 = vmatpush1.msra.mxu0 0.0
    %2076 = vmatprep.subr.mxu0 0.0
    %2077 = vmatpush1.msra.mxu0 0.0
    %2078 = vmatprep.subr.mxu0 0.0
    %2079 = vmatpush1.msra.mxu0 0.0
    %2080 = vmatprep.subr.mxu0 0.0
    %2081 = vmatpush1.msra.mxu0 0.0
    %2082 = vmatprep.subr.mxu0 0.0
    %2083 = vmatpush1.msra.mxu0 0.0
    %2084 = vmatprep.subr.mxu0 0.0
    %2085 = vmatpush1.msra.mxu0 0.0
    %2086 = vmatprep.subr.mxu0 0.0
    %2087 = vmatpush1.msra.mxu0 0.0
    %2088 = vmatprep.subr.mxu0 0.0
    %2089 = vmatpush1.msra.mxu0 0.0
    %2090 = vmatprep.subr.mxu0 0.0
    %2091 = vmatpush1.msra.mxu0 0.0
    %2092 = vmatprep.subr.mxu0 0.0
    %2093 = vmatpush1.msra.mxu0 0.0
    %2094 = vmatprep.subr.mxu0 0.0
    %2095 = vmatpush1.msra.mxu0 0.0
    %2096 = vmatprep.subr.mxu0 0.0
    %2097 = vmatpush1.msra.mxu0 0.0
    %2098 = vmatprep.subr.mxu0 0.0
    %2099 = vmatpush1.msra.mxu0 0.0
    %2100 = vmatprep.subr.mxu0 0.0
    %2101 = vmatpush1.msra.mxu0 0.0
    %2102 = vmatprep.subr.mxu0 0.0
    %2103 = vmatpush1.msra.mxu0 0.0
    %2104 = vmatprep.mubr.f32.mxu0 0.0
    %2105 = vmatmul.mubr.f32.gmra.mrb[0].mxu0 %v2035
    %v2106 = vpop.f32.mrb[0].mxu0
    %v2107 = vadd.f32 %v2033, %v2106
    %v2108 = vpop.f32.mrb[0].mxu0
    %2109 = vmatprep.mubr.f32.mxu0 0.0
    %2110 = vmatmul.mubr.f32.gmra.mrb[0].mxu0 %v2038
    %v2111 = vpop.f32.mrb[0].mxu0
    %v2112 = vadd.f32 %v2033, %v2111
    %v2113 = vpop.f32.mrb[0].mxu0
    %2114 = vdwg.mxu0
    %v2115 = vadd.f32 %v248, %v2107
    %v2116 = vadd.f32 %v253, %v2112
    %v2117 = vld [vmem:[%s9 + $0x4] sm:$0x1]
    %v2118 = vld [vmem:[%s9 + $0x5] sm:$0x1]
    %v2119 = vsel %vm174, %v2115, 0.0
    %2120 = vadd.xlane.f32.xlu0 %v2119
    %v2121 = vpop.xlane.xlu0 %2120
    %v2122 = vsel %vm174, %v2116, 0.0
    %2123 = vadd.xlane.f32.xlu0 %v2122
    %v2124 = vpop.xlane.xlu0 %2123
    %v2125 = vrcp.pop 32.0
    %v2126 = vmul.f32 %v2121, %v2125
    %v2127 = vmul.f32 %v2124, %v2125
    %v2128 = vsub.f32 %v2115, %v2126
    %v2129 = vsub.f32 %v2116, %v2127
    %v2130 = vmul.f32 %v2128, %v2128
    %v2131 = vmul.f32 %v2129, %v2129
    %v2132 = vsel %vm174, %v2130, 0.0
    %2133 = vadd.xlane.f32.xlu0 %v2132
    %v2134 = vpop.xlane.xlu0 %2133
    %v2135 = vsel %vm174, %v2131, 0.0
    %2136 = vadd.xlane.f32.xlu0 %v2135
    %v2137 = vpop.xlane.xlu0 %2136
    %v2138 = vmul.f32 %v2134, %v2125
    %v2139 = vmul.f32 %v2137, %v2125
    %v2140 = vadd.f32 %v2138, 1e-05
    %v2141 = vadd.f32 %v2139, 1e-05
    %v2142 = vrsqrt.pop %v2140
    %v2143 = vrsqrt.pop %v2141
    %v2144 = vmul.f32 %v2128, %v2142
    %v2145 = vmul.f32 %v2129, %v2143
    %v2146 = vlaneseq
    %v2147 = vshrl.u32 %v2146, 7
    %v2148 = vsub.s32 0, %v2147
    %v2149 = vrot.slane %v2117, %v2148
    %v2150 = vmul.f32 %v2144, %v2149
    %v2151 = vmul.f32 %v2145, %v2149
    %v2152 = vlaneseq
    %v2153 = vshrl.u32 %v2152, 7
    %v2154 = vsub.s32 0, %v2153
    %v2155 = vrot.slane %v2118, %v2154
    %v2156 = vadd.f32 %v2150, %v2155
    %v2157 = vadd.f32 %v2151, %v2155
    %v2158 = vadd.f32 %v2156, %v157
    %v2159 = vadd.f32 %v2157, %v158
    %s2160 = scalar_lea.vmem [#allocation11], 64
    %v2161 = vld [vmem:[%s2160] sm:$0xff]
    %v2162 = vld [vmem:[%s2160 + $0x8] sm:$0xff]
    %v2163 = vld [vmem:[%s2160 + $0x10] sm:$0xff]
    %v2164 = vld [vmem:[%s2160 + $0x18] sm:$0xff]
    %v2165 = vld [vmem:[%s9 + $0x2] sm:$0x1]
    %v2166 = vlaneseq
    %v2167 = vshrl.u32 %v2166, 7
    %v2168 = vsub.s32 0, %v2167
    %v2169 = vrot.slane %v2165, %v2168
    %v2171 = vsel %vm174, %v2158, 0
    %v2174 = vsel %vm174, %v2159, 0
    %2176 = vmatprep.subr.mxu0 0.0
    %2177 = vmatpush1.msra.mxu0 %v2161
    %2178 = vmatprep.subr.mxu0 0.0
    %2179 = vmatpush1.msra.mxu0 %v2162
    %2180 = vmatprep.subr.mxu0 0.0
    %2181 = vmatpush1.msra.mxu0 %v2163
    %2182 = vmatprep.subr.mxu0 0.0
    %2183 = vmatpush1.msra.mxu0 %v2164
    %2184 = vmatprep.subr.mxu0 0.0
    %2185 = vmatpush1.msra.mxu0 0.0
    %2186 = vmatprep.subr.mxu0 0.0
    %2187 = vmatpush1.msra.mxu0 0.0
    %2188 = vmatprep.subr.mxu0 0.0
    %2189 = vmatpush1.msra.mxu0 0.0
    %2190 = vmatprep.subr.mxu0 0.0
    %2191 = vmatpush1.msra.mxu0 0.0
    %2192 = vmatprep.subr.mxu0 0.0
    %2193 = vmatpush1.msra.mxu0 0.0
    %2194 = vmatprep.subr.mxu0 0.0
    %2195 = vmatpush1.msra.mxu0 0.0
    %2196 = vmatprep.subr.mxu0 0.0
    %2197 = vmatpush1.msra.mxu0 0.0
    %2198 = vmatprep.subr.mxu0 0.0
    %2199 = vmatpush1.msra.mxu0 0.0
    %2200 = vmatprep.subr.mxu0 0.0
    %2201 = vmatpush1.msra.mxu0 0.0
    %2202 = vmatprep.subr.mxu0 0.0
    %2203 = vmatpush1.msra.mxu0 0.0
    %2204 = vmatprep.subr.mxu0 0.0
    %2205 = vmatpush1.msra.mxu0 0.0
    %2206 = vmatprep.subr.mxu0 0.0
    %2207 = vmatpush1.msra.mxu0 0.0
    %2208 = vmatprep.subr.mxu0 0.0
    %2209 = vmatpush1.msra.mxu0 0.0
    %2210 = vmatprep.subr.mxu0 0.0
    %2211 = vmatpush1.msra.mxu0 0.0
    %2212 = vmatprep.subr.mxu0 0.0
    %2213 = vmatpush1.msra.mxu0 0.0
    %2214 = vmatprep.subr.mxu0 0.0
    %2215 = vmatpush1.msra.mxu0 0.0
    %2216 = vmatprep.subr.mxu0 0.0
    %2217 = vmatpush1.msra.mxu0 0.0
    %2218 = vmatprep.subr.mxu0 0.0
    %2219 = vmatpush1.msra.mxu0 0.0
    %2220 = vmatprep.subr.mxu0 0.0
    %2221 = vmatpush1.msra.mxu0 0.0
    %2222 = vmatprep.subr.mxu0 0.0
    %2223 = vmatpush1.msra.mxu0 0.0
    %2224 = vmatprep.subr.mxu0 0.0
    %2225 = vmatpush1.msra.mxu0 0.0
    %2226 = vmatprep.subr.mxu0 0.0
    %2227 = vmatpush1.msra.mxu0 0.0
    %2228 = vmatprep.subr.mxu0 0.0
    %2229 = vmatpush1.msra.mxu0 0.0
    %2230 = vmatprep.subr.mxu0 0.0
    %2231 = vmatpush1.msra.mxu0 0.0
    %2232 = vmatprep.subr.mxu0 0.0
    %2233 = vmatpush1.msra.mxu0 0.0
    %2234 = vmatprep.subr.mxu0 0.0
    %2235 = vmatpush1.msra.mxu0 0.0
    %2236 = vmatprep.subr.mxu0 0.0
    %2237 = vmatpush1.msra.mxu0 0.0
    %2238 = vmatprep.subr.mxu0 0.0
    %2239 = vmatpush1.msra.mxu0 0.0
    %2240 = vmatprep.mubr.f32.mxu0 0.0
    %2241 = vmatmul.mubr.f32.gmra.mrb[0].mxu0 %v2171
    %v2242 = vpop.f32.mrb[0].mxu0
    %v2243 = vadd.f32 %v2169, %v2242
    %v2244 = vpop.f32.mrb[0].mxu0
    %2245 = vmatprep.mubr.f32.mxu0 0.0
    %2246 = vmatmul.mubr.f32.gmra.mrb[0].mxu0 %v2174
    %v2247 = vpop.f32.mrb[0].mxu0
    %v2248 = vadd.f32 %v2169, %v2247
    %v2249 = vpop.f32.mrb[0].mxu0
    %2250 = vdwg.mxu0
    %2253 = vrot.lane.b32.xlu0 %v2243, 120
    %v2254 = vpop.permute.xlu0 %2253
    %2255 = vrot.lane.b32.xlu0 %v2248, 120
    %v2256 = vpop.permute.xlu0 %2255
    %2259 = vrot.lane.b32.xlu0 %v2243, 112
    %v2260 = vpop.permute.xlu0 %2259
    %2261 = vrot.lane.b32.xlu0 %v2248, 112
    %v2262 = vpop.permute.xlu0 %2261
    %2265 = vrot.lane.b32.xlu0 %v2243, 104
    %v2266 = vpop.permute.xlu0 %2265
    %2267 = vrot.lane.b32.xlu0 %v2248, 104
    %v2268 = vpop.permute.xlu0 %2267
    %v2271 = vmul.f32 %v2243, 0.35355338
    %v2272 = vmul.f32 %v2248, 0.35355338
    %v2273 = vmul.f32 %v2254, 0.35355338
    %v2274 = vmul.f32 %v2256, 0.35355338
    %v2275 = vmul.f32 %v2260, 0.35355338
    %v2276 = vmul.f32 %v2262, 0.35355338
    %v2277 = vmul.f32 %v2266, 0.35355338
    %v2278 = vmul.f32 %v2268, 0.35355338
    %2283 = vrot.lane.b32.xlu0 %v348, 120
    %v2284 = vpop.permute.xlu0 %2283
    %2285 = vrot.lane.b32.xlu0 %v353, 120
    %v2286 = vpop.permute.xlu0 %2285
    %2287 = vrot.lane.b32.xlu0 %v358, 120
    %v2288 = vpop.permute.xlu0 %2287
    %2289 = vrot.lane.b32.xlu0 %v363, 120
    %v2290 = vpop.permute.xlu0 %2289
    %2291 = vrot.lane.b32.xlu0 %v348, 112
    %v2292 = vpop.permute.xlu0 %2291
    %2293 = vrot.lane.b32.xlu0 %v353, 112
    %v2294 = vpop.permute.xlu0 %2293
    %2295 = vrot.lane.b32.xlu0 %v358, 112
    %v2296 = vpop.permute.xlu0 %2295
    %2297 = vrot.lane.b32.xlu0 %v363, 112
    %v2298 = vpop.permute.xlu0 %2297
    %2299 = vrot.lane.b32.xlu0 %v348, 104
    %v2300 = vpop.permute.xlu0 %2299
    %2301 = vrot.lane.b32.xlu0 %v353, 104
    %v2302 = vpop.permute.xlu0 %2301
    %2303 = vrot.lane.b32.xlu0 %v358, 104
    %v2304 = vpop.permute.xlu0 %2303
    %2305 = vrot.lane.b32.xlu0 %v363, 104
    %v2306 = vpop.permute.xlu0 %2305
    %2311 = vrot.lane.b32.xlu0 %v455, 120
    %v2312 = vpop.permute.xlu0 %2311
    %2313 = vrot.lane.b32.xlu0 %v460, 120
    %v2314 = vpop.permute.xlu0 %2313
    %2315 = vrot.lane.b32.xlu0 %v465, 120
    %v2316 = vpop.permute.xlu0 %2315
    %2317 = vrot.lane.b32.xlu0 %v470, 120
    %v2318 = vpop.permute.xlu0 %2317
    %2323 = vrot.lane.b32.xlu0 %v455, 112
    %v2324 = vpop.permute.xlu0 %2323
    %2325 = vrot.lane.b32.xlu0 %v460, 112
    %v2326 = vpop.permute.xlu0 %2325
    %2327 = vrot.lane.b32.xlu0 %v465, 112
    %v2328 = vpop.permute.xlu0 %2327
    %2329 = vrot.lane.b32.xlu0 %v470, 112
    %v2330 = vpop.permute.xlu0 %2329
    %2335 = vrot.lane.b32.xlu0 %v455, 104
    %v2336 = vpop.permute.xlu0 %2335
    %2337 = vrot.lane.b32.xlu0 %v460, 104
    %v2338 = vpop.permute.xlu0 %2337
    %2339 = vrot.lane.b32.xlu0 %v465, 104
    %v2340 = vpop.permute.xlu0 %2339
    %2341 = vrot.lane.b32.xlu0 %v470, 104
    %v2342 = vpop.permute.xlu0 %2341
    %v2348 = vsel %vm705, %v2271, 0
    %v2350 = vsel %vm705, %v348, 0
    %v2352 = vsel %vm705, %v353, 0
    %2354 = vmatprep.subr.mxu0 0.0
    %2355 = vmatpush1.xpose.msra.mxu0 %v2350
    %2356 = vmatprep.subr.mxu0 0.0
    %2357 = vmatpush1.xpose.msra.mxu0 %v2352
    %2358 = vmatprep.subr.mxu0 0.0
    %2359 = vmatpush1.xpose.msra.mxu0 0.0
    %2360 = vmatprep.subr.mxu0 0.0
    %2361 = vmatpush1.xpose.msra.mxu0 0.0
    %2362 = vmatprep.subr.mxu0 0.0
    %2363 = vmatpush1.xpose.msra.mxu0 0.0
    %2364 = vmatprep.subr.mxu0 0.0
    %2365 = vmatpush1.xpose.msra.mxu0 0.0
    %2366 = vmatprep.subr.mxu0 0.0
    %2367 = vmatpush1.xpose.msra.mxu0 0.0
    %2368 = vmatprep.subr.mxu0 0.0
    %2369 = vmatpush1.xpose.msra.mxu0 0.0
    %2370 = vmatprep.subr.mxu0 0.0
    %2371 = vmatpush1.xpose.msra.mxu0 0.0
    %2372 = vmatprep.subr.mxu0 0.0
    %2373 = vmatpush1.xpose.msra.mxu0 0.0
    %2374 = vmatprep.subr.mxu0 0.0
    %2375 = vmatpush1.xpose.msra.mxu0 0.0
    %2376 = vmatprep.subr.mxu0 0.0
    %2377 = vmatpush1.xpose.msra.mxu0 0.0
    %2378 = vmatprep.subr.mxu0 0.0
    %2379 = vmatpush1.xpose.msra.mxu0 0.0
    %2380 = vmatprep.subr.mxu0 0.0
    %2381 = vmatpush1.xpose.msra.mxu0 0.0
    %2382 = vmatprep.subr.mxu0 0.0
    %2383 = vmatpush1.xpose.msra.mxu0 0.0
    %2384 = vmatprep.subr.mxu0 0.0
    %2385 = vmatpush1.xpose.msra.mxu0 0.0
    %2386 = vmatprep.subr.mxu0 0.0
    %2387 = vmatpush1.xpose.msra.mxu0 0.0
    %2388 = vmatprep.subr.mxu0 0.0
    %2389 = vmatpush1.xpose.msra.mxu0 0.0
    %2390 = vmatprep.subr.mxu0 0.0
    %2391 = vmatpush1.xpose.msra.mxu0 0.0
    %2392 = vmatprep.subr.mxu0 0.0
    %2393 = vmatpush1.xpose.msra.mxu0 0.0
    %2394 = vmatprep.subr.mxu0 0.0
    %2395 = vmatpush1.xpose.msra.mxu0 0.0
    %2396 = vmatprep.subr.mxu0 0.0
    %2397 = vmatpush1.xpose.msra.mxu0 0.0
    %2398 = vmatprep.subr.mxu0 0.0
    %2399 = vmatpush1.xpose.msra.mxu0 0.0
    %2400 = vmatprep.subr.mxu0 0.0
    %2401 = vmatpush1.xpose.msra.mxu0 0.0
    %2402 = vmatprep.subr.mxu0 0.0
    %2403 = vmatpush1.xpose.msra.mxu0 0.0
    %2404 = vmatprep.subr.mxu0 0.0
    %2405 = vmatpush1.xpose.msra.mxu0 0.0
    %2406 = vmatprep.subr.mxu0 0.0
    %2407 = vmatpush1.xpose.msra.mxu0 0.0
    %2408 = vmatprep.subr.mxu0 0.0
    %2409 = vmatpush1.xpose.msra.mxu0 0.0
    %2410 = vmatprep.subr.mxu0 0.0
    %2411 = vmatpush1.xpose.msra.mxu0 0.0
    %2412 = vmatprep.subr.mxu0 0.0
    %2413 = vmatpush1.xpose.msra.mxu0 0.0
    %2414 = vmatprep.subr.mxu0 0.0
    %2415 = vmatpush1.xpose.msra.mxu0 0.0
    %2416 = vmatprep.subr.mxu0 0.0
    %2417 = vmatpush1.xpose.msra.mxu0 0.0
    %2418 = vmatprep.mubr.f32.mxu0 0.0
    %2419 = vmatmul.mubr.f32.gmra.mrb[0].mxu0 %v2348
    %v2420 = vpop.f32.mrb[0].mxu0
    %v2421 = vadd.f32 0.0, %v2420
    %v2422 = vpop.f32.mrb[0].mxu0
    %2423 = vdwg.mxu0
    %v2425 = vsel %vm705, %v2272, 0
    %v2427 = vsel %vm705, %v358, 0
    %v2429 = vsel %vm705, %v363, 0
    %2431 = vmatprep.subr.mxu0 0.0
    %2432 = vmatpush1.xpose.msra.mxu0 %v2427
    %2433 = vmatprep.subr.mxu0 0.0
    %2434 = vmatpush1.xpose.msra.mxu0 %v2429
    %2435 = vmatprep.subr.mxu0 0.0
    %2436 = vmatpush1.xpose.msra.mxu0 0.0
    %2437 = vmatprep.subr.mxu0 0.0
    %2438 = vmatpush1.xpose.msra.mxu0 0.0
    %2439 = vmatprep.subr.mxu0 0.0
    %2440 = vmatpush1.xpose.msra.mxu0 0.0
    %2441 = vmatprep.subr.mxu0 0.0
    %2442 = vmatpush1.xpose.msra.mxu0 0.0
    %2443 = vmatprep.subr.mxu0 0.0
    %2444 = vmatpush1.xpose.msra.mxu0 0.0
    %2445 = vmatprep.subr.mxu0 0.0
    %2446 = vmatpush1.xpose.msra.mxu0 0.0
    %2447 = vmatprep.subr.mxu0 0.0
    %2448 = vmatpush1.xpose.msra.mxu0 0.0
    %2449 = vmatprep.subr.mxu0 0.0
    %2450 = vmatpush1.xpose.msra.mxu0 0.0
    %2451 = vmatprep.subr.mxu0 0.0
    %2452 = vmatpush1.xpose.msra.mxu0 0.0
    %2453 = vmatprep.subr.mxu0 0.0
    %2454 = vmatpush1.xpose.msra.mxu0 0.0
    %2455 = vmatprep.subr.mxu0 0.0
    %2456 = vmatpush1.xpose.msra.mxu0 0.0
    %2457 = vmatprep.subr.mxu0 0.0
    %2458 = vmatpush1.xpose.msra.mxu0 0.0
    %2459 = vmatprep.subr.mxu0 0.0
    %2460 = vmatpush1.xpose.msra.mxu0 0.0
    %2461 = vmatprep.subr.mxu0 0.0
    %2462 = vmatpush1.xpose.msra.mxu0 0.0
    %2463 = vmatprep.subr.mxu0 0.0
    %2464 = vmatpush1.xpose.msra.mxu0 0.0
    %2465 = vmatprep.subr.mxu0 0.0
    %2466 = vmatpush1.xpose.msra.mxu0 0.0
    %2467 = vmatprep.subr.mxu0 0.0
    %2468 = vmatpush1.xpose.msra.mxu0 0.0
    %2469 = vmatprep.subr.mxu0 0.0
    %2470 = vmatpush1.xpose.msra.mxu0 0.0
    %2471 = vmatprep.subr.mxu0 0.0
    %2472 = vmatpush1.xpose.msra.mxu0 0.0
    %2473 = vmatprep.subr.mxu0 0.0
    %2474 = vmatpush1.xpose.msra.mxu0 0.0
    %2475 = vmatprep.subr.mxu0 0.0
    %2476 = vmatpush1.xpose.msra.mxu0 0.0
    %2477 = vmatprep.subr.mxu0 0.0
    %2478 = vmatpush1.xpose.msra.mxu0 0.0
    %2479 = vmatprep.subr.mxu0 0.0
    %2480 = vmatpush1.xpose.msra.mxu0 0.0
    %2481 = vmatprep.subr.mxu0 0.0
    %2482 = vmatpush1.xpose.msra.mxu0 0.0
    %2483 = vmatprep.subr.mxu0 0.0
    %2484 = vmatpush1.xpose.msra.mxu0 0.0
    %2485 = vmatprep.subr.mxu0 0.0
    %2486 = vmatpush1.xpose.msra.mxu0 0.0
    %2487 = vmatprep.subr.mxu0 0.0
    %2488 = vmatpush1.xpose.msra.mxu0 0.0
    %2489 = vmatprep.subr.mxu0 0.0
    %2490 = vmatpush1.xpose.msra.mxu0 0.0
    %2491 = vmatprep.subr.mxu0 0.0
    %2492 = vmatpush1.xpose.msra.mxu0 0.0
    %2493 = vmatprep.subr.mxu0 0.0
    %2494 = vmatpush1.xpose.msra.mxu0 0.0
    %2495 = vmatprep.mubr.f32.mxu0 0.0
    %2496 = vmatmul.mubr.f32.gmra.mrb[0].mxu0 %v2425
    %v2497 = vpop.f32.mrb[0].mxu0
    %v2498 = vadd.f32 0.0, %v2497
    %v2499 = vpop.f32.mrb[0].mxu0
    %2500 = vdwg.mxu0
    %v2502 = vsel %vm705, %v2273, 0
    %v2504 = vsel %vm705, %v2284, 0
    %v2506 = vsel %vm705, %v2286, 0
    %2508 = vmatprep.subr.mxu0 0.0
    %2509 = vmatpush1.xpose.msra.mxu0 %v2504
    %2510 = vmatprep.subr.mxu0 0.0
    %2511 = vmatpush1.xpose.msra.mxu0 %v2506
    %2512 = vmatprep.subr.mxu0 0.0
    %2513 = vmatpush1.xpose.msra.mxu0 0.0
    %2514 = vmatprep.subr.mxu0 0.0
    %2515 = vmatpush1.xpose.msra.mxu0 0.0
    %2516 = vmatprep.subr.mxu0 0.0
    %2517 = vmatpush1.xpose.msra.mxu0 0.0
    %2518 = vmatprep.subr.mxu0 0.0
    %2519 = vmatpush1.xpose.msra.mxu0 0.0
    %2520 = vmatprep.subr.mxu0 0.0
    %2521 = vmatpush1.xpose.msra.mxu0 0.0
    %2522 = vmatprep.subr.mxu0 0.0
    %2523 = vmatpush1.xpose.msra.mxu0 0.0
    %2524 = vmatprep.subr.mxu0 0.0
    %2525 = vmatpush1.xpose.msra.mxu0 0.0
    %2526 = vmatprep.subr.mxu0 0.0
    %2527 = vmatpush1.xpose.msra.mxu0 0.0
    %2528 = vmatprep.subr.mxu0 0.0
    %2529 = vmatpush1.xpose.msra.mxu0 0.0
    %2530 = vmatprep.subr.mxu0 0.0
    %2531 = vmatpush1.xpose.msra.mxu0 0.0
    %2532 = vmatprep.subr.mxu0 0.0
    %2533 = vmatpush1.xpose.msra.mxu0 0.0
    %2534 = vmatprep.subr.mxu0 0.0
    %2535 = vmatpush1.xpose.msra.mxu0 0.0
    %2536 = vmatprep.subr.mxu0 0.0
    %2537 = vmatpush1.xpose.msra.mxu0 0.0
    %2538 = vmatprep.subr.mxu0 0.0
    %2539 = vmatpush1.xpose.msra.mxu0 0.0
    %2540 = vmatprep.subr.mxu0 0.0
    %2541 = vmatpush1.xpose.msra.mxu0 0.0
    %2542 = vmatprep.subr.mxu0 0.0
    %2543 = vmatpush1.xpose.msra.mxu0 0.0
    %2544 = vmatprep.subr.mxu0 0.0
    %2545 = vmatpush1.xpose.msra.mxu0 0.0
    %2546 = vmatprep.subr.mxu0 0.0
    %2547 = vmatpush1.xpose.msra.mxu0 0.0
    %2548 = vmatprep.subr.mxu0 0.0
    %2549 = vmatpush1.xpose.msra.mxu0 0.0
    %2550 = vmatprep.subr.mxu0 0.0
    %2551 = vmatpush1.xpose.msra.mxu0 0.0
    %2552 = vmatprep.subr.mxu0 0.0
    %2553 = vmatpush1.xpose.msra.mxu0 0.0
    %2554 = vmatprep.subr.mxu0 0.0
    %2555 = vmatpush1.xpose.msra.mxu0 0.0
    %2556 = vmatprep.subr.mxu0 0.0
    %2557 = vmatpush1.xpose.msra.mxu0 0.0
    %2558 = vmatprep.subr.mxu0 0.0
    %2559 = vmatpush1.xpose.msra.mxu0 0.0
    %2560 = vmatprep.subr.mxu0 0.0
    %2561 = vmatpush1.xpose.msra.mxu0 0.0
    %2562 = vmatprep.subr.mxu0 0.0
    %2563 = vmatpush1.xpose.msra.mxu0 0.0
    %2564 = vmatprep.subr.mxu0 0.0
    %2565 = vmatpush1.xpose.msra.mxu0 0.0
    %2566 = vmatprep.subr.mxu0 0.0
    %2567 = vmatpush1.xpose.msra.mxu0 0.0
    %2568 = vmatprep.subr.mxu0 0.0
    %2569 = vmatpush1.xpose.msra.mxu0 0.0
    %2570 = vmatprep.subr.mxu0 0.0
    %2571 = vmatpush1.xpose.msra.mxu0 0.0
    %2572 = vmatprep.mubr.f32.mxu0 0.0
    %2573 = vmatmul.mubr.f32.gmra.mrb[0].mxu0 %v2502
    %v2574 = vpop.f32.mrb[0].mxu0
    %v2575 = vadd.f32 0.0, %v2574
    %v2576 = vpop.f32.mrb[0].mxu0
    %2577 = vdwg.mxu0
    %v2579 = vsel %vm705, %v2274, 0
    %v2581 = vsel %vm705, %v2288, 0
    %v2583 = vsel %vm705, %v2290, 0
    %2585 = vmatprep.subr.mxu0 0.0
    %2586 = vmatpush1.xpose.msra.mxu0 %v2581
    %2587 = vmatprep.subr.mxu0 0.0
    %2588 = vmatpush1.xpose.msra.mxu0 %v2583
    %2589 = vmatprep.subr.mxu0 0.0
    %2590 = vmatpush1.xpose.msra.mxu0 0.0
    %2591 = vmatprep.subr.mxu0 0.0
    %2592 = vmatpush1.xpose.msra.mxu0 0.0
    %2593 = vmatprep.subr.mxu0 0.0
    %2594 = vmatpush1.xpose.msra.mxu0 0.0
    %2595 = vmatprep.subr.mxu0 0.0
    %2596 = vmatpush1.xpose.msra.mxu0 0.0
    %2597 = vmatprep.subr.mxu0 0.0
    %2598 = vmatpush1.xpose.msra.mxu0 0.0
    %2599 = vmatprep.subr.mxu0 0.0
    %2600 = vmatpush1.xpose.msra.mxu0 0.0
    %2601 = vmatprep.subr.mxu0 0.0
    %2602 = vmatpush1.xpose.msra.mxu0 0.0
    %2603 = vmatprep.subr.mxu0 0.0
    %2604 = vmatpush1.xpose.msra.mxu0 0.0
    %2605 = vmatprep.subr.mxu0 0.0
    %2606 = vmatpush1.xpose.msra.mxu0 0.0
    %2607 = vmatprep.subr.mxu0 0.0
    %2608 = vmatpush1.xpose.msra.mxu0 0.0
    %2609 = vmatprep.subr.mxu0 0.0
    %2610 = vmatpush1.xpose.msra.mxu0 0.0
    %2611 = vmatprep.subr.mxu0 0.0
    %2612 = vmatpush1.xpose.msra.mxu0 0.0
    %2613 = vmatprep.subr.mxu0 0.0
    %2614 = vmatpush1.xpose.msra.mxu0 0.0
    %2615 = vmatprep.subr.mxu0 0.0
    %2616 = vmatpush1.xpose.msra.mxu0 0.0
    %2617 = vmatprep.subr.mxu0 0.0
    %2618 = vmatpush1.xpose.msra.mxu0 0.0
    %2619 = vmatprep.subr.mxu0 0.0
    %2620 = vmatpush1.xpose.msra.mxu0 0.0
    %2621 = vmatprep.subr.mxu0 0.0
    %2622 = vmatpush1.xpose.msra.mxu0 0.0
    %2623 = vmatprep.subr.mxu0 0.0
    %2624 = vmatpush1.xpose.msra.mxu0 0.0
    %2625 = vmatprep.subr.mxu0 0.0
    %2626 = vmatpush1.xpose.msra.mxu0 0.0
    %2627 = vmatprep.subr.mxu0 0.0
    %2628 = vmatpush1.xpose.msra.mxu0 0.0
    %2629 = vmatprep.subr.mxu0 0.0
    %2630 = vmatpush1.xpose.msra.mxu0 0.0
    %2631 = vmatprep.subr.mxu0 0.0
    %2632 = vmatpush1.xpose.msra.mxu0 0.0
    %2633 = vmatprep.subr.mxu0 0.0
    %2634 = vmatpush1.xpose.msra.mxu0 0.0
    %2635 = vmatprep.subr.mxu0 0.0
    %2636 = vmatpush1.xpose.msra.mxu0 0.0
    %2637 = vmatprep.subr.mxu0 0.0
    %2638 = vmatpush1.xpose.msra.mxu0 0.0
    %2639 = vmatprep.subr.mxu0 0.0
    %2640 = vmatpush1.xpose.msra.mxu0 0.0
    %2641 = vmatprep.subr.mxu0 0.0
    %2642 = vmatpush1.xpose.msra.mxu0 0.0
    %2643 = vmatprep.subr.mxu0 0.0
    %2644 = vmatpush1.xpose.msra.mxu0 0.0
    %2645 = vmatprep.subr.mxu0 0.0
    %2646 = vmatpush1.xpose.msra.mxu0 0.0
    %2647 = vmatprep.subr.mxu0 0.0
    %2648 = vmatpush1.xpose.msra.mxu0 0.0
    %2649 = vmatprep.mubr.f32.mxu0 0.0
    %2650 = vmatmul.mubr.f32.gmra.mrb[0].mxu0 %v2579
    %v2651 = vpop.f32.mrb[0].mxu0
    %v2652 = vadd.f32 0.0, %v2651
    %v2653 = vpop.f32.mrb[0].mxu0
    %2654 = vdwg.mxu0
    %v2656 = vsel %vm705, %v2275, 0
    %v2658 = vsel %vm705, %v2292, 0
    %v2660 = vsel %vm705, %v2294, 0
    %2662 = vmatprep.subr.mxu0 0.0
    %2663 = vmatpush1.xpose.msra.mxu0 %v2658
    %2664 = vmatprep.subr.mxu0 0.0
    %2665 = vmatpush1.xpose.msra.mxu0 %v2660
    %2666 = vmatprep.subr.mxu0 0.0
    %2667 = vmatpush1.xpose.msra.mxu0 0.0
    %2668 = vmatprep.subr.mxu0 0.0
    %2669 = vmatpush1.xpose.msra.mxu0 0.0
    %2670 = vmatprep.subr.mxu0 0.0
    %2671 = vmatpush1.xpose.msra.mxu0 0.0
    %2672 = vmatprep.subr.mxu0 0.0
    %2673 = vmatpush1.xpose.msra.mxu0 0.0
    %2674 = vmatprep.subr.mxu0 0.0
    %2675 = vmatpush1.xpose.msra.mxu0 0.0
    %2676 = vmatprep.subr.mxu0 0.0
    %2677 = vmatpush1.xpose.msra.mxu0 0.0
    %2678 = vmatprep.subr.mxu0 0.0
    %2679 = vmatpush1.xpose.msra.mxu0 0.0
    %2680 = vmatprep.subr.mxu0 0.0
    %2681 = vmatpush1.xpose.msra.mxu0 0.0
    %2682 = vmatprep.subr.mxu0 0.0
    %2683 = vmatpush1.xpose.msra.mxu0 0.0
    %2684 = vmatprep.subr.mxu0 0.0
    %2685 = vmatpush1.xpose.msra.mxu0 0.0
    %2686 = vmatprep.subr.mxu0 0.0
    %2687 = vmatpush1.xpose.msra.mxu0 0.0
    %2688 = vmatprep.subr.mxu0 0.0
    %2689 = vmatpush1.xpose.msra.mxu0 0.0
    %2690 = vmatprep.subr.mxu0 0.0
    %2691 = vmatpush1.xpose.msra.mxu0 0.0
    %2692 = vmatprep.subr.mxu0 0.0
    %2693 = vmatpush1.xpose.msra.mxu0 0.0
    %2694 = vmatprep.subr.mxu0 0.0
    %2695 = vmatpush1.xpose.msra.mxu0 0.0
    %2696 = vmatprep.subr.mxu0 0.0
    %2697 = vmatpush1.xpose.msra.mxu0 0.0
    %2698 = vmatprep.subr.mxu0 0.0
    %2699 = vmatpush1.xpose.msra.mxu0 0.0
    %2700 = vmatprep.subr.mxu0 0.0
    %2701 = vmatpush1.xpose.msra.mxu0 0.0
    %2702 = vmatprep.subr.mxu0 0.0
    %2703 = vmatpush1.xpose.msra.mxu0 0.0
    %2704 = vmatprep.subr.mxu0 0.0
    %2705 = vmatpush1.xpose.msra.mxu0 0.0
    %2706 = vmatprep.subr.mxu0 0.0
    %2707 = vmatpush1.xpose.msra.mxu0 0.0
    %2708 = vmatprep.subr.mxu0 0.0
    %2709 = vmatpush1.xpose.msra.mxu0 0.0
    %2710 = vmatprep.subr.mxu0 0.0
    %2711 = vmatpush1.xpose.msra.mxu0 0.0
    %2712 = vmatprep.subr.mxu0 0.0
    %2713 = vmatpush1.xpose.msra.mxu0 0.0
    %2714 = vmatprep.subr.mxu0 0.0
    %2715 = vmatpush1.xpose.msra.mxu0 0.0
    %2716 = vmatprep.subr.mxu0 0.0
    %2717 = vmatpush1.xpose.msra.mxu0 0.0
    %2718 = vmatprep.subr.mxu0 0.0
    %2719 = vmatpush1.xpose.msra.mxu0 0.0
    %2720 = vmatprep.subr.mxu0 0.0
    %2721 = vmatpush1.xpose.msra.mxu0 0.0
    %2722 = vmatprep.subr.mxu0 0.0
    %2723 = vmatpush1.xpose.msra.mxu0 0.0
    %2724 = vmatprep.subr.mxu0 0.0
    %2725 = vmatpush1.xpose.msra.mxu0 0.0
    %2726 = vmatprep.mubr.f32.mxu0 0.0
    %2727 = vmatmul.mubr.f32.gmra.mrb[0].mxu0 %v2656
    %v2728 = vpop.f32.mrb[0].mxu0
    %v2729 = vadd.f32 0.0, %v2728
    %v2730 = vpop.f32.mrb[0].mxu0
    %2731 = vdwg.mxu0
    %v2733 = vsel %vm705, %v2276, 0
    %v2735 = vsel %vm705, %v2296, 0
    %v2737 = vsel %vm705, %v2298, 0
    %2739 = vmatprep.subr.mxu0 0.0
    %2740 = vmatpush1.xpose.msra.mxu0 %v2735
    %2741 = vmatprep.subr.mxu0 0.0
    %2742 = vmatpush1.xpose.msra.mxu0 %v2737
    %2743 = vmatprep.subr.mxu0 0.0
    %2744 = vmatpush1.xpose.msra.mxu0 0.0
    %2745 = vmatprep.subr.mxu0 0.0
    %2746 = vmatpush1.xpose.msra.mxu0 0.0
    %2747 = vmatprep.subr.mxu0 0.0
    %2748 = vmatpush1.xpose.msra.mxu0 0.0
    %2749 = vmatprep.subr.mxu0 0.0
    %2750 = vmatpush1.xpose.msra.mxu0 0.0
    %2751 = vmatprep.subr.mxu0 0.0
    %2752 = vmatpush1.xpose.msra.mxu0 0.0
    %2753 = vmatprep.subr.mxu0 0.0
    %2754 = vmatpush1.xpose.msra.mxu0 0.0
    %2755 = vmatprep.subr.mxu0 0.0
    %2756 = vmatpush1.xpose.msra.mxu0 0.0
    %2757 = vmatprep.subr.mxu0 0.0
    %2758 = vmatpush1.xpose.msra.mxu0 0.0
    %2759 = vmatprep.subr.mxu0 0.0
    %2760 = vmatpush1.xpose.msra.mxu0 0.0
    %2761 = vmatprep.subr.mxu0 0.0
    %2762 = vmatpush1.xpose.msra.mxu0 0.0
    %2763 = vmatprep.subr.mxu0 0.0
    %2764 = vmatpush1.xpose.msra.mxu0 0.0
    %2765 = vmatprep.subr.mxu0 0.0
    %2766 = vmatpush1.xpose.msra.mxu0 0.0
    %2767 = vmatprep.subr.mxu0 0.0
    %2768 = vmatpush1.xpose.msra.mxu0 0.0
    %2769 = vmatprep.subr.mxu0 0.0
    %2770 = vmatpush1.xpose.msra.mxu0 0.0
    %2771 = vmatprep.subr.mxu0 0.0
    %2772 = vmatpush1.xpose.msra.mxu0 0.0
    %2773 = vmatprep.subr.mxu0 0.0
    %2774 = vmatpush1.xpose.msra.mxu0 0.0
    %2775 = vmatprep.subr.mxu0 0.0
    %2776 = vmatpush1.xpose.msra.mxu0 0.0
    %2777 = vmatprep.subr.mxu0 0.0
    %2778 = vmatpush1.xpose.msra.mxu0 0.0
    %2779 = vmatprep.subr.mxu0 0.0
    %2780 = vmatpush1.xpose.msra.mxu0 0.0
    %2781 = vmatprep.subr.mxu0 0.0
    %2782 = vmatpush1.xpose.msra.mxu0 0.0
    %2783 = vmatprep.subr.mxu0 0.0
    %2784 = vmatpush1.xpose.msra.mxu0 0.0
    %2785 = vmatprep.subr.mxu0 0.0
    %2786 = vmatpush1.xpose.msra.mxu0 0.0
    %2787 = vmatprep.subr.mxu0 0.0
    %2788 = vmatpush1.xpose.msra.mxu0 0.0
    %2789 = vmatprep.subr.mxu0 0.0
    %2790 = vmatpush1.xpose.msra.mxu0 0.0
    %2791 = vmatprep.subr.mxu0 0.0
    %2792 = vmatpush1.xpose.msra.mxu0 0.0
    %2793 = vmatprep.subr.mxu0 0.0
    %2794 = vmatpush1.xpose.msra.mxu0 0.0
    %2795 = vmatprep.subr.mxu0 0.0
    %2796 = vmatpush1.xpose.msra.mxu0 0.0
    %2797 = vmatprep.subr.mxu0 0.0
    %2798 = vmatpush1.xpose.msra.mxu0 0.0
    %2799 = vmatprep.subr.mxu0 0.0
    %2800 = vmatpush1.xpose.msra.mxu0 0.0
    %2801 = vmatprep.subr.mxu0 0.0
    %2802 = vmatpush1.xpose.msra.mxu0 0.0
    %2803 = vmatprep.mubr.f32.mxu0 0.0
    %2804 = vmatmul.mubr.f32.gmra.mrb[0].mxu0 %v2733
    %v2805 = vpop.f32.mrb[0].mxu0
    %v2806 = vadd.f32 0.0, %v2805
    %v2807 = vpop.f32.mrb[0].mxu0
    %2808 = vdwg.mxu0
    %v2810 = vsel %vm705, %v2277, 0
    %v2812 = vsel %vm705, %v2300, 0
    %v2814 = vsel %vm705, %v2302, 0
    %2816 = vmatprep.subr.mxu0 0.0
    %2817 = vmatpush1.xpose.msra.mxu0 %v2812
    %2818 = vmatprep.subr.mxu0 0.0
    %2819 = vmatpush1.xpose.msra.mxu0 %v2814
    %2820 = vmatprep.subr.mxu0 0.0
    %2821 = vmatpush1.xpose.msra.mxu0 0.0
    %2822 = vmatprep.subr.mxu0 0.0
    %2823 = vmatpush1.xpose.msra.mxu0 0.0
    %2824 = vmatprep.subr.mxu0 0.0
    %2825 = vmatpush1.xpose.msra.mxu0 0.0
    %2826 = vmatprep.subr.mxu0 0.0
    %2827 = vmatpush1.xpose.msra.mxu0 0.0
    %2828 = vmatprep.subr.mxu0 0.0
    %2829 = vmatpush1.xpose.msra.mxu0 0.0
    %2830 = vmatprep.subr.mxu0 0.0
    %2831 = vmatpush1.xpose.msra.mxu0 0.0
    %2832 = vmatprep.subr.mxu0 0.0
    %2833 = vmatpush1.xpose.msra.mxu0 0.0
    %2834 = vmatprep.subr.mxu0 0.0
    %2835 = vmatpush1.xpose.msra.mxu0 0.0
    %2836 = vmatprep.subr.mxu0 0.0
    %2837 = vmatpush1.xpose.msra.mxu0 0.0
    %2838 = vmatprep.subr.mxu0 0.0
    %2839 = vmatpush1.xpose.msra.mxu0 0.0
    %2840 = vmatprep.subr.mxu0 0.0
    %2841 = vmatpush1.xpose.msra.mxu0 0.0
    %2842 = vmatprep.subr.mxu0 0.0
    %2843 = vmatpush1.xpose.msra.mxu0 0.0
    %2844 = vmatprep.subr.mxu0 0.0
    %2845 = vmatpush1.xpose.msra.mxu0 0.0
    %2846 = vmatprep.subr.mxu0 0.0
    %2847 = vmatpush1.xpose.msra.mxu0 0.0
    %2848 = vmatprep.subr.mxu0 0.0
    %2849 = vmatpush1.xpose.msra.mxu0 0.0
    %2850 = vmatprep.subr.mxu0 0.0
    %2851 = vmatpush1.xpose.msra.mxu0 0.0
    %2852 = vmatprep.subr.mxu0 0.0
    %2853 = vmatpush1.xpose.msra.mxu0 0.0
    %2854 = vmatprep.subr.mxu0 0.0
    %2855 = vmatpush1.xpose.msra.mxu0 0.0
    %2856 = vmatprep.subr.mxu0 0.0
    %2857 = vmatpush1.xpose.msra.mxu0 0.0
    %2858 = vmatprep.subr.mxu0 0.0
    %2859 = vmatpush1.xpose.msra.mxu0 0.0
    %2860 = vmatprep.subr.mxu0 0.0
    %2861 = vmatpush1.xpose.msra.mxu0 0.0
    %2862 = vmatprep.subr.mxu0 0.0
    %2863 = vmatpush1.xpose.msra.mxu0 0.0
    %2864 = vmatprep.subr.mxu0 0.0
    %2865 = vmatpush1.xpose.msra.mxu0 0.0
    %2866 = vmatprep.subr.mxu0 0.0
    %2867 = vmatpush1.xpose.msra.mxu0 0.0
    %2868 = vmatprep.subr.mxu0 0.0
    %2869 = vmatpush1.xpose.msra.mxu0 0.0
    %2870 = vmatprep.subr.mxu0 0.0
    %2871 = vmatpush1.xpose.msra.mxu0 0.0
    %2872 = vmatprep.subr.mxu0 0.0
    %2873 = vmatpush1.xpose.msra.mxu0 0.0
    %2874 = vmatprep.subr.mxu0 0.0
    %2875 = vmatpush1.xpose.msra.mxu0 0.0
    %2876 = vmatprep.subr.mxu0 0.0
    %2877 = vmatpush1.xpose.msra.mxu0 0.0
    %2878 = vmatprep.subr.mxu0 0.0
    %2879 = vmatpush1.xpose.msra.mxu0 0.0
    %2880 = vmatprep.mubr.f32.mxu0 0.0
    %2881 = vmatmul.mubr.f32.gmra.mrb[0].mxu0 %v2810
    %v2882 = vpop.f32.mrb[0].mxu0
    %v2883 = vadd.f32 0.0, %v2882
    %v2884 = vpop.f32.mrb[0].mxu0
    %2885 = vdwg.mxu0
    %v2887 = vsel %vm705, %v2278, 0
    %v2889 = vsel %vm705, %v2304, 0
    %v2891 = vsel %vm705, %v2306, 0
    %2893 = vmatprep.subr.mxu0 0.0
    %2894 = vmatpush1.xpose.msra.mxu0 %v2889
    %2895 = vmatprep.subr.mxu0 0.0
    %2896 = vmatpush1.xpose.msra.mxu0 %v2891
    %2897 = vmatprep.subr.mxu0 0.0
    %2898 = vmatpush1.xpose.msra.mxu0 0.0
    %2899 = vmatprep.subr.mxu0 0.0
    %2900 = vmatpush1.xpose.msra.mxu0 0.0
    %2901 = vmatprep.subr.mxu0 0.0
    %2902 = vmatpush1.xpose.msra.mxu0 0.0
    %2903 = vmatprep.subr.mxu0 0.0
    %2904 = vmatpush1.xpose.msra.mxu0 0.0
    %2905 = vmatprep.subr.mxu0 0.0
    %2906 = vmatpush1.xpose.msra.mxu0 0.0
    %2907 = vmatprep.subr.mxu0 0.0
    %2908 = vmatpush1.xpose.msra.mxu0 0.0
    %2909 = vmatprep.subr.mxu0 0.0
    %2910 = vmatpush1.xpose.msra.mxu0 0.0
    %2911 = vmatprep.subr.mxu0 0.0
    %2912 = vmatpush1.xpose.msra.mxu0 0.0
    %2913 = vmatprep.subr.mxu0 0.0
    %2914 = vmatpush1.xpose.msra.mxu0 0.0
    %2915 = vmatprep.subr.mxu0 0.0
    %2916 = vmatpush1.xpose.msra.mxu0 0.0
    %2917 = vmatprep.subr.mxu0 0.0
    %2918 = vmatpush1.xpose.msra.mxu0 0.0
    %2919 = vmatprep.subr.mxu0 0.0
    %2920 = vmatpush1.xpose.msra.mxu0 0.0
    %2921 = vmatprep.subr.mxu0 0.0
    %2922 = vmatpush1.xpose.msra.mxu0 0.0
    %2923 = vmatprep.subr.mxu0 0.0
    %2924 = vmatpush1.xpose.msra.mxu0 0.0
    %2925 = vmatprep.subr.mxu0 0.0
    %2926 = vmatpush1.xpose.msra.mxu0 0.0
    %2927 = vmatprep.subr.mxu0 0.0
    %2928 = vmatpush1.xpose.msra.mxu0 0.0
    %2929 = vmatprep.subr.mxu0 0.0
    %2930 = vmatpush1.xpose.msra.mxu0 0.0
    %2931 = vmatprep.subr.mxu0 0.0
    %2932 = vmatpush1.xpose.msra.mxu0 0.0
    %2933 = vmatprep.subr.mxu0 0.0
    %2934 = vmatpush1.xpose.msra.mxu0 0.0
    %2935 = vmatprep.subr.mxu0 0.0
    %2936 = vmatpush1.xpose.msra.mxu0 0.0
    %2937 = vmatprep.subr.mxu0 0.0
    %2938 = vmatpush1.xpose.msra.mxu0 0.0
    %2939 = vmatprep.subr.mxu0 0.0
    %2940 = vmatpush1.xpose.msra.mxu0 0.0
    %2941 = vmatprep.subr.mxu0 0.0
    %2942 = vmatpush1.xpose.msra.mxu0 0.0
    %2943 = vmatprep.subr.mxu0 0.0
    %2944 = vmatpush1.xpose.msra.mxu0 0.0
    %2945 = vmatprep.subr.mxu0 0.0
    %2946 = vmatpush1.xpose.msra.mxu0 0.0
    %2947 = vmatprep.subr.mxu0 0.0
    %2948 = vmatpush1.xpose.msra.mxu0 0.0
    %2949 = vmatprep.subr.mxu0 0.0
    %2950 = vmatpush1.xpose.msra.mxu0 0.0
    %2951 = vmatprep.subr.mxu0 0.0
    %2952 = vmatpush1.xpose.msra.mxu0 0.0
    %2953 = vmatprep.subr.mxu0 0.0
    %2954 = vmatpush1.xpose.msra.mxu0 0.0
    %2955 = vmatprep.subr.mxu0 0.0
    %2956 = vmatpush1.xpose.msra.mxu0 0.0
    %2957 = vmatprep.mubr.f32.mxu0 0.0
    %2958 = vmatmul.mubr.f32.gmra.mrb[0].mxu0 %v2887
    %v2959 = vpop.f32.mrb[0].mxu0
    %v2960 = vadd.f32 0.0, %v2959
    %v2961 = vpop.f32.mrb[0].mxu0
    %2962 = vdwg.mxu0
    %v2963 = vsel %vm2018, %v2421, -inf
    %2964 = vmax.xlane.f32.xlu0 %v2963
    %v2965 = vpop.xlane.xlu0 %2964
    %v2966 = vsel %vm2018, %v2498, -inf
    %2967 = vmax.xlane.f32.xlu0 %v2966
    %v2968 = vpop.xlane.xlu0 %2967
    %v2969 = vsel %vm2018, %v2575, -inf
    %2970 = vmax.xlane.f32.xlu0 %v2969
    %v2971 = vpop.xlane.xlu0 %2970
    %v2972 = vsel %vm2018, %v2652, -inf
    %2973 = vmax.xlane.f32.xlu0 %v2972
    %v2974 = vpop.xlane.xlu0 %2973
    %v2975 = vsel %vm2018, %v2729, -inf
    %2976 = vmax.xlane.f32.xlu0 %v2975
    %v2977 = vpop.xlane.xlu0 %2976
    %v2978 = vsel %vm2018, %v2806, -inf
    %2979 = vmax.xlane.f32.xlu0 %v2978
    %v2980 = vpop.xlane.xlu0 %2979
    %v2981 = vsel %vm2018, %v2883, -inf
    %2982 = vmax.xlane.f32.xlu0 %v2981
    %v2983 = vpop.xlane.xlu0 %2982
    %v2984 = vsel %vm2018, %v2960, -inf
    %2985 = vmax.xlane.f32.xlu0 %v2984
    %v2986 = vpop.xlane.xlu0 %2985
    %v2987 = vsub.f32 %v2421, %v2965
    %v2988 = vsub.f32 %v2498, %v2968
    %v2989 = vsub.f32 %v2575, %v2971
    %v2990 = vsub.f32 %v2652, %v2974
    %v2991 = vsub.f32 %v2729, %v2977
    %v2992 = vsub.f32 %v2806, %v2980
    %v2993 = vsub.f32 %v2883, %v2983
    %v2994 = vsub.f32 %v2960, %v2986
    %v2995 = vmul.f32 %v2987, 1.442695
    %v2996 = vpow.pop %v2995
    %v2997 = vmul.f32 %v2988, 1.442695
    %v2998 = vpow.pop %v2997
    %v2999 = vmul.f32 %v2989, 1.442695
    %v3000 = vpow.pop %v2999
    %v3001 = vmul.f32 %v2990, 1.442695
    %v3002 = vpow.pop %v3001
    %v3003 = vmul.f32 %v2991, 1.442695
    %v3004 = vpow.pop %v3003
    %v3005 = vmul.f32 %v2992, 1.442695
    %v3006 = vpow.pop %v3005
    %v3007 = vmul.f32 %v2993, 1.442695
    %v3008 = vpow.pop %v3007
    %v3009 = vmul.f32 %v2994, 1.442695
    %v3010 = vpow.pop %v3009
    %v3011 = vsel %vm2018, %v2996, 0.0
    %3012 = vadd.xlane.f32.xlu0 %v3011
    %v3013 = vpop.xlane.xlu0 %3012
    %v3014 = vsel %vm2018, %v2998, 0.0
    %3015 = vadd.xlane.f32.xlu0 %v3014
    %v3016 = vpop.xlane.xlu0 %3015
    %v3017 = vsel %vm2018, %v3000, 0.0
    %3018 = vadd.xlane.f32.xlu0 %v3017
    %v3019 = vpop.xlane.xlu0 %3018
    %v3020 = vsel %vm2018, %v3002, 0.0
    %3021 = vadd.xlane.f32.xlu0 %v3020
    %v3022 = vpop.xlane.xlu0 %3021
    %v3023 = vsel %vm2018, %v3004, 0.0
    %3024 = vadd.xlane.f32.xlu0 %v3023
    %v3025 = vpop.xlane.xlu0 %3024
    %v3026 = vsel %vm2018, %v3006, 0.0
    %3027 = vadd.xlane.f32.xlu0 %v3026
    %v3028 = vpop.xlane.xlu0 %3027
    %v3029 = vsel %vm2018, %v3008, 0.0
    %3030 = vadd.xlane.f32.xlu0 %v3029
    %v3031 = vpop.xlane.xlu0 %3030
    %v3032 = vsel %vm2018, %v3010, 0.0
    %3033 = vadd.xlane.f32.xlu0 %v3032
    %v3034 = vpop.xlane.xlu0 %3033
    %v3035 = vrcp.pop %v3013
    %v3036 = vrcp.pop %v3016
    %v3037 = vrcp.pop %v3019
    %v3038 = vrcp.pop %v3022
    %v3039 = vrcp.pop %v3025
    %v3040 = vrcp.pop %v3028
    %v3041 = vrcp.pop %v3031
    %v3042 = vrcp.pop %v3034
    %v3043 = vmul.f32 %v2996, %v3035
    %v3044 = vmul.f32 %v2998, %v3036
    %v3045 = vmul.f32 %v3000, %v3037
    %v3046 = vmul.f32 %v3002, %v3038
    %v3047 = vmul.f32 %v3004, %v3039
    %v3048 = vmul.f32 %v3006, %v3040
    %v3049 = vmul.f32 %v3008, %v3041
    %v3050 = vmul.f32 %v3010, %v3042
    %v3052 = vsel %vm2018, %v3043, 0
    %3054 = vmatprep.subr.mxu0 0.0
    %3055 = vmatpush1.msra.mxu0 %v455
    %3056 = vmatprep.subr.mxu0 0.0
    %3057 = vmatpush1.msra.mxu0 %v460
    %3058 = vmatprep.subr.mxu0 0.0
    %3059 = vmatpush1.msra.mxu0 0.0
    %3060 = vmatprep.subr.mxu0 0.0
    %3061 = vmatpush1.msra.mxu0 0.0
    %3062 = vmatprep.subr.mxu0 0.0
    %3063 = vmatpush1.msra.mxu0 0.0
    %3064 = vmatprep.subr.mxu0 0.0
    %3065 = vmatpush1.msra.mxu0 0.0
    %3066 = vmatprep.subr.mxu0 0.0
    %3067 = vmatpush1.msra.mxu0 0.0
    %3068 = vmatprep.subr.mxu0 0.0
    %3069 = vmatpush1.msra.mxu0 0.0
    %3070 = vmatprep.subr.mxu0 0.0
    %3071 = vmatpush1.msra.mxu0 0.0
    %3072 = vmatprep.subr.mxu0 0.0
    %3073 = vmatpush1.msra.mxu0 0.0
    %3074 = vmatprep.subr.mxu0 0.0
    %3075 = vmatpush1.msra.mxu0 0.0
    %3076 = vmatprep.subr.mxu0 0.0
    %3077 = vmatpush1.msra.mxu0 0.0
    %3078 = vmatprep.subr.mxu0 0.0
    %3079 = vmatpush1.msra.mxu0 0.0
    %3080 = vmatprep.subr.mxu0 0.0
    %3081 = vmatpush1.msra.mxu0 0.0
    %3082 = vmatprep.subr.mxu0 0.0
    %3083 = vmatpush1.msra.mxu0 0.0
    %3084 = vmatprep.subr.mxu0 0.0
    %3085 = vmatpush1.msra.mxu0 0.0
    %3086 = vmatprep.subr.mxu0 0.0
    %3087 = vmatpush1.msra.mxu0 0.0
    %3088 = vmatprep.subr.mxu0 0.0
    %3089 = vmatpush1.msra.mxu0 0.0
    %3090 = vmatprep.subr.mxu0 0.0
    %3091 = vmatpush1.msra.mxu0 0.0
    %3092 = vmatprep.subr.mxu0 0.0
    %3093 = vmatpush1.msra.mxu0 0.0
    %3094 = vmatprep.subr.mxu0 0.0
    %3095 = vmatpush1.msra.mxu0 0.0
    %3096 = vmatprep.subr.mxu0 0.0
    %3097 = vmatpush1.msra.mxu0 0.0
    %3098 = vmatprep.subr.mxu0 0.0
    %3099 = vmatpush1.msra.mxu0 0.0
    %3100 = vmatprep.subr.mxu0 0.0
    %3101 = vmatpush1.msra.mxu0 0.0
    %3102 = vmatprep.subr.mxu0 0.0
    %3103 = vmatpush1.msra.mxu0 0.0
    %3104 = vmatprep.subr.mxu0 0.0
    %3105 = vmatpush1.msra.mxu0 0.0
    %3106 = vmatprep.subr.mxu0 0.0
    %3107 = vmatpush1.msra.mxu0 0.0
    %3108 = vmatprep.subr.mxu0 0.0
    %3109 = vmatpush1.msra.mxu0 0.0
    %3110 = vmatprep.subr.mxu0 0.0
    %3111 = vmatpush1.msra.mxu0 0.0
    %3112 = vmatprep.subr.mxu0 0.0
    %3113 = vmatpush1.msra.mxu0 0.0
    %3114 = vmatprep.subr.mxu0 0.0
    %3115 = vmatpush1.msra.mxu0 0.0
    %3116 = vmatprep.subr.mxu0 0.0
    %3117 = vmatpush1.msra.mxu0 0.0
    %3118 = vmatprep.mubr.f32.mxu0 0.0
    %3119 = vmatmul.mubr.f32.gmra.mrb[0].mxu0 %v3052
    %v3120 = vpop.f32.mrb[0].mxu0
    %v3121 = vadd.f32 0.0, %v3120
    %v3122 = vpop.f32.mrb[0].mxu0
    %3123 = vdwg.mxu0
    %v3125 = vsel %vm2018, %v3044, 0
    %3127 = vmatprep.subr.mxu0 0.0
    %3128 = vmatpush1.msra.mxu0 %v465
    %3129 = vmatprep.subr.mxu0 0.0
    %3130 = vmatpush1.msra.mxu0 %v470
    %3131 = vmatprep.subr.mxu0 0.0
    %3132 = vmatpush1.msra.mxu0 0.0
    %3133 = vmatprep.subr.mxu0 0.0
    %3134 = vmatpush1.msra.mxu0 0.0
    %3135 = vmatprep.subr.mxu0 0.0
    %3136 = vmatpush1.msra.mxu0 0.0
    %3137 = vmatprep.subr.mxu0 0.0
    %3138 = vmatpush1.msra.mxu0 0.0
    %3139 = vmatprep.subr.mxu0 0.0
    %3140 = vmatpush1.msra.mxu0 0.0
    %3141 = vmatprep.subr.mxu0 0.0
    %3142 = vmatpush1.msra.mxu0 0.0
    %3143 = vmatprep.subr.mxu0 0.0
    %3144 = vmatpush1.msra.mxu0 0.0
    %3145 = vmatprep.subr.mxu0 0.0
    %3146 = vmatpush1.msra.mxu0 0.0
    %3147 = vmatprep.subr.mxu0 0.0
    %3148 = vmatpush1.msra.mxu0 0.0
    %3149 = vmatprep.subr.mxu0 0.0
    %3150 = vmatpush1.msra.mxu0 0.0
    %3151 = vmatprep.subr.mxu0 0.0
    %3152 = vmatpush1.msra.mxu0 0.0
    %3153 = vmatprep.subr.mxu0 0.0
    %3154 = vmatpush1.msra.mxu0 0.0
    %3155 = vmatprep.subr.mxu0 0.0
    %3156 = vmatpush1.msra.mxu0 0.0
    %3157 = vmatprep.subr.mxu0 0.0
    %3158 = vmatpush1.msra.mxu0 0.0
    %3159 = vmatprep.subr.mxu0 0.0
    %3160 = vmatpush1.msra.mxu0 0.0
    %3161 = vmatprep.subr.mxu0 0.0
    %3162 = vmatpush1.msra.mxu0 0.0
    %3163 = vmatprep.subr.mxu0 0.0
    %3164 = vmatpush1.msra.mxu0 0.0
    %3165 = vmatprep.subr.mxu0 0.0
    %3166 = vmatpush1.msra.mxu0 0.0
    %3167 = vmatprep.subr.mxu0 0.0
    %3168 = vmatpush1.msra.mxu0 0.0
    %3169 = vmatprep.subr.mxu0 0.0
    %3170 = vmatpush1.msra.mxu0 0.0
    %3171 = vmatprep.subr.mxu0 0.0
    %3172 = vmatpush1.msra.mxu0 0.0
    %3173 = vmatprep.subr.mxu0 0.0
    %3174 = vmatpush1.msra.mxu0 0.0
    %3175 = vmatprep.subr.mxu0 0.0
    %3176 = vmatpush1.msra.mxu0 0.0
    %3177 = vmatprep.subr.mxu0 0.0
    %3178 = vmatpush1.msra.mxu0 0.0
    %3179 = vmatprep.subr.mxu0 0.0
    %3180 = vmatpush1.msra.mxu0 0.0
    %3181 = vmatprep.subr.mxu0 0.0
    %3182 = vmatpush1.msra.mxu0 0.0
    %3183 = vmatprep.subr.mxu0 0.0
    %3184 = vmatpush1.msra.mxu0 0.0
    %3185 = vmatprep.subr.mxu0 0.0
    %3186 = vmatpush1.msra.mxu0 0.0
    %3187 = vmatprep.subr.mxu0 0.0
    %3188 = vmatpush1.msra.mxu0 0.0
    %3189 = vmatprep.subr.mxu0 0.0
    %3190 = vmatpush1.msra.mxu0 0.0
    %3191 = vmatprep.mubr.f32.mxu0 0.0
    %3192 = vmatmul.mubr.f32.gmra.mrb[0].mxu0 %v3125
    %v3193 = vpop.f32.mrb[0].mxu0
    %v3194 = vadd.f32 0.0, %v3193
    %v3195 = vpop.f32.mrb[0].mxu0
    %3196 = vdwg.mxu0
    %v3198 = vsel %vm2018, %v3045, 0
    %3200 = vmatprep.subr.mxu0 0.0
    %3201 = vmatpush1.msra.mxu0 %v2312
    %3202 = vmatprep.subr.mxu0 0.0
    %3203 = vmatpush1.msra.mxu0 %v2314
    %3204 = vmatprep.subr.mxu0 0.0
    %3205 = vmatpush1.msra.mxu0 0.0
    %3206 = vmatprep.subr.mxu0 0.0
    %3207 = vmatpush1.msra.mxu0 0.0
    %3208 = vmatprep.subr.mxu0 0.0
    %3209 = vmatpush1.msra.mxu0 0.0
    %3210 = vmatprep.subr.mxu0 0.0
    %3211 = vmatpush1.msra.mxu0 0.0
    %3212 = vmatprep.subr.mxu0 0.0
    %3213 = vmatpush1.msra.mxu0 0.0
    %3214 = vmatprep.subr.mxu0 0.0
    %3215 = vmatpush1.msra.mxu0 0.0
    %3216 = vmatprep.subr.mxu0 0.0
    %3217 = vmatpush1.msra.mxu0 0.0
    %3218 = vmatprep.subr.mxu0 0.0
    %3219 = vmatpush1.msra.mxu0 0.0
    %3220 = vmatprep.subr.mxu0 0.0
    %3221 = vmatpush1.msra.mxu0 0.0
    %3222 = vmatprep.subr.mxu0 0.0
    %3223 = vmatpush1.msra.mxu0 0.0
    %3224 = vmatprep.subr.mxu0 0.0
    %3225 = vmatpush1.msra.mxu0 0.0
    %3226 = vmatprep.subr.mxu0 0.0
    %3227 = vmatpush1.msra.mxu0 0.0
    %3228 = vmatprep.subr.mxu0 0.0
    %3229 = vmatpush1.msra.mxu0 0.0
    %3230 = vmatprep.subr.mxu0 0.0
    %3231 = vmatpush1.msra.mxu0 0.0
    %3232 = vmatprep.subr.mxu0 0.0
    %3233 = vmatpush1.msra.mxu0 0.0
    %3234 = vmatprep.subr.mxu0 0.0
    %3235 = vmatpush1.msra.mxu0 0.0
    %3236 = vmatprep.subr.mxu0 0.0
    %3237 = vmatpush1.msra.mxu0 0.0
    %3238 = vmatprep.subr.mxu0 0.0
    %3239 = vmatpush1.msra.mxu0 0.0
    %3240 = vmatprep.subr.mxu0 0.0
    %3241 = vmatpush1.msra.mxu0 0.0
    %3242 = vmatprep.subr.mxu0 0.0
    %3243 = vmatpush1.msra.mxu0 0.0
    %3244 = vmatprep.subr.mxu0 0.0
    %3245 = vmatpush1.msra.mxu0 0.0
    %3246 = vmatprep.subr.mxu0 0.0
    %3247 = vmatpush1.msra.mxu0 0.0
    %3248 = vmatprep.subr.mxu0 0.0
    %3249 = vmatpush1.msra.mxu0 0.0
    %3250 = vmatprep.subr.mxu0 0.0
    %3251 = vmatpush1.msra.mxu0 0.0
    %3252 = vmatprep.subr.mxu0 0.0
    %3253 = vmatpush1.msra.mxu0 0.0
    %3254 = vmatprep.subr.mxu0 0.0
    %3255 = vmatpush1.msra.mxu0 0.0
    %3256 = vmatprep.subr.mxu0 0.0
    %3257 = vmatpush1.msra.mxu0 0.0
    %3258 = vmatprep.subr.mxu0 0.0
    %3259 = vmatpush1.msra.mxu0 0.0
    %3260 = vmatprep.subr.mxu0 0.0
    %3261 = vmatpush1.msra.mxu0 0.0
    %3262 = vmatprep.subr.mxu0 0.0
    %3263 = vmatpush1.msra.mxu0 0.0
    %3264 = vmatprep.mubr.f32.mxu0 0.0
    %3265 = vmatmul.mubr.f32.gmra.mrb[0].mxu0 %v3198
    %v3266 = vpop.f32.mrb[0].mxu0
    %v3267 = vadd.f32 0.0, %v3266
    %v3268 = vpop.f32.mrb[0].mxu0
    %3269 = vdwg.mxu0
    %v3271 = vsel %vm2018, %v3046, 0
    %3273 = vmatprep.subr.mxu0 0.0
    %3274 = vmatpush1.msra.mxu0 %v2316
    %3275 = vmatprep.subr.mxu0 0.0
    %3276 = vmatpush1.msra.mxu0 %v2318
    %3277 = vmatprep.subr.mxu0 0.0
    %3278 = vmatpush1.msra.mxu0 0.0
    %3279 = vmatprep.subr.mxu0 0.0
    %3280 = vmatpush1.msra.mxu0 0.0
    %3281 = vmatprep.subr.mxu0 0.0
    %3282 = vmatpush1.msra.mxu0 0.0
    %3283 = vmatprep.subr.mxu0 0.0
    %3284 = vmatpush1.msra.mxu0 0.0
    %3285 = vmatprep.subr.mxu0 0.0
    %3286 = vmatpush1.msra.mxu0 0.0
    %3287 = vmatprep.subr.mxu0 0.0
    %3288 = vmatpush1.msra.mxu0 0.0
    %3289 = vmatprep.subr.mxu0 0.0
    %3290 = vmatpush1.msra.mxu0 0.0
    %3291 = vmatprep.subr.mxu0 0.0
    %3292 = vmatpush1.msra.mxu0 0.0
    %3293 = vmatprep.subr.mxu0 0.0
    %3294 = vmatpush1.msra.mxu0 0.0
    %3295 = vmatprep.subr.mxu0 0.0
    %3296 = vmatpush1.msra.mxu0 0.0
    %3297 = vmatprep.subr.mxu0 0.0
    %3298 = vmatpush1.msra.mxu0 0.0
    %3299 = vmatprep.subr.mxu0 0.0
    %3300 = vmatpush1.msra.mxu0 0.0
    %3301 = vmatprep.subr.mxu0 0.0
    %3302 = vmatpush1.msra.mxu0 0.0
    %3303 = vmatprep.subr.mxu0 0.0
    %3304 = vmatpush1.msra.mxu0 0.0
    %3305 = vmatprep.subr.mxu0 0.0
    %3306 = vmatpush1.msra.mxu0 0.0
    %3307 = vmatprep.subr.mxu0 0.0
    %3308 = vmatpush1.msra.mxu0 0.0
    %3309 = vmatprep.subr.mxu0 0.0
    %3310 = vmatpush1.msra.mxu0 0.0
    %3311 = vmatprep.subr.mxu0 0.0
    %3312 = vmatpush1.msra.mxu0 0.0
    %3313 = vmatprep.subr.mxu0 0.0
    %3314 = vmatpush1.msra.mxu0 0.0
    %3315 = vmatprep.subr.mxu0 0.0
    %3316 = vmatpush1.msra.mxu0 0.0
    %3317 = vmatprep.subr.mxu0 0.0
    %3318 = vmatpush1.msra.mxu0 0.0
    %3319 = vmatprep.subr.mxu0 0.0
    %3320 = vmatpush1.msra.mxu0 0.0
    %3321 = vmatprep.subr.mxu0 0.0
    %3322 = vmatpush1.msra.mxu0 0.0
    %3323 = vmatprep.subr.mxu0 0.0
    %3324 = vmatpush1.msra.mxu0 0.0
    %3325 = vmatprep.subr.mxu0 0.0
    %3326 = vmatpush1.msra.mxu0 0.0
    %3327 = vmatprep.subr.mxu0 0.0
    %3328 = vmatpush1.msra.mxu0 0.0
    %3329 = vmatprep.subr.mxu0 0.0
    %3330 = vmatpush1.msra.mxu0 0.0
    %3331 = vmatprep.subr.mxu0 0.0
    %3332 = vmatpush1.msra.mxu0 0.0
    %3333 = vmatprep.subr.mxu0 0.0
    %3334 = vmatpush1.msra.mxu0 0.0
    %3335 = vmatprep.subr.mxu0 0.0
    %3336 = vmatpush1.msra.mxu0 0.0
    %3337 = vmatprep.mubr.f32.mxu0 0.0
    %3338 = vmatmul.mubr.f32.gmra.mrb[0].mxu0 %v3271
    %v3339 = vpop.f32.mrb[0].mxu0
    %v3340 = vadd.f32 0.0, %v3339
    %v3341 = vpop.f32.mrb[0].mxu0
    %3342 = vdwg.mxu0
    %v3344 = vsel %vm2018, %v3047, 0
    %3346 = vmatprep.subr.mxu0 0.0
    %3347 = vmatpush1.msra.mxu0 %v2324
    %3348 = vmatprep.subr.mxu0 0.0
    %3349 = vmatpush1.msra.mxu0 %v2326
    %3350 = vmatprep.subr.mxu0 0.0
    %3351 = vmatpush1.msra.mxu0 0.0
    %3352 = vmatprep.subr.mxu0 0.0
    %3353 = vmatpush1.msra.mxu0 0.0
    %3354 = vmatprep.subr.mxu0 0.0
    %3355 = vmatpush1.msra.mxu0 0.0
    %3356 = vmatprep.subr.mxu0 0.0
    %3357 = vmatpush1.msra.mxu0 0.0
    %3358 = vmatprep.subr.mxu0 0.0
    %3359 = vmatpush1.msra.mxu0 0.0
    %3360 = vmatprep.subr.mxu0 0.0
    %3361 = vmatpush1.msra.mxu0 0.0
    %3362 = vmatprep.subr.mxu0 0.0
    %3363 = vmatpush1.msra.mxu0 0.0
    %3364 = vmatprep.subr.mxu0 0.0
    %3365 = vmatpush1.msra.mxu0 0.0
    %3366 = vmatprep.subr.mxu0 0.0
    %3367 = vmatpush1.msra.mxu0 0.0
    %3368 = vmatprep.subr.mxu0 0.0
    %3369 = vmatpush1.msra.mxu0 0.0
    %3370 = vmatprep.subr.mxu0 0.0
    %3371 = vmatpush1.msra.mxu0 0.0
    %3372 = vmatprep.subr.mxu0 0.0
    %3373 = vmatpush1.msra.mxu0 0.0
    %3374 = vmatprep.subr.mxu0 0.0
    %3375 = vmatpush1.msra.mxu0 0.0
    %3376 = vmatprep.subr.mxu0 0.0
    %3377 = vmatpush1.msra.mxu0 0.0
    %3378 = vmatprep.subr.mxu0 0.0
    %3379 = vmatpush1.msra.mxu0 0.0
    %3380 = vmatprep.subr.mxu0 0.0
    %3381 = vmatpush1.msra.mxu0 0.0
    %3382 = vmatprep.subr.mxu0 0.0
    %3383 = vmatpush1.msra.mxu0 0.0
    %3384 = vmatprep.subr.mxu0 0.0
    %3385 = vmatpush1.msra.mxu0 0.0
    %3386 = vmatprep.subr.mxu0 0.0
    %3387 = vmatpush1.msra.mxu0 0.0
    %3388 = vmatprep.subr.mxu0 0.0
    %3389 = vmatpush1.msra.mxu0 0.0
    %3390 = vmatprep.subr.mxu0 0.0
    %3391 = vmatpush1.msra.mxu0 0.0
    %3392 = vmatprep.subr.mxu0 0.0
    %3393 = vmatpush1.msra.mxu0 0.0
    %3394 = vmatprep.subr.mxu0 0.0
    %3395 = vmatpush1.msra.mxu0 0.0
    %3396 = vmatprep.subr.mxu0 0.0
    %3397 = vmatpush1.msra.mxu0 0.0
    %3398 = vmatprep.subr.mxu0 0.0
    %3399 = vmatpush1.msra.mxu0 0.0
    %3400 = vmatprep.subr.mxu0 0.0
    %3401 = vmatpush1.msra.mxu0 0.0
    %3402 = vmatprep.subr.mxu0 0.0
    %3403 = vmatpush1.msra.mxu0 0.0
    %3404 = vmatprep.subr.mxu0 0.0
    %3405 = vmatpush1.msra.mxu0 0.0
    %3406 = vmatprep.subr.mxu0 0.0
    %3407 = vmatpush1.msra.mxu0 0.0
    %3408 = vmatprep.subr.mxu0 0.0
    %3409 = vmatpush1.msra.mxu0 0.0
    %3410 = vmatprep.mubr.f32.mxu0 0.0
    %3411 = vmatmul.mubr.f32.gmra.mrb[0].mxu0 %v3344
    %v3412 = vpop.f32.mrb[0].mxu0
    %v3413 = vadd.f32 0.0, %v3412
    %v3414 = vpop.f32.mrb[0].mxu0
    %3415 = vdwg.mxu0
    %v3417 = vsel %vm2018, %v3048, 0
    %3419 = vmatprep.subr.mxu0 0.0
    %3420 = vmatpush1.msra.mxu0 %v2328
    %3421 = vmatprep.subr.mxu0 0.0
    %3422 = vmatpush1.msra.mxu0 %v2330
    %3423 = vmatprep.subr.mxu0 0.0
    %3424 = vmatpush1.msra.mxu0 0.0
    %3425 = vmatprep.subr.mxu0 0.0
    %3426 = vmatpush1.msra.mxu0 0.0
    %3427 = vmatprep.subr.mxu0 0.0
    %3428 = vmatpush1.msra.mxu0 0.0
    %3429 = vmatprep.subr.mxu0 0.0
    %3430 = vmatpush1.msra.mxu0 0.0
    %3431 = vmatprep.subr.mxu0 0.0
    %3432 = vmatpush1.msra.mxu0 0.0
    %3433 = vmatprep.subr.mxu0 0.0
    %3434 = vmatpush1.msra.mxu0 0.0
    %3435 = vmatprep.subr.mxu0 0.0
    %3436 = vmatpush1.msra.mxu0 0.0
    %3437 = vmatprep.subr.mxu0 0.0
    %3438 = vmatpush1.msra.mxu0 0.0
    %3439 = vmatprep.subr.mxu0 0.0
    %3440 = vmatpush1.msra.mxu0 0.0
    %3441 = vmatprep.subr.mxu0 0.0
    %3442 = vmatpush1.msra.mxu0 0.0
    %3443 = vmatprep.subr.mxu0 0.0
    %3444 = vmatpush1.msra.mxu0 0.0
    %3445 = vmatprep.subr.mxu0 0.0
    %3446 = vmatpush1.msra.mxu0 0.0
    %3447 = vmatprep.subr.mxu0 0.0
    %3448 = vmatpush1.msra.mxu0 0.0
    %3449 = vmatprep.subr.mxu0 0.0
    %3450 = vmatpush1.msra.mxu0 0.0
    %3451 = vmatprep.subr.mxu0 0.0
    %3452 = vmatpush1.msra.mxu0 0.0
    %3453 = vmatprep.subr.mxu0 0.0
    %3454 = vmatpush1.msra.mxu0 0.0
    %3455 = vmatprep.subr.mxu0 0.0
    %3456 = vmatpush1.msra.mxu0 0.0
    %3457 = vmatprep.subr.mxu0 0.0
    %3458 = vmatpush1.msra.mxu0 0.0
    %3459 = vmatprep.subr.mxu0 0.0
    %3460 = vmatpush1.msra.mxu0 0.0
    %3461 = vmatprep.subr.mxu0 0.0
    %3462 = vmatpush1.msra.mxu0 0.0
    %3463 = vmatprep.subr.mxu0 0.0
    %3464 = vmatpush1.msra.mxu0 0.0
    %3465 = vmatprep.subr.mxu0 0.0
    %3466 = vmatpush1.msra.mxu0 0.0
    %3467 = vmatprep.subr.mxu0 0.0
    %3468 = vmatpush1.msra.mxu0 0.0
    %3469 = vmatprep.subr.mxu0 0.0
    %3470 = vmatpush1.msra.mxu0 0.0
    %3471 = vmatprep.subr.mxu0 0.0
    %3472 = vmatpush1.msra.mxu0 0.0
    %3473 = vmatprep.subr.mxu0 0.0
    %3474 = vmatpush1.msra.mxu0 0.0
    %3475 = vmatprep.subr.mxu0 0.0
    %3476 = vmatpush1.msra.mxu0 0.0
    %3477 = vmatprep.subr.mxu0 0.0
    %3478 = vmatpush1.msra.mxu0 0.0
    %3479 = vmatprep.subr.mxu0 0.0
    %3480 = vmatpush1.msra.mxu0 0.0
    %3481 = vmatprep.subr.mxu0 0.0
    %3482 = vmatpush1.msra.mxu0 0.0
    %3483 = vmatprep.mubr.f32.mxu0 0.0
    %3484 = vmatmul.mubr.f32.gmra.mrb[0].mxu0 %v3417
    %v3485 = vpop.f32.mrb[0].mxu0
    %v3486 = vadd.f32 0.0, %v3485
    %v3487 = vpop.f32.mrb[0].mxu0
    %3488 = vdwg.mxu0
    %v3490 = vsel %vm2018, %v3049, 0
    %3492 = vmatprep.subr.mxu0 0.0
    %3493 = vmatpush1.msra.mxu0 %v2336
    %3494 = vmatprep.subr.mxu0 0.0
    %3495 = vmatpush1.msra.mxu0 %v2338
    %3496 = vmatprep.subr.mxu0 0.0
    %3497 = vmatpush1.msra.mxu0 0.0
    %3498 = vmatprep.subr.mxu0 0.0
    %3499 = vmatpush1.msra.mxu0 0.0
    %3500 = vmatprep.subr.mxu0 0.0
    %3501 = vmatpush1.msra.mxu0 0.0
    %3502 = vmatprep.subr.mxu0 0.0
    %3503 = vmatpush1.msra.mxu0 0.0
    %3504 = vmatprep.subr.mxu0 0.0
    %3505 = vmatpush1.msra.mxu0 0.0
    %3506 = vmatprep.subr.mxu0 0.0
    %3507 = vmatpush1.msra.mxu0 0.0
    %3508 = vmatprep.subr.mxu0 0.0
    %3509 = vmatpush1.msra.mxu0 0.0
    %3510 = vmatprep.subr.mxu0 0.0
    %3511 = vmatpush1.msra.mxu0 0.0
    %3512 = vmatprep.subr.mxu0 0.0
    %3513 = vmatpush1.msra.mxu0 0.0
    %3514 = vmatprep.subr.mxu0 0.0
    %3515 = vmatpush1.msra.mxu0 0.0
    %3516 = vmatprep.subr.mxu0 0.0
    %3517 = vmatpush1.msra.mxu0 0.0
    %3518 = vmatprep.subr.mxu0 0.0
    %3519 = vmatpush1.msra.mxu0 0.0
    %3520 = vmatprep.subr.mxu0 0.0
    %3521 = vmatpush1.msra.mxu0 0.0
    %3522 = vmatprep.subr.mxu0 0.0
    %3523 = vmatpush1.msra.mxu0 0.0
    %3524 = vmatprep.subr.mxu0 0.0
    %3525 = vmatpush1.msra.mxu0 0.0
    %3526 = vmatprep.subr.mxu0 0.0
    %3527 = vmatpush1.msra.mxu0 0.0
    %3528 = vmatprep.subr.mxu0 0.0
    %3529 = vmatpush1.msra.mxu0 0.0
    %3530 = vmatprep.subr.mxu0 0.0
    %3531 = vmatpush1.msra.mxu0 0.0
    %3532 = vmatprep.subr.mxu0 0.0
    %3533 = vmatpush1.msra.mxu0 0.0
    %3534 = vmatprep.subr.mxu0 0.0
    %3535 = vmatpush1.msra.mxu0 0.0
    %3536 = vmatprep.subr.mxu0 0.0
    %3537 = vmatpush1.msra.mxu0 0.0
    %3538 = vmatprep.subr.mxu0 0.0
    %3539 = vmatpush1.msra.mxu0 0.0
    %3540 = vmatprep.subr.mxu0 0.0
    %3541 = vmatpush1.msra.mxu0 0.0
    %3542 = vmatprep.subr.mxu0 0.0
    %3543 = vmatpush1.msra.mxu0 0.0
    %3544 = vmatprep.subr.mxu0 0.0
    %3545 = vmatpush1.msra.mxu0 0.0
    %3546 = vmatprep.subr.mxu0 0.0
    %3547 = vmatpush1.msra.mxu0 0.0
    %3548 = vmatprep.subr.mxu0 0.0
    %3549 = vmatpush1.msra.mxu0 0.0
    %3550 = vmatprep.subr.mxu0 0.0
    %3551 = vmatpush1.msra.mxu0 0.0
    %3552 = vmatprep.subr.mxu0 0.0
    %3553 = vmatpush1.msra.mxu0 0.0
    %3554 = vmatprep.subr.mxu0 0.0
    %3555 = vmatpush1.msra.mxu0 0.0
    %3556 = vmatprep.mubr.f32.mxu0 0.0
    %3557 = vmatmul.mubr.f32.gmra.mrb[0].mxu0 %v3490
    %v3558 = vpop.f32.mrb[0].mxu0
    %v3559 = vadd.f32 0.0, %v3558
    %v3560 = vpop.f32.mrb[0].mxu0
    %3561 = vdwg.mxu0
    %v3563 = vsel %vm2018, %v3050, 0
    %3565 = vmatprep.subr.mxu0 0.0
    %3566 = vmatpush1.msra.mxu0 %v2340
    %3567 = vmatprep.subr.mxu0 0.0
    %3568 = vmatpush1.msra.mxu0 %v2342
    %3569 = vmatprep.subr.mxu0 0.0
    %3570 = vmatpush1.msra.mxu0 0.0
    %3571 = vmatprep.subr.mxu0 0.0
    %3572 = vmatpush1.msra.mxu0 0.0
    %3573 = vmatprep.subr.mxu0 0.0
    %3574 = vmatpush1.msra.mxu0 0.0
    %3575 = vmatprep.subr.mxu0 0.0
    %3576 = vmatpush1.msra.mxu0 0.0
    %3577 = vmatprep.subr.mxu0 0.0
    %3578 = vmatpush1.msra.mxu0 0.0
    %3579 = vmatprep.subr.mxu0 0.0
    %3580 = vmatpush1.msra.mxu0 0.0
    %3581 = vmatprep.subr.mxu0 0.0
    %3582 = vmatpush1.msra.mxu0 0.0
    %3583 = vmatprep.subr.mxu0 0.0
    %3584 = vmatpush1.msra.mxu0 0.0
    %3585 = vmatprep.subr.mxu0 0.0
    %3586 = vmatpush1.msra.mxu0 0.0
    %3587 = vmatprep.subr.mxu0 0.0
    %3588 = vmatpush1.msra.mxu0 0.0
    %3589 = vmatprep.subr.mxu0 0.0
    %3590 = vmatpush1.msra.mxu0 0.0
    %3591 = vmatprep.subr.mxu0 0.0
    %3592 = vmatpush1.msra.mxu0 0.0
    %3593 = vmatprep.subr.mxu0 0.0
    %3594 = vmatpush1.msra.mxu0 0.0
    %3595 = vmatprep.subr.mxu0 0.0
    %3596 = vmatpush1.msra.mxu0 0.0
    %3597 = vmatprep.subr.mxu0 0.0
    %3598 = vmatpush1.msra.mxu0 0.0
    %3599 = vmatprep.subr.mxu0 0.0
    %3600 = vmatpush1.msra.mxu0 0.0
    %3601 = vmatprep.subr.mxu0 0.0
    %3602 = vmatpush1.msra.mxu0 0.0
    %3603 = vmatprep.subr.mxu0 0.0
    %3604 = vmatpush1.msra.mxu0 0.0
    %3605 = vmatprep.subr.mxu0 0.0
    %3606 = vmatpush1.msra.mxu0 0.0
    %3607 = vmatprep.subr.mxu0 0.0
    %3608 = vmatpush1.msra.mxu0 0.0
    %3609 = vmatprep.subr.mxu0 0.0
    %3610 = vmatpush1.msra.mxu0 0.0
    %3611 = vmatprep.subr.mxu0 0.0
    %3612 = vmatpush1.msra.mxu0 0.0
    %3613 = vmatprep.subr.mxu0 0.0
    %3614 = vmatpush1.msra.mxu0 0.0
    %3615 = vmatprep.subr.mxu0 0.0
    %3616 = vmatpush1.msra.mxu0 0.0
    %3617 = vmatprep.subr.mxu0 0.0
    %3618 = vmatpush1.msra.mxu0 0.0
    %3619 = vmatprep.subr.mxu0 0.0
    %3620 = vmatpush1.msra.mxu0 0.0
    %3621 = vmatprep.subr.mxu0 0.0
    %3622 = vmatpush1.msra.mxu0 0.0
    %3623 = vmatprep.subr.mxu0 0.0
    %3624 = vmatpush1.msra.mxu0 0.0
    %3625 = vmatprep.subr.mxu0 0.0
    %3626 = vmatpush1.msra.mxu0 0.0
    %3627 = vmatprep.subr.mxu0 0.0
    %3628 = vmatpush1.msra.mxu0 0.0
    %3629 = vmatprep.mubr.f32.mxu0 0.0
    %3630 = vmatmul.mubr.f32.gmra.mrb[0].mxu0 %v3563
    %v3631 = vpop.f32.mrb[0].mxu0
    %v3632 = vadd.f32 0.0, %v3631
    %v3633 = vpop.f32.mrb[0].mxu0
    %3634 = vdwg.mxu0
    %3637 = vrot.lane.b32.xlu0 %v3267, 8
    %v3638 = vpop.permute.xlu0 %3637
    %3639 = vrot.lane.b32.xlu0 %v3340, 8
    %v3640 = vpop.permute.xlu0 %3639
    %3645 = vrot.lane.b32.xlu0 %v3413, 16
    %v3646 = vpop.permute.xlu0 %3645
    %3647 = vrot.lane.b32.xlu0 %v3486, 16
    %v3648 = vpop.permute.xlu0 %3647
    %3653 = vrot.lane.b32.xlu0 %v3559, 24
    %v3654 = vpop.permute.xlu0 %3653
    %3655 = vrot.lane.b32.xlu0 %v3632, 24
    %v3656 = vpop.permute.xlu0 %3655
    %v3659 = vsel %vm705, %v3121, %v3638
    %v3660 = vsel %vm705, %v3194, %v3640
    %v3661 = vsel %vm2018, %v3659, %v3646
    %v3662 = vsel %vm2018, %v3660, %v3648
    %v3663 = vsel %vm2021, %v3661, %v3654
    %v3664 = vsel %vm2021, %v3662, %v3656
    %s3665 = scalar_lea.vmem [#allocation11], 96
    %v3666 = vld [vmem:[%s3665] sm:$0xff]
    %v3667 = vld [vmem:[%s3665 + $0x8] sm:$0xff]
    %v3668 = vld [vmem:[%s3665 + $0x10] sm:$0xff]
    %v3669 = vld [vmem:[%s3665 + $0x18] sm:$0xff]
    %v3670 = vld [vmem:[%s9 + $0x3] sm:$0x1]
    %v3671 = vlaneseq
    %v3672 = vshrl.u32 %v3671, 7
    %v3673 = vsub.s32 0, %v3672
    %v3674 = vrot.slane %v3670, %v3673
    %v3676 = vsel %vm174, %v3663, 0
    %v3679 = vsel %vm174, %v3664, 0
    %3681 = vmatprep.subr.mxu0 0.0
    %3682 = vmatpush1.msra.mxu0 %v3666
    %3683 = vmatprep.subr.mxu0 0.0
    %3684 = vmatpush1.msra.mxu0 %v3667
    %3685 = vmatprep.subr.mxu0 0.0
    %3686 = vmatpush1.msra.mxu0 %v3668
    %3687 = vmatprep.subr.mxu0 0.0
    %3688 = vmatpush1.msra.mxu0 %v3669
    %3689 = vmatprep.subr.mxu0 0.0
    %3690 = vmatpush1.msra.mxu0 0.0
    %3691 = vmatprep.subr.mxu0 0.0
    %3692 = vmatpush1.msra.mxu0 0.0
    %3693 = vmatprep.subr.mxu0 0.0
    %3694 = vmatpush1.msra.mxu0 0.0
    %3695 = vmatprep.subr.mxu0 0.0
    %3696 = vmatpush1.msra.mxu0 0.0
    %3697 = vmatprep.subr.mxu0 0.0
    %3698 = vmatpush1.msra.mxu0 0.0
    %3699 = vmatprep.subr.mxu0 0.0
    %3700 = vmatpush1.msra.mxu0 0.0
    %3701 = vmatprep.subr.mxu0 0.0
    %3702 = vmatpush1.msra.mxu0 0.0
    %3703 = vmatprep.subr.mxu0 0.0
    %3704 = vmatpush1.msra.mxu0 0.0
    %3705 = vmatprep.subr.mxu0 0.0
    %3706 = vmatpush1.msra.mxu0 0.0
    %3707 = vmatprep.subr.mxu0 0.0
    %3708 = vmatpush1.msra.mxu0 0.0
    %3709 = vmatprep.subr.mxu0 0.0
    %3710 = vmatpush1.msra.mxu0 0.0
    %3711 = vmatprep.subr.mxu0 0.0
    %3712 = vmatpush1.msra.mxu0 0.0
    %3713 = vmatprep.subr.mxu0 0.0
    %3714 = vmatpush1.msra.mxu0 0.0
    %3715 = vmatprep.subr.mxu0 0.0
    %3716 = vmatpush1.msra.mxu0 0.0
    %3717 = vmatprep.subr.mxu0 0.0
    %3718 = vmatpush1.msra.mxu0 0.0
    %3719 = vmatprep.subr.mxu0 0.0
    %3720 = vmatpush1.msra.mxu0 0.0
    %3721 = vmatprep.subr.mxu0 0.0
    %3722 = vmatpush1.msra.mxu0 0.0
    %3723 = vmatprep.subr.mxu0 0.0
    %3724 = vmatpush1.msra.mxu0 0.0
    %3725 = vmatprep.subr.mxu0 0.0
    %3726 = vmatpush1.msra.mxu0 0.0
    %3727 = vmatprep.subr.mxu0 0.0
    %3728 = vmatpush1.msra.mxu0 0.0
    %3729 = vmatprep.subr.mxu0 0.0
    %3730 = vmatpush1.msra.mxu0 0.0
    %3731 = vmatprep.subr.mxu0 0.0
    %3732 = vmatpush1.msra.mxu0 0.0
    %3733 = vmatprep.subr.mxu0 0.0
    %3734 = vmatpush1.msra.mxu0 0.0
    %3735 = vmatprep.subr.mxu0 0.0
    %3736 = vmatpush1.msra.mxu0 0.0
    %3737 = vmatprep.subr.mxu0 0.0
    %3738 = vmatpush1.msra.mxu0 0.0
    %3739 = vmatprep.subr.mxu0 0.0
    %3740 = vmatpush1.msra.mxu0 0.0
    %3741 = vmatprep.subr.mxu0 0.0
    %3742 = vmatpush1.msra.mxu0 0.0
    %3743 = vmatprep.subr.mxu0 0.0
    %3744 = vmatpush1.msra.mxu0 0.0
    %3745 = vmatprep.mubr.f32.mxu0 0.0
    %3746 = vmatmul.mubr.f32.gmra.mrb[0].mxu0 %v3676
    %v3747 = vpop.f32.mrb[0].mxu0
    %v3748 = vadd.f32 %v3674, %v3747
    %v3749 = vpop.f32.mrb[0].mxu0
    %3750 = vmatprep.mubr.f32.mxu0 0.0
    %3751 = vmatmul.mubr.f32.gmra.mrb[0].mxu0 %v3679
    %v3752 = vpop.f32.mrb[0].mxu0
    %v3753 = vadd.f32 %v3674, %v3752
    %v3754 = vpop.f32.mrb[0].mxu0
    %3755 = vdwg.mxu0
    %v3756 = vadd.f32 %v2156, %v3748
    %v3757 = vadd.f32 %v2157, %v3753
    %v3758 = vld [vmem:[%s9 + $0x6] sm:$0x1]
    %v3759 = vld [vmem:[%s9 + $0x7] sm:$0x1]
    %v3760 = vsel %vm174, %v3756, 0.0
    %3761 = vadd.xlane.f32.xlu0 %v3760
    %v3762 = vpop.xlane.xlu0 %3761
    %v3763 = vsel %vm174, %v3757, 0.0
    %3764 = vadd.xlane.f32.xlu0 %v3763
    %v3765 = vpop.xlane.xlu0 %3764
    %v3766 = vmul.f32 %v3762, %v2125
    %v3767 = vmul.f32 %v3765, %v2125
    %v3768 = vsub.f32 %v3756, %v3766
    %v3769 = vsub.f32 %v3757, %v3767
    %v3770 = vmul.f32 %v3768, %v3768
    %v3771 = vmul.f32 %v3769, %v3769
    %v3772 = vsel %vm174, %v3770, 0.0
    %3773 = vadd.xlane.f32.xlu0 %v3772
    %v3774 = vpop.xlane.xlu0 %3773
    %v3775 = vsel %vm174, %v3771, 0.0
    %3776 = vadd.xlane.f32.xlu0 %v3775
    %v3777 = vpop.xlane.xlu0 %3776
    %v3778 = vmul.f32 %v3774, %v2125
    %v3779 = vmul.f32 %v3777, %v2125
    %v3780 = vadd.f32 %v3778, 1e-05
    %v3781 = vadd.f32 %v3779, 1e-05
    %v3782 = vrsqrt.pop %v3780
    %v3783 = vrsqrt.pop %v3781
    %v3784 = vmul.f32 %v3768, %v3782
    %v3785 = vmul.f32 %v3769, %v3783
    %v3786 = vlaneseq
    %v3787 = vshrl.u32 %v3786, 7
    %v3788 = vsub.s32 0, %v3787
    %v3789 = vrot.slane %v3758, %v3788
    %v3790 = vmul.f32 %v3784, %v3789
    %v3791 = vmul.f32 %v3785, %v3789
    %v3792 = vlaneseq
    %v3793 = vshrl.u32 %v3792, 7
    %v3794 = vsub.s32 0, %v3793
    %v3795 = vrot.slane %v3759, %v3794
    %v3796 = vadd.f32 %v3790, %v3795
    %v3797 = vadd.f32 %v3791, %v3795
    %v3798 = vadd.f32 %v3796, %v3796
    %v3799 = vadd.f32 %v3797, %v3797
    %v3800 = vld [vmem:[%s9 + $0x8] sm:$0x1]
    %v3801 = vld [vmem:[%s9 + $0x9] sm:$0x1]
    %v3802 = vsel %vm174, %v3798, 0.0
    %3803 = vadd.xlane.f32.xlu0 %v3802
    %v3804 = vpop.xlane.xlu0 %3803
    %v3805 = vsel %vm174, %v3799, 0.0
    %3806 = vadd.xlane.f32.xlu0 %v3805
    %v3807 = vpop.xlane.xlu0 %3806
    %v3808 = vmul.f32 %v3804, %v2125
    %v3809 = vmul.f32 %v3807, %v2125
    %v3810 = vsub.f32 %v3798, %v3808
    %v3811 = vsub.f32 %v3799, %v3809
    %v3812 = vmul.f32 %v3810, %v3810
    %v3813 = vmul.f32 %v3811, %v3811
    %v3814 = vsel %vm174, %v3812, 0.0
    %3815 = vadd.xlane.f32.xlu0 %v3814
    %v3816 = vpop.xlane.xlu0 %3815
    %v3817 = vsel %vm174, %v3813, 0.0
    %3818 = vadd.xlane.f32.xlu0 %v3817
    %v3819 = vpop.xlane.xlu0 %3818
    %v3820 = vmul.f32 %v3816, %v2125
    %v3821 = vmul.f32 %v3819, %v2125
    %v3822 = vadd.f32 %v3820, 1e-05
    %v3823 = vadd.f32 %v3821, 1e-05
    %v3824 = vrsqrt.pop %v3822
    %v3825 = vrsqrt.pop %v3823
    %v3826 = vmul.f32 %v3810, %v3824
    %v3827 = vmul.f32 %v3811, %v3825
    %v3828 = vlaneseq
    %v3829 = vshrl.u32 %v3828, 7
    %v3830 = vsub.s32 0, %v3829
    %v3831 = vrot.slane %v3800, %v3830
    %v3832 = vmul.f32 %v3826, %v3831
    %v3833 = vmul.f32 %v3827, %v3831
    %v3834 = vlaneseq
    %v3835 = vshrl.u32 %v3834, 7
    %v3836 = vsub.s32 0, %v3835
    %v3837 = vrot.slane %v3801, %v3836
    %v3838 = vadd.f32 %v3832, %v3837
    %v3839 = vadd.f32 %v3833, %v3837
    %v3840 = vadd.f32 %v3838, %v157
    %v3841 = vadd.f32 %v3839, %v158
    %s3842 = scalar_lea.vmem [#allocation10], 32
    %v3843 = vld [vmem:[%s3842] sm:$0xff]
    %v3844 = vld [vmem:[%s3842 + $0x8] sm:$0xff]
    %v3845 = vld [vmem:[%s3842 + $0x10] sm:$0xff]
    %v3846 = vld [vmem:[%s3842 + $0x18] sm:$0xff]
    %v3847 = vld [vmem:[%s8 + $0x1] sm:$0x1]
    %v3848 = vlaneseq
    %v3849 = vshrl.u32 %v3848, 7
    %v3850 = vsub.s32 0, %v3849
    %v3851 = vrot.slane %v3847, %v3850
    %v3853 = vsel %vm174, %v3840, 0
    %v3856 = vsel %vm174, %v3841, 0
    %3858 = vmatprep.subr.mxu0 0.0
    %3859 = vmatpush1.msra.mxu0 %v3843
    %3860 = vmatprep.subr.mxu0 0.0
    %3861 = vmatpush1.msra.mxu0 %v3844
    %3862 = vmatprep.subr.mxu0 0.0
    %3863 = vmatpush1.msra.mxu0 %v3845
    %3864 = vmatprep.subr.mxu0 0.0
    %3865 = vmatpush1.msra.mxu0 %v3846
    %3866 = vmatprep.subr.mxu0 0.0
    %3867 = vmatpush1.msra.mxu0 0.0
    %3868 = vmatprep.subr.mxu0 0.0
    %3869 = vmatpush1.msra.mxu0 0.0
    %3870 = vmatprep.subr.mxu0 0.0
    %3871 = vmatpush1.msra.mxu0 0.0
    %3872 = vmatprep.subr.mxu0 0.0
    %3873 = vmatpush1.msra.mxu0 0.0
    %3874 = vmatprep.subr.mxu0 0.0
    %3875 = vmatpush1.msra.mxu0 0.0
    %3876 = vmatprep.subr.mxu0 0.0
    %3877 = vmatpush1.msra.mxu0 0.0
    %3878 = vmatprep.subr.mxu0 0.0
    %3879 = vmatpush1.msra.mxu0 0.0
    %3880 = vmatprep.subr.mxu0 0.0
    %3881 = vmatpush1.msra.mxu0 0.0
    %3882 = vmatprep.subr.mxu0 0.0
    %3883 = vmatpush1.msra.mxu0 0.0
    %3884 = vmatprep.subr.mxu0 0.0
    %3885 = vmatpush1.msra.mxu0 0.0
    %3886 = vmatprep.subr.mxu0 0.0
    %3887 = vmatpush1.msra.mxu0 0.0
    %3888 = vmatprep.subr.mxu0 0.0
    %3889 = vmatpush1.msra.mxu0 0.0
    %3890 = vmatprep.subr.mxu0 0.0
    %3891 = vmatpush1.msra.mxu0 0.0
    %3892 = vmatprep.subr.mxu0 0.0
    %3893 = vmatpush1.msra.mxu0 0.0
    %3894 = vmatprep.subr.mxu0 0.0
    %3895 = vmatpush1.msra.mxu0 0.0
    %3896 = vmatprep.subr.mxu0 0.0
    %3897 = vmatpush1.msra.mxu0 0.0
    %3898 = vmatprep.subr.mxu0 0.0
    %3899 = vmatpush1.msra.mxu0 0.0
    %3900 = vmatprep.subr.mxu0 0.0
    %3901 = vmatpush1.msra.mxu0 0.0
    %3902 = vmatprep.subr.mxu0 0.0
    %3903 = vmatpush1.msra.mxu0 0.0
    %3904 = vmatprep.subr.mxu0 0.0
    %3905 = vmatpush1.msra.mxu0 0.0
    %3906 = vmatprep.subr.mxu0 0.0
    %3907 = vmatpush1.msra.mxu0 0.0
    %3908 = vmatprep.subr.mxu0 0.0
    %3909 = vmatpush1.msra.mxu0 0.0
    %3910 = vmatprep.subr.mxu0 0.0
    %3911 = vmatpush1.msra.mxu0 0.0
    %3912 = vmatprep.subr.mxu0 0.0
    %3913 = vmatpush1.msra.mxu0 0.0
    %3914 = vmatprep.subr.mxu0 0.0
    %3915 = vmatpush1.msra.mxu0 0.0
    %3916 = vmatprep.subr.mxu0 0.0
    %3917 = vmatpush1.msra.mxu0 0.0
    %3918 = vmatprep.subr.mxu0 0.0
    %3919 = vmatpush1.msra.mxu0 0.0
    %3920 = vmatprep.subr.mxu0 0.0
    %3921 = vmatpush1.msra.mxu0 0.0
    %3922 = vmatprep.mubr.f32.mxu0 0.0
    %3923 = vmatmul.mubr.f32.gmra.mrb[0].mxu0 %v3853
    %v3924 = vpop.f32.mrb[0].mxu0
    %v3925 = vadd.f32 %v3851, %v3924
    %v3926 = vpop.f32.mrb[0].mxu0
    %3927 = vmatprep.mubr.f32.mxu0 0.0
    %3928 = vmatmul.mubr.f32.gmra.mrb[0].mxu0 %v3856
    %v3929 = vpop.f32.mrb[0].mxu0
    %v3930 = vadd.f32 %v3851, %v3929
    %v3931 = vpop.f32.mrb[0].mxu0
    %3932 = vdwg.mxu0
    %s3933 = scalar_lea.vmem [#allocation11], 128
    %v3934 = vld [vmem:[%s3933] sm:$0xff]
    %v3935 = vld [vmem:[%s3933 + $0x8] sm:$0xff]
    %v3936 = vld [vmem:[%s3933 + $0x10] sm:$0xff]
    %v3937 = vld [vmem:[%s3933 + $0x18] sm:$0xff]
    %v3938 = vld [vmem:[%s9 + $0xa] sm:$0x1]
    %v3939 = vlaneseq
    %v3940 = vshrl.u32 %v3939, 7
    %v3941 = vsub.s32 0, %v3940
    %v3942 = vrot.slane %v3938, %v3941
    %v3944 = vsel %vm174, %v3838, 0
    %v3947 = vsel %vm174, %v3839, 0
    %3949 = vmatprep.subr.mxu0 0.0
    %3950 = vmatpush1.msra.mxu0 %v3934
    %3951 = vmatprep.subr.mxu0 0.0
    %3952 = vmatpush1.msra.mxu0 %v3935
    %3953 = vmatprep.subr.mxu0 0.0
    %3954 = vmatpush1.msra.mxu0 %v3936
    %3955 = vmatprep.subr.mxu0 0.0
    %3956 = vmatpush1.msra.mxu0 %v3937
    %3957 = vmatprep.subr.mxu0 0.0
    %3958 = vmatpush1.msra.mxu0 0.0
    %3959 = vmatprep.subr.mxu0 0.0
    %3960 = vmatpush1.msra.mxu0 0.0
    %3961 = vmatprep.subr.mxu0 0.0
    %3962 = vmatpush1.msra.mxu0 0.0
    %3963 = vmatprep.subr.mxu0 0.0
    %3964 = vmatpush1.msra.mxu0 0.0
    %3965 = vmatprep.subr.mxu0 0.0
    %3966 = vmatpush1.msra.mxu0 0.0
    %3967 = vmatprep.subr.mxu0 0.0
    %3968 = vmatpush1.msra.mxu0 0.0
    %3969 = vmatprep.subr.mxu0 0.0
    %3970 = vmatpush1.msra.mxu0 0.0
    %3971 = vmatprep.subr.mxu0 0.0
    %3972 = vmatpush1.msra.mxu0 0.0
    %3973 = vmatprep.subr.mxu0 0.0
    %3974 = vmatpush1.msra.mxu0 0.0
    %3975 = vmatprep.subr.mxu0 0.0
    %3976 = vmatpush1.msra.mxu0 0.0
    %3977 = vmatprep.subr.mxu0 0.0
    %3978 = vmatpush1.msra.mxu0 0.0
    %3979 = vmatprep.subr.mxu0 0.0
    %3980 = vmatpush1.msra.mxu0 0.0
    %3981 = vmatprep.subr.mxu0 0.0
    %3982 = vmatpush1.msra.mxu0 0.0
    %3983 = vmatprep.subr.mxu0 0.0
    %3984 = vmatpush1.msra.mxu0 0.0
    %3985 = vmatprep.subr.mxu0 0.0
    %3986 = vmatpush1.msra.mxu0 0.0
    %3987 = vmatprep.subr.mxu0 0.0
    %3988 = vmatpush1.msra.mxu0 0.0
    %3989 = vmatprep.subr.mxu0 0.0
    %3990 = vmatpush1.msra.mxu0 0.0
    %3991 = vmatprep.subr.mxu0 0.0
    %3992 = vmatpush1.msra.mxu0 0.0
    %3993 = vmatprep.subr.mxu0 0.0
    %3994 = vmatpush1.msra.mxu0 0.0
    %3995 = vmatprep.subr.mxu0 0.0
    %3996 = vmatpush1.msra.mxu0 0.0
    %3997 = vmatprep.subr.mxu0 0.0
    %3998 = vmatpush1.msra.mxu0 0.0
    %3999 = vmatprep.subr.mxu0 0.0
    %4000 = vmatpush1.msra.mxu0 0.0
    %4001 = vmatprep.subr.mxu0 0.0
    %4002 = vmatpush1.msra.mxu0 0.0
    %4003 = vmatprep.subr.mxu0 0.0
    %4004 = vmatpush1.msra.mxu0 0.0
    %4005 = vmatprep.subr.mxu0 0.0
    %4006 = vmatpush1.msra.mxu0 0.0
    %4007 = vmatprep.subr.mxu0 0.0
    %4008 = vmatpush1.msra.mxu0 0.0
    %4009 = vmatprep.subr.mxu0 0.0
    %4010 = vmatpush1.msra.mxu0 0.0
    %4011 = vmatprep.subr.mxu0 0.0
    %4012 = vmatpush1.msra.mxu0 0.0
    %4013 = vmatprep.mubr.f32.mxu0 0.0
    %4014 = vmatmul.mubr.f32.gmra.mrb[0].mxu0 %v3944
    %v4015 = vpop.f32.mrb[0].mxu0
    %v4016 = vadd.f32 %v3942, %v4015
    %v4017 = vpop.f32.mrb[0].mxu0
    %4018 = vmatprep.mubr.f32.mxu0 0.0
    %4019 = vmatmul.mubr.f32.gmra.mrb[0].mxu0 %v3947
    %v4020 = vpop.f32.mrb[0].mxu0
    %v4021 = vadd.f32 %v3942, %v4020
    %v4022 = vpop.f32.mrb[0].mxu0
    %4023 = vdwg.mxu0
    %4026 = vrot.lane.b32.xlu0 %v3925, 120
    %v4027 = vpop.permute.xlu0 %4026
    %4028 = vrot.lane.b32.xlu0 %v3930, 120
    %v4029 = vpop.permute.xlu0 %4028
    %4032 = vrot.lane.b32.xlu0 %v3925, 112
    %v4033 = vpop.permute.xlu0 %4032
    %4034 = vrot.lane.b32.xlu0 %v3930, 112
    %v4035 = vpop.permute.xlu0 %4034
    %4038 = vrot.lane.b32.xlu0 %v3925, 104
    %v4039 = vpop.permute.xlu0 %4038
    %4040 = vrot.lane.b32.xlu0 %v3930, 104
    %v4041 = vpop.permute.xlu0 %4040
    %v4044 = vmul.f32 %v3925, 0.35355338
    %v4045 = vmul.f32 %v3930, 0.35355338
    %v4046 = vmul.f32 %v4027, 0.35355338
    %v4047 = vmul.f32 %v4029, 0.35355338
    %v4048 = vmul.f32 %v4033, 0.35355338
    %v4049 = vmul.f32 %v4035, 0.35355338
    %v4050 = vmul.f32 %v4039, 0.35355338
    %v4051 = vmul.f32 %v4041, 0.35355338
    %4054 = vrot.lane.b32.xlu0 %v4016, 120
    %v4055 = vpop.permute.xlu0 %4054
    %4056 = vrot.lane.b32.xlu0 %v4021, 120
    %v4057 = vpop.permute.xlu0 %4056
    %4060 = vrot.lane.b32.xlu0 %v4016, 112
    %v4061 = vpop.permute.xlu0 %4060
    %4062 = vrot.lane.b32.xlu0 %v4021, 112
    %v4063 = vpop.permute.xlu0 %4062
    %4066 = vrot.lane.b32.xlu0 %v4016, 104
    %v4067 = vpop.permute.xlu0 %4066
    %4068 = vrot.lane.b32.xlu0 %v4021, 104
    %v4069 = vpop.permute.xlu0 %4068
    %4072 = vrot.lane.b32.xlu0 %v3925, 96
    %v4073 = vpop.permute.xlu0 %4072
    %v4075 = vsel %vm705, %v4044, 0
    %v4077 = vsel %vm705, %v4073, 0
    %4079 = vmatprep.subr.mxu0 0.0
    %4080 = vmatpush1.xpose.msra.mxu0 %v4077
    %4081 = vmatprep.subr.mxu0 0.0
    %4082 = vmatpush1.xpose.msra.mxu0 0.0
    %4083 = vmatprep.subr.mxu0 0.0
    %4084 = vmatpush1.xpose.msra.mxu0 0.0
    %4085 = vmatprep.subr.mxu0 0.0
    %4086 = vmatpush1.xpose.msra.mxu0 0.0
    %4087 = vmatprep.subr.mxu0 0.0
    %4088 = vmatpush1.xpose.msra.mxu0 0.0
    %4089 = vmatprep.subr.mxu0 0.0
    %4090 = vmatpush1.xpose.msra.mxu0 0.0
    %4091 = vmatprep.subr.mxu0 0.0
    %4092 = vmatpush1.xpose.msra.mxu0 0.0
    %4093 = vmatprep.subr.mxu0 0.0
    %4094 = vmatpush1.xpose.msra.mxu0 0.0
    %4095 = vmatprep.subr.mxu0 0.0
    %4096 = vmatpush1.xpose.msra.mxu0 0.0
    %4097 = vmatprep.subr.mxu0 0.0
    %4098 = vmatpush1.xpose.msra.mxu0 0.0
    %4099 = vmatprep.subr.mxu0 0.0
    %4100 = vmatpush1.xpose.msra.mxu0 0.0
    %4101 = vmatprep.subr.mxu0 0.0
    %4102 = vmatpush1.xpose.msra.mxu0 0.0
    %4103 = vmatprep.subr.mxu0 0.0
    %4104 = vmatpush1.xpose.msra.mxu0 0.0
    %4105 = vmatprep.subr.mxu0 0.0
    %4106 = vmatpush1.xpose.msra.mxu0 0.0
    %4107 = vmatprep.subr.mxu0 0.0
    %4108 = vmatpush1.xpose.msra.mxu0 0.0
    %4109 = vmatprep.subr.mxu0 0.0
    %4110 = vmatpush1.xpose.msra.mxu0 0.0
    %4111 = vmatprep.subr.mxu0 0.0
    %4112 = vmatpush1.xpose.msra.mxu0 0.0
    %4113 = vmatprep.subr.mxu0 0.0
    %4114 = vmatpush1.xpose.msra.mxu0 0.0
    %4115 = vmatprep.subr.mxu0 0.0
    %4116 = vmatpush1.xpose.msra.mxu0 0.0
    %4117 = vmatprep.subr.mxu0 0.0
    %4118 = vmatpush1.xpose.msra.mxu0 0.0
    %4119 = vmatprep.subr.mxu0 0.0
    %4120 = vmatpush1.xpose.msra.mxu0 0.0
    %4121 = vmatprep.subr.mxu0 0.0
    %4122 = vmatpush1.xpose.msra.mxu0 0.0
    %4123 = vmatprep.subr.mxu0 0.0
    %4124 = vmatpush1.xpose.msra.mxu0 0.0
    %4125 = vmatprep.subr.mxu0 0.0
    %4126 = vmatpush1.xpose.msra.mxu0 0.0
    %4127 = vmatprep.subr.mxu0 0.0
    %4128 = vmatpush1.xpose.msra.mxu0 0.0
    %4129 = vmatprep.subr.mxu0 0.0
    %4130 = vmatpush1.xpose.msra.mxu0 0.0
    %4131 = vmatprep.subr.mxu0 0.0
    %4132 = vmatpush1.xpose.msra.mxu0 0.0
    %4133 = vmatprep.subr.mxu0 0.0
    %4134 = vmatpush1.xpose.msra.mxu0 0.0
    %4135 = vmatprep.subr.mxu0 0.0
    %4136 = vmatpush1.xpose.msra.mxu0 0.0
    %4137 = vmatprep.subr.mxu0 0.0
    %4138 = vmatpush1.xpose.msra.mxu0 0.0
    %4139 = vmatprep.subr.mxu0 0.0
    %4140 = vmatpush1.xpose.msra.mxu0 0.0
    %4141 = vmatprep.subr.mxu0 0.0
    %4142 = vmatpush1.xpose.msra.mxu0 0.0
    %4143 = vmatprep.mubr.f32.mxu0 0.0
    %4144 = vmatmul.mubr.f32.gmra.mrb[0].mxu0 %v4075
    %v4145 = vpop.f32.mrb[0].mxu0
    %v4146 = vadd.f32 0.0, %v4145
    %v4147 = vpop.f32.mrb[0].mxu0
    %4148 = vdwg.mxu0
    %4149 = vrot.lane.b32.xlu0 %v3930, 96
    %v4150 = vpop.permute.xlu0 %4149
    %v4152 = vsel %vm705, %v4045, 0
    %v4154 = vsel %vm705, %v4150, 0
    %4156 = vmatprep.subr.mxu0 0.0
    %4157 = vmatpush1.xpose.msra.mxu0 %v4154
    %4158 = vmatprep.subr.mxu0 0.0
    %4159 = vmatpush1.xpose.msra.mxu0 0.0
    %4160 = vmatprep.subr.mxu0 0.0
    %4161 = vmatpush1.xpose.msra.mxu0 0.0
    %4162 = vmatprep.subr.mxu0 0.0
    %4163 = vmatpush1.xpose.msra.mxu0 0.0
    %4164 = vmatprep.subr.mxu0 0.0
    %4165 = vmatpush1.xpose.msra.mxu0 0.0
    %4166 = vmatprep.subr.mxu0 0.0
    %4167 = vmatpush1.xpose.msra.mxu0 0.0
    %4168 = vmatprep.subr.mxu0 0.0
    %4169 = vmatpush1.xpose.msra.mxu0 0.0
    %4170 = vmatprep.subr.mxu0 0.0
    %4171 = vmatpush1.xpose.msra.mxu0 0.0
    %4172 = vmatprep.subr.mxu0 0.0
    %4173 = vmatpush1.xpose.msra.mxu0 0.0
    %4174 = vmatprep.subr.mxu0 0.0
    %4175 = vmatpush1.xpose.msra.mxu0 0.0
    %4176 = vmatprep.subr.mxu0 0.0
    %4177 = vmatpush1.xpose.msra.mxu0 0.0
    %4178 = vmatprep.subr.mxu0 0.0
    %4179 = vmatpush1.xpose.msra.mxu0 0.0
    %4180 = vmatprep.subr.mxu0 0.0
    %4181 = vmatpush1.xpose.msra.mxu0 0.0
    %4182 = vmatprep.subr.mxu0 0.0
    %4183 = vmatpush1.xpose.msra.mxu0 0.0
    %4184 = vmatprep.subr.mxu0 0.0
    %4185 = vmatpush1.xpose.msra.mxu0 0.0
    %4186 = vmatprep.subr.mxu0 0.0
    %4187 = vmatpush1.xpose.msra.mxu0 0.0
    %4188 = vmatprep.subr.mxu0 0.0
    %4189 = vmatpush1.xpose.msra.mxu0 0.0
    %4190 = vmatprep.subr.mxu0 0.0
    %4191 = vmatpush1.xpose.msra.mxu0 0.0
    %4192 = vmatprep.subr.mxu0 0.0
    %4193 = vmatpush1.xpose.msra.mxu0 0.0
    %4194 = vmatprep.subr.mxu0 0.0
    %4195 = vmatpush1.xpose.msra.mxu0 0.0
    %4196 = vmatprep.subr.mxu0 0.0
    %4197 = vmatpush1.xpose.msra.mxu0 0.0
    %4198 = vmatprep.subr.mxu0 0.0
    %4199 = vmatpush1.xpose.msra.mxu0 0.0
    %4200 = vmatprep.subr.mxu0 0.0
    %4201 = vmatpush1.xpose.msra.mxu0 0.0
    %4202 = vmatprep.subr.mxu0 0.0
    %4203 = vmatpush1.xpose.msra.mxu0 0.0
    %4204 = vmatprep.subr.mxu0 0.0
    %4205 = vmatpush1.xpose.msra.mxu0 0.0
    %4206 = vmatprep.subr.mxu0 0.0
    %4207 = vmatpush1.xpose.msra.mxu0 0.0
    %4208 = vmatprep.subr.mxu0 0.0
    %4209 = vmatpush1.xpose.msra.mxu0 0.0
    %4210 = vmatprep.subr.mxu0 0.0
    %4211 = vmatpush1.xpose.msra.mxu0 0.0
    %4212 = vmatprep.subr.mxu0 0.0
    %4213 = vmatpush1.xpose.msra.mxu0 0.0
    %4214 = vmatprep.subr.mxu0 0.0
    %4215 = vmatpush1.xpose.msra.mxu0 0.0
    %4216 = vmatprep.subr.mxu0 0.0
    %4217 = vmatpush1.xpose.msra.mxu0 0.0
    %4218 = vmatprep.subr.mxu0 0.0
    %4219 = vmatpush1.xpose.msra.mxu0 0.0
    %4220 = vmatprep.mubr.f32.mxu0 0.0
    %4221 = vmatmul.mubr.f32.gmra.mrb[0].mxu0 %v4152
    %v4222 = vpop.f32.mrb[0].mxu0
    %v4223 = vadd.f32 0.0, %v4222
    %v4224 = vpop.f32.mrb[0].mxu0
    %4225 = vdwg.mxu0
    %4226 = vrot.lane.b32.xlu0 %v4027, 96
    %v4227 = vpop.permute.xlu0 %4226
    %v4229 = vsel %vm705, %v4046, 0
    %v4231 = vsel %vm705, %v4227, 0
    %4233 = vmatprep.subr.mxu0 0.0
    %4234 = vmatpush1.xpose.msra.mxu0 %v4231
    %4235 = vmatprep.subr.mxu0 0.0
    %4236 = vmatpush1.xpose.msra.mxu0 0.0
    %4237 = vmatprep.subr.mxu0 0.0
    %4238 = vmatpush1.xpose.msra.mxu0 0.0
    %4239 = vmatprep.subr.mxu0 0.0
    %4240 = vmatpush1.xpose.msra.mxu0 0.0
    %4241 = vmatprep.subr.mxu0 0.0
    %4242 = vmatpush1.xpose.msra.mxu0 0.0
    %4243 = vmatprep.subr.mxu0 0.0
    %4244 = vmatpush1.xpose.msra.mxu0 0.0
    %4245 = vmatprep.subr.mxu0 0.0
    %4246 = vmatpush1.xpose.msra.mxu0 0.0
    %4247 = vmatprep.subr.mxu0 0.0
    %4248 = vmatpush1.xpose.msra.mxu0 0.0
    %4249 = vmatprep.subr.mxu0 0.0
    %4250 = vmatpush1.xpose.msra.mxu0 0.0
    %4251 = vmatprep.subr.mxu0 0.0
    %4252 = vmatpush1.xpose.msra.mxu0 0.0
    %4253 = vmatprep.subr.mxu0 0.0
    %4254 = vmatpush1.xpose.msra.mxu0 0.0
    %4255 = vmatprep.subr.mxu0 0.0
    %4256 = vmatpush1.xpose.msra.mxu0 0.0
    %4257 = vmatprep.subr.mxu0 0.0
    %4258 = vmatpush1.xpose.msra.mxu0 0.0
    %4259 = vmatprep.subr.mxu0 0.0
    %4260 = vmatpush1.xpose.msra.mxu0 0.0
    %4261 = vmatprep.subr.mxu0 0.0
    %4262 = vmatpush1.xpose.msra.mxu0 0.0
    %4263 = vmatprep.subr.mxu0 0.0
    %4264 = vmatpush1.xpose.msra.mxu0 0.0
    %4265 = vmatprep.subr.mxu0 0.0
    %4266 = vmatpush1.xpose.msra.mxu0 0.0
    %4267 = vmatprep.subr.mxu0 0.0
    %4268 = vmatpush1.xpose.msra.mxu0 0.0
    %4269 = vmatprep.subr.mxu0 0.0
    %4270 = vmatpush1.xpose.msra.mxu0 0.0
    %4271 = vmatprep.subr.mxu0 0.0
    %4272 = vmatpush1.xpose.msra.mxu0 0.0
    %4273 = vmatprep.subr.mxu0 0.0
    %4274 = vmatpush1.xpose.msra.mxu0 0.0
    %4275 = vmatprep.subr.mxu0 0.0
    %4276 = vmatpush1.xpose.msra.mxu0 0.0
    %4277 = vmatprep.subr.mxu0 0.0
    %4278 = vmatpush1.xpose.msra.mxu0 0.0
    %4279 = vmatprep.subr.mxu0 0.0
    %4280 = vmatpush1.xpose.msra.mxu0 0.0
    %4281 = vmatprep.subr.mxu0 0.0
    %4282 = vmatpush1.xpose.msra.mxu0 0.0
    %4283 = vmatprep.subr.mxu0 0.0
    %4284 = vmatpush1.xpose.msra.mxu0 0.0
    %4285 = vmatprep.subr.mxu0 0.0
    %4286 = vmatpush1.xpose.msra.mxu0 0.0
    %4287 = vmatprep.subr.mxu0 0.0
    %4288 = vmatpush1.xpose.msra.mxu0 0.0
    %4289 = vmatprep.subr.mxu0 0.0
    %4290 = vmatpush1.xpose.msra.mxu0 0.0
    %4291 = vmatprep.subr.mxu0 0.0
    %4292 = vmatpush1.xpose.msra.mxu0 0.0
    %4293 = vmatprep.subr.mxu0 0.0
    %4294 = vmatpush1.xpose.msra.mxu0 0.0
    %4295 = vmatprep.subr.mxu0 0.0
    %4296 = vmatpush1.xpose.msra.mxu0 0.0
    %4297 = vmatprep.mubr.f32.mxu0 0.0
    %4298 = vmatmul.mubr.f32.gmra.mrb[0].mxu0 %v4229
    %v4299 = vpop.f32.mrb[0].mxu0
    %v4300 = vadd.f32 0.0, %v4299
    %v4301 = vpop.f32.mrb[0].mxu0
    %4302 = vdwg.mxu0
    %4303 = vrot.lane.b32.xlu0 %v4029, 96
    %v4304 = vpop.permute.xlu0 %4303
    %v4306 = vsel %vm705, %v4047, 0
    %v4308 = vsel %vm705, %v4304, 0
    %4310 = vmatprep.subr.mxu0 0.0
    %4311 = vmatpush1.xpose.msra.mxu0 %v4308
    %4312 = vmatprep.subr.mxu0 0.0
    %4313 = vmatpush1.xpose.msra.mxu0 0.0
    %4314 = vmatprep.subr.mxu0 0.0
    %4315 = vmatpush1.xpose.msra.mxu0 0.0
    %4316 = vmatprep.subr.mxu0 0.0
    %4317 = vmatpush1.xpose.msra.mxu0 0.0
    %4318 = vmatprep.subr.mxu0 0.0
    %4319 = vmatpush1.xpose.msra.mxu0 0.0
    %4320 = vmatprep.subr.mxu0 0.0
    %4321 = vmatpush1.xpose.msra.mxu0 0.0
    %4322 = vmatprep.subr.mxu0 0.0
    %4323 = vmatpush1.xpose.msra.mxu0 0.0
    %4324 = vmatprep.subr.mxu0 0.0
    %4325 = vmatpush1.xpose.msra.mxu0 0.0
    %4326 = vmatprep.subr.mxu0 0.0
    %4327 = vmatpush1.xpose.msra.mxu0 0.0
    %4328 = vmatprep.subr.mxu0 0.0
    %4329 = vmatpush1.xpose.msra.mxu0 0.0
    %4330 = vmatprep.subr.mxu0 0.0
    %4331 = vmatpush1.xpose.msra.mxu0 0.0
    %4332 = vmatprep.subr.mxu0 0.0
    %4333 = vmatpush1.xpose.msra.mxu0 0.0
    %4334 = vmatprep.subr.mxu0 0.0
    %4335 = vmatpush1.xpose.msra.mxu0 0.0
    %4336 = vmatprep.subr.mxu0 0.0
    %4337 = vmatpush1.xpose.msra.mxu0 0.0
    %4338 = vmatprep.subr.mxu0 0.0
    %4339 = vmatpush1.xpose.msra.mxu0 0.0
    %4340 = vmatprep.subr.mxu0 0.0
    %4341 = vmatpush1.xpose.msra.mxu0 0.0
    %4342 = vmatprep.subr.mxu0 0.0
    %4343 = vmatpush1.xpose.msra.mxu0 0.0
    %4344 = vmatprep.subr.mxu0 0.0
    %4345 = vmatpush1.xpose.msra.mxu0 0.0
    %4346 = vmatprep.subr.mxu0 0.0
    %4347 = vmatpush1.xpose.msra.mxu0 0.0
    %4348 = vmatprep.subr.mxu0 0.0
    %4349 = vmatpush1.xpose.msra.mxu0 0.0
    %4350 = vmatprep.subr.mxu0 0.0
    %4351 = vmatpush1.xpose.msra.mxu0 0.0
    %4352 = vmatprep.subr.mxu0 0.0
    %4353 = vmatpush1.xpose.msra.mxu0 0.0
    %4354 = vmatprep.subr.mxu0 0.0
    %4355 = vmatpush1.xpose.msra.mxu0 0.0
    %4356 = vmatprep.subr.mxu0 0.0
    %4357 = vmatpush1.xpose.msra.mxu0 0.0
    %4358 = vmatprep.subr.mxu0 0.0
    %4359 = vmatpush1.xpose.msra.mxu0 0.0
    %4360 = vmatprep.subr.mxu0 0.0
    %4361 = vmatpush1.xpose.msra.mxu0 0.0
    %4362 = vmatprep.subr.mxu0 0.0
    %4363 = vmatpush1.xpose.msra.mxu0 0.0
    %4364 = vmatprep.subr.mxu0 0.0
    %4365 = vmatpush1.xpose.msra.mxu0 0.0
    %4366 = vmatprep.subr.mxu0 0.0
    %4367 = vmatpush1.xpose.msra.mxu0 0.0
    %4368 = vmatprep.subr.mxu0 0.0
    %4369 = vmatpush1.xpose.msra.mxu0 0.0
    %4370 = vmatprep.subr.mxu0 0.0
    %4371 = vmatpush1.xpose.msra.mxu0 0.0
    %4372 = vmatprep.subr.mxu0 0.0
    %4373 = vmatpush1.xpose.msra.mxu0 0.0
    %4374 = vmatprep.mubr.f32.mxu0 0.0
    %4375 = vmatmul.mubr.f32.gmra.mrb[0].mxu0 %v4306
    %v4376 = vpop.f32.mrb[0].mxu0
    %v4377 = vadd.f32 0.0, %v4376
    %v4378 = vpop.f32.mrb[0].mxu0
    %4379 = vdwg.mxu0
    %4380 = vrot.lane.b32.xlu0 %v4033, 96
    %v4381 = vpop.permute.xlu0 %4380
    %v4383 = vsel %vm705, %v4048, 0
    %v4385 = vsel %vm705, %v4381, 0
    %4387 = vmatprep.subr.mxu0 0.0
    %4388 = vmatpush1.xpose.msra.mxu0 %v4385
    %4389 = vmatprep.subr.mxu0 0.0
    %4390 = vmatpush1.xpose.msra.mxu0 0.0
    %4391 = vmatprep.subr.mxu0 0.0
    %4392 = vmatpush1.xpose.msra.mxu0 0.0
    %4393 = vmatprep.subr.mxu0 0.0
    %4394 = vmatpush1.xpose.msra.mxu0 0.0
    %4395 = vmatprep.subr.mxu0 0.0
    %4396 = vmatpush1.xpose.msra.mxu0 0.0
    %4397 = vmatprep.subr.mxu0 0.0
    %4398 = vmatpush1.xpose.msra.mxu0 0.0
    %4399 = vmatprep.subr.mxu0 0.0
    %4400 = vmatpush1.xpose.msra.mxu0 0.0
    %4401 = vmatprep.subr.mxu0 0.0
    %4402 = vmatpush1.xpose.msra.mxu0 0.0
    %4403 = vmatprep.subr.mxu0 0.0
    %4404 = vmatpush1.xpose.msra.mxu0 0.0
    %4405 = vmatprep.subr.mxu0 0.0
    %4406 = vmatpush1.xpose.msra.mxu0 0.0
    %4407 = vmatprep.subr.mxu0 0.0
    %4408 = vmatpush1.xpose.msra.mxu0 0.0
    %4409 = vmatprep.subr.mxu0 0.0
    %4410 = vmatpush1.xpose.msra.mxu0 0.0
    %4411 = vmatprep.subr.mxu0 0.0
    %4412 = vmatpush1.xpose.msra.mxu0 0.0
    %4413 = vmatprep.subr.mxu0 0.0
    %4414 = vmatpush1.xpose.msra.mxu0 0.0
    %4415 = vmatprep.subr.mxu0 0.0
    %4416 = vmatpush1.xpose.msra.mxu0 0.0
    %4417 = vmatprep.subr.mxu0 0.0
    %4418 = vmatpush1.xpose.msra.mxu0 0.0
    %4419 = vmatprep.subr.mxu0 0.0
    %4420 = vmatpush1.xpose.msra.mxu0 0.0
    %4421 = vmatprep.subr.mxu0 0.0
    %4422 = vmatpush1.xpose.msra.mxu0 0.0
    %4423 = vmatprep.subr.mxu0 0.0
    %4424 = vmatpush1.xpose.msra.mxu0 0.0
    %4425 = vmatprep.subr.mxu0 0.0
    %4426 = vmatpush1.xpose.msra.mxu0 0.0
    %4427 = vmatprep.subr.mxu0 0.0
    %4428 = vmatpush1.xpose.msra.mxu0 0.0
    %4429 = vmatprep.subr.mxu0 0.0
    %4430 = vmatpush1.xpose.msra.mxu0 0.0
    %4431 = vmatprep.subr.mxu0 0.0
    %4432 = vmatpush1.xpose.msra.mxu0 0.0
    %4433 = vmatprep.subr.mxu0 0.0
    %4434 = vmatpush1.xpose.msra.mxu0 0.0
    %4435 = vmatprep.subr.mxu0 0.0
    %4436 = vmatpush1.xpose.msra.mxu0 0.0
    %4437 = vmatprep.subr.mxu0 0.0
    %4438 = vmatpush1.xpose.msra.mxu0 0.0
    %4439 = vmatprep.subr.mxu0 0.0
    %4440 = vmatpush1.xpose.msra.mxu0 0.0
    %4441 = vmatprep.subr.mxu0 0.0
    %4442 = vmatpush1.xpose.msra.mxu0 0.0
    %4443 = vmatprep.subr.mxu0 0.0
    %4444 = vmatpush1.xpose.msra.mxu0 0.0
    %4445 = vmatprep.subr.mxu0 0.0
    %4446 = vmatpush1.xpose.msra.mxu0 0.0
    %4447 = vmatprep.subr.mxu0 0.0
    %4448 = vmatpush1.xpose.msra.mxu0 0.0
    %4449 = vmatprep.subr.mxu0 0.0
    %4450 = vmatpush1.xpose.msra.mxu0 0.0
    %4451 = vmatprep.mubr.f32.mxu0 0.0
    %4452 = vmatmul.mubr.f32.gmra.mrb[0].mxu0 %v4383
    %v4453 = vpop.f32.mrb[0].mxu0
    %v4454 = vadd.f32 0.0, %v4453
    %v4455 = vpop.f32.mrb[0].mxu0
    %4456 = vdwg.mxu0
    %4457 = vrot.lane.b32.xlu0 %v4035, 96
    %v4458 = vpop.permute.xlu0 %4457
    %v4460 = vsel %vm705, %v4049, 0
    %v4462 = vsel %vm705, %v4458, 0
    %4464 = vmatprep.subr.mxu0 0.0
    %4465 = vmatpush1.xpose.msra.mxu0 %v4462
    %4466 = vmatprep.subr.mxu0 0.0
    %4467 = vmatpush1.xpose.msra.mxu0 0.0
    %4468 = vmatprep.subr.mxu0 0.0
    %4469 = vmatpush1.xpose.msra.mxu0 0.0
    %4470 = vmatprep.subr.mxu0 0.0
    %4471 = vmatpush1.xpose.msra.mxu0 0.0
    %4472 = vmatprep.subr.mxu0 0.0
    %4473 = vmatpush1.xpose.msra.mxu0 0.0
    %4474 = vmatprep.subr.mxu0 0.0
    %4475 = vmatpush1.xpose.msra.mxu0 0.0
    %4476 = vmatprep.subr.mxu0 0.0
    %4477 = vmatpush1.xpose.msra.mxu0 0.0
    %4478 = vmatprep.subr.mxu0 0.0
    %4479 = vmatpush1.xpose.msra.mxu0 0.0
    %4480 = vmatprep.subr.mxu0 0.0
    %4481 = vmatpush1.xpose.msra.mxu0 0.0
    %4482 = vmatprep.subr.mxu0 0.0
    %4483 = vmatpush1.xpose.msra.mxu0 0.0
    %4484 = vmatprep.subr.mxu0 0.0
    %4485 = vmatpush1.xpose.msra.mxu0 0.0
    %4486 = vmatprep.subr.mxu0 0.0
    %4487 = vmatpush1.xpose.msra.mxu0 0.0
    %4488 = vmatprep.subr.mxu0 0.0
    %4489 = vmatpush1.xpose.msra.mxu0 0.0
    %4490 = vmatprep.subr.mxu0 0.0
    %4491 = vmatpush1.xpose.msra.mxu0 0.0
    %4492 = vmatprep.subr.mxu0 0.0
    %4493 = vmatpush1.xpose.msra.mxu0 0.0
    %4494 = vmatprep.subr.mxu0 0.0
    %4495 = vmatpush1.xpose.msra.mxu0 0.0
    %4496 = vmatprep.subr.mxu0 0.0
    %4497 = vmatpush1.xpose.msra.mxu0 0.0
    %4498 = vmatprep.subr.mxu0 0.0
    %4499 = vmatpush1.xpose.msra.mxu0 0.0
    %4500 = vmatprep.subr.mxu0 0.0
    %4501 = vmatpush1.xpose.msra.mxu0 0.0
    %4502 = vmatprep.subr.mxu0 0.0
    %4503 = vmatpush1.xpose.msra.mxu0 0.0
    %4504 = vmatprep.subr.mxu0 0.0
    %4505 = vmatpush1.xpose.msra.mxu0 0.0
    %4506 = vmatprep.subr.mxu0 0.0
    %4507 = vmatpush1.xpose.msra.mxu0 0.0
    %4508 = vmatprep.subr.mxu0 0.0
    %4509 = vmatpush1.xpose.msra.mxu0 0.0
    %4510 = vmatprep.subr.mxu0 0.0
    %4511 = vmatpush1.xpose.msra.mxu0 0.0
    %4512 = vmatprep.subr.mxu0 0.0
    %4513 = vmatpush1.xpose.msra.mxu0 0.0
    %4514 = vmatprep.subr.mxu0 0.0
    %4515 = vmatpush1.xpose.msra.mxu0 0.0
    %4516 = vmatprep.subr.mxu0 0.0
    %4517 = vmatpush1.xpose.msra.mxu0 0.0
    %4518 = vmatprep.subr.mxu0 0.0
    %4519 = vmatpush1.xpose.msra.mxu0 0.0
    %4520 = vmatprep.subr.mxu0 0.0
    %4521 = vmatpush1.xpose.msra.mxu0 0.0
    %4522 = vmatprep.subr.mxu0 0.0
    %4523 = vmatpush1.xpose.msra.mxu0 0.0
    %4524 = vmatprep.subr.mxu0 0.0
    %4525 = vmatpush1.xpose.msra.mxu0 0.0
    %4526 = vmatprep.subr.mxu0 0.0
    %4527 = vmatpush1.xpose.msra.mxu0 0.0
    %4528 = vmatprep.mubr.f32.mxu0 0.0
    %4529 = vmatmul.mubr.f32.gmra.mrb[0].mxu0 %v4460
    %v4530 = vpop.f32.mrb[0].mxu0
    %v4531 = vadd.f32 0.0, %v4530
    %v4532 = vpop.f32.mrb[0].mxu0
    %4533 = vdwg.mxu0
    %4534 = vrot.lane.b32.xlu0 %v4039, 96
    %v4535 = vpop.permute.xlu0 %4534
    %v4537 = vsel %vm705, %v4050, 0
    %v4539 = vsel %vm705, %v4535, 0
    %4541 = vmatprep.subr.mxu0 0.0
    %4542 = vmatpush1.xpose.msra.mxu0 %v4539
    %4543 = vmatprep.subr.mxu0 0.0
    %4544 = vmatpush1.xpose.msra.mxu0 0.0
    %4545 = vmatprep.subr.mxu0 0.0
    %4546 = vmatpush1.xpose.msra.mxu0 0.0
    %4547 = vmatprep.subr.mxu0 0.0
    %4548 = vmatpush1.xpose.msra.mxu0 0.0
    %4549 = vmatprep.subr.mxu0 0.0
    %4550 = vmatpush1.xpose.msra.mxu0 0.0
    %4551 = vmatprep.subr.mxu0 0.0
    %4552 = vmatpush1.xpose.msra.mxu0 0.0
    %4553 = vmatprep.subr.mxu0 0.0
    %4554 = vmatpush1.xpose.msra.mxu0 0.0
    %4555 = vmatprep.subr.mxu0 0.0
    %4556 = vmatpush1.xpose.msra.mxu0 0.0
    %4557 = vmatprep.subr.mxu0 0.0
    %4558 = vmatpush1.xpose.msra.mxu0 0.0
    %4559 = vmatprep.subr.mxu0 0.0
    %4560 = vmatpush1.xpose.msra.mxu0 0.0
    %4561 = vmatprep.subr.mxu0 0.0
    %4562 = vmatpush1.xpose.msra.mxu0 0.0
    %4563 = vmatprep.subr.mxu0 0.0
    %4564 = vmatpush1.xpose.msra.mxu0 0.0
    %4565 = vmatprep.subr.mxu0 0.0
    %4566 = vmatpush1.xpose.msra.mxu0 0.0
    %4567 = vmatprep.subr.mxu0 0.0
    %4568 = vmatpush1.xpose.msra.mxu0 0.0
    %4569 = vmatprep.subr.mxu0 0.0
    %4570 = vmatpush1.xpose.msra.mxu0 0.0
    %4571 = vmatprep.subr.mxu0 0.0
    %4572 = vmatpush1.xpose.msra.mxu0 0.0
    %4573 = vmatprep.subr.mxu0 0.0
    %4574 = vmatpush1.xpose.msra.mxu0 0.0
    %4575 = vmatprep.subr.mxu0 0.0
    %4576 = vmatpush1.xpose.msra.mxu0 0.0
    %4577 = vmatprep.subr.mxu0 0.0
    %4578 = vmatpush1.xpose.msra.mxu0 0.0
    %4579 = vmatprep.subr.mxu0 0.0
    %4580 = vmatpush1.xpose.msra.mxu0 0.0
    %4581 = vmatprep.subr.mxu0 0.0
    %4582 = vmatpush1.xpose.msra.mxu0 0.0
    %4583 = vmatprep.subr.mxu0 0.0
    %4584 = vmatpush1.xpose.msra.mxu0 0.0
    %4585 = vmatprep.subr.mxu0 0.0
    %4586 = vmatpush1.xpose.msra.mxu0 0.0
    %4587 = vmatprep.subr.mxu0 0.0
    %4588 = vmatpush1.xpose.msra.mxu0 0.0
    %4589 = vmatprep.subr.mxu0 0.0
    %4590 = vmatpush1.xpose.msra.mxu0 0.0
    %4591 = vmatprep.subr.mxu0 0.0
    %4592 = vmatpush1.xpose.msra.mxu0 0.0
    %4593 = vmatprep.subr.mxu0 0.0
    %4594 = vmatpush1.xpose.msra.mxu0 0.0
    %4595 = vmatprep.subr.mxu0 0.0
    %4596 = vmatpush1.xpose.msra.mxu0 0.0
    %4597 = vmatprep.subr.mxu0 0.0
    %4598 = vmatpush1.xpose.msra.mxu0 0.0
    %4599 = vmatprep.subr.mxu0 0.0
    %4600 = vmatpush1.xpose.msra.mxu0 0.0
    %4601 = vmatprep.subr.mxu0 0.0
    %4602 = vmatpush1.xpose.msra.mxu0 0.0
    %4603 = vmatprep.subr.mxu0 0.0
    %4604 = vmatpush1.xpose.msra.mxu0 0.0
    %4605 = vmatprep.mubr.f32.mxu0 0.0
    %4606 = vmatmul.mubr.f32.gmra.mrb[0].mxu0 %v4537
    %v4607 = vpop.f32.mrb[0].mxu0
    %v4608 = vadd.f32 0.0, %v4607
    %v4609 = vpop.f32.mrb[0].mxu0
    %4610 = vdwg.mxu0
    %4611 = vrot.lane.b32.xlu0 %v4041, 96
    %v4612 = vpop.permute.xlu0 %4611
    %v4614 = vsel %vm705, %v4051, 0
    %v4616 = vsel %vm705, %v4612, 0
    %4618 = vmatprep.subr.mxu0 0.0
    %4619 = vmatpush1.xpose.msra.mxu0 %v4616
    %4620 = vmatprep.subr.mxu0 0.0
    %4621 = vmatpush1.xpose.msra.mxu0 0.0
    %4622 = vmatprep.subr.mxu0 0.0
    %4623 = vmatpush1.xpose.msra.mxu0 0.0
    %4624 = vmatprep.subr.mxu0 0.0
    %4625 = vmatpush1.xpose.msra.mxu0 0.0
    %4626 = vmatprep.subr.mxu0 0.0
    %4627 = vmatpush1.xpose.msra.mxu0 0.0
    %4628 = vmatprep.subr.mxu0 0.0
    %4629 = vmatpush1.xpose.msra.mxu0 0.0
    %4630 = vmatprep.subr.mxu0 0.0
    %4631 = vmatpush1.xpose.msra.mxu0 0.0
    %4632 = vmatprep.subr.mxu0 0.0
    %4633 = vmatpush1.xpose.msra.mxu0 0.0
    %4634 = vmatprep.subr.mxu0 0.0
    %4635 = vmatpush1.xpose.msra.mxu0 0.0
    %4636 = vmatprep.subr.mxu0 0.0
    %4637 = vmatpush1.xpose.msra.mxu0 0.0
    %4638 = vmatprep.subr.mxu0 0.0
    %4639 = vmatpush1.xpose.msra.mxu0 0.0
    %4640 = vmatprep.subr.mxu0 0.0
    %4641 = vmatpush1.xpose.msra.mxu0 0.0
    %4642 = vmatprep.subr.mxu0 0.0
    %4643 = vmatpush1.xpose.msra.mxu0 0.0
    %4644 = vmatprep.subr.mxu0 0.0
    %4645 = vmatpush1.xpose.msra.mxu0 0.0
    %4646 = vmatprep.subr.mxu0 0.0
    %4647 = vmatpush1.xpose.msra.mxu0 0.0
    %4648 = vmatprep.subr.mxu0 0.0
    %4649 = vmatpush1.xpose.msra.mxu0 0.0
    %4650 = vmatprep.subr.mxu0 0.0
    %4651 = vmatpush1.xpose.msra.mxu0 0.0
    %4652 = vmatprep.subr.mxu0 0.0
    %4653 = vmatpush1.xpose.msra.mxu0 0.0
    %4654 = vmatprep.subr.mxu0 0.0
    %4655 = vmatpush1.xpose.msra.mxu0 0.0
    %4656 = vmatprep.subr.mxu0 0.0
    %4657 = vmatpush1.xpose.msra.mxu0 0.0
    %4658 = vmatprep.subr.mxu0 0.0
    %4659 = vmatpush1.xpose.msra.mxu0 0.0
    %4660 = vmatprep.subr.mxu0 0.0
    %4661 = vmatpush1.xpose.msra.mxu0 0.0
    %4662 = vmatprep.subr.mxu0 0.0
    %4663 = vmatpush1.xpose.msra.mxu0 0.0
    %4664 = vmatprep.subr.mxu0 0.0
    %4665 = vmatpush1.xpose.msra.mxu0 0.0
    %4666 = vmatprep.subr.mxu0 0.0
    %4667 = vmatpush1.xpose.msra.mxu0 0.0
    %4668 = vmatprep.subr.mxu0 0.0
    %4669 = vmatpush1.xpose.msra.mxu0 0.0
    %4670 = vmatprep.subr.mxu0 0.0
    %4671 = vmatpush1.xpose.msra.mxu0 0.0
    %4672 = vmatprep.subr.mxu0 0.0
    %4673 = vmatpush1.xpose.msra.mxu0 0.0
    %4674 = vmatprep.subr.mxu0 0.0
    %4675 = vmatpush1.xpose.msra.mxu0 0.0
    %4676 = vmatprep.subr.mxu0 0.0
    %4677 = vmatpush1.xpose.msra.mxu0 0.0
    %4678 = vmatprep.subr.mxu0 0.0
    %4679 = vmatpush1.xpose.msra.mxu0 0.0
    %4680 = vmatprep.subr.mxu0 0.0
    %4681 = vmatpush1.xpose.msra.mxu0 0.0
    %4682 = vmatprep.mubr.f32.mxu0 0.0
    %4683 = vmatmul.mubr.f32.gmra.mrb[0].mxu0 %v4614
    %v4684 = vpop.f32.mrb[0].mxu0
    %v4685 = vadd.f32 0.0, %v4684
    %v4686 = vpop.f32.mrb[0].mxu0
    %4687 = vdwg.mxu0
    %v4688 = vsel %vm705, %v4146, -inf
    %4689 = vmax.xlane.f32.xlu0 %v4688
    %v4690 = vpop.xlane.xlu0 %4689
    %v4691 = vsel %vm705, %v4223, -inf
    %4692 = vmax.xlane.f32.xlu0 %v4691
    %v4693 = vpop.xlane.xlu0 %4692
    %v4694 = vsel %vm705, %v4300, -inf
    %4695 = vmax.xlane.f32.xlu0 %v4694
    %v4696 = vpop.xlane.xlu0 %4695
    %v4697 = vsel %vm705, %v4377, -inf
    %4698 = vmax.xlane.f32.xlu0 %v4697
    %v4699 = vpop.xlane.xlu0 %4698
    %v4700 = vsel %vm705, %v4454, -inf
    %4701 = vmax.xlane.f32.xlu0 %v4700
    %v4702 = vpop.xlane.xlu0 %4701
    %v4703 = vsel %vm705, %v4531, -inf
    %4704 = vmax.xlane.f32.xlu0 %v4703
    %v4705 = vpop.xlane.xlu0 %4704
    %v4706 = vsel %vm705, %v4608, -inf
    %4707 = vmax.xlane.f32.xlu0 %v4706
    %v4708 = vpop.xlane.xlu0 %4707
    %v4709 = vsel %vm705, %v4685, -inf
    %4710 = vmax.xlane.f32.xlu0 %v4709
    %v4711 = vpop.xlane.xlu0 %4710
    %v4712 = vsub.f32 %v4146, %v4690
    %v4713 = vsub.f32 %v4223, %v4693
    %v4714 = vsub.f32 %v4300, %v4696
    %v4715 = vsub.f32 %v4377, %v4699
    %v4716 = vsub.f32 %v4454, %v4702
    %v4717 = vsub.f32 %v4531, %v4705
    %v4718 = vsub.f32 %v4608, %v4708
    %v4719 = vsub.f32 %v4685, %v4711
    %v4720 = vmul.f32 %v4712, 1.442695
    %v4721 = vpow.pop %v4720
    %v4722 = vmul.f32 %v4713, 1.442695
    %v4723 = vpow.pop %v4722
    %v4724 = vmul.f32 %v4714, 1.442695
    %v4725 = vpow.pop %v4724
    %v4726 = vmul.f32 %v4715, 1.442695
    %v4727 = vpow.pop %v4726
    %v4728 = vmul.f32 %v4716, 1.442695
    %v4729 = vpow.pop %v4728
    %v4730 = vmul.f32 %v4717, 1.442695
    %v4731 = vpow.pop %v4730
    %v4732 = vmul.f32 %v4718, 1.442695
    %v4733 = vpow.pop %v4732
    %v4734 = vmul.f32 %v4719, 1.442695
    %v4735 = vpow.pop %v4734
    %v4736 = vsel %vm705, %v4721, 0.0
    %4737 = vadd.xlane.f32.xlu0 %v4736
    %v4738 = vpop.xlane.xlu0 %4737
    %v4739 = vsel %vm705, %v4723, 0.0
    %4740 = vadd.xlane.f32.xlu0 %v4739
    %v4741 = vpop.xlane.xlu0 %4740
    %v4742 = vsel %vm705, %v4725, 0.0
    %4743 = vadd.xlane.f32.xlu0 %v4742
    %v4744 = vpop.xlane.xlu0 %4743
    %v4745 = vsel %vm705, %v4727, 0.0
    %4746 = vadd.xlane.f32.xlu0 %v4745
    %v4747 = vpop.xlane.xlu0 %4746
    %v4748 = vsel %vm705, %v4729, 0.0
    %4749 = vadd.xlane.f32.xlu0 %v4748
    %v4750 = vpop.xlane.xlu0 %4749
    %v4751 = vsel %vm705, %v4731, 0.0
    %4752 = vadd.xlane.f32.xlu0 %v4751
    %v4753 = vpop.xlane.xlu0 %4752
    %v4754 = vsel %vm705, %v4733, 0.0
    %4755 = vadd.xlane.f32.xlu0 %v4754
    %v4756 = vpop.xlane.xlu0 %4755
    %v4757 = vsel %vm705, %v4735, 0.0
    %4758 = vadd.xlane.f32.xlu0 %v4757
    %v4759 = vpop.xlane.xlu0 %4758
    %v4760 = vrcp.pop %v4738
    %v4761 = vrcp.pop %v4741
    %v4762 = vrcp.pop %v4744
    %v4763 = vrcp.pop %v4747
    %v4764 = vrcp.pop %v4750
    %v4765 = vrcp.pop %v4753
    %v4766 = vrcp.pop %v4756
    %v4767 = vrcp.pop %v4759
    %v4768 = vmul.f32 %v4721, %v4760
    %v4769 = vmul.f32 %v4723, %v4761
    %v4770 = vmul.f32 %v4725, %v4762
    %v4771 = vmul.f32 %v4727, %v4763
    %v4772 = vmul.f32 %v4729, %v4764
    %v4773 = vmul.f32 %v4731, %v4765
    %v4774 = vmul.f32 %v4733, %v4766
    %v4775 = vmul.f32 %v4735, %v4767
    %v4777 = vsel %vm705, %v4768, 0
    %4779 = vmatprep.subr.mxu0 0.0
    %4780 = vmatpush1.msra.mxu0 %v4016
    %4781 = vmatprep.subr.mxu0 0.0
    %4782 = vmatpush1.msra.mxu0 0.0
    %4783 = vmatprep.subr.mxu0 0.0
    %4784 = vmatpush1.msra.mxu0 0.0
    %4785 = vmatprep.subr.mxu0 0.0
    %4786 = vmatpush1.msra.mxu0 0.0
    %4787 = vmatprep.subr.mxu0 0.0
    %4788 = vmatpush1.msra.mxu0 0.0
    %4789 = vmatprep.subr.mxu0 0.0
    %4790 = vmatpush1.msra.mxu0 0.0
    %4791 = vmatprep.subr.mxu0 0.0
    %4792 = vmatpush1.msra.mxu0 0.0
    %4793 = vmatprep.subr.mxu0 0.0
    %4794 = vmatpush1.msra.mxu0 0.0
    %4795 = vmatprep.subr.mxu0 0.0
    %4796 = vmatpush1.msra.mxu0 0.0
    %4797 = vmatprep.subr.mxu0 0.0
    %4798 = vmatpush1.msra.mxu0 0.0
    %4799 = vmatprep.subr.mxu0 0.0
    %4800 = vmatpush1.msra.mxu0 0.0
    %4801 = vmatprep.subr.mxu0 0.0
    %4802 = vmatpush1.msra.mxu0 0.0
    %4803 = vmatprep.subr.mxu0 0.0
    %4804 = vmatpush1.msra.mxu0 0.0
    %4805 = vmatprep.subr.mxu0 0.0
    %4806 = vmatpush1.msra.mxu0 0.0
    %4807 = vmatprep.subr.mxu0 0.0
    %4808 = vmatpush1.msra.mxu0 0.0
    %4809 = vmatprep.subr.mxu0 0.0
    %4810 = vmatpush1.msra.mxu0 0.0
    %4811 = vmatprep.subr.mxu0 0.0
    %4812 = vmatpush1.msra.mxu0 0.0
    %4813 = vmatprep.subr.mxu0 0.0
    %4814 = vmatpush1.msra.mxu0 0.0
    %4815 = vmatprep.subr.mxu0 0.0
    %4816 = vmatpush1.msra.mxu0 0.0
    %4817 = vmatprep.subr.mxu0 0.0
    %4818 = vmatpush1.msra.mxu0 0.0
    %4819 = vmatprep.subr.mxu0 0.0
    %4820 = vmatpush1.msra.mxu0 0.0
    %4821 = vmatprep.subr.mxu0 0.0
    %4822 = vmatpush1.msra.mxu0 0.0
    %4823 = vmatprep.subr.mxu0 0.0
    %4824 = vmatpush1.msra.mxu0 0.0
    %4825 = vmatprep.subr.mxu0 0.0
    %4826 = vmatpush1.msra.mxu0 0.0
    %4827 = vmatprep.subr.mxu0 0.0
    %4828 = vmatpush1.msra.mxu0 0.0
    %4829 = vmatprep.subr.mxu0 0.0
    %4830 = vmatpush1.msra.mxu0 0.0
    %4831 = vmatprep.subr.mxu0 0.0
    %4832 = vmatpush1.msra.mxu0 0.0
    %4833 = vmatprep.subr.mxu0 0.0
    %4834 = vmatpush1.msra.mxu0 0.0
    %4835 = vmatprep.subr.mxu0 0.0
    %4836 = vmatpush1.msra.mxu0 0.0
    %4837 = vmatprep.subr.mxu0 0.0
    %4838 = vmatpush1.msra.mxu0 0.0
    %4839 = vmatprep.subr.mxu0 0.0
    %4840 = vmatpush1.msra.mxu0 0.0
    %4841 = vmatprep.subr.mxu0 0.0
    %4842 = vmatpush1.msra.mxu0 0.0
    %4843 = vmatprep.mubr.f32.mxu0 0.0
    %4844 = vmatmul.mubr.f32.gmra.mrb[0].mxu0 %v4777
    %v4845 = vpop.f32.mrb[0].mxu0
    %v4846 = vadd.f32 0.0, %v4845
    %v4847 = vpop.f32.mrb[0].mxu0
    %4848 = vdwg.mxu0
    %v4850 = vsel %vm705, %v4769, 0
    %4852 = vmatprep.subr.mxu0 0.0
    %4853 = vmatpush1.msra.mxu0 %v4021
    %4854 = vmatprep.subr.mxu0 0.0
    %4855 = vmatpush1.msra.mxu0 0.0
    %4856 = vmatprep.subr.mxu0 0.0
    %4857 = vmatpush1.msra.mxu0 0.0
    %4858 = vmatprep.subr.mxu0 0.0
    %4859 = vmatpush1.msra.mxu0 0.0
    %4860 = vmatprep.subr.mxu0 0.0
    %4861 = vmatpush1.msra.mxu0 0.0
    %4862 = vmatprep.subr.mxu0 0.0
    %4863 = vmatpush1.msra.mxu0 0.0
    %4864 = vmatprep.subr.mxu0 0.0
    %4865 = vmatpush1.msra.mxu0 0.0
    %4866 = vmatprep.subr.mxu0 0.0
    %4867 = vmatpush1.msra.mxu0 0.0
    %4868 = vmatprep.subr.mxu0 0.0
    %4869 = vmatpush1.msra.mxu0 0.0
    %4870 = vmatprep.subr.mxu0 0.0
    %4871 = vmatpush1.msra.mxu0 0.0
    %4872 = vmatprep.subr.mxu0 0.0
    %4873 = vmatpush1.msra.mxu0 0.0
    %4874 = vmatprep.subr.mxu0 0.0
    %4875 = vmatpush1.msra.mxu0 0.0
    %4876 = vmatprep.subr.mxu0 0.0
    %4877 = vmatpush1.msra.mxu0 0.0
    %4878 = vmatprep.subr.mxu0 0.0
    %4879 = vmatpush1.msra.mxu0 0.0
    %4880 = vmatprep.subr.mxu0 0.0
    %4881 = vmatpush1.msra.mxu0 0.0
    %4882 = vmatprep.subr.mxu0 0.0
    %4883 = vmatpush1.msra.mxu0 0.0
    %4884 = vmatprep.subr.mxu0 0.0
    %4885 = vmatpush1.msra.mxu0 0.0
    %4886 = vmatprep.subr.mxu0 0.0
    %4887 = vmatpush1.msra.mxu0 0.0
    %4888 = vmatprep.subr.mxu0 0.0
    %4889 = vmatpush1.msra.mxu0 0.0
    %4890 = vmatprep.subr.mxu0 0.0
    %4891 = vmatpush1.msra.mxu0 0.0
    %4892 = vmatprep.subr.mxu0 0.0
    %4893 = vmatpush1.msra.mxu0 0.0
    %4894 = vmatprep.subr.mxu0 0.0
    %4895 = vmatpush1.msra.mxu0 0.0
    %4896 = vmatprep.subr.mxu0 0.0
    %4897 = vmatpush1.msra.mxu0 0.0
    %4898 = vmatprep.subr.mxu0 0.0
    %4899 = vmatpush1.msra.mxu0 0.0
    %4900 = vmatprep.subr.mxu0 0.0
    %4901 = vmatpush1.msra.mxu0 0.0
    %4902 = vmatprep.subr.mxu0 0.0
    %4903 = vmatpush1.msra.mxu0 0.0
    %4904 = vmatprep.subr.mxu0 0.0
    %4905 = vmatpush1.msra.mxu0 0.0
    %4906 = vmatprep.subr.mxu0 0.0
    %4907 = vmatpush1.msra.mxu0 0.0
    %4908 = vmatprep.subr.mxu0 0.0
    %4909 = vmatpush1.msra.mxu0 0.0
    %4910 = vmatprep.subr.mxu0 0.0
    %4911 = vmatpush1.msra.mxu0 0.0
    %4912 = vmatprep.subr.mxu0 0.0
    %4913 = vmatpush1.msra.mxu0 0.0
    %4914 = vmatprep.subr.mxu0 0.0
    %4915 = vmatpush1.msra.mxu0 0.0
    %4916 = vmatprep.mubr.f32.mxu0 0.0
    %4917 = vmatmul.mubr.f32.gmra.mrb[0].mxu0 %v4850
    %v4918 = vpop.f32.mrb[0].mxu0
    %v4919 = vadd.f32 0.0, %v4918
    %v4920 = vpop.f32.mrb[0].mxu0
    %4921 = vdwg.mxu0
    %v4923 = vsel %vm705, %v4770, 0
    %4925 = vmatprep.subr.mxu0 0.0
    %4926 = vmatpush1.msra.mxu0 %v4055
    %4927 = vmatprep.subr.mxu0 0.0
    %4928 = vmatpush1.msra.mxu0 0.0
    %4929 = vmatprep.subr.mxu0 0.0
    %4930 = vmatpush1.msra.mxu0 0.0
    %4931 = vmatprep.subr.mxu0 0.0
    %4932 = vmatpush1.msra.mxu0 0.0
    %4933 = vmatprep.subr.mxu0 0.0
    %4934 = vmatpush1.msra.mxu0 0.0
    %4935 = vmatprep.subr.mxu0 0.0
    %4936 = vmatpush1.msra.mxu0 0.0
    %4937 = vmatprep.subr.mxu0 0.0
    %4938 = vmatpush1.msra.mxu0 0.0
    %4939 = vmatprep.subr.mxu0 0.0
    %4940 = vmatpush1.msra.mxu0 0.0
    %4941 = vmatprep.subr.mxu0 0.0
    %4942 = vmatpush1.msra.mxu0 0.0
    %4943 = vmatprep.subr.mxu0 0.0
    %4944 = vmatpush1.msra.mxu0 0.0
    %4945 = vmatprep.subr.mxu0 0.0
    %4946 = vmatpush1.msra.mxu0 0.0
    %4947 = vmatprep.subr.mxu0 0.0
    %4948 = vmatpush1.msra.mxu0 0.0
    %4949 = vmatprep.subr.mxu0 0.0
    %4950 = vmatpush1.msra.mxu0 0.0
    %4951 = vmatprep.subr.mxu0 0.0
    %4952 = vmatpush1.msra.mxu0 0.0
    %4953 = vmatprep.subr.mxu0 0.0
    %4954 = vmatpush1.msra.mxu0 0.0
    %4955 = vmatprep.subr.mxu0 0.0
    %4956 = vmatpush1.msra.mxu0 0.0
    %4957 = vmatprep.subr.mxu0 0.0
    %4958 = vmatpush1.msra.mxu0 0.0
    %4959 = vmatprep.subr.mxu0 0.0
    %4960 = vmatpush1.msra.mxu0 0.0
    %4961 = vmatprep.subr.mxu0 0.0
    %4962 = vmatpush1.msra.mxu0 0.0
    %4963 = vmatprep.subr.mxu0 0.0
    %4964 = vmatpush1.msra.mxu0 0.0
    %4965 = vmatprep.subr.mxu0 0.0
    %4966 = vmatpush1.msra.mxu0 0.0
    %4967 = vmatprep.subr.mxu0 0.0
    %4968 = vmatpush1.msra.mxu0 0.0
    %4969 = vmatprep.subr.mxu0 0.0
    %4970 = vmatpush1.msra.mxu0 0.0
    %4971 = vmatprep.subr.mxu0 0.0
    %4972 = vmatpush1.msra.mxu0 0.0
    %4973 = vmatprep.subr.mxu0 0.0
    %4974 = vmatpush1.msra.mxu0 0.0
    %4975 = vmatprep.subr.mxu0 0.0
    %4976 = vmatpush1.msra.mxu0 0.0
    %4977 = vmatprep.subr.mxu0 0.0
    %4978 = vmatpush1.msra.mxu0 0.0
    %4979 = vmatprep.subr.mxu0 0.0
    %4980 = vmatpush1.msra.mxu0 0.0
    %4981 = vmatprep.subr.mxu0 0.0
    %4982 = vmatpush1.msra.mxu0 0.0
    %4983 = vmatprep.subr.mxu0 0.0
    %4984 = vmatpush1.msra.mxu0 0.0
    %4985 = vmatprep.subr.mxu0 0.0
    %4986 = vmatpush1.msra.mxu0 0.0
    %4987 = vmatprep.subr.mxu0 0.0
    %4988 = vmatpush1.msra.mxu0 0.0
    %4989 = vmatprep.mubr.f32.mxu0 0.0
    %4990 = vmatmul.mubr.f32.gmra.mrb[0].mxu0 %v4923
    %v4991 = vpop.f32.mrb[0].mxu0
    %v4992 = vadd.f32 0.0, %v4991
    %v4993 = vpop.f32.mrb[0].mxu0
    %4994 = vdwg.mxu0
    %v4996 = vsel %vm705, %v4771, 0
    %4998 = vmatprep.subr.mxu0 0.0
    %4999 = vmatpush1.msra.mxu0 %v4057
    %5000 = vmatprep.subr.mxu0 0.0
    %5001 = vmatpush1.msra.mxu0 0.0
    %5002 = vmatprep.subr.mxu0 0.0
    %5003 = vmatpush1.msra.mxu0 0.0
    %5004 = vmatprep.subr.mxu0 0.0
    %5005 = vmatpush1.msra.mxu0 0.0
    %5006 = vmatprep.subr.mxu0 0.0
    %5007 = vmatpush1.msra.mxu0 0.0
    %5008 = vmatprep.subr.mxu0 0.0
    %5009 = vmatpush1.msra.mxu0 0.0
    %5010 = vmatprep.subr.mxu0 0.0
    %5011 = vmatpush1.msra.mxu0 0.0
    %5012 = vmatprep.subr.mxu0 0.0
    %5013 = vmatpush1.msra.mxu0 0.0
    %5014 = vmatprep.subr.mxu0 0.0
    %5015 = vmatpush1.msra.mxu0 0.0
    %5016 = vmatprep.subr.mxu0 0.0
    %5017 = vmatpush1.msra.mxu0 0.0
    %5018 = vmatprep.subr.mxu0 0.0
    %5019 = vmatpush1.msra.mxu0 0.0
    %5020 = vmatprep.subr.mxu0 0.0
    %5021 = vmatpush1.msra.mxu0 0.0
    %5022 = vmatprep.subr.mxu0 0.0
    %5023 = vmatpush1.msra.mxu0 0.0
    %5024 = vmatprep.subr.mxu0 0.0
    %5025 = vmatpush1.msra.mxu0 0.0
    %5026 = vmatprep.subr.mxu0 0.0
    %5027 = vmatpush1.msra.mxu0 0.0
    %5028 = vmatprep.subr.mxu0 0.0
    %5029 = vmatpush1.msra.mxu0 0.0
    %5030 = vmatprep.subr.mxu0 0.0
    %5031 = vmatpush1.msra.mxu0 0.0
    %5032 = vmatprep.subr.mxu0 0.0
    %5033 = vmatpush1.msra.mxu0 0.0
    %5034 = vmatprep.subr.mxu0 0.0
    %5035 = vmatpush1.msra.mxu0 0.0
    %5036 = vmatprep.subr.mxu0 0.0
    %5037 = vmatpush1.msra.mxu0 0.0
    %5038 = vmatprep.subr.mxu0 0.0
    %5039 = vmatpush1.msra.mxu0 0.0
    %5040 = vmatprep.subr.mxu0 0.0
    %5041 = vmatpush1.msra.mxu0 0.0
    %5042 = vmatprep.subr.mxu0 0.0
    %5043 = vmatpush1.msra.mxu0 0.0
    %5044 = vmatprep.subr.mxu0 0.0
    %5045 = vmatpush1.msra.mxu0 0.0
    %5046 = vmatprep.subr.mxu0 0.0
    %5047 = vmatpush1.msra.mxu0 0.0
    %5048 = vmatprep.subr.mxu0 0.0
    %5049 = vmatpush1.msra.mxu0 0.0
    %5050 = vmatprep.subr.mxu0 0.0
    %5051 = vmatpush1.msra.mxu0 0.0
    %5052 = vmatprep.subr.mxu0 0.0
    %5053 = vmatpush1.msra.mxu0 0.0
    %5054 = vmatprep.subr.mxu0 0.0
    %5055 = vmatpush1.msra.mxu0 0.0
    %5056 = vmatprep.subr.mxu0 0.0
    %5057 = vmatpush1.msra.mxu0 0.0
    %5058 = vmatprep.subr.mxu0 0.0
    %5059 = vmatpush1.msra.mxu0 0.0
    %5060 = vmatprep.subr.mxu0 0.0
    %5061 = vmatpush1.msra.mxu0 0.0
    %5062 = vmatprep.mubr.f32.mxu0 0.0
    %5063 = vmatmul.mubr.f32.gmra.mrb[0].mxu0 %v4996
    %v5064 = vpop.f32.mrb[0].mxu0
    %v5065 = vadd.f32 0.0, %v5064
    %v5066 = vpop.f32.mrb[0].mxu0
    %5067 = vdwg.mxu0
    %v5069 = vsel %vm705, %v4772, 0
    %5071 = vmatprep.subr.mxu0 0.0
    %5072 = vmatpush1.msra.mxu0 %v4061
    %5073 = vmatprep.subr.mxu0 0.0
    %5074 = vmatpush1.msra.mxu0 0.0
    %5075 = vmatprep.subr.mxu0 0.0
    %5076 = vmatpush1.msra.mxu0 0.0
    %5077 = vmatprep.subr.mxu0 0.0
    %5078 = vmatpush1.msra.mxu0 0.0
    %5079 = vmatprep.subr.mxu0 0.0
    %5080 = vmatpush1.msra.mxu0 0.0
    %5081 = vmatprep.subr.mxu0 0.0
    %5082 = vmatpush1.msra.mxu0 0.0
    %5083 = vmatprep.subr.mxu0 0.0
    %5084 = vmatpush1.msra.mxu0 0.0
    %5085 = vmatprep.subr.mxu0 0.0
    %5086 = vmatpush1.msra.mxu0 0.0
    %5087 = vmatprep.subr.mxu0 0.0
    %5088 = vmatpush1.msra.mxu0 0.0
    %5089 = vmatprep.subr.mxu0 0.0
    %5090 = vmatpush1.msra.mxu0 0.0
    %5091 = vmatprep.subr.mxu0 0.0
    %5092 = vmatpush1.msra.mxu0 0.0
    %5093 = vmatprep.subr.mxu0 0.0
    %5094 = vmatpush1.msra.mxu0 0.0
    %5095 = vmatprep.subr.mxu0 0.0
    %5096 = vmatpush1.msra.mxu0 0.0
    %5097 = vmatprep.subr.mxu0 0.0
    %5098 = vmatpush1.msra.mxu0 0.0
    %5099 = vmatprep.subr.mxu0 0.0
    %5100 = vmatpush1.msra.mxu0 0.0
    %5101 = vmatprep.subr.mxu0 0.0
    %5102 = vmatpush1.msra.mxu0 0.0
    %5103 = vmatprep.subr.mxu0 0.0
    %5104 = vmatpush1.msra.mxu0 0.0
    %5105 = vmatprep.subr.mxu0 0.0
    %5106 = vmatpush1.msra.mxu0 0.0
    %5107 = vmatprep.subr.mxu0 0.0
    %5108 = vmatpush1.msra.mxu0 0.0
    %5109 = vmatprep.subr.mxu0 0.0
    %5110 = vmatpush1.msra.mxu0 0.0
    %5111 = vmatprep.subr.mxu0 0.0
    %5112 = vmatpush1.msra.mxu0 0.0
    %5113 = vmatprep.subr.mxu0 0.0
    %5114 = vmatpush1.msra.mxu0 0.0
    %5115 = vmatprep.subr.mxu0 0.0
    %5116 = vmatpush1.msra.mxu0 0.0
    %5117 = vmatprep.subr.mxu0 0.0
    %5118 = vmatpush1.msra.mxu0 0.0
    %5119 = vmatprep.subr.mxu0 0.0
    %5120 = vmatpush1.msra.mxu0 0.0
    %5121 = vmatprep.subr.mxu0 0.0
    %5122 = vmatpush1.msra.mxu0 0.0
    %5123 = vmatprep.subr.mxu0 0.0
    %5124 = vmatpush1.msra.mxu0 0.0
    %5125 = vmatprep.subr.mxu0 0.0
    %5126 = vmatpush1.msra.mxu0 0.0
    %5127 = vmatprep.subr.mxu0 0.0
    %5128 = vmatpush1.msra.mxu0 0.0
    %5129 = vmatprep.subr.mxu0 0.0
    %5130 = vmatpush1.msra.mxu0 0.0
    %5131 = vmatprep.subr.mxu0 0.0
    %5132 = vmatpush1.msra.mxu0 0.0
    %5133 = vmatprep.subr.mxu0 0.0
    %5134 = vmatpush1.msra.mxu0 0.0
    %5135 = vmatprep.mubr.f32.mxu0 0.0
    %5136 = vmatmul.mubr.f32.gmra.mrb[0].mxu0 %v5069
    %v5137 = vpop.f32.mrb[0].mxu0
    %v5138 = vadd.f32 0.0, %v5137
    %v5139 = vpop.f32.mrb[0].mxu0
    %5140 = vdwg.mxu0
    %v5142 = vsel %vm705, %v4773, 0
    %5144 = vmatprep.subr.mxu0 0.0
    %5145 = vmatpush1.msra.mxu0 %v4063
    %5146 = vmatprep.subr.mxu0 0.0
    %5147 = vmatpush1.msra.mxu0 0.0
    %5148 = vmatprep.subr.mxu0 0.0
    %5149 = vmatpush1.msra.mxu0 0.0
    %5150 = vmatprep.subr.mxu0 0.0
    %5151 = vmatpush1.msra.mxu0 0.0
    %5152 = vmatprep.subr.mxu0 0.0
    %5153 = vmatpush1.msra.mxu0 0.0
    %5154 = vmatprep.subr.mxu0 0.0
    %5155 = vmatpush1.msra.mxu0 0.0
    %5156 = vmatprep.subr.mxu0 0.0
    %5157 = vmatpush1.msra.mxu0 0.0
    %5158 = vmatprep.subr.mxu0 0.0
    %5159 = vmatpush1.msra.mxu0 0.0
    %5160 = vmatprep.subr.mxu0 0.0
    %5161 = vmatpush1.msra.mxu0 0.0
    %5162 = vmatprep.subr.mxu0 0.0
    %5163 = vmatpush1.msra.mxu0 0.0
    %5164 = vmatprep.subr.mxu0 0.0
    %5165 = vmatpush1.msra.mxu0 0.0
    %5166 = vmatprep.subr.mxu0 0.0
    %5167 = vmatpush1.msra.mxu0 0.0
    %5168 = vmatprep.subr.mxu0 0.0
    %5169 = vmatpush1.msra.mxu0 0.0
    %5170 = vmatprep.subr.mxu0 0.0
    %5171 = vmatpush1.msra.mxu0 0.0
    %5172 = vmatprep.subr.mxu0 0.0
    %5173 = vmatpush1.msra.mxu0 0.0
    %5174 = vmatprep.subr.mxu0 0.0
    %5175 = vmatpush1.msra.mxu0 0.0
    %5176 = vmatprep.subr.mxu0 0.0
    %5177 = vmatpush1.msra.mxu0 0.0
    %5178 = vmatprep.subr.mxu0 0.0
    %5179 = vmatpush1.msra.mxu0 0.0
    %5180 = vmatprep.subr.mxu0 0.0
    %5181 = vmatpush1.msra.mxu0 0.0
    %5182 = vmatprep.subr.mxu0 0.0
    %5183 = vmatpush1.msra.mxu0 0.0
    %5184 = vmatprep.subr.mxu0 0.0
    %5185 = vmatpush1.msra.mxu0 0.0
    %5186 = vmatprep.subr.mxu0 0.0
    %5187 = vmatpush1.msra.mxu0 0.0
    %5188 = vmatprep.subr.mxu0 0.0
    %5189 = vmatpush1.msra.mxu0 0.0
    %5190 = vmatprep.subr.mxu0 0.0
    %5191 = vmatpush1.msra.mxu0 0.0
    %5192 = vmatprep.subr.mxu0 0.0
    %5193 = vmatpush1.msra.mxu0 0.0
    %5194 = vmatprep.subr.mxu0 0.0
    %5195 = vmatpush1.msra.mxu0 0.0
    %5196 = vmatprep.subr.mxu0 0.0
    %5197 = vmatpush1.msra.mxu0 0.0
    %5198 = vmatprep.subr.mxu0 0.0
    %5199 = vmatpush1.msra.mxu0 0.0
    %5200 = vmatprep.subr.mxu0 0.0
    %5201 = vmatpush1.msra.mxu0 0.0
    %5202 = vmatprep.subr.mxu0 0.0
    %5203 = vmatpush1.msra.mxu0 0.0
    %5204 = vmatprep.subr.mxu0 0.0
    %5205 = vmatpush1.msra.mxu0 0.0
    %5206 = vmatprep.subr.mxu0 0.0
    %5207 = vmatpush1.msra.mxu0 0.0
    %5208 = vmatprep.mubr.f32.mxu0 0.0
    %5209 = vmatmul.mubr.f32.gmra.mrb[0].mxu0 %v5142
    %v5210 = vpop.f32.mrb[0].mxu0
    %v5211 = vadd.f32 0.0, %v5210
    %v5212 = vpop.f32.mrb[0].mxu0
    %5213 = vdwg.mxu0
    %v5215 = vsel %vm705, %v4774, 0
    %5217 = vmatprep.subr.mxu0 0.0
    %5218 = vmatpush1.msra.mxu0 %v4067
    %5219 = vmatprep.subr.mxu0 0.0
    %5220 = vmatpush1.msra.mxu0 0.0
    %5221 = vmatprep.subr.mxu0 0.0
    %5222 = vmatpush1.msra.mxu0 0.0
    %5223 = vmatprep.subr.mxu0 0.0
    %5224 = vmatpush1.msra.mxu0 0.0
    %5225 = vmatprep.subr.mxu0 0.0
    %5226 = vmatpush1.msra.mxu0 0.0
    %5227 = vmatprep.subr.mxu0 0.0
    %5228 = vmatpush1.msra.mxu0 0.0
    %5229 = vmatprep.subr.mxu0 0.0
    %5230 = vmatpush1.msra.mxu0 0.0
    %5231 = vmatprep.subr.mxu0 0.0
    %5232 = vmatpush1.msra.mxu0 0.0
    %5233 = vmatprep.subr.mxu0 0.0
    %5234 = vmatpush1.msra.mxu0 0.0
    %5235 = vmatprep.subr.mxu0 0.0
    %5236 = vmatpush1.msra.mxu0 0.0
    %5237 = vmatprep.subr.mxu0 0.0
    %5238 = vmatpush1.msra.mxu0 0.0
    %5239 = vmatprep.subr.mxu0 0.0
    %5240 = vmatpush1.msra.mxu0 0.0
    %5241 = vmatprep.subr.mxu0 0.0
    %5242 = vmatpush1.msra.mxu0 0.0
    %5243 = vmatprep.subr.mxu0 0.0
    %5244 = vmatpush1.msra.mxu0 0.0
    %5245 = vmatprep.subr.mxu0 0.0
    %5246 = vmatpush1.msra.mxu0 0.0
    %5247 = vmatprep.subr.mxu0 0.0
    %5248 = vmatpush1.msra.mxu0 0.0
    %5249 = vmatprep.subr.mxu0 0.0
    %5250 = vmatpush1.msra.mxu0 0.0
    %5251 = vmatprep.subr.mxu0 0.0
    %5252 = vmatpush1.msra.mxu0 0.0
    %5253 = vmatprep.subr.mxu0 0.0
    %5254 = vmatpush1.msra.mxu0 0.0
    %5255 = vmatprep.subr.mxu0 0.0
    %5256 = vmatpush1.msra.mxu0 0.0
    %5257 = vmatprep.subr.mxu0 0.0
    %5258 = vmatpush1.msra.mxu0 0.0
    %5259 = vmatprep.subr.mxu0 0.0
    %5260 = vmatpush1.msra.mxu0 0.0
    %5261 = vmatprep.subr.mxu0 0.0
    %5262 = vmatpush1.msra.mxu0 0.0
    %5263 = vmatprep.subr.mxu0 0.0
    %5264 = vmatpush1.msra.mxu0 0.0
    %5265 = vmatprep.subr.mxu0 0.0
    %5266 = vmatpush1.msra.mxu0 0.0
    %5267 = vmatprep.subr.mxu0 0.0
    %5268 = vmatpush1.msra.mxu0 0.0
    %5269 = vmatprep.subr.mxu0 0.0
    %5270 = vmatpush1.msra.mxu0 0.0
    %5271 = vmatprep.subr.mxu0 0.0
    %5272 = vmatpush1.msra.mxu0 0.0
    %5273 = vmatprep.subr.mxu0 0.0
    %5274 = vmatpush1.msra.mxu0 0.0
    %5275 = vmatprep.subr.mxu0 0.0
    %5276 = vmatpush1.msra.mxu0 0.0
    %5277 = vmatprep.subr.mxu0 0.0
    %5278 = vmatpush1.msra.mxu0 0.0
    %5279 = vmatprep.subr.mxu0 0.0
    %5280 = vmatpush1.msra.mxu0 0.0
    %5281 = vmatprep.mubr.f32.mxu0 0.0
    %5282 = vmatmul.mubr.f32.gmra.mrb[0].mxu0 %v5215
    %v5283 = vpop.f32.mrb[0].mxu0
    %v5284 = vadd.f32 0.0, %v5283
    %v5285 = vpop.f32.mrb[0].mxu0
    %5286 = vdwg.mxu0
    %v5288 = vsel %vm705, %v4775, 0
    %5290 = vmatprep.subr.mxu0 0.0
    %5291 = vmatpush1.msra.mxu0 %v4069
    %5292 = vmatprep.subr.mxu0 0.0
    %5293 = vmatpush1.msra.mxu0 0.0
    %5294 = vmatprep.subr.mxu0 0.0
    %5295 = vmatpush1.msra.mxu0 0.0
    %5296 = vmatprep.subr.mxu0 0.0
    %5297 = vmatpush1.msra.mxu0 0.0
    %5298 = vmatprep.subr.mxu0 0.0
    %5299 = vmatpush1.msra.mxu0 0.0
    %5300 = vmatprep.subr.mxu0 0.0
    %5301 = vmatpush1.msra.mxu0 0.0
    %5302 = vmatprep.subr.mxu0 0.0
    %5303 = vmatpush1.msra.mxu0 0.0
    %5304 = vmatprep.subr.mxu0 0.0
    %5305 = vmatpush1.msra.mxu0 0.0
    %5306 = vmatprep.subr.mxu0 0.0
    %5307 = vmatpush1.msra.mxu0 0.0
    %5308 = vmatprep.subr.mxu0 0.0
    %5309 = vmatpush1.msra.mxu0 0.0
    %5310 = vmatprep.subr.mxu0 0.0
    %5311 = vmatpush1.msra.mxu0 0.0
    %5312 = vmatprep.subr.mxu0 0.0
    %5313 = vmatpush1.msra.mxu0 0.0
    %5314 = vmatprep.subr.mxu0 0.0
    %5315 = vmatpush1.msra.mxu0 0.0
    %5316 = vmatprep.subr.mxu0 0.0
    %5317 = vmatpush1.msra.mxu0 0.0
    %5318 = vmatprep.subr.mxu0 0.0
    %5319 = vmatpush1.msra.mxu0 0.0
    %5320 = vmatprep.subr.mxu0 0.0
    %5321 = vmatpush1.msra.mxu0 0.0
    %5322 = vmatprep.subr.mxu0 0.0
    %5323 = vmatpush1.msra.mxu0 0.0
    %5324 = vmatprep.subr.mxu0 0.0
    %5325 = vmatpush1.msra.mxu0 0.0
    %5326 = vmatprep.subr.mxu0 0.0
    %5327 = vmatpush1.msra.mxu0 0.0
    %5328 = vmatprep.subr.mxu0 0.0
    %5329 = vmatpush1.msra.mxu0 0.0
    %5330 = vmatprep.subr.mxu0 0.0
    %5331 = vmatpush1.msra.mxu0 0.0
    %5332 = vmatprep.subr.mxu0 0.0
    %5333 = vmatpush1.msra.mxu0 0.0
    %5334 = vmatprep.subr.mxu0 0.0
    %5335 = vmatpush1.msra.mxu0 0.0
    %5336 = vmatprep.subr.mxu0 0.0
    %5337 = vmatpush1.msra.mxu0 0.0
    %5338 = vmatprep.subr.mxu0 0.0
    %5339 = vmatpush1.msra.mxu0 0.0
    %5340 = vmatprep.subr.mxu0 0.0
    %5341 = vmatpush1.msra.mxu0 0.0
    %5342 = vmatprep.subr.mxu0 0.0
    %5343 = vmatpush1.msra.mxu0 0.0
    %5344 = vmatprep.subr.mxu0 0.0
    %5345 = vmatpush1.msra.mxu0 0.0
    %5346 = vmatprep.subr.mxu0 0.0
    %5347 = vmatpush1.msra.mxu0 0.0
    %5348 = vmatprep.subr.mxu0 0.0
    %5349 = vmatpush1.msra.mxu0 0.0
    %5350 = vmatprep.subr.mxu0 0.0
    %5351 = vmatpush1.msra.mxu0 0.0
    %5352 = vmatprep.subr.mxu0 0.0
    %5353 = vmatpush1.msra.mxu0 0.0
    %5354 = vmatprep.mubr.f32.mxu0 0.0
    %5355 = vmatmul.mubr.f32.gmra.mrb[0].mxu0 %v5288
    %v5356 = vpop.f32.mrb[0].mxu0
    %v5357 = vadd.f32 0.0, %v5356
    %v5358 = vpop.f32.mrb[0].mxu0
    %5359 = vdwg.mxu0
    %5362 = vrot.lane.b32.xlu0 %v4992, 8
    %v5363 = vpop.permute.xlu0 %5362
    %5364 = vrot.lane.b32.xlu0 %v5065, 8
    %v5365 = vpop.permute.xlu0 %5364
    %5370 = vrot.lane.b32.xlu0 %v5138, 16
    %v5371 = vpop.permute.xlu0 %5370
    %5372 = vrot.lane.b32.xlu0 %v5211, 16
    %v5373 = vpop.permute.xlu0 %5372
    %5378 = vrot.lane.b32.xlu0 %v5284, 24
    %v5379 = vpop.permute.xlu0 %5378
    %5380 = vrot.lane.b32.xlu0 %v5357, 24
    %v5381 = vpop.permute.xlu0 %5380
    %v5384 = vsel %vm705, %v4846, %v5363
    %v5385 = vsel %vm705, %v4919, %v5365
    %v5386 = vsel %vm2018, %v5384, %v5371
    %v5387 = vsel %vm2018, %v5385, %v5373
    %v5388 = vsel %vm2021, %v5386, %v5379
    %v5389 = vsel %vm2021, %v5387, %v5381
    %s5390 = scalar_lea.vmem [#allocation11], 160
    %v5391 = vld [vmem:[%s5390] sm:$0xff]
    %v5392 = vld [vmem:[%s5390 + $0x8] sm:$0xff]
    %v5393 = vld [vmem:[%s5390 + $0x10] sm:$0xff]
    %v5394 = vld [vmem:[%s5390 + $0x18] sm:$0xff]
    %v5395 = vld [vmem:[%s9 + $0xb] sm:$0x1]
    %v5396 = vlaneseq
    %v5397 = vshrl.u32 %v5396, 7
    %v5398 = vsub.s32 0, %v5397
    %v5399 = vrot.slane %v5395, %v5398
    %v5401 = vsel %vm174, %v5388, 0
    %v5404 = vsel %vm174, %v5389, 0
    %5406 = vmatprep.subr.mxu0 0.0
    %5407 = vmatpush1.msra.mxu0 %v5391
    %5408 = vmatprep.subr.mxu0 0.0
    %5409 = vmatpush1.msra.mxu0 %v5392
    %5410 = vmatprep.subr.mxu0 0.0
    %5411 = vmatpush1.msra.mxu0 %v5393
    %5412 = vmatprep.subr.mxu0 0.0
    %5413 = vmatpush1.msra.mxu0 %v5394
    %5414 = vmatprep.subr.mxu0 0.0
    %5415 = vmatpush1.msra.mxu0 0.0
    %5416 = vmatprep.subr.mxu0 0.0
    %5417 = vmatpush1.msra.mxu0 0.0
    %5418 = vmatprep.subr.mxu0 0.0
    %5419 = vmatpush1.msra.mxu0 0.0
    %5420 = vmatprep.subr.mxu0 0.0
    %5421 = vmatpush1.msra.mxu0 0.0
    %5422 = vmatprep.subr.mxu0 0.0
    %5423 = vmatpush1.msra.mxu0 0.0
    %5424 = vmatprep.subr.mxu0 0.0
    %5425 = vmatpush1.msra.mxu0 0.0
    %5426 = vmatprep.subr.mxu0 0.0
    %5427 = vmatpush1.msra.mxu0 0.0
    %5428 = vmatprep.subr.mxu0 0.0
    %5429 = vmatpush1.msra.mxu0 0.0
    %5430 = vmatprep.subr.mxu0 0.0
    %5431 = vmatpush1.msra.mxu0 0.0
    %5432 = vmatprep.subr.mxu0 0.0
    %5433 = vmatpush1.msra.mxu0 0.0
    %5434 = vmatprep.subr.mxu0 0.0
    %5435 = vmatpush1.msra.mxu0 0.0
    %5436 = vmatprep.subr.mxu0 0.0
    %5437 = vmatpush1.msra.mxu0 0.0
    %5438 = vmatprep.subr.mxu0 0.0
    %5439 = vmatpush1.msra.mxu0 0.0
    %5440 = vmatprep.subr.mxu0 0.0
    %5441 = vmatpush1.msra.mxu0 0.0
    %5442 = vmatprep.subr.mxu0 0.0
    %5443 = vmatpush1.msra.mxu0 0.0
    %5444 = vmatprep.subr.mxu0 0.0
    %5445 = vmatpush1.msra.mxu0 0.0
    %5446 = vmatprep.subr.mxu0 0.0
    %5447 = vmatpush1.msra.mxu0 0.0
    %5448 = vmatprep.subr.mxu0 0.0
    %5449 = vmatpush1.msra.mxu0 0.0
    %5450 = vmatprep.subr.mxu0 0.0
    %5451 = vmatpush1.msra.mxu0 0.0
    %5452 = vmatprep.subr.mxu0 0.0
    %5453 = vmatpush1.msra.mxu0 0.0
    %5454 = vmatprep.subr.mxu0 0.0
    %5455 = vmatpush1.msra.mxu0 0.0
    %5456 = vmatprep.subr.mxu0 0.0
    %5457 = vmatpush1.msra.mxu0 0.0
    %5458 = vmatprep.subr.mxu0 0.0
    %5459 = vmatpush1.msra.mxu0 0.0
    %5460 = vmatprep.subr.mxu0 0.0
    %5461 = vmatpush1.msra.mxu0 0.0
    %5462 = vmatprep.subr.mxu0 0.0
    %5463 = vmatpush1.msra.mxu0 0.0
    %5464 = vmatprep.subr.mxu0 0.0
    %5465 = vmatpush1.msra.mxu0 0.0
    %5466 = vmatprep.subr.mxu0 0.0
    %5467 = vmatpush1.msra.mxu0 0.0
    %5468 = vmatprep.subr.mxu0 0.0
    %5469 = vmatpush1.msra.mxu0 0.0
    %5470 = vmatprep.mubr.f32.mxu0 0.0
    %5471 = vmatmul.mubr.f32.gmra.mrb[0].mxu0 %v5401
    %v5472 = vpop.f32.mrb[0].mxu0
    %v5473 = vadd.f32 %v5399, %v5472
    %v5474 = vpop.f32.mrb[0].mxu0
    %5475 = vmatprep.mubr.f32.mxu0 0.0
    %5476 = vmatmul.mubr.f32.gmra.mrb[0].mxu0 %v5404
    %v5477 = vpop.f32.mrb[0].mxu0
    %v5478 = vadd.f32 %v5399, %v5477
    %v5479 = vpop.f32.mrb[0].mxu0
    %5480 = vdwg.mxu0
    %v5481 = vadd.f32 %v3838, %v5473
    %v5482 = vadd.f32 %v3839, %v5478
    %v5483 = vld [vmem:[%s9 + $0xe] sm:$0x1]
    %v5484 = vld [vmem:[%s9 + $0xf] sm:$0x1]
    %v5485 = vsel %vm174, %v5481, 0.0
    %5486 = vadd.xlane.f32.xlu0 %v5485
    %v5487 = vpop.xlane.xlu0 %5486
    %v5488 = vsel %vm174, %v5482, 0.0
    %5489 = vadd.xlane.f32.xlu0 %v5488
    %v5490 = vpop.xlane.xlu0 %5489
    %v5491 = vmul.f32 %v5487, %v2125
    %v5492 = vmul.f32 %v5490, %v2125
    %v5493 = vsub.f32 %v5481, %v5491
    %v5494 = vsub.f32 %v5482, %v5492
    %v5495 = vmul.f32 %v5493, %v5493
    %v5496 = vmul.f32 %v5494, %v5494
    %v5497 = vsel %vm174, %v5495, 0.0
    %5498 = vadd.xlane.f32.xlu0 %v5497
    %v5499 = vpop.xlane.xlu0 %5498
    %v5500 = vsel %vm174, %v5496, 0.0
    %5501 = vadd.xlane.f32.xlu0 %v5500
    %v5502 = vpop.xlane.xlu0 %5501
    %v5503 = vmul.f32 %v5499, %v2125
    %v5504 = vmul.f32 %v5502, %v2125
    %v5505 = vadd.f32 %v5503, 1e-05
    %v5506 = vadd.f32 %v5504, 1e-05
    %v5507 = vrsqrt.pop %v5505
    %v5508 = vrsqrt.pop %v5506
    %v5509 = vmul.f32 %v5493, %v5507
    %v5510 = vmul.f32 %v5494, %v5508
    %v5511 = vlaneseq
    %v5512 = vshrl.u32 %v5511, 7
    %v5513 = vsub.s32 0, %v5512
    %v5514 = vrot.slane %v5483, %v5513
    %v5515 = vmul.f32 %v5509, %v5514
    %v5516 = vmul.f32 %v5510, %v5514
    %v5517 = vlaneseq
    %v5518 = vshrl.u32 %v5517, 7
    %v5519 = vsub.s32 0, %v5518
    %v5520 = vrot.slane %v5484, %v5519
    %v5521 = vadd.f32 %v5515, %v5520
    %v5522 = vadd.f32 %v5516, %v5520
    %v5523 = vadd.f32 %v5521, %v157
    %v5524 = vadd.f32 %v5522, %v158
    %s5525 = scalar_lea.vmem [#allocation11], 192
    %v5526 = vld [vmem:[%s5525] sm:$0xff]
    %v5527 = vld [vmem:[%s5525 + $0x8] sm:$0xff]
    %v5528 = vld [vmem:[%s5525 + $0x10] sm:$0xff]
    %v5529 = vld [vmem:[%s5525 + $0x18] sm:$0xff]
    %v5530 = vld [vmem:[%s9 + $0xc] sm:$0x1]
    %v5531 = vlaneseq
    %v5532 = vshrl.u32 %v5531, 7
    %v5533 = vsub.s32 0, %v5532
    %v5534 = vrot.slane %v5530, %v5533
    %v5536 = vsel %vm174, %v5523, 0
    %v5539 = vsel %vm174, %v5524, 0
    %5541 = vmatprep.subr.mxu0 0.0
    %5542 = vmatpush1.msra.mxu0 %v5526
    %5543 = vmatprep.subr.mxu0 0.0
    %5544 = vmatpush1.msra.mxu0 %v5527
    %5545 = vmatprep.subr.mxu0 0.0
    %5546 = vmatpush1.msra.mxu0 %v5528
    %5547 = vmatprep.subr.mxu0 0.0
    %5548 = vmatpush1.msra.mxu0 %v5529
    %5549 = vmatprep.subr.mxu0 0.0
    %5550 = vmatpush1.msra.mxu0 0.0
    %5551 = vmatprep.subr.mxu0 0.0
    %5552 = vmatpush1.msra.mxu0 0.0
    %5553 = vmatprep.subr.mxu0 0.0
    %5554 = vmatpush1.msra.mxu0 0.0
    %5555 = vmatprep.subr.mxu0 0.0
    %5556 = vmatpush1.msra.mxu0 0.0
    %5557 = vmatprep.subr.mxu0 0.0
    %5558 = vmatpush1.msra.mxu0 0.0
    %5559 = vmatprep.subr.mxu0 0.0
    %5560 = vmatpush1.msra.mxu0 0.0
    %5561 = vmatprep.subr.mxu0 0.0
    %5562 = vmatpush1.msra.mxu0 0.0
    %5563 = vmatprep.subr.mxu0 0.0
    %5564 = vmatpush1.msra.mxu0 0.0
    %5565 = vmatprep.subr.mxu0 0.0
    %5566 = vmatpush1.msra.mxu0 0.0
    %5567 = vmatprep.subr.mxu0 0.0
    %5568 = vmatpush1.msra.mxu0 0.0
    %5569 = vmatprep.subr.mxu0 0.0
    %5570 = vmatpush1.msra.mxu0 0.0
    %5571 = vmatprep.subr.mxu0 0.0
    %5572 = vmatpush1.msra.mxu0 0.0
    %5573 = vmatprep.subr.mxu0 0.0
    %5574 = vmatpush1.msra.mxu0 0.0
    %5575 = vmatprep.subr.mxu0 0.0
    %5576 = vmatpush1.msra.mxu0 0.0
    %5577 = vmatprep.subr.mxu0 0.0
    %5578 = vmatpush1.msra.mxu0 0.0
    %5579 = vmatprep.subr.mxu0 0.0
    %5580 = vmatpush1.msra.mxu0 0.0
    %5581 = vmatprep.subr.mxu0 0.0
    %5582 = vmatpush1.msra.mxu0 0.0
    %5583 = vmatprep.subr.mxu0 0.0
    %5584 = vmatpush1.msra.mxu0 0.0
    %5585 = vmatprep.subr.mxu0 0.0
    %5586 = vmatpush1.msra.mxu0 0.0
    %5587 = vmatprep.subr.mxu0 0.0
    %5588 = vmatpush1.msra.mxu0 0.0
    %5589 = vmatprep.subr.mxu0 0.0
    %5590 = vmatpush1.msra.mxu0 0.0
    %5591 = vmatprep.subr.mxu0 0.0
    %5592 = vmatpush1.msra.mxu0 0.0
    %5593 = vmatprep.subr.mxu0 0.0
    %5594 = vmatpush1.msra.mxu0 0.0
    %5595 = vmatprep.subr.mxu0 0.0
    %5596 = vmatpush1.msra.mxu0 0.0
    %5597 = vmatprep.subr.mxu0 0.0
    %5598 = vmatpush1.msra.mxu0 0.0
    %5599 = vmatprep.subr.mxu0 0.0
    %5600 = vmatpush1.msra.mxu0 0.0
    %5601 = vmatprep.subr.mxu0 0.0
    %5602 = vmatpush1.msra.mxu0 0.0
    %5603 = vmatprep.subr.mxu0 0.0
    %5604 = vmatpush1.msra.mxu0 0.0
    %5605 = vmatprep.mubr.f32.mxu0 0.0
    %5606 = vmatmul.mubr.f32.gmra.mrb[0].mxu0 %v5536
    %v5607 = vpop.f32.mrb[0].mxu0
    %v5608 = vadd.f32 %v5534, %v5607
    %v5609 = vpop.f32.mrb[0].mxu0
    %5610 = vmatprep.mubr.f32.mxu0 0.0
    %5611 = vmatmul.mubr.f32.gmra.mrb[0].mxu0 %v5539
    %v5612 = vpop.f32.mrb[0].mxu0
    %v5613 = vadd.f32 %v5534, %v5612
    %v5614 = vpop.f32.mrb[0].mxu0
    %5615 = vdwg.mxu0
    %5618 = vrot.lane.b32.xlu0 %v5608, 120
    %v5619 = vpop.permute.xlu0 %5618
    %5620 = vrot.lane.b32.xlu0 %v5613, 120
    %v5621 = vpop.permute.xlu0 %5620
    %5624 = vrot.lane.b32.xlu0 %v5608, 112
    %v5625 = vpop.permute.xlu0 %5624
    %5626 = vrot.lane.b32.xlu0 %v5613, 112
    %v5627 = vpop.permute.xlu0 %5626
    %5630 = vrot.lane.b32.xlu0 %v5608, 104
    %v5631 = vpop.permute.xlu0 %5630
    %5632 = vrot.lane.b32.xlu0 %v5613, 104
    %v5633 = vpop.permute.xlu0 %5632
    %v5636 = vmul.f32 %v5608, 0.35355338
    %v5637 = vmul.f32 %v5613, 0.35355338
    %v5638 = vmul.f32 %v5619, 0.35355338
    %v5639 = vmul.f32 %v5621, 0.35355338
    %v5640 = vmul.f32 %v5625, 0.35355338
    %v5641 = vmul.f32 %v5627, 0.35355338
    %v5642 = vmul.f32 %v5631, 0.35355338
    %v5643 = vmul.f32 %v5633, 0.35355338
    %5644 = vrot.lane.b32.xlu0 %v348, 96
    %v5645 = vpop.permute.xlu0 %5644
    %5646 = vrot.lane.b32.xlu0 %v353, 96
    %v5647 = vpop.permute.xlu0 %5646
    %v5649 = vsel %vm705, %v5636, 0
    %v5651 = vsel %vm705, %v5645, 0
    %v5653 = vsel %vm705, %v5647, 0
    %5655 = vmatprep.subr.mxu0 0.0
    %5656 = vmatpush1.xpose.msra.mxu0 %v5651
    %5657 = vmatprep.subr.mxu0 0.0
    %5658 = vmatpush1.xpose.msra.mxu0 %v5653
    %5659 = vmatprep.subr.mxu0 0.0
    %5660 = vmatpush1.xpose.msra.mxu0 0.0
    %5661 = vmatprep.subr.mxu0 0.0
    %5662 = vmatpush1.xpose.msra.mxu0 0.0
    %5663 = vmatprep.subr.mxu0 0.0
    %5664 = vmatpush1.xpose.msra.mxu0 0.0
    %5665 = vmatprep.subr.mxu0 0.0
    %5666 = vmatpush1.xpose.msra.mxu0 0.0
    %5667 = vmatprep.subr.mxu0 0.0
    %5668 = vmatpush1.xpose.msra.mxu0 0.0
    %5669 = vmatprep.subr.mxu0 0.0
    %5670 = vmatpush1.xpose.msra.mxu0 0.0
    %5671 = vmatprep.subr.mxu0 0.0
    %5672 = vmatpush1.xpose.msra.mxu0 0.0
    %5673 = vmatprep.subr.mxu0 0.0
    %5674 = vmatpush1.xpose.msra.mxu0 0.0
    %5675 = vmatprep.subr.mxu0 0.0
    %5676 = vmatpush1.xpose.msra.mxu0 0.0
    %5677 = vmatprep.subr.mxu0 0.0
    %5678 = vmatpush1.xpose.msra.mxu0 0.0
    %5679 = vmatprep.subr.mxu0 0.0
    %5680 = vmatpush1.xpose.msra.mxu0 0.0
    %5681 = vmatprep.subr.mxu0 0.0
    %5682 = vmatpush1.xpose.msra.mxu0 0.0
    %5683 = vmatprep.subr.mxu0 0.0
    %5684 = vmatpush1.xpose.msra.mxu0 0.0
    %5685 = vmatprep.subr.mxu0 0.0
    %5686 = vmatpush1.xpose.msra.mxu0 0.0
    %5687 = vmatprep.subr.mxu0 0.0
    %5688 = vmatpush1.xpose.msra.mxu0 0.0
    %5689 = vmatprep.subr.mxu0 0.0
    %5690 = vmatpush1.xpose.msra.mxu0 0.0
    %5691 = vmatprep.subr.mxu0 0.0
    %5692 = vmatpush1.xpose.msra.mxu0 0.0
    %5693 = vmatprep.subr.mxu0 0.0
    %5694 = vmatpush1.xpose.msra.mxu0 0.0
    %5695 = vmatprep.subr.mxu0 0.0
    %5696 = vmatpush1.xpose.msra.mxu0 0.0
    %5697 = vmatprep.subr.mxu0 0.0
    %5698 = vmatpush1.xpose.msra.mxu0 0.0
    %5699 = vmatprep.subr.mxu0 0.0
    %5700 = vmatpush1.xpose.msra.mxu0 0.0
    %5701 = vmatprep.subr.mxu0 0.0
    %5702 = vmatpush1.xpose.msra.mxu0 0.0
    %5703 = vmatprep.subr.mxu0 0.0
    %5704 = vmatpush1.xpose.msra.mxu0 0.0
    %5705 = vmatprep.subr.mxu0 0.0
    %5706 = vmatpush1.xpose.msra.mxu0 0.0
    %5707 = vmatprep.subr.mxu0 0.0
    %5708 = vmatpush1.xpose.msra.mxu0 0.0
    %5709 = vmatprep.subr.mxu0 0.0
    %5710 = vmatpush1.xpose.msra.mxu0 0.0
    %5711 = vmatprep.subr.mxu0 0.0
    %5712 = vmatpush1.xpose.msra.mxu0 0.0
    %5713 = vmatprep.subr.mxu0 0.0
    %5714 = vmatpush1.xpose.msra.mxu0 0.0
    %5715 = vmatprep.subr.mxu0 0.0
    %5716 = vmatpush1.xpose.msra.mxu0 0.0
    %5717 = vmatprep.subr.mxu0 0.0
    %5718 = vmatpush1.xpose.msra.mxu0 0.0
    %5719 = vmatprep.mubr.f32.mxu0 0.0
    %5720 = vmatmul.mubr.f32.gmra.mrb[0].mxu0 %v5649
    %v5721 = vpop.f32.mrb[0].mxu0
    %v5722 = vadd.f32 0.0, %v5721
    %v5723 = vpop.f32.mrb[0].mxu0
    %5724 = vdwg.mxu0
    %5725 = vrot.lane.b32.xlu0 %v358, 96
    %v5726 = vpop.permute.xlu0 %5725
    %5727 = vrot.lane.b32.xlu0 %v363, 96
    %v5728 = vpop.permute.xlu0 %5727
    %v5730 = vsel %vm705, %v5637, 0
    %v5732 = vsel %vm705, %v5726, 0
    %v5734 = vsel %vm705, %v5728, 0
    %5736 = vmatprep.subr.mxu0 0.0
    %5737 = vmatpush1.xpose.msra.mxu0 %v5732
    %5738 = vmatprep.subr.mxu0 0.0
    %5739 = vmatpush1.xpose.msra.mxu0 %v5734
    %5740 = vmatprep.subr.mxu0 0.0
    %5741 = vmatpush1.xpose.msra.mxu0 0.0
    %5742 = vmatprep.subr.mxu0 0.0
    %5743 = vmatpush1.xpose.msra.mxu0 0.0
    %5744 = vmatprep.subr.mxu0 0.0
    %5745 = vmatpush1.xpose.msra.mxu0 0.0
    %5746 = vmatprep.subr.mxu0 0.0
    %5747 = vmatpush1.xpose.msra.mxu0 0.0
    %5748 = vmatprep.subr.mxu0 0.0
    %5749 = vmatpush1.xpose.msra.mxu0 0.0
    %5750 = vmatprep.subr.mxu0 0.0
    %5751 = vmatpush1.xpose.msra.mxu0 0.0
    %5752 = vmatprep.subr.mxu0 0.0
    %5753 = vmatpush1.xpose.msra.mxu0 0.0
    %5754 = vmatprep.subr.mxu0 0.0
    %5755 = vmatpush1.xpose.msra.mxu0 0.0
    %5756 = vmatprep.subr.mxu0 0.0
    %5757 = vmatpush1.xpose.msra.mxu0 0.0
    %5758 = vmatprep.subr.mxu0 0.0
    %5759 = vmatpush1.xpose.msra.mxu0 0.0
    %5760 = vmatprep.subr.mxu0 0.0
    %5761 = vmatpush1.xpose.msra.mxu0 0.0
    %5762 = vmatprep.subr.mxu0 0.0
    %5763 = vmatpush1.xpose.msra.mxu0 0.0
    %5764 = vmatprep.subr.mxu0 0.0
    %5765 = vmatpush1.xpose.msra.mxu0 0.0
    %5766 = vmatprep.subr.mxu0 0.0
    %5767 = vmatpush1.xpose.msra.mxu0 0.0
    %5768 = vmatprep.subr.mxu0 0.0
    %5769 = vmatpush1.xpose.msra.mxu0 0.0
    %5770 = vmatprep.subr.mxu0 0.0
    %5771 = vmatpush1.xpose.msra.mxu0 0.0
    %5772 = vmatprep.subr.mxu0 0.0
    %5773 = vmatpush1.xpose.msra.mxu0 0.0
    %5774 = vmatprep.subr.mxu0 0.0
    %5775 = vmatpush1.xpose.msra.mxu0 0.0
    %5776 = vmatprep.subr.mxu0 0.0
    %5777 = vmatpush1.xpose.msra.mxu0 0.0
    %5778 = vmatprep.subr.mxu0 0.0
    %5779 = vmatpush1.xpose.msra.mxu0 0.0
    %5780 = vmatprep.subr.mxu0 0.0
    %5781 = vmatpush1.xpose.msra.mxu0 0.0
    %5782 = vmatprep.subr.mxu0 0.0
    %5783 = vmatpush1.xpose.msra.mxu0 0.0
    %5784 = vmatprep.subr.mxu0 0.0
    %5785 = vmatpush1.xpose.msra.mxu0 0.0
    %5786 = vmatprep.subr.mxu0 0.0
    %5787 = vmatpush1.xpose.msra.mxu0 0.0
    %5788 = vmatprep.subr.mxu0 0.0
    %5789 = vmatpush1.xpose.msra.mxu0 0.0
    %5790 = vmatprep.subr.mxu0 0.0
    %5791 = vmatpush1.xpose.msra.mxu0 0.0
    %5792 = vmatprep.subr.mxu0 0.0
    %5793 = vmatpush1.xpose.msra.mxu0 0.0
    %5794 = vmatprep.subr.mxu0 0.0
    %5795 = vmatpush1.xpose.msra.mxu0 0.0
    %5796 = vmatprep.subr.mxu0 0.0
    %5797 = vmatpush1.xpose.msra.mxu0 0.0
    %5798 = vmatprep.subr.mxu0 0.0
    %5799 = vmatpush1.xpose.msra.mxu0 0.0
    %5800 = vmatprep.mubr.f32.mxu0 0.0
    %5801 = vmatmul.mubr.f32.gmra.mrb[0].mxu0 %v5730
    %v5802 = vpop.f32.mrb[0].mxu0
    %v5803 = vadd.f32 0.0, %v5802
    %v5804 = vpop.f32.mrb[0].mxu0
    %5805 = vdwg.mxu0
    %5806 = vrot.lane.b32.xlu0 %v2284, 96
    %v5807 = vpop.permute.xlu0 %5806
    %5808 = vrot.lane.b32.xlu0 %v2286, 96
    %v5809 = vpop.permute.xlu0 %5808
    %v5811 = vsel %vm705, %v5638, 0
    %v5813 = vsel %vm705, %v5807, 0
    %v5815 = vsel %vm705, %v5809, 0
    %5817 = vmatprep.subr.mxu0 0.0
    %5818 = vmatpush1.xpose.msra.mxu0 %v5813
    %5819 = vmatprep.subr.mxu0 0.0
    %5820 = vmatpush1.xpose.msra.mxu0 %v5815
    %5821 = vmatprep.subr.mxu0 0.0
    %5822 = vmatpush1.xpose.msra.mxu0 0.0
    %5823 = vmatprep.subr.mxu0 0.0
    %5824 = vmatpush1.xpose.msra.mxu0 0.0
    %5825 = vmatprep.subr.mxu0 0.0
    %5826 = vmatpush1.xpose.msra.mxu0 0.0
    %5827 = vmatprep.subr.mxu0 0.0
    %5828 = vmatpush1.xpose.msra.mxu0 0.0
    %5829 = vmatprep.subr.mxu0 0.0
    %5830 = vmatpush1.xpose.msra.mxu0 0.0
    %5831 = vmatprep.subr.mxu0 0.0
    %5832 = vmatpush1.xpose.msra.mxu0 0.0
    %5833 = vmatprep.subr.mxu0 0.0
    %5834 = vmatpush1.xpose.msra.mxu0 0.0
    %5835 = vmatprep.subr.mxu0 0.0
    %5836 = vmatpush1.xpose.msra.mxu0 0.0
    %5837 = vmatprep.subr.mxu0 0.0
    %5838 = vmatpush1.xpose.msra.mxu0 0.0
    %5839 = vmatprep.subr.mxu0 0.0
    %5840 = vmatpush1.xpose.msra.mxu0 0.0
    %5841 = vmatprep.subr.mxu0 0.0
    %5842 = vmatpush1.xpose.msra.mxu0 0.0
    %5843 = vmatprep.subr.mxu0 0.0
    %5844 = vmatpush1.xpose.msra.mxu0 0.0
    %5845 = vmatprep.subr.mxu0 0.0
    %5846 = vmatpush1.xpose.msra.mxu0 0.0
    %5847 = vmatprep.subr.mxu0 0.0
    %5848 = vmatpush1.xpose.msra.mxu0 0.0
    %5849 = vmatprep.subr.mxu0 0.0
    %5850 = vmatpush1.xpose.msra.mxu0 0.0
    %5851 = vmatprep.subr.mxu0 0.0
    %5852 = vmatpush1.xpose.msra.mxu0 0.0
    %5853 = vmatprep.subr.mxu0 0.0
    %5854 = vmatpush1.xpose.msra.mxu0 0.0
    %5855 = vmatprep.subr.mxu0 0.0
    %5856 = vmatpush1.xpose.msra.mxu0 0.0
    %5857 = vmatprep.subr.mxu0 0.0
    %5858 = vmatpush1.xpose.msra.mxu0 0.0
    %5859 = vmatprep.subr.mxu0 0.0
    %5860 = vmatpush1.xpose.msra.mxu0 0.0
    %5861 = vmatprep.subr.mxu0 0.0
    %5862 = vmatpush1.xpose.msra.mxu0 0.0
    %5863 = vmatprep.subr.mxu0 0.0
    %5864 = vmatpush1.xpose.msra.mxu0 0.0
    %5865 = vmatprep.subr.mxu0 0.0
    %5866 = vmatpush1.xpose.msra.mxu0 0.0
    %5867 = vmatprep.subr.mxu0 0.0
    %5868 = vmatpush1.xpose.msra.mxu0 0.0
    %5869 = vmatprep.subr.mxu0 0.0
    %5870 = vmatpush1.xpose.msra.mxu0 0.0
    %5871 = vmatprep.subr.mxu0 0.0
    %5872 = vmatpush1.xpose.msra.mxu0 0.0
    %5873 = vmatprep.subr.mxu0 0.0
    %5874 = vmatpush1.xpose.msra.mxu0 0.0
    %5875 = vmatprep.subr.mxu0 0.0
    %5876 = vmatpush1.xpose.msra.mxu0 0.0
    %5877 = vmatprep.subr.mxu0 0.0
    %5878 = vmatpush1.xpose.msra.mxu0 0.0
    %5879 = vmatprep.subr.mxu0 0.0
    %5880 = vmatpush1.xpose.msra.mxu0 0.0
    %5881 = vmatprep.mubr.f32.mxu0 0.0
    %5882 = vmatmul.mubr.f32.gmra.mrb[0].mxu0 %v5811
    %v5883 = vpop.f32.mrb[0].mxu0
    %v5884 = vadd.f32 0.0, %v5883
    %v5885 = vpop.f32.mrb[0].mxu0
    %5886 = vdwg.mxu0
    %5887 = vrot.lane.b32.xlu0 %v2288, 96
    %v5888 = vpop.permute.xlu0 %5887
    %5889 = vrot.lane.b32.xlu0 %v2290, 96
    %v5890 = vpop.permute.xlu0 %5889
    %v5892 = vsel %vm705, %v5639, 0
    %v5894 = vsel %vm705, %v5888, 0
    %v5896 = vsel %vm705, %v5890, 0
    %5898 = vmatprep.subr.mxu0 0.0
    %5899 = vmatpush1.xpose.msra.mxu0 %v5894
    %5900 = vmatprep.subr.mxu0 0.0
    %5901 = vmatpush1.xpose.msra.mxu0 %v5896
    %5902 = vmatprep.subr.mxu0 0.0
    %5903 = vmatpush1.xpose.msra.mxu0 0.0
    %5904 = vmatprep.subr.mxu0 0.0
    %5905 = vmatpush1.xpose.msra.mxu0 0.0
    %5906 = vmatprep.subr.mxu0 0.0
    %5907 = vmatpush1.xpose.msra.mxu0 0.0
    %5908 = vmatprep.subr.mxu0 0.0
    %5909 = vmatpush1.xpose.msra.mxu0 0.0
    %5910 = vmatprep.subr.mxu0 0.0
    %5911 = vmatpush1.xpose.msra.mxu0 0.0
    %5912 = vmatprep.subr.mxu0 0.0
    %5913 = vmatpush1.xpose.msra.mxu0 0.0
    %5914 = vmatprep.subr.mxu0 0.0
    %5915 = vmatpush1.xpose.msra.mxu0 0.0
    %5916 = vmatprep.subr.mxu0 0.0
    %5917 = vmatpush1.xpose.msra.mxu0 0.0
    %5918 = vmatprep.subr.mxu0 0.0
    %5919 = vmatpush1.xpose.msra.mxu0 0.0
    %5920 = vmatprep.subr.mxu0 0.0
    %5921 = vmatpush1.xpose.msra.mxu0 0.0
    %5922 = vmatprep.subr.mxu0 0.0
    %5923 = vmatpush1.xpose.msra.mxu0 0.0
    %5924 = vmatprep.subr.mxu0 0.0
    %5925 = vmatpush1.xpose.msra.mxu0 0.0
    %5926 = vmatprep.subr.mxu0 0.0
    %5927 = vmatpush1.xpose.msra.mxu0 0.0
    %5928 = vmatprep.subr.mxu0 0.0
    %5929 = vmatpush1.xpose.msra.mxu0 0.0
    %5930 = vmatprep.subr.mxu0 0.0
    %5931 = vmatpush1.xpose.msra.mxu0 0.0
    %5932 = vmatprep.subr.mxu0 0.0
    %5933 = vmatpush1.xpose.msra.mxu0 0.0
    %5934 = vmatprep.subr.mxu0 0.0
    %5935 = vmatpush1.xpose.msra.mxu0 0.0
    %5936 = vmatprep.subr.mxu0 0.0
    %5937 = vmatpush1.xpose.msra.mxu0 0.0
    %5938 = vmatprep.subr.mxu0 0.0
    %5939 = vmatpush1.xpose.msra.mxu0 0.0
    %5940 = vmatprep.subr.mxu0 0.0
    %5941 = vmatpush1.xpose.msra.mxu0 0.0
    %5942 = vmatprep.subr.mxu0 0.0
    %5943 = vmatpush1.xpose.msra.mxu0 0.0
    %5944 = vmatprep.subr.mxu0 0.0
    %5945 = vmatpush1.xpose.msra.mxu0 0.0
    %5946 = vmatprep.subr.mxu0 0.0
    %5947 = vmatpush1.xpose.msra.mxu0 0.0
    %5948 = vmatprep.subr.mxu0 0.0
    %5949 = vmatpush1.xpose.msra.mxu0 0.0
    %5950 = vmatprep.subr.mxu0 0.0
    %5951 = vmatpush1.xpose.msra.mxu0 0.0
    %5952 = vmatprep.subr.mxu0 0.0
    %5953 = vmatpush1.xpose.msra.mxu0 0.0
    %5954 = vmatprep.subr.mxu0 0.0
    %5955 = vmatpush1.xpose.msra.mxu0 0.0
    %5956 = vmatprep.subr.mxu0 0.0
    %5957 = vmatpush1.xpose.msra.mxu0 0.0
    %5958 = vmatprep.subr.mxu0 0.0
    %5959 = vmatpush1.xpose.msra.mxu0 0.0
    %5960 = vmatprep.subr.mxu0 0.0
    %5961 = vmatpush1.xpose.msra.mxu0 0.0
    %5962 = vmatprep.mubr.f32.mxu0 0.0
    %5963 = vmatmul.mubr.f32.gmra.mrb[0].mxu0 %v5892
    %v5964 = vpop.f32.mrb[0].mxu0
    %v5965 = vadd.f32 0.0, %v5964
    %v5966 = vpop.f32.mrb[0].mxu0
    %5967 = vdwg.mxu0
    %5968 = vrot.lane.b32.xlu0 %v2292, 96
    %v5969 = vpop.permute.xlu0 %5968
    %5970 = vrot.lane.b32.xlu0 %v2294, 96
    %v5971 = vpop.permute.xlu0 %5970
    %v5973 = vsel %vm705, %v5640, 0
    %v5975 = vsel %vm705, %v5969, 0
    %v5977 = vsel %vm705, %v5971, 0
    %5979 = vmatprep.subr.mxu0 0.0
    %5980 = vmatpush1.xpose.msra.mxu0 %v5975
    %5981 = vmatprep.subr.mxu0 0.0
    %5982 = vmatpush1.xpose.msra.mxu0 %v5977
    %5983 = vmatprep.subr.mxu0 0.0
    %5984 = vmatpush1.xpose.msra.mxu0 0.0
    %5985 = vmatprep.subr.mxu0 0.0
    %5986 = vmatpush1.xpose.msra.mxu0 0.0
    %5987 = vmatprep.subr.mxu0 0.0
    %5988 = vmatpush1.xpose.msra.mxu0 0.0
    %5989 = vmatprep.subr.mxu0 0.0
    %5990 = vmatpush1.xpose.msra.mxu0 0.0
    %5991 = vmatprep.subr.mxu0 0.0
    %5992 = vmatpush1.xpose.msra.mxu0 0.0
    %5993 = vmatprep.subr.mxu0 0.0
    %5994 = vmatpush1.xpose.msra.mxu0 0.0
    %5995 = vmatprep.subr.mxu0 0.0
    %5996 = vmatpush1.xpose.msra.mxu0 0.0
    %5997 = vmatprep.subr.mxu0 0.0
    %5998 = vmatpush1.xpose.msra.mxu0 0.0
    %5999 = vmatprep.subr.mxu0 0.0
    %6000 = vmatpush1.xpose.msra.mxu0 0.0
    %6001 = vmatprep.subr.mxu0 0.0
    %6002 = vmatpush1.xpose.msra.mxu0 0.0
    %6003 = vmatprep.subr.mxu0 0.0
    %6004 = vmatpush1.xpose.msra.mxu0 0.0
    %6005 = vmatprep.subr.mxu0 0.0
    %6006 = vmatpush1.xpose.msra.mxu0 0.0
    %6007 = vmatprep.subr.mxu0 0.0
    %6008 = vmatpush1.xpose.msra.mxu0 0.0
    %6009 = vmatprep.subr.mxu0 0.0
    %6010 = vmatpush1.xpose.msra.mxu0 0.0
    %6011 = vmatprep.subr.mxu0 0.0
    %6012 = vmatpush1.xpose.msra.mxu0 0.0
    %6013 = vmatprep.subr.mxu0 0.0
    %6014 = vmatpush1.xpose.msra.mxu0 0.0
    %6015 = vmatprep.subr.mxu0 0.0
    %6016 = vmatpush1.xpose.msra.mxu0 0.0
    %6017 = vmatprep.subr.mxu0 0.0
    %6018 = vmatpush1.xpose.msra.mxu0 0.0
    %6019 = vmatprep.subr.mxu0 0.0
    %6020 = vmatpush1.xpose.msra.mxu0 0.0
    %6021 = vmatprep.subr.mxu0 0.0
    %6022 = vmatpush1.xpose.msra.mxu0 0.0
    %6023 = vmatprep.subr.mxu0 0.0
    %6024 = vmatpush1.xpose.msra.mxu0 0.0
    %6025 = vmatprep.subr.mxu0 0.0
    %6026 = vmatpush1.xpose.msra.mxu0 0.0
    %6027 = vmatprep.subr.mxu0 0.0
    %6028 = vmatpush1.xpose.msra.mxu0 0.0
    %6029 = vmatprep.subr.mxu0 0.0
    %6030 = vmatpush1.xpose.msra.mxu0 0.0
    %6031 = vmatprep.subr.mxu0 0.0
    %6032 = vmatpush1.xpose.msra.mxu0 0.0
    %6033 = vmatprep.subr.mxu0 0.0
    %6034 = vmatpush1.xpose.msra.mxu0 0.0
    %6035 = vmatprep.subr.mxu0 0.0
    %6036 = vmatpush1.xpose.msra.mxu0 0.0
    %6037 = vmatprep.subr.mxu0 0.0
    %6038 = vmatpush1.xpose.msra.mxu0 0.0
    %6039 = vmatprep.subr.mxu0 0.0
    %6040 = vmatpush1.xpose.msra.mxu0 0.0
    %6041 = vmatprep.subr.mxu0 0.0
    %6042 = vmatpush1.xpose.msra.mxu0 0.0
    %6043 = vmatprep.mubr.f32.mxu0 0.0
    %6044 = vmatmul.mubr.f32.gmra.mrb[0].mxu0 %v5973
    %v6045 = vpop.f32.mrb[0].mxu0
    %v6046 = vadd.f32 0.0, %v6045
    %v6047 = vpop.f32.mrb[0].mxu0
    %6048 = vdwg.mxu0
    %6049 = vrot.lane.b32.xlu0 %v2296, 96
    %v6050 = vpop.permute.xlu0 %6049
    %6051 = vrot.lane.b32.xlu0 %v2298, 96
    %v6052 = vpop.permute.xlu0 %6051
    %v6054 = vsel %vm705, %v5641, 0
    %v6056 = vsel %vm705, %v6050, 0
    %v6058 = vsel %vm705, %v6052, 0
    %6060 = vmatprep.subr.mxu0 0.0
    %6061 = vmatpush1.xpose.msra.mxu0 %v6056
    %6062 = vmatprep.subr.mxu0 0.0
    %6063 = vmatpush1.xpose.msra.mxu0 %v6058
    %6064 = vmatprep.subr.mxu0 0.0
    %6065 = vmatpush1.xpose.msra.mxu0 0.0
    %6066 = vmatprep.subr.mxu0 0.0
    %6067 = vmatpush1.xpose.msra.mxu0 0.0
    %6068 = vmatprep.subr.mxu0 0.0
    %6069 = vmatpush1.xpose.msra.mxu0 0.0
    %6070 = vmatprep.subr.mxu0 0.0
    %6071 = vmatpush1.xpose.msra.mxu0 0.0
    %6072 = vmatprep.subr.mxu0 0.0
    %6073 = vmatpush1.xpose.msra.mxu0 0.0
    %6074 = vmatprep.subr.mxu0 0.0
    %6075 = vmatpush1.xpose.msra.mxu0 0.0
    %6076 = vmatprep.subr.mxu0 0.0
    %6077 = vmatpush1.xpose.msra.mxu0 0.0
    %6078 = vmatprep.subr.mxu0 0.0
    %6079 = vmatpush1.xpose.msra.mxu0 0.0
    %6080 = vmatprep.subr.mxu0 0.0
    %6081 = vmatpush1.xpose.msra.mxu0 0.0
    %6082 = vmatprep.subr.mxu0 0.0
    %6083 = vmatpush1.xpose.msra.mxu0 0.0
    %6084 = vmatprep.subr.mxu0 0.0
    %6085 = vmatpush1.xpose.msra.mxu0 0.0
    %6086 = vmatprep.subr.mxu0 0.0
    %6087 = vmatpush1.xpose.msra.mxu0 0.0
    %6088 = vmatprep.subr.mxu0 0.0
    %6089 = vmatpush1.xpose.msra.mxu0 0.0
    %6090 = vmatprep.subr.mxu0 0.0
    %6091 = vmatpush1.xpose.msra.mxu0 0.0
    %6092 = vmatprep.subr.mxu0 0.0
    %6093 = vmatpush1.xpose.msra.mxu0 0.0
    %6094 = vmatprep.subr.mxu0 0.0
    %6095 = vmatpush1.xpose.msra.mxu0 0.0
    %6096 = vmatprep.subr.mxu0 0.0
    %6097 = vmatpush1.xpose.msra.mxu0 0.0
    %6098 = vmatprep.subr.mxu0 0.0
    %6099 = vmatpush1.xpose.msra.mxu0 0.0
    %6100 = vmatprep.subr.mxu0 0.0
    %6101 = vmatpush1.xpose.msra.mxu0 0.0
    %6102 = vmatprep.subr.mxu0 0.0
    %6103 = vmatpush1.xpose.msra.mxu0 0.0
    %6104 = vmatprep.subr.mxu0 0.0
    %6105 = vmatpush1.xpose.msra.mxu0 0.0
    %6106 = vmatprep.subr.mxu0 0.0
    %6107 = vmatpush1.xpose.msra.mxu0 0.0
    %6108 = vmatprep.subr.mxu0 0.0
    %6109 = vmatpush1.xpose.msra.mxu0 0.0
    %6110 = vmatprep.subr.mxu0 0.0
    %6111 = vmatpush1.xpose.msra.mxu0 0.0
    %6112 = vmatprep.subr.mxu0 0.0
    %6113 = vmatpush1.xpose.msra.mxu0 0.0
    %6114 = vmatprep.subr.mxu0 0.0
    %6115 = vmatpush1.xpose.msra.mxu0 0.0
    %6116 = vmatprep.subr.mxu0 0.0
    %6117 = vmatpush1.xpose.msra.mxu0 0.0
    %6118 = vmatprep.subr.mxu0 0.0
    %6119 = vmatpush1.xpose.msra.mxu0 0.0
    %6120 = vmatprep.subr.mxu0 0.0
    %6121 = vmatpush1.xpose.msra.mxu0 0.0
    %6122 = vmatprep.subr.mxu0 0.0
    %6123 = vmatpush1.xpose.msra.mxu0 0.0
    %6124 = vmatprep.mubr.f32.mxu0 0.0
    %6125 = vmatmul.mubr.f32.gmra.mrb[0].mxu0 %v6054
    %v6126 = vpop.f32.mrb[0].mxu0
    %v6127 = vadd.f32 0.0, %v6126
    %v6128 = vpop.f32.mrb[0].mxu0
    %6129 = vdwg.mxu0
    %6130 = vrot.lane.b32.xlu0 %v2300, 96
    %v6131 = vpop.permute.xlu0 %6130
    %6132 = vrot.lane.b32.xlu0 %v2302, 96
    %v6133 = vpop.permute.xlu0 %6132
    %v6135 = vsel %vm705, %v5642, 0
    %v6137 = vsel %vm705, %v6131, 0
    %v6139 = vsel %vm705, %v6133, 0
    %6141 = vmatprep.subr.mxu0 0.0
    %6142 = vmatpush1.xpose.msra.mxu0 %v6137
    %6143 = vmatprep.subr.mxu0 0.0
    %6144 = vmatpush1.xpose.msra.mxu0 %v6139
    %6145 = vmatprep.subr.mxu0 0.0
    %6146 = vmatpush1.xpose.msra.mxu0 0.0
    %6147 = vmatprep.subr.mxu0 0.0
    %6148 = vmatpush1.xpose.msra.mxu0 0.0
    %6149 = vmatprep.subr.mxu0 0.0
    %6150 = vmatpush1.xpose.msra.mxu0 0.0
    %6151 = vmatprep.subr.mxu0 0.0
    %6152 = vmatpush1.xpose.msra.mxu0 0.0
    %6153 = vmatprep.subr.mxu0 0.0
    %6154 = vmatpush1.xpose.msra.mxu0 0.0
    %6155 = vmatprep.subr.mxu0 0.0
    %6156 = vmatpush1.xpose.msra.mxu0 0.0
    %6157 = vmatprep.subr.mxu0 0.0
    %6158 = vmatpush1.xpose.msra.mxu0 0.0
    %6159 = vmatprep.subr.mxu0 0.0
    %6160 = vmatpush1.xpose.msra.mxu0 0.0
    %6161 = vmatprep.subr.mxu0 0.0
    %6162 = vmatpush1.xpose.msra.mxu0 0.0
    %6163 = vmatprep.subr.mxu0 0.0
    %6164 = vmatpush1.xpose.msra.mxu0 0.0
    %6165 = vmatprep.subr.mxu0 0.0
    %6166 = vmatpush1.xpose.msra.mxu0 0.0
    %6167 = vmatprep.subr.mxu0 0.0
    %6168 = vmatpush1.xpose.msra.mxu0 0.0
    %6169 = vmatprep.subr.mxu0 0.0
    %6170 = vmatpush1.xpose.msra.mxu0 0.0
    %6171 = vmatprep.subr.mxu0 0.0
    %6172 = vmatpush1.xpose.msra.mxu0 0.0
    %6173 = vmatprep.subr.mxu0 0.0
    %6174 = vmatpush1.xpose.msra.mxu0 0.0
    %6175 = vmatprep.subr.mxu0 0.0
    %6176 = vmatpush1.xpose.msra.mxu0 0.0
    %6177 = vmatprep.subr.mxu0 0.0
    %6178 = vmatpush1.xpose.msra.mxu0 0.0
    %6179 = vmatprep.subr.mxu0 0.0
    %6180 = vmatpush1.xpose.msra.mxu0 0.0
    %6181 = vmatprep.subr.mxu0 0.0
    %6182 = vmatpush1.xpose.msra.mxu0 0.0
    %6183 = vmatprep.subr.mxu0 0.0
    %6184 = vmatpush1.xpose.msra.mxu0 0.0
    %6185 = vmatprep.subr.mxu0 0.0
    %6186 = vmatpush1.xpose.msra.mxu0 0.0
    %6187 = vmatprep.subr.mxu0 0.0
    %6188 = vmatpush1.xpose.msra.mxu0 0.0
    %6189 = vmatprep.subr.mxu0 0.0
    %6190 = vmatpush1.xpose.msra.mxu0 0.0
    %6191 = vmatprep.subr.mxu0 0.0
    %6192 = vmatpush1.xpose.msra.mxu0 0.0
    %6193 = vmatprep.subr.mxu0 0.0
    %6194 = vmatpush1.xpose.msra.mxu0 0.0
    %6195 = vmatprep.subr.mxu0 0.0
    %6196 = vmatpush1.xpose.msra.mxu0 0.0
    %6197 = vmatprep.subr.mxu0 0.0
    %6198 = vmatpush1.xpose.msra.mxu0 0.0
    %6199 = vmatprep.subr.mxu0 0.0
    %6200 = vmatpush1.xpose.msra.mxu0 0.0
    %6201 = vmatprep.subr.mxu0 0.0
    %6202 = vmatpush1.xpose.msra.mxu0 0.0
    %6203 = vmatprep.subr.mxu0 0.0
    %6204 = vmatpush1.xpose.msra.mxu0 0.0
    %6205 = vmatprep.mubr.f32.mxu0 0.0
    %6206 = vmatmul.mubr.f32.gmra.mrb[0].mxu0 %v6135
    %v6207 = vpop.f32.mrb[0].mxu0
    %v6208 = vadd.f32 0.0, %v6207
    %v6209 = vpop.f32.mrb[0].mxu0
    %6210 = vdwg.mxu0
    %6211 = vrot.lane.b32.xlu0 %v2304, 96
    %v6212 = vpop.permute.xlu0 %6211
    %6213 = vrot.lane.b32.xlu0 %v2306, 96
    %v6214 = vpop.permute.xlu0 %6213
    %v6216 = vsel %vm705, %v5643, 0
    %v6218 = vsel %vm705, %v6212, 0
    %v6220 = vsel %vm705, %v6214, 0
    %6222 = vmatprep.subr.mxu0 0.0
    %6223 = vmatpush1.xpose.msra.mxu0 %v6218
    %6224 = vmatprep.subr.mxu0 0.0
    %6225 = vmatpush1.xpose.msra.mxu0 %v6220
    %6226 = vmatprep.subr.mxu0 0.0
    %6227 = vmatpush1.xpose.msra.mxu0 0.0
    %6228 = vmatprep.subr.mxu0 0.0
    %6229 = vmatpush1.xpose.msra.mxu0 0.0
    %6230 = vmatprep.subr.mxu0 0.0
    %6231 = vmatpush1.xpose.msra.mxu0 0.0
    %6232 = vmatprep.subr.mxu0 0.0
    %6233 = vmatpush1.xpose.msra.mxu0 0.0
    %6234 = vmatprep.subr.mxu0 0.0
    %6235 = vmatpush1.xpose.msra.mxu0 0.0
    %6236 = vmatprep.subr.mxu0 0.0
    %6237 = vmatpush1.xpose.msra.mxu0 0.0
    %6238 = vmatprep.subr.mxu0 0.0
    %6239 = vmatpush1.xpose.msra.mxu0 0.0
    %6240 = vmatprep.subr.mxu0 0.0
    %6241 = vmatpush1.xpose.msra.mxu0 0.0
    %6242 = vmatprep.subr.mxu0 0.0
    %6243 = vmatpush1.xpose.msra.mxu0 0.0
    %6244 = vmatprep.subr.mxu0 0.0
    %6245 = vmatpush1.xpose.msra.mxu0 0.0
    %6246 = vmatprep.subr.mxu0 0.0
    %6247 = vmatpush1.xpose.msra.mxu0 0.0
    %6248 = vmatprep.subr.mxu0 0.0
    %6249 = vmatpush1.xpose.msra.mxu0 0.0
    %6250 = vmatprep.subr.mxu0 0.0
    %6251 = vmatpush1.xpose.msra.mxu0 0.0
    %6252 = vmatprep.subr.mxu0 0.0
    %6253 = vmatpush1.xpose.msra.mxu0 0.0
    %6254 = vmatprep.subr.mxu0 0.0
    %6255 = vmatpush1.xpose.msra.mxu0 0.0
    %6256 = vmatprep.subr.mxu0 0.0
    %6257 = vmatpush1.xpose.msra.mxu0 0.0
    %6258 = vmatprep.subr.mxu0 0.0
    %6259 = vmatpush1.xpose.msra.mxu0 0.0
    %6260 = vmatprep.subr.mxu0 0.0
    %6261 = vmatpush1.xpose.msra.mxu0 0.0
    %6262 = vmatprep.subr.mxu0 0.0
    %6263 = vmatpush1.xpose.msra.mxu0 0.0
    %6264 = vmatprep.subr.mxu0 0.0
    %6265 = vmatpush1.xpose.msra.mxu0 0.0
    %6266 = vmatprep.subr.mxu0 0.0
    %6267 = vmatpush1.xpose.msra.mxu0 0.0
    %6268 = vmatprep.subr.mxu0 0.0
    %6269 = vmatpush1.xpose.msra.mxu0 0.0
    %6270 = vmatprep.subr.mxu0 0.0
    %6271 = vmatpush1.xpose.msra.mxu0 0.0
    %6272 = vmatprep.subr.mxu0 0.0
    %6273 = vmatpush1.xpose.msra.mxu0 0.0
    %6274 = vmatprep.subr.mxu0 0.0
    %6275 = vmatpush1.xpose.msra.mxu0 0.0
    %6276 = vmatprep.subr.mxu0 0.0
    %6277 = vmatpush1.xpose.msra.mxu0 0.0
    %6278 = vmatprep.subr.mxu0 0.0
    %6279 = vmatpush1.xpose.msra.mxu0 0.0
    %6280 = vmatprep.subr.mxu0 0.0
    %6281 = vmatpush1.xpose.msra.mxu0 0.0
    %6282 = vmatprep.subr.mxu0 0.0
    %6283 = vmatpush1.xpose.msra.mxu0 0.0
    %6284 = vmatprep.subr.mxu0 0.0
    %6285 = vmatpush1.xpose.msra.mxu0 0.0
    %6286 = vmatprep.mubr.f32.mxu0 0.0
    %6287 = vmatmul.mubr.f32.gmra.mrb[0].mxu0 %v6216
    %v6288 = vpop.f32.mrb[0].mxu0
    %v6289 = vadd.f32 0.0, %v6288
    %v6290 = vpop.f32.mrb[0].mxu0
    %6291 = vdwg.mxu0
    %v6292 = vsel %vm2018, %v5722, -inf
    %6293 = vmax.xlane.f32.xlu0 %v6292
    %v6294 = vpop.xlane.xlu0 %6293
    %v6295 = vsel %vm2018, %v5803, -inf
    %6296 = vmax.xlane.f32.xlu0 %v6295
    %v6297 = vpop.xlane.xlu0 %6296
    %v6298 = vsel %vm2018, %v5884, -inf
    %6299 = vmax.xlane.f32.xlu0 %v6298
    %v6300 = vpop.xlane.xlu0 %6299
    %v6301 = vsel %vm2018, %v5965, -inf
    %6302 = vmax.xlane.f32.xlu0 %v6301
    %v6303 = vpop.xlane.xlu0 %6302
    %v6304 = vsel %vm2018, %v6046, -inf
    %6305 = vmax.xlane.f32.xlu0 %v6304
    %v6306 = vpop.xlane.xlu0 %6305
    %v6307 = vsel %vm2018, %v6127, -inf
    %6308 = vmax.xlane.f32.xlu0 %v6307
    %v6309 = vpop.xlane.xlu0 %6308
    %v6310 = vsel %vm2018, %v6208, -inf
    %6311 = vmax.xlane.f32.xlu0 %v6310
    %v6312 = vpop.xlane.xlu0 %6311
    %v6313 = vsel %vm2018, %v6289, -inf
    %6314 = vmax.xlane.f32.xlu0 %v6313
    %v6315 = vpop.xlane.xlu0 %6314
    %v6316 = vsub.f32 %v5722, %v6294
    %v6317 = vsub.f32 %v5803, %v6297
    %v6318 = vsub.f32 %v5884, %v6300
    %v6319 = vsub.f32 %v5965, %v6303
    %v6320 = vsub.f32 %v6046, %v6306
    %v6321 = vsub.f32 %v6127, %v6309
    %v6322 = vsub.f32 %v6208, %v6312
    %v6323 = vsub.f32 %v6289, %v6315
    %v6324 = vmul.f32 %v6316, 1.442695
    %v6325 = vpow.pop %v6324
    %v6326 = vmul.f32 %v6317, 1.442695
    %v6327 = vpow.pop %v6326
    %v6328 = vmul.f32 %v6318, 1.442695
    %v6329 = vpow.pop %v6328
    %v6330 = vmul.f32 %v6319, 1.442695
    %v6331 = vpow.pop %v6330
    %v6332 = vmul.f32 %v6320, 1.442695
    %v6333 = vpow.pop %v6332
    %v6334 = vmul.f32 %v6321, 1.442695
    %v6335 = vpow.pop %v6334
    %v6336 = vmul.f32 %v6322, 1.442695
    %v6337 = vpow.pop %v6336
    %v6338 = vmul.f32 %v6323, 1.442695
    %v6339 = vpow.pop %v6338
    %v6340 = vsel %vm2018, %v6325, 0.0
    %6341 = vadd.xlane.f32.xlu0 %v6340
    %v6342 = vpop.xlane.xlu0 %6341
    %v6343 = vsel %vm2018, %v6327, 0.0
    %6344 = vadd.xlane.f32.xlu0 %v6343
    %v6345 = vpop.xlane.xlu0 %6344
    %v6346 = vsel %vm2018, %v6329, 0.0
    %6347 = vadd.xlane.f32.xlu0 %v6346
    %v6348 = vpop.xlane.xlu0 %6347
    %v6349 = vsel %vm2018, %v6331, 0.0
    %6350 = vadd.xlane.f32.xlu0 %v6349
    %v6351 = vpop.xlane.xlu0 %6350
    %v6352 = vsel %vm2018, %v6333, 0.0
    %6353 = vadd.xlane.f32.xlu0 %v6352
    %v6354 = vpop.xlane.xlu0 %6353
    %v6355 = vsel %vm2018, %v6335, 0.0
    %6356 = vadd.xlane.f32.xlu0 %v6355
    %v6357 = vpop.xlane.xlu0 %6356
    %v6358 = vsel %vm2018, %v6337, 0.0
    %6359 = vadd.xlane.f32.xlu0 %v6358
    %v6360 = vpop.xlane.xlu0 %6359
    %v6361 = vsel %vm2018, %v6339, 0.0
    %6362 = vadd.xlane.f32.xlu0 %v6361
    %v6363 = vpop.xlane.xlu0 %6362
    %v6364 = vrcp.pop %v6342
    %v6365 = vrcp.pop %v6345
    %v6366 = vrcp.pop %v6348
    %v6367 = vrcp.pop %v6351
    %v6368 = vrcp.pop %v6354
    %v6369 = vrcp.pop %v6357
    %v6370 = vrcp.pop %v6360
    %v6371 = vrcp.pop %v6363
    %v6372 = vmul.f32 %v6325, %v6364
    %v6373 = vmul.f32 %v6327, %v6365
    %v6374 = vmul.f32 %v6329, %v6366
    %v6375 = vmul.f32 %v6331, %v6367
    %v6376 = vmul.f32 %v6333, %v6368
    %v6377 = vmul.f32 %v6335, %v6369
    %v6378 = vmul.f32 %v6337, %v6370
    %v6379 = vmul.f32 %v6339, %v6371
    %6380 = vrot.lane.b32.xlu0 %v455, 96
    %v6381 = vpop.permute.xlu0 %6380
    %6382 = vrot.lane.b32.xlu0 %v460, 96
    %v6383 = vpop.permute.xlu0 %6382
    %v6387 = vsel %vm2018, %v6372, 0
    %6389 = vmatprep.subr.mxu0 0.0
    %6390 = vmatpush1.msra.mxu0 %v6381
    %6391 = vmatprep.subr.mxu0 0.0
    %6392 = vmatpush1.msra.mxu0 %v6383
    %6393 = vmatprep.subr.mxu0 0.0
    %6394 = vmatpush1.msra.mxu0 0.0
    %6395 = vmatprep.subr.mxu0 0.0
    %6396 = vmatpush1.msra.mxu0 0.0
    %6397 = vmatprep.subr.mxu0 0.0
    %6398 = vmatpush1.msra.mxu0 0.0
    %6399 = vmatprep.subr.mxu0 0.0
    %6400 = vmatpush1.msra.mxu0 0.0
    %6401 = vmatprep.subr.mxu0 0.0
    %6402 = vmatpush1.msra.mxu0 0.0
    %6403 = vmatprep.subr.mxu0 0.0
    %6404 = vmatpush1.msra.mxu0 0.0
    %6405 = vmatprep.subr.mxu0 0.0
    %6406 = vmatpush1.msra.mxu0 0.0
    %6407 = vmatprep.subr.mxu0 0.0
    %6408 = vmatpush1.msra.mxu0 0.0
    %6409 = vmatprep.subr.mxu0 0.0
    %6410 = vmatpush1.msra.mxu0 0.0
    %6411 = vmatprep.subr.mxu0 0.0
    %6412 = vmatpush1.msra.mxu0 0.0
    %6413 = vmatprep.subr.mxu0 0.0
    %6414 = vmatpush1.msra.mxu0 0.0
    %6415 = vmatprep.subr.mxu0 0.0
    %6416 = vmatpush1.msra.mxu0 0.0
    %6417 = vmatprep.subr.mxu0 0.0
    %6418 = vmatpush1.msra.mxu0 0.0
    %6419 = vmatprep.subr.mxu0 0.0
    %6420 = vmatpush1.msra.mxu0 0.0
    %6421 = vmatprep.subr.mxu0 0.0
    %6422 = vmatpush1.msra.mxu0 0.0
    %6423 = vmatprep.subr.mxu0 0.0
    %6424 = vmatpush1.msra.mxu0 0.0
    %6425 = vmatprep.subr.mxu0 0.0
    %6426 = vmatpush1.msra.mxu0 0.0
    %6427 = vmatprep.subr.mxu0 0.0
    %6428 = vmatpush1.msra.mxu0 0.0
    %6429 = vmatprep.subr.mxu0 0.0
    %6430 = vmatpush1.msra.mxu0 0.0
    %6431 = vmatprep.subr.mxu0 0.0
    %6432 = vmatpush1.msra.mxu0 0.0
    %6433 = vmatprep.subr.mxu0 0.0
    %6434 = vmatpush1.msra.mxu0 0.0
    %6435 = vmatprep.subr.mxu0 0.0
    %6436 = vmatpush1.msra.mxu0 0.0
    %6437 = vmatprep.subr.mxu0 0.0
    %6438 = vmatpush1.msra.mxu0 0.0
    %6439 = vmatprep.subr.mxu0 0.0
    %6440 = vmatpush1.msra.mxu0 0.0
    %6441 = vmatprep.subr.mxu0 0.0
    %6442 = vmatpush1.msra.mxu0 0.0
    %6443 = vmatprep.subr.mxu0 0.0
    %6444 = vmatpush1.msra.mxu0 0.0
    %6445 = vmatprep.subr.mxu0 0.0
    %6446 = vmatpush1.msra.mxu0 0.0
    %6447 = vmatprep.subr.mxu0 0.0
    %6448 = vmatpush1.msra.mxu0 0.0
    %6449 = vmatprep.subr.mxu0 0.0
    %6450 = vmatpush1.msra.mxu0 0.0
    %6451 = vmatprep.subr.mxu0 0.0
    %6452 = vmatpush1.msra.mxu0 0.0
    %6453 = vmatprep.mubr.f32.mxu0 0.0
    %6454 = vmatmul.mubr.f32.gmra.mrb[0].mxu0 %v6387
    %v6455 = vpop.f32.mrb[0].mxu0
    %v6456 = vadd.f32 0.0, %v6455
    %v6457 = vpop.f32.mrb[0].mxu0
    %6458 = vdwg.mxu0
    %6459 = vrot.lane.b32.xlu0 %v465, 96
    %v6460 = vpop.permute.xlu0 %6459
    %6461 = vrot.lane.b32.xlu0 %v470, 96
    %v6462 = vpop.permute.xlu0 %6461
    %v6466 = vsel %vm2018, %v6373, 0
    %6468 = vmatprep.subr.mxu0 0.0
    %6469 = vmatpush1.msra.mxu0 %v6460
    %6470 = vmatprep.subr.mxu0 0.0
    %6471 = vmatpush1.msra.mxu0 %v6462
    %6472 = vmatprep.subr.mxu0 0.0
    %6473 = vmatpush1.msra.mxu0 0.0
    %6474 = vmatprep.subr.mxu0 0.0
    %6475 = vmatpush1.msra.mxu0 0.0
    %6476 = vmatprep.subr.mxu0 0.0
    %6477 = vmatpush1.msra.mxu0 0.0
    %6478 = vmatprep.subr.mxu0 0.0
    %6479 = vmatpush1.msra.mxu0 0.0
    %6480 = vmatprep.subr.mxu0 0.0
    %6481 = vmatpush1.msra.mxu0 0.0
    %6482 = vmatprep.subr.mxu0 0.0
    %6483 = vmatpush1.msra.mxu0 0.0
    %6484 = vmatprep.subr.mxu0 0.0
    %6485 = vmatpush1.msra.mxu0 0.0
    %6486 = vmatprep.subr.mxu0 0.0
    %6487 = vmatpush1.msra.mxu0 0.0
    %6488 = vmatprep.subr.mxu0 0.0
    %6489 = vmatpush1.msra.mxu0 0.0
    %6490 = vmatprep.subr.mxu0 0.0
    %6491 = vmatpush1.msra.mxu0 0.0
    %6492 = vmatprep.subr.mxu0 0.0
    %6493 = vmatpush1.msra.mxu0 0.0
    %6494 = vmatprep.subr.mxu0 0.0
    %6495 = vmatpush1.msra.mxu0 0.0
    %6496 = vmatprep.subr.mxu0 0.0
    %6497 = vmatpush1.msra.mxu0 0.0
    %6498 = vmatprep.subr.mxu0 0.0
    %6499 = vmatpush1.msra.mxu0 0.0
    %6500 = vmatprep.subr.mxu0 0.0
    %6501 = vmatpush1.msra.mxu0 0.0
    %6502 = vmatprep.subr.mxu0 0.0
    %6503 = vmatpush1.msra.mxu0 0.0
    %6504 = vmatprep.subr.mxu0 0.0
    %6505 = vmatpush1.msra.mxu0 0.0
    %6506 = vmatprep.subr.mxu0 0.0
    %6507 = vmatpush1.msra.mxu0 0.0
    %6508 = vmatprep.subr.mxu0 0.0
    %6509 = vmatpush1.msra.mxu0 0.0
    %6510 = vmatprep.subr.mxu0 0.0
    %6511 = vmatpush1.msra.mxu0 0.0
    %6512 = vmatprep.subr.mxu0 0.0
    %6513 = vmatpush1.msra.mxu0 0.0
    %6514 = vmatprep.subr.mxu0 0.0
    %6515 = vmatpush1.msra.mxu0 0.0
    %6516 = vmatprep.subr.mxu0 0.0
    %6517 = vmatpush1.msra.mxu0 0.0
    %6518 = vmatprep.subr.mxu0 0.0
    %6519 = vmatpush1.msra.mxu0 0.0
    %6520 = vmatprep.subr.mxu0 0.0
    %6521 = vmatpush1.msra.mxu0 0.0
    %6522 = vmatprep.subr.mxu0 0.0
    %6523 = vmatpush1.msra.mxu0 0.0
    %6524 = vmatprep.subr.mxu0 0.0
    %6525 = vmatpush1.msra.mxu0 0.0
    %6526 = vmatprep.subr.mxu0 0.0
    %6527 = vmatpush1.msra.mxu0 0.0
    %6528 = vmatprep.subr.mxu0 0.0
    %6529 = vmatpush1.msra.mxu0 0.0
    %6530 = vmatprep.subr.mxu0 0.0
    %6531 = vmatpush1.msra.mxu0 0.0
    %6532 = vmatprep.mubr.f32.mxu0 0.0
    %6533 = vmatmul.mubr.f32.gmra.mrb[0].mxu0 %v6466
    %v6534 = vpop.f32.mrb[0].mxu0
    %v6535 = vadd.f32 0.0, %v6534
    %v6536 = vpop.f32.mrb[0].mxu0
    %6537 = vdwg.mxu0
    %6538 = vrot.lane.b32.xlu0 %v2312, 96
    %v6539 = vpop.permute.xlu0 %6538
    %6540 = vrot.lane.b32.xlu0 %v2314, 96
    %v6541 = vpop.permute.xlu0 %6540
    %v6545 = vsel %vm2018, %v6374, 0
    %6547 = vmatprep.subr.mxu0 0.0
    %6548 = vmatpush1.msra.mxu0 %v6539
    %6549 = vmatprep.subr.mxu0 0.0
    %6550 = vmatpush1.msra.mxu0 %v6541
    %6551 = vmatprep.subr.mxu0 0.0
    %6552 = vmatpush1.msra.mxu0 0.0
    %6553 = vmatprep.subr.mxu0 0.0
    %6554 = vmatpush1.msra.mxu0 0.0
    %6555 = vmatprep.subr.mxu0 0.0
    %6556 = vmatpush1.msra.mxu0 0.0
    %6557 = vmatprep.subr.mxu0 0.0
    %6558 = vmatpush1.msra.mxu0 0.0
    %6559 = vmatprep.subr.mxu0 0.0
    %6560 = vmatpush1.msra.mxu0 0.0
    %6561 = vmatprep.subr.mxu0 0.0
    %6562 = vmatpush1.msra.mxu0 0.0
    %6563 = vmatprep.subr.mxu0 0.0
    %6564 = vmatpush1.msra.mxu0 0.0
    %6565 = vmatprep.subr.mxu0 0.0
    %6566 = vmatpush1.msra.mxu0 0.0
    %6567 = vmatprep.subr.mxu0 0.0
    %6568 = vmatpush1.msra.mxu0 0.0
    %6569 = vmatprep.subr.mxu0 0.0
    %6570 = vmatpush1.msra.mxu0 0.0
    %6571 = vmatprep.subr.mxu0 0.0
    %6572 = vmatpush1.msra.mxu0 0.0
    %6573 = vmatprep.subr.mxu0 0.0
    %6574 = vmatpush1.msra.mxu0 0.0
    %6575 = vmatprep.subr.mxu0 0.0
    %6576 = vmatpush1.msra.mxu0 0.0
    %6577 = vmatprep.subr.mxu0 0.0
    %6578 = vmatpush1.msra.mxu0 0.0
    %6579 = vmatprep.subr.mxu0 0.0
    %6580 = vmatpush1.msra.mxu0 0.0
    %6581 = vmatprep.subr.mxu0 0.0
    %6582 = vmatpush1.msra.mxu0 0.0
    %6583 = vmatprep.subr.mxu0 0.0
    %6584 = vmatpush1.msra.mxu0 0.0
    %6585 = vmatprep.subr.mxu0 0.0
    %6586 = vmatpush1.msra.mxu0 0.0
    %6587 = vmatprep.subr.mxu0 0.0
    %6588 = vmatpush1.msra.mxu0 0.0
    %6589 = vmatprep.subr.mxu0 0.0
    %6590 = vmatpush1.msra.mxu0 0.0
    %6591 = vmatprep.subr.mxu0 0.0
    %6592 = vmatpush1.msra.mxu0 0.0
    %6593 = vmatprep.subr.mxu0 0.0
    %6594 = vmatpush1.msra.mxu0 0.0
    %6595 = vmatprep.subr.mxu0 0.0
    %6596 = vmatpush1.msra.mxu0 0.0
    %6597 = vmatprep.subr.mxu0 0.0
    %6598 = vmatpush1.msra.mxu0 0.0
    %6599 = vmatprep.subr.mxu0 0.0
    %6600 = vmatpush1.msra.mxu0 0.0
    %6601 = vmatprep.subr.mxu0 0.0
    %6602 = vmatpush1.msra.mxu0 0.0
    %6603 = vmatprep.subr.mxu0 0.0
    %6604 = vmatpush1.msra.mxu0 0.0
    %6605 = vmatprep.subr.mxu0 0.0
    %6606 = vmatpush1.msra.mxu0 0.0
    %6607 = vmatprep.subr.mxu0 0.0
    %6608 = vmatpush1.msra.mxu0 0.0
    %6609 = vmatprep.subr.mxu0 0.0
    %6610 = vmatpush1.msra.mxu0 0.0
    %6611 = vmatprep.mubr.f32.mxu0 0.0
    %6612 = vmatmul.mubr.f32.gmra.mrb[0].mxu0 %v6545
    %v6613 = vpop.f32.mrb[0].mxu0
    %v6614 = vadd.f32 0.0, %v6613
    %v6615 = vpop.f32.mrb[0].mxu0
    %6616 = vdwg.mxu0
    %6617 = vrot.lane.b32.xlu0 %v2316, 96
    %v6618 = vpop.permute.xlu0 %6617
    %6619 = vrot.lane.b32.xlu0 %v2318, 96
    %v6620 = vpop.permute.xlu0 %6619
    %v6624 = vsel %vm2018, %v6375, 0
    %6626 = vmatprep.subr.mxu0 0.0
    %6627 = vmatpush1.msra.mxu0 %v6618
    %6628 = vmatprep.subr.mxu0 0.0
    %6629 = vmatpush1.msra.mxu0 %v6620
    %6630 = vmatprep.subr.mxu0 0.0
    %6631 = vmatpush1.msra.mxu0 0.0
    %6632 = vmatprep.subr.mxu0 0.0
    %6633 = vmatpush1.msra.mxu0 0.0
    %6634 = vmatprep.subr.mxu0 0.0
    %6635 = vmatpush1.msra.mxu0 0.0
    %6636 = vmatprep.subr.mxu0 0.0
    %6637 = vmatpush1.msra.mxu0 0.0
    %6638 = vmatprep.subr.mxu0 0.0
    %6639 = vmatpush1.msra.mxu0 0.0
    %6640 = vmatprep.subr.mxu0 0.0
    %6641 = vmatpush1.msra.mxu0 0.0
    %6642 = vmatprep.subr.mxu0 0.0
    %6643 = vmatpush1.msra.mxu0 0.0
    %6644 = vmatprep.subr.mxu0 0.0
    %6645 = vmatpush1.msra.mxu0 0.0
    %6646 = vmatprep.subr.mxu0 0.0
    %6647 = vmatpush1.msra.mxu0 0.0
    %6648 = vmatprep.subr.mxu0 0.0
    %6649 = vmatpush1.msra.mxu0 0.0
    %6650 = vmatprep.subr.mxu0 0.0
    %6651 = vmatpush1.msra.mxu0 0.0
    %6652 = vmatprep.subr.mxu0 0.0
    %6653 = vmatpush1.msra.mxu0 0.0
    %6654 = vmatprep.subr.mxu0 0.0
    %6655 = vmatpush1.msra.mxu0 0.0
    %6656 = vmatprep.subr.mxu0 0.0
    %6657 = vmatpush1.msra.mxu0 0.0
    %6658 = vmatprep.subr.mxu0 0.0
    %6659 = vmatpush1.msra.mxu0 0.0
    %6660 = vmatprep.subr.mxu0 0.0
    %6661 = vmatpush1.msra.mxu0 0.0
    %6662 = vmatprep.subr.mxu0 0.0
    %6663 = vmatpush1.msra.mxu0 0.0
    %6664 = vmatprep.subr.mxu0 0.0
    %6665 = vmatpush1.msra.mxu0 0.0
    %6666 = vmatprep.subr.mxu0 0.0
    %6667 = vmatpush1.msra.mxu0 0.0
    %6668 = vmatprep.subr.mxu0 0.0
    %6669 = vmatpush1.msra.mxu0 0.0
    %6670 = vmatprep.subr.mxu0 0.0
    %6671 = vmatpush1.msra.mxu0 0.0
    %6672 = vmatprep.subr.mxu0 0.0
    %6673 = vmatpush1.msra.mxu0 0.0
    %6674 = vmatprep.subr.mxu0 0.0
    %6675 = vmatpush1.msra.mxu0 0.0
    %6676 = vmatprep.subr.mxu0 0.0
    %6677 = vmatpush1.msra.mxu0 0.0
    %6678 = vmatprep.subr.mxu0 0.0
    %6679 = vmatpush1.msra.mxu0 0.0
    %6680 = vmatprep.subr.mxu0 0.0
    %6681 = vmatpush1.msra.mxu0 0.0
    %6682 = vmatprep.subr.mxu0 0.0
    %6683 = vmatpush1.msra.mxu0 0.0
    %6684 = vmatprep.subr.mxu0 0.0
    %6685 = vmatpush1.msra.mxu0 0.0
    %6686 = vmatprep.subr.mxu0 0.0
    %6687 = vmatpush1.msra.mxu0 0.0
    %6688 = vmatprep.subr.mxu0 0.0
    %6689 = vmatpush1.msra.mxu0 0.0
    %6690 = vmatprep.mubr.f32.mxu0 0.0
    %6691 = vmatmul.mubr.f32.gmra.mrb[0].mxu0 %v6624
    %v6692 = vpop.f32.mrb[0].mxu0
    %v6693 = vadd.f32 0.0, %v6692
    %v6694 = vpop.f32.mrb[0].mxu0
    %6695 = vdwg.mxu0
    %6696 = vrot.lane.b32.xlu0 %v2324, 96
    %v6697 = vpop.permute.xlu0 %6696
    %6698 = vrot.lane.b32.xlu0 %v2326, 96
    %v6699 = vpop.permute.xlu0 %6698
    %v6703 = vsel %vm2018, %v6376, 0
    %6705 = vmatprep.subr.mxu0 0.0
    %6706 = vmatpush1.msra.mxu0 %v6697
    %6707 = vmatprep.subr.mxu0 0.0
    %6708 = vmatpush1.msra.mxu0 %v6699
    %6709 = vmatprep.subr.mxu0 0.0
    %6710 = vmatpush1.msra.mxu0 0.0
    %6711 = vmatprep.subr.mxu0 0.0
    %6712 = vmatpush1.msra.mxu0 0.0
    %6713 = vmatprep.subr.mxu0 0.0
    %6714 = vmatpush1.msra.mxu0 0.0
    %6715 = vmatprep.subr.mxu0 0.0
    %6716 = vmatpush1.msra.mxu0 0.0
    %6717 = vmatprep.subr.mxu0 0.0
    %6718 = vmatpush1.msra.mxu0 0.0
    %6719 = vmatprep.subr.mxu0 0.0
    %6720 = vmatpush1.msra.mxu0 0.0
    %6721 = vmatprep.subr.mxu0 0.0
    %6722 = vmatpush1.msra.mxu0 0.0
    %6723 = vmatprep.subr.mxu0 0.0
    %6724 = vmatpush1.msra.mxu0 0.0
    %6725 = vmatprep.subr.mxu0 0.0
    %6726 = vmatpush1.msra.mxu0 0.0
    %6727 = vmatprep.subr.mxu0 0.0
    %6728 = vmatpush1.msra.mxu0 0.0
    %6729 = vmatprep.subr.mxu0 0.0
    %6730 = vmatpush1.msra.mxu0 0.0
    %6731 = vmatprep.subr.mxu0 0.0
    %6732 = vmatpush1.msra.mxu0 0.0
    %6733 = vmatprep.subr.mxu0 0.0
    %6734 = vmatpush1.msra.mxu0 0.0
    %6735 = vmatprep.subr.mxu0 0.0
    %6736 = vmatpush1.msra.mxu0 0.0
    %6737 = vmatprep.subr.mxu0 0.0
    %6738 = vmatpush1.msra.mxu0 0.0
    %6739 = vmatprep.subr.mxu0 0.0
    %6740 = vmatpush1.msra.mxu0 0.0
    %6741 = vmatprep.subr.mxu0 0.0
    %6742 = vmatpush1.msra.mxu0 0.0
    %6743 = vmatprep.subr.mxu0 0.0
    %6744 = vmatpush1.msra.mxu0 0.0
    %6745 = vmatprep.subr.mxu0 0.0
    %6746 = vmatpush1.msra.mxu0 0.0
    %6747 = vmatprep.subr.mxu0 0.0
    %6748 = vmatpush1.msra.mxu0 0.0
    %6749 = vmatprep.subr.mxu0 0.0
    %6750 = vmatpush1.msra.mxu0 0.0
    %6751 = vmatprep.subr.mxu0 0.0
    %6752 = vmatpush1.msra.mxu0 0.0
    %6753 = vmatprep.subr.mxu0 0.0
    %6754 = vmatpush1.msra.mxu0 0.0
    %6755 = vmatprep.subr.mxu0 0.0
    %6756 = vmatpush1.msra.mxu0 0.0
    %6757 = vmatprep.subr.mxu0 0.0
    %6758 = vmatpush1.msra.mxu0 0.0
    %6759 = vmatprep.subr.mxu0 0.0
    %6760 = vmatpush1.msra.mxu0 0.0
    %6761 = vmatprep.subr.mxu0 0.0
    %6762 = vmatpush1.msra.mxu0 0.0
    %6763 = vmatprep.subr.mxu0 0.0
    %6764 = vmatpush1.msra.mxu0 0.0
    %6765 = vmatprep.subr.mxu0 0.0
    %6766 = vmatpush1.msra.mxu0 0.0
    %6767 = vmatprep.subr.mxu0 0.0
    %6768 = vmatpush1.msra.mxu0 0.0
    %6769 = vmatprep.mubr.f32.mxu0 0.0
    %6770 = vmatmul.mubr.f32.gmra.mrb[0].mxu0 %v6703
    %v6771 = vpop.f32.mrb[0].mxu0
    %v6772 = vadd.f32 0.0, %v6771
    %v6773 = vpop.f32.mrb[0].mxu0
    %6774 = vdwg.mxu0
    %6775 = vrot.lane.b32.xlu0 %v2328, 96
    %v6776 = vpop.permute.xlu0 %6775
    %6777 = vrot.lane.b32.xlu0 %v2330, 96
    %v6778 = vpop.permute.xlu0 %6777
    %v6782 = vsel %vm2018, %v6377, 0
    %6784 = vmatprep.subr.mxu0 0.0
    %6785 = vmatpush1.msra.mxu0 %v6776
    %6786 = vmatprep.subr.mxu0 0.0
    %6787 = vmatpush1.msra.mxu0 %v6778
    %6788 = vmatprep.subr.mxu0 0.0
    %6789 = vmatpush1.msra.mxu0 0.0
    %6790 = vmatprep.subr.mxu0 0.0
    %6791 = vmatpush1.msra.mxu0 0.0
    %6792 = vmatprep.subr.mxu0 0.0
    %6793 = vmatpush1.msra.mxu0 0.0
    %6794 = vmatprep.subr.mxu0 0.0
    %6795 = vmatpush1.msra.mxu0 0.0
    %6796 = vmatprep.subr.mxu0 0.0
    %6797 = vmatpush1.msra.mxu0 0.0
    %6798 = vmatprep.subr.mxu0 0.0
    %6799 = vmatpush1.msra.mxu0 0.0
    %6800 = vmatprep.subr.mxu0 0.0
    %6801 = vmatpush1.msra.mxu0 0.0
    %6802 = vmatprep.subr.mxu0 0.0
    %6803 = vmatpush1.msra.mxu0 0.0
    %6804 = vmatprep.subr.mxu0 0.0
    %6805 = vmatpush1.msra.mxu0 0.0
    %6806 = vmatprep.subr.mxu0 0.0
    %6807 = vmatpush1.msra.mxu0 0.0
    %6808 = vmatprep.subr.mxu0 0.0
    %6809 = vmatpush1.msra.mxu0 0.0
    %6810 = vmatprep.subr.mxu0 0.0
    %6811 = vmatpush1.msra.mxu0 0.0
    %6812 = vmatprep.subr.mxu0 0.0
    %6813 = vmatpush1.msra.mxu0 0.0
    %6814 = vmatprep.subr.mxu0 0.0
    %6815 = vmatpush1.msra.mxu0 0.0
    %6816 = vmatprep.subr.mxu0 0.0
    %6817 = vmatpush1.msra.mxu0 0.0
    %6818 = vmatprep.subr.mxu0 0.0
    %6819 = vmatpush1.msra.mxu0 0.0
    %6820 = vmatprep.subr.mxu0 0.0
    %6821 = vmatpush1.msra.mxu0 0.0
    %6822 = vmatprep.subr.mxu0 0.0
    %6823 = vmatpush1.msra.mxu0 0.0
    %6824 = vmatprep.subr.mxu0 0.0
    %6825 = vmatpush1.msra.mxu0 0.0
    %6826 = vmatprep.subr.mxu0 0.0
    %6827 = vmatpush1.msra.mxu0 0.0
    %6828 = vmatprep.subr.mxu0 0.0
    %6829 = vmatpush1.msra.mxu0 0.0
    %6830 = vmatprep.subr.mxu0 0.0
    %6831 = vmatpush1.msra.mxu0 0.0
    %6832 = vmatprep.subr.mxu0 0.0
    %6833 = vmatpush1.msra.mxu0 0.0
    %6834 = vmatprep.subr.mxu0 0.0
    %6835 = vmatpush1.msra.mxu0 0.0
    %6836 = vmatprep.subr.mxu0 0.0
    %6837 = vmatpush1.msra.mxu0 0.0
    %6838 = vmatprep.subr.mxu0 0.0
    %6839 = vmatpush1.msra.mxu0 0.0
    %6840 = vmatprep.subr.mxu0 0.0
    %6841 = vmatpush1.msra.mxu0 0.0
    %6842 = vmatprep.subr.mxu0 0.0
    %6843 = vmatpush1.msra.mxu0 0.0
    %6844 = vmatprep.subr.mxu0 0.0
    %6845 = vmatpush1.msra.mxu0 0.0
    %6846 = vmatprep.subr.mxu0 0.0
    %6847 = vmatpush1.msra.mxu0 0.0
    %6848 = vmatprep.mubr.f32.mxu0 0.0
    %6849 = vmatmul.mubr.f32.gmra.mrb[0].mxu0 %v6782
    %v6850 = vpop.f32.mrb[0].mxu0
    %v6851 = vadd.f32 0.0, %v6850
    %v6852 = vpop.f32.mrb[0].mxu0
    %6853 = vdwg.mxu0
    %6854 = vrot.lane.b32.xlu0 %v2336, 96
    %v6855 = vpop.permute.xlu0 %6854
    %6856 = vrot.lane.b32.xlu0 %v2338, 96
    %v6857 = vpop.permute.xlu0 %6856
    %v6861 = vsel %vm2018, %v6378, 0
    %6863 = vmatprep.subr.mxu0 0.0
    %6864 = vmatpush1.msra.mxu0 %v6855
    %6865 = vmatprep.subr.mxu0 0.0
    %6866 = vmatpush1.msra.mxu0 %v6857
    %6867 = vmatprep.subr.mxu0 0.0
    %6868 = vmatpush1.msra.mxu0 0.0
    %6869 = vmatprep.subr.mxu0 0.0
    %6870 = vmatpush1.msra.mxu0 0.0
    %6871 = vmatprep.subr.mxu0 0.0
    %6872 = vmatpush1.msra.mxu0 0.0
    %6873 = vmatprep.subr.mxu0 0.0
    %6874 = vmatpush1.msra.mxu0 0.0
    %6875 = vmatprep.subr.mxu0 0.0
    %6876 = vmatpush1.msra.mxu0 0.0
    %6877 = vmatprep.subr.mxu0 0.0
    %6878 = vmatpush1.msra.mxu0 0.0
    %6879 = vmatprep.subr.mxu0 0.0
    %6880 = vmatpush1.msra.mxu0 0.0
    %6881 = vmatprep.subr.mxu0 0.0
    %6882 = vmatpush1.msra.mxu0 0.0
    %6883 = vmatprep.subr.mxu0 0.0
    %6884 = vmatpush1.msra.mxu0 0.0
    %6885 = vmatprep.subr.mxu0 0.0
    %6886 = vmatpush1.msra.mxu0 0.0
    %6887 = vmatprep.subr.mxu0 0.0
    %6888 = vmatpush1.msra.mxu0 0.0
    %6889 = vmatprep.subr.mxu0 0.0
    %6890 = vmatpush1.msra.mxu0 0.0
    %6891 = vmatprep.subr.mxu0 0.0
    %6892 = vmatpush1.msra.mxu0 0.0
    %6893 = vmatprep.subr.mxu0 0.0
    %6894 = vmatpush1.msra.mxu0 0.0
    %6895 = vmatprep.subr.mxu0 0.0
    %6896 = vmatpush1.msra.mxu0 0.0
    %6897 = vmatprep.subr.mxu0 0.0
    %6898 = vmatpush1.msra.mxu0 0.0
    %6899 = vmatprep.subr.mxu0 0.0
    %6900 = vmatpush1.msra.mxu0 0.0
    %6901 = vmatprep.subr.mxu0 0.0
    %6902 = vmatpush1.msra.mxu0 0.0
    %6903 = vmatprep.subr.mxu0 0.0
    %6904 = vmatpush1.msra.mxu0 0.0
    %6905 = vmatprep.subr.mxu0 0.0
    %6906 = vmatpush1.msra.mxu0 0.0
    %6907 = vmatprep.subr.mxu0 0.0
    %6908 = vmatpush1.msra.mxu0 0.0
    %6909 = vmatprep.subr.mxu0 0.0
    %6910 = vmatpush1.msra.mxu0 0.0
    %6911 = vmatprep.subr.mxu0 0.0
    %6912 = vmatpush1.msra.mxu0 0.0
    %6913 = vmatprep.subr.mxu0 0.0
    %6914 = vmatpush1.msra.mxu0 0.0
    %6915 = vmatprep.subr.mxu0 0.0
    %6916 = vmatpush1.msra.mxu0 0.0
    %6917 = vmatprep.subr.mxu0 0.0
    %6918 = vmatpush1.msra.mxu0 0.0
    %6919 = vmatprep.subr.mxu0 0.0
    %6920 = vmatpush1.msra.mxu0 0.0
    %6921 = vmatprep.subr.mxu0 0.0
    %6922 = vmatpush1.msra.mxu0 0.0
    %6923 = vmatprep.subr.mxu0 0.0
    %6924 = vmatpush1.msra.mxu0 0.0
    %6925 = vmatprep.subr.mxu0 0.0
    %6926 = vmatpush1.msra.mxu0 0.0
    %6927 = vmatprep.mubr.f32.mxu0 0.0
    %6928 = vmatmul.mubr.f32.gmra.mrb[0].mxu0 %v6861
    %v6929 = vpop.f32.mrb[0].mxu0
    %v6930 = vadd.f32 0.0, %v6929
    %v6931 = vpop.f32.mrb[0].mxu0
    %6932 = vdwg.mxu0
    %6933 = vrot.lane.b32.xlu0 %v2340, 96
    %v6934 = vpop.permute.xlu0 %6933
    %6935 = vrot.lane.b32.xlu0 %v2342, 96
    %v6936 = vpop.permute.xlu0 %6935
    %v6940 = vsel %vm2018, %v6379, 0
    %6942 = vmatprep.subr.mxu0 0.0
    %6943 = vmatpush1.msra.mxu0 %v6934
    %6944 = vmatprep.subr.mxu0 0.0
    %6945 = vmatpush1.msra.mxu0 %v6936
    %6946 = vmatprep.subr.mxu0 0.0
    %6947 = vmatpush1.msra.mxu0 0.0
    %6948 = vmatprep.subr.mxu0 0.0
    %6949 = vmatpush1.msra.mxu0 0.0
    %6950 = vmatprep.subr.mxu0 0.0
    %6951 = vmatpush1.msra.mxu0 0.0
    %6952 = vmatprep.subr.mxu0 0.0
    %6953 = vmatpush1.msra.mxu0 0.0
    %6954 = vmatprep.subr.mxu0 0.0
    %6955 = vmatpush1.msra.mxu0 0.0
    %6956 = vmatprep.subr.mxu0 0.0
    %6957 = vmatpush1.msra.mxu0 0.0
    %6958 = vmatprep.subr.mxu0 0.0
    %6959 = vmatpush1.msra.mxu0 0.0
    %6960 = vmatprep.subr.mxu0 0.0
    %6961 = vmatpush1.msra.mxu0 0.0
    %6962 = vmatprep.subr.mxu0 0.0
    %6963 = vmatpush1.msra.mxu0 0.0
    %6964 = vmatprep.subr.mxu0 0.0
    %6965 = vmatpush1.msra.mxu0 0.0
    %6966 = vmatprep.subr.mxu0 0.0
    %6967 = vmatpush1.msra.mxu0 0.0
    %6968 = vmatprep.subr.mxu0 0.0
    %6969 = vmatpush1.msra.mxu0 0.0
    %6970 = vmatprep.subr.mxu0 0.0
    %6971 = vmatpush1.msra.mxu0 0.0
    %6972 = vmatprep.subr.mxu0 0.0
    %6973 = vmatpush1.msra.mxu0 0.0
    %6974 = vmatprep.subr.mxu0 0.0
    %6975 = vmatpush1.msra.mxu0 0.0
    %6976 = vmatprep.subr.mxu0 0.0
    %6977 = vmatpush1.msra.mxu0 0.0
    %6978 = vmatprep.subr.mxu0 0.0
    %6979 = vmatpush1.msra.mxu0 0.0
    %6980 = vmatprep.subr.mxu0 0.0
    %6981 = vmatpush1.msra.mxu0 0.0
    %6982 = vmatprep.subr.mxu0 0.0
    %6983 = vmatpush1.msra.mxu0 0.0
    %6984 = vmatprep.subr.mxu0 0.0
    %6985 = vmatpush1.msra.mxu0 0.0
    %6986 = vmatprep.subr.mxu0 0.0
    %6987 = vmatpush1.msra.mxu0 0.0
    %6988 = vmatprep.subr.mxu0 0.0
    %6989 = vmatpush1.msra.mxu0 0.0
    %6990 = vmatprep.subr.mxu0 0.0
    %6991 = vmatpush1.msra.mxu0 0.0
    %6992 = vmatprep.subr.mxu0 0.0
    %6993 = vmatpush1.msra.mxu0 0.0
    %6994 = vmatprep.subr.mxu0 0.0
    %6995 = vmatpush1.msra.mxu0 0.0
    %6996 = vmatprep.subr.mxu0 0.0
    %6997 = vmatpush1.msra.mxu0 0.0
    %6998 = vmatprep.subr.mxu0 0.0
    %6999 = vmatpush1.msra.mxu0 0.0
    %7000 = vmatprep.subr.mxu0 0.0
    %7001 = vmatpush1.msra.mxu0 0.0
    %7002 = vmatprep.subr.mxu0 0.0
    %7003 = vmatpush1.msra.mxu0 0.0
    %7004 = vmatprep.subr.mxu0 0.0
    %7005 = vmatpush1.msra.mxu0 0.0
    %7006 = vmatprep.mubr.f32.mxu0 0.0
    %7007 = vmatmul.mubr.f32.gmra.mrb[0].mxu0 %v6940
    %v7008 = vpop.f32.mrb[0].mxu0
    %v7009 = vadd.f32 0.0, %v7008
    %v7010 = vpop.f32.mrb[0].mxu0
    %7011 = vdwg.mxu0
    %7014 = vrot.lane.b32.xlu0 %v6614, 8
    %v7015 = vpop.permute.xlu0 %7014
    %7016 = vrot.lane.b32.xlu0 %v6693, 8
    %v7017 = vpop.permute.xlu0 %7016
    %7022 = vrot.lane.b32.xlu0 %v6772, 16
    %v7023 = vpop.permute.xlu0 %7022
    %7024 = vrot.lane.b32.xlu0 %v6851, 16
    %v7025 = vpop.permute.xlu0 %7024
    %7030 = vrot.lane.b32.xlu0 %v6930, 24
    %v7031 = vpop.permute.xlu0 %7030
    %7032 = vrot.lane.b32.xlu0 %v7009, 24
    %v7033 = vpop.permute.xlu0 %7032
    %v7036 = vsel %vm705, %v6456, %v7015
    %v7037 = vsel %vm705, %v6535, %v7017
    %v7038 = vsel %vm2018, %v7036, %v7023
    %v7039 = vsel %vm2018, %v7037, %v7025
    %v7040 = vsel %vm2021, %v7038, %v7031
    %v7041 = vsel %vm2021, %v7039, %v7033
    %s7042 = scalar_lea.vmem [#allocation11], 224
    %v7043 = vld [vmem:[%s7042] sm:$0xff]
    %v7044 = vld [vmem:[%s7042 + $0x8] sm:$0xff]
    %v7045 = vld [vmem:[%s7042 + $0x10] sm:$0xff]
    %v7046 = vld [vmem:[%s7042 + $0x18] sm:$0xff]
    %v7047 = vld [vmem:[%s9 + $0xd] sm:$0x1]
    %v7048 = vlaneseq
    %v7049 = vshrl.u32 %v7048, 7
    %v7050 = vsub.s32 0, %v7049
    %v7051 = vrot.slane %v7047, %v7050
    %v7053 = vsel %vm174, %v7040, 0
    %v7056 = vsel %vm174, %v7041, 0
    %7058 = vmatprep.subr.mxu0 0.0
    %7059 = vmatpush1.msra.mxu0 %v7043
    %7060 = vmatprep.subr.mxu0 0.0
    %7061 = vmatpush1.msra.mxu0 %v7044
    %7062 = vmatprep.subr.mxu0 0.0
    %7063 = vmatpush1.msra.mxu0 %v7045
    %7064 = vmatprep.subr.mxu0 0.0
    %7065 = vmatpush1.msra.mxu0 %v7046
    %7066 = vmatprep.subr.mxu0 0.0
    %7067 = vmatpush1.msra.mxu0 0.0
    %7068 = vmatprep.subr.mxu0 0.0
    %7069 = vmatpush1.msra.mxu0 0.0
    %7070 = vmatprep.subr.mxu0 0.0
    %7071 = vmatpush1.msra.mxu0 0.0
    %7072 = vmatprep.subr.mxu0 0.0
    %7073 = vmatpush1.msra.mxu0 0.0
    %7074 = vmatprep.subr.mxu0 0.0
    %7075 = vmatpush1.msra.mxu0 0.0
    %7076 = vmatprep.subr.mxu0 0.0
    %7077 = vmatpush1.msra.mxu0 0.0
    %7078 = vmatprep.subr.mxu0 0.0
    %7079 = vmatpush1.msra.mxu0 0.0
    %7080 = vmatprep.subr.mxu0 0.0
    %7081 = vmatpush1.msra.mxu0 0.0
    %7082 = vmatprep.subr.mxu0 0.0
    %7083 = vmatpush1.msra.mxu0 0.0
    %7084 = vmatprep.subr.mxu0 0.0
    %7085 = vmatpush1.msra.mxu0 0.0
    %7086 = vmatprep.subr.mxu0 0.0
    %7087 = vmatpush1.msra.mxu0 0.0
    %7088 = vmatprep.subr.mxu0 0.0
    %7089 = vmatpush1.msra.mxu0 0.0
    %7090 = vmatprep.subr.mxu0 0.0
    %7091 = vmatpush1.msra.mxu0 0.0
    %7092 = vmatprep.subr.mxu0 0.0
    %7093 = vmatpush1.msra.mxu0 0.0
    %7094 = vmatprep.subr.mxu0 0.0
    %7095 = vmatpush1.msra.mxu0 0.0
    %7096 = vmatprep.subr.mxu0 0.0
    %7097 = vmatpush1.msra.mxu0 0.0
    %7098 = vmatprep.subr.mxu0 0.0
    %7099 = vmatpush1.msra.mxu0 0.0
    %7100 = vmatprep.subr.mxu0 0.0
    %7101 = vmatpush1.msra.mxu0 0.0
    %7102 = vmatprep.subr.mxu0 0.0
    %7103 = vmatpush1.msra.mxu0 0.0
    %7104 = vmatprep.subr.mxu0 0.0
    %7105 = vmatpush1.msra.mxu0 0.0
    %7106 = vmatprep.subr.mxu0 0.0
    %7107 = vmatpush1.msra.mxu0 0.0
    %7108 = vmatprep.subr.mxu0 0.0
    %7109 = vmatpush1.msra.mxu0 0.0
    %7110 = vmatprep.subr.mxu0 0.0
    %7111 = vmatpush1.msra.mxu0 0.0
    %7112 = vmatprep.subr.mxu0 0.0
    %7113 = vmatpush1.msra.mxu0 0.0
    %7114 = vmatprep.subr.mxu0 0.0
    %7115 = vmatpush1.msra.mxu0 0.0
    %7116 = vmatprep.subr.mxu0 0.0
    %7117 = vmatpush1.msra.mxu0 0.0
    %7118 = vmatprep.subr.mxu0 0.0
    %7119 = vmatpush1.msra.mxu0 0.0
    %7120 = vmatprep.subr.mxu0 0.0
    %7121 = vmatpush1.msra.mxu0 0.0
    %7122 = vmatprep.mubr.f32.mxu0 0.0
    %7123 = vmatmul.mubr.f32.gmra.mrb[0].mxu0 %v7053
    %v7124 = vpop.f32.mrb[0].mxu0
    %v7125 = vadd.f32 %v7051, %v7124
    %v7126 = vpop.f32.mrb[0].mxu0
    %7127 = vmatprep.mubr.f32.mxu0 0.0
    %7128 = vmatmul.mubr.f32.gmra.mrb[0].mxu0 %v7056
    %v7129 = vpop.f32.mrb[0].mxu0
    %v7130 = vadd.f32 %v7051, %v7129
    %v7131 = vpop.f32.mrb[0].mxu0
    %7132 = vdwg.mxu0
    %v7133 = vadd.f32 %v5521, %v7125
    %v7134 = vadd.f32 %v5522, %v7130
    %v7135 = vld [vmem:[%s9 + $0x10] sm:$0x1]
    %v7136 = vld [vmem:[%s9 + $0x11] sm:$0x1]
    %v7137 = vsel %vm174, %v7133, 0.0
    %7138 = vadd.xlane.f32.xlu0 %v7137
    %v7139 = vpop.xlane.xlu0 %7138
    %v7140 = vsel %vm174, %v7134, 0.0
    %7141 = vadd.xlane.f32.xlu0 %v7140
    %v7142 = vpop.xlane.xlu0 %7141
    %v7143 = vmul.f32 %v7139, %v2125
    %v7144 = vmul.f32 %v7142, %v2125
    %v7145 = vsub.f32 %v7133, %v7143
    %v7146 = vsub.f32 %v7134, %v7144
    %v7147 = vmul.f32 %v7145, %v7145
    %v7148 = vmul.f32 %v7146, %v7146
    %v7149 = vsel %vm174, %v7147, 0.0
    %7150 = vadd.xlane.f32.xlu0 %v7149
    %v7151 = vpop.xlane.xlu0 %7150
    %v7152 = vsel %vm174, %v7148, 0.0
    %7153 = vadd.xlane.f32.xlu0 %v7152
    %v7154 = vpop.xlane.xlu0 %7153
    %v7155 = vmul.f32 %v7151, %v2125
    %v7156 = vmul.f32 %v7154, %v2125
    %v7157 = vadd.f32 %v7155, 1e-05
    %v7158 = vadd.f32 %v7156, 1e-05
    %v7159 = vrsqrt.pop %v7157
    %v7160 = vrsqrt.pop %v7158
    %v7161 = vmul.f32 %v7145, %v7159
    %v7162 = vmul.f32 %v7146, %v7160
    %v7163 = vlaneseq
    %v7164 = vshrl.u32 %v7163, 7
    %v7165 = vsub.s32 0, %v7164
    %v7166 = vrot.slane %v7135, %v7165
    %v7167 = vmul.f32 %v7161, %v7166
    %v7168 = vmul.f32 %v7162, %v7166
    %v7169 = vlaneseq
    %v7170 = vshrl.u32 %v7169, 7
    %v7171 = vsub.s32 0, %v7170
    %v7172 = vrot.slane %v7136, %v7171
    %v7173 = vadd.f32 %v7167, %v7172
    %v7174 = vadd.f32 %v7168, %v7172
    %v7175 = vadd.f32 %v7173, %v7173
    %v7176 = vadd.f32 %v7174, %v7174
    %v7177 = vld [vmem:[%s9 + $0x12] sm:$0x1]
    %v7178 = vld [vmem:[%s9 + $0x13] sm:$0x1]
    %v7179 = vsel %vm174, %v7175, 0.0
    %7180 = vadd.xlane.f32.xlu0 %v7179
    %v7181 = vpop.xlane.xlu0 %7180
    %v7182 = vsel %vm174, %v7176, 0.0
    %7183 = vadd.xlane.f32.xlu0 %v7182
    %v7184 = vpop.xlane.xlu0 %7183
    %v7185 = vmul.f32 %v7181, %v2125
    %v7186 = vmul.f32 %v7184, %v2125
    %v7187 = vsub.f32 %v7175, %v7185
    %v7188 = vsub.f32 %v7176, %v7186
    %v7189 = vmul.f32 %v7187, %v7187
    %v7190 = vmul.f32 %v7188, %v7188
    %v7191 = vsel %vm174, %v7189, 0.0
    %7192 = vadd.xlane.f32.xlu0 %v7191
    %v7193 = vpop.xlane.xlu0 %7192
    %v7194 = vsel %vm174, %v7190, 0.0
    %7195 = vadd.xlane.f32.xlu0 %v7194
    %v7196 = vpop.xlane.xlu0 %7195
    %v7197 = vmul.f32 %v7193, %v2125
    %v7198 = vmul.f32 %v7196, %v2125
    %v7199 = vadd.f32 %v7197, 1e-05
    %v7200 = vadd.f32 %v7198, 1e-05
    %v7201 = vrsqrt.pop %v7199
    %v7202 = vrsqrt.pop %v7200
    %v7203 = vmul.f32 %v7187, %v7201
    %v7204 = vmul.f32 %v7188, %v7202
    %v7205 = vlaneseq
    %v7206 = vshrl.u32 %v7205, 7
    %v7207 = vsub.s32 0, %v7206
    %v7208 = vrot.slane %v7177, %v7207
    %v7209 = vmul.f32 %v7203, %v7208
    %v7210 = vmul.f32 %v7204, %v7208
    %v7211 = vlaneseq
    %v7212 = vshrl.u32 %v7211, 7
    %v7213 = vsub.s32 0, %v7212
    %v7214 = vrot.slane %v7178, %v7213
    %v7215 = vadd.f32 %v7209, %v7214
    %v7216 = vadd.f32 %v7210, %v7214
    %7217 = vst.msk [vmem:[#allocation16] sm:$0xff] %vm174, %v7215
    %7218 = vst.msk [vmem:[#allocation16 + $0x8] sm:$0xff] %vm174, %v7216
    // Predicated region
    $region82: #{tpu_custom_call.1} parent=1 // pred_check
      _
    $region83: #{tpu_custom_call.1} parent=1 // pred_check_branch
      %7220 = sbr.rel (0) target = $region85
    $region84: #{tpu_custom_call.1} parent=1 // pred_region
      %s7222 = ssub.s32 256, 256
      %7223 = vsyncadd [#allocation4], %s7222
      %s7224 = sshll.u32 [#allocation16], 4
      %s7225 = int_to_ptr.vmem [resolvable:$true] %s7224
      %7230 = dma.vmem_to_hbm [thread:$0]  %s7225, 256, %s12, [#allocation4], 128, 128, 8
    $region85: #{tpu_custom_call.1} parent=1 // pred_fallthru
      _
    // Predicated region
    $region86: #{tpu_custom_call.1} parent=1 // pred_check
      _
    $region87: #{tpu_custom_call.1} parent=1 // pred_check_branch
      %7232 = sbr.rel (0) target = $region89
    $region88: #{tpu_custom_call.1} parent=1 // pred_region
      %7233 = dma.done [#allocation4], 256
    $region89: #{tpu_custom_call.1} parent=1 // pred_fallthru
      _
    %7234 = vsyncpa [#allocation3], 1
    %7235 = vsyncpa [#allocation6], 1
    %7236 = vsyncpa [#allocation9], 1
    %7237 = vsyncpa [#allocation12], 1
    %7238 = vsyncpa [#allocation15], 1
    %7239 = vsyncpa [#allocation4], 1

</llo_original>
